<compile_context>
chip_gen: v6e
topology: v6e:2x2x1
jax: 0.10.0
libtpu: 0.0.40
codegen_flags: <defaults>
</compile_context>

<pallas_src>
import math

import jax
import jax.numpy as jnp
import numpy as np
from jax.experimental import pallas as pl
from jax.experimental.pallas import tpu as pltpu

N_LEVELS = 4
LN_EPS = 1e-6
_F32 = jnp.float32
_HIGHEST = jax.lax.Precision.HIGHEST
_OFFS = [(dy, dx) for dy in (-1, 0, 1) for dx in (-1, 0, 1)]


def _gelu(x):
    # tanh-approximate GELU: ~5 VALU ops + 1 EUP tanh per element.
    # TODO(synk): torch nn.GELU() defaults to exact erf; max abs deviation ~1e-3.
    c = 0.7978845608028654  # sqrt(2/pi)
    return 0.5 * x * (1.0 + jnp.tanh(c * (x + 0.044715 * x * x * x)))


# ---------------------- host-side precomputed index structure ----------------------


def _build_shift_masks(h, w, b_tile, k):
    # (9, b_tile*h*w) f32 validity masks for the 9 (dy*k, dx*k) shifts on an h x w
    # image.  For level i (k = 2**i) this is exactly "the pooled-grid 3x3 neighbour
    # exists", evaluated at full resolution.
    P = h * w
    p = np.arange(P)
    y, x = p // w, p % w
    rows = []
    for dy, dx in _OFFS:
        valid = ((y + dy * k >= 0) & (y + dy * k < h) &
                 (x + dx * k >= 0) & (x + dx * k < w))
        rows.append(valid.astype(np.float32))
    m = np.stack(rows, axis=0)
    return jnp.asarray(np.tile(m, (1, b_tile)))


def _build_bfly_masks(h, w, b_tile):
    # (2*(N_LEVELS-1), b_tile*h*w) f32: row r      = 1.0 where bit r of x is 0,
    #                                   row NB + r = 1.0 where bit r of y is 0.
    # Used to pick the +d / -d partner in the butterfly block-max exchange.
    P = h * w
    p = np.arange(P)
    y, x = p // w, p % w
    rows = []
    for r in range(N_LEVELS - 1):
        rows.append((((x >> r) & 1) == 0).astype(np.float32))
    for r in range(N_LEVELS - 1):
        rows.append((((y >> r) & 1) == 0).astype(np.float32))
    m = np.stack(rows, axis=0)
    return jnp.asarray(np.tile(m, (1, b_tile)))


# --------------------------------- Pallas kernel ------------------------------------


def _make_kernel(C, H, W, chunk, ccm_dtype):
    NB = N_LEVELS - 1

    def shifted(v, d):
        # out[:, p] = v[:, p + d]; out-of-image / cross-sample wrap lanes are always
        # discarded by a precomputed mask at the use site, so roll wraparound is safe.
        lanes = v.shape[1]
        if d == 0:
            return v
        if lanes % 128 == 0:
            return pltpu.roll(v, (-d) % lanes, axis=1)     # XLU slot, not VALU/ld-st
        if d > 0:
            return jnp.concatenate([v[:, d:], jnp.zeros((v.shape[0], d), v.dtype)], axis=1)
        return jnp.concatenate([jnp.zeros((v.shape[0], -d), v.dtype), v[:, :d]], axis=1)

    def kernel(x_ref,
               m0_ref, m1_ref, m2_ref, m3_ref, bfly_ref,
               ln1w_ref, ln1b_ref, ln2w_ref, ln2b_ref,
               dww_ref, dwb_ref, aggrw_ref, aggrb_ref,
               c1w_ref, c1b_ref, c2w_ref, c2b_ref,
               o_ref,
               s_acc_ref, ccm_ref):
        mask_refs = (m0_ref, m1_ref, m2_ref, m3_ref)

        x = x_ref[0].astype(_F32)                                    # (C, L)

        def layernorm(v, w_ref, b_ref):
            u = jnp.mean(v, axis=0, keepdims=True)
            var = jnp.mean((v - u) ** 2, axis=0, keepdims=True)
            return w_ref[...] * ((v - u) * jax.lax.rsqrt(var + LN_EPS)) + b_ref[...]

        def dwconv(v, lvl, k, masks9):
            # Depthwise 3x3, padding=1, on the level-`lvl` pooled grid, evaluated at
            # full resolution: pooled tap (dy, dx) == shift of (dy*k*W + dx*k) lanes
            # on the nearest-upsampled block-max image, with precomputed validity.
            acc = dwb_ref[lvl] + jnp.zeros_like(v)
            for t, (dy, dx) in enumerate(_OFFS):
                m = masks9[t:t + 1, :]
                acc = acc + dww_ref[lvl * 9 + t] * (m * shifted(v, dy * k * W + dx * k))
            return acc

        # ---------------- branch 1: x = SAFM(norm1(x)) + x ----------------
        xn = layernorm(x, ln1w_ref, ln1b_ref)
        masks_full = m0_ref[...]                                     # (9, L)
        bfly = bfly_ref[...]                                         # (2*NB, L)
        bfly_c = 1.0 - bfly

        for i in range(N_LEVELS):
            xc = xn[i * chunk:(i + 1) * chunk, :]
            if i == 0:
                s = dwconv(xc, 0, 1, masks_full)
            else:
                k = 2 ** i
                # k x k block max, replicated at full resolution, via a butterfly
                # max-exchange (partners never cross image / sample boundaries since
                # H, W are multiples of k): rolls hit the XLU, blend/max hit the VPU.
                v = xc
                for r in range(i):                                   # x direction
                    d = 1 << r
                    part = (bfly[r:r + 1, :] * shifted(v, d)
                            + bfly_c[r:r + 1, :] * shifted(v, -d))
                    v = jnp.maximum(v, part)
                for r in range(i):                                   # y direction
                    d = (1 << r) * W
                    part = (bfly[NB + r:NB + r + 1, :] * shifted(v, d)
                            + bfly_c[NB + r:NB + r + 1, :] * shifted(v, -d))
                    v = jnp.maximum(v, part)
                s = dwconv(v, i, k, mask_refs[i][...])
            s_acc_ref[i * chunk:(i + 1) * chunk, :] = s              # stage for fused 1x1

        # single fused K=C aggregation matmul (bf16 operands, f32 accumulation)
        aggr = jnp.dot(aggrw_ref[...], s_acc_ref[...].astype(jnp.bfloat16),
                       preferred_element_type=_F32) + aggrb_ref[...]
        x = _gelu(aggr) * xn + x

        # ---------------- branch 2: x = CCM(norm2(x)) + x ----------------
        x2 = layernorm(x, ln2w_ref, ln2b_ref)
        for t, (dy, dx) in enumerate(_OFFS):
            m = masks_full[t:t + 1, :]
            ccm_ref[t * C:(t + 1) * C, :] = (m * shifted(x2, dy * W + dx)).astype(ccm_dtype)
        stacked = ccm_ref[...]
        if stacked.dtype != jnp.bfloat16:
            stacked = stacked.astype(jnp.bfloat16)
        h1 = jnp.dot(c1w_ref[...], stacked,
                     preferred_element_type=_F32) + c1b_ref[...]     # K = 9*C, one pass
        h1 = _gelu(h1)
        y = jnp.dot(c2w_ref[...], h1.astype(jnp.bfloat16),
                    preferred_element_type=_F32) + c2b_ref[...]

        o_ref[0] = (x + y).astype(o_ref.dtype)

    return kernel


def attblock_pallas(x, params, b_tile=None):
    N, C, H, W = x.shape
    HW = H * W
    assert C % N_LEVELS == 0, "dim must be divisible by n_levels=4"
    chunk = C // N_LEVELS
    kmax = 2 ** (N_LEVELS - 1)
    assert H % kmax == 0 and W % kmax == 0, "H, W must be divisible by 2**(n_levels-1)"

    if b_tile is None:
        # v7x: keep G >= 2 so both TensorCores get grid steps; on v5e/v6e the extra
        # step costs ~0.35us while the lane dim stays long (good MXU N / lane util).
        b_tile = N // 2 if N % 2 == 0 else N
    assert N % b_tile == 0
    G = N // b_tile
    L = b_tile * HW

    # pack b_tile samples along lanes: (N, C, H, W) -> (G, C, b_tile*HW)
    xf = x.reshape(G, b_tile, C, HW).transpose(0, 2, 1, 3).reshape(G, C, L)

    # grid-invariant index structure, precomputed on host (all O(L), no O(L^2) terms)
    consts = [_build_shift_masks(H, W, b_tile, 2 ** i) for i in range(N_LEVELS)]
    consts.append(_build_bfly_masks(H, W, b_tile))

    ccm_dtype = jnp.bfloat16 if C % 16 == 0 else jnp.float32
    ccm_itemsize = 2 if ccm_dtype == jnp.bfloat16 else 4

    param_list = [
        params["ln1_w"], params["ln1_b"], params["ln2_w"], params["ln2_b"],
        params["dw_w9"], params["dw_b"],
        params["aggr_w"].astype(jnp.bfloat16), params["aggr_b"],
        params["c1w_flat"].astype(jnp.bfloat16), params["c1b"],
        params["c2w"].astype(jnp.bfloat16), params["c2b"],
    ]

    kernel = _make_kernel(C, H, W, chunk, ccm_dtype)

    def bcast_spec(arr):
        nd = arr.ndim
        return pl.BlockSpec(arr.shape, lambda g, _nd=nd: (0,) * _nd)

    # scoped-VMEM budget sized from the real operand set (defaults are 16/32 MiB).
    def nbytes(a):
        return int(np.prod(a.shape)) * a.dtype.itemsize
    vmem_need = 4 * C * L * 4                                    # in + out, double-buffered
    vmem_need += 2 * sum(nbytes(a) for a in consts)              # invariant masks
    vmem_need += 2 * sum(nbytes(a) for a in param_list)          # weights / biases
    vmem_need += C * L * 4 + 9 * C * L * ccm_itemsize            # scratch
    vmem_limit = int(min(max(2 * vmem_need + (8 << 20), 16 << 20), 48 << 20))

    out = pl.pallas_call(
        kernel,
        out_shape=jax.ShapeDtypeStruct((G, C, L), jnp.float32),
        grid_spec=pltpu.PrefetchScalarGridSpec(
            num_scalar_prefetch=0,
            grid=(G,),
            in_specs=[pl.BlockSpec((1, C, L), lambda g: (g, 0, 0))]
                     + [bcast_spec(a) for a in consts]
                     + [bcast_spec(p) for p in param_list],
            out_specs=pl.BlockSpec((1, C, L), lambda g: (g, 0, 0)),
            scratch_shapes=[pltpu.VMEM((C, L), jnp.float32),       # staged SAFM levels
                            pltpu.VMEM((9 * C, L), ccm_dtype)],    # CCM 9-tap stack
        ),
        compiler_params=pltpu.CompilerParams(
            dimension_semantics=("parallel",),
            vmem_limit_bytes=vmem_limit),
    )(xf, *consts, *param_list)

    return out.reshape(G, C, b_tile, HW).transpose(0, 2, 1, 3).reshape(N, C, H, W)


# ------------------------- deterministic parameter init -----------------------------


def init_params(key, dim, ffn_scale=2.0):
    chunk = dim // N_LEVELS
    hidden = int(dim * ffn_scale)
    ks = jax.random.split(key, 12)
    dw_full = 0.2 * jax.random.normal(ks[0], (N_LEVELS, chunk, 3, 3), jnp.float32)
    dw_b = 0.1 * jax.random.normal(ks[1], (N_LEVELS, chunk), jnp.float32)
    aggr_w = (1.0 / math.sqrt(dim)) * jax.random.normal(ks[2], (dim, dim), jnp.float32)
    aggr_b = 0.1 * jax.random.normal(ks[3], (dim,), jnp.float32)
    c1_full = (1.0 / math.sqrt(dim * 9)) * jax.random.normal(ks[4], (hidden, dim, 3, 3), jnp.float32)
    c1_b = 0.1 * jax.random.normal(ks[5], (hidden,), jnp.float32)
    c2_w = (1.0 / math.sqrt(hidden)) * jax.random.normal(ks[6], (dim, hidden), jnp.float32)
    c2_b = 0.1 * jax.random.normal(ks[7], (dim,), jnp.float32)
    ln1_w = 1.0 + 0.1 * jax.random.normal(ks[8], (dim,), jnp.float32)
    ln1_b = 0.1 * jax.random.normal(ks[9], (dim,), jnp.float32)
    ln2_w = 1.0 + 0.1 * jax.random.normal(ks[10], (dim,), jnp.float32)
    ln2_b = 0.1 * jax.random.normal(ks[11], (dim,), jnp.float32)

    # kernel-side layouts:
    # dw_w9[l*9 + (ky*3+kx), c, 0] = dw_full[l, c, ky, kx]
    dw_w9 = dw_full.reshape(N_LEVELS, chunk, 9).transpose(0, 2, 1).reshape(N_LEVELS * 9, chunk)[..., None]
    # c1w_flat[o, (ky*3+kx)*dim + c] = c1_full[o, c, ky, kx]
    c1w_flat = (c1_full.transpose(2, 3, 0, 1).reshape(9, hidden, dim)
                        .transpose(1, 0, 2).reshape(hidden, 9 * dim))

    return dict(
        ln1_w=ln1_w[:, None], ln1_b=ln1_b[:, None],
        ln2_w=ln2_w[:, None], ln2_b=ln2_b[:, None],
        dw_full=dw_full, dw_w9=dw_w9, dw_b=dw_b[..., None],
        aggr_w=aggr_w, aggr_b=aggr_b[:, None],
        c1_full=c1_full, c1w_flat=c1w_flat, c1b=c1_b[:, None],
        c2w=c2_w, c2b=c2_b[:, None],
    )


# ------------------------------ pure-JAX reference ----------------------------------


def _gelu_exact(x):
    return 0.5 * x * (1.0 + jax.lax.erf(x * 0.7071067811865476))


def attblock_reference(x, params):
    N, C, H, W = x.shape
    chunk = C // N_LEVELS

    def layernorm_cf(v, w, b):
        u = jnp.mean(v, axis=1, keepdims=True)
        s = jnp.mean((v - u) ** 2, axis=1, keepdims=True)
        vn = (v - u) / jnp.sqrt(s + LN_EPS)
        return w[None, :, None, None] * vn + b[None, :, None, None]

    def conv2d(v, w, b, pad, groups=1):
        out = jax.lax.conv_general_dilated(
            v, w, (1, 1), [(pad, pad), (pad, pad)],
            dimension_numbers=("NCHW", "OIHW", "NCHW"),
            feature_group_count=groups, precision=_HIGHEST)
        return out + b[None, :, None, None]

    xn = layernorm_cf(x, params["ln1_w"][:, 0], params["ln1_b"][:, 0])
    outs = []
    for i in range(N_LEVELS):
        xc = xn[:, i * chunk:(i + 1) * chunk]
        wdw = params["dw_full"][i][:, None, :, :]
        bdw = params["dw_b"][i, :, 0]
        if i == 0:
            s = conv2d(xc, wdw, bdw, 1, groups=chunk)
        else:
            k = 2 ** i
            pooled = jax.lax.reduce_window(xc, -jnp.inf, jax.lax.max,
                                           (1, 1, k, k), (1, 1, k, k), "VALID")
            s = conv2d(pooled, wdw, bdw, 1, groups=chunk)
            s = jnp.repeat(jnp.repeat(s, k, axis=2), k, axis=3)
        outs.append(s)
    cat = jnp.concatenate(outs, axis=1)
    aggr = conv2d(cat, params["aggr_w"][:, :, None, None], params["aggr_b"][:, 0], 0)
    x = _gelu_exact(aggr) * xn + x

    x2 = layernorm_cf(x, params["ln2_w"][:, 0], params["ln2_b"][:, 0])
    h1 = _gelu_exact(conv2d(x2, params["c1_full"], params["c1b"][:, 0], 1))
    y = conv2d(h1, params["c2w"][:, :, None, None], params["c2b"][:, 0], 0)
    return x + y


if __name__ == "__main__":
    dim, H, W, N = 32, 16, 16, 4   # dim % 4 == 0, H, W % 8 == 0
    key = jax.random.PRNGKey(0)
    kx, kp = jax.random.split(key)
    x = jax.random.normal(kx, (N, dim, H, W), jnp.float32)
    params = init_params(kp, dim, ffn_scale=2.0)

    out = attblock_pallas(x, params)          # b_tile=2 -> grid=(2,), both v7x TCs busy
    out = jax.block_until_ready(out)

    ref = attblock_reference(x, params)
    # bf16 MXU operands (f32 accumulation) + tanh-GELU vs. exact erf reference
    np.testing.assert_allclose(np.asarray(out), np.asarray(ref), rtol=2e-2, atol=2e-2)

    print("KERNEL_OK")
</pallas_src>

<mosaic_0001>
module attributes {stable_mosaic.version = 11 : i64} {
  func.func @kernel(%arg0: i32, %arg1: memref<1x32x512xf32, #tpu.memory_space<vmem>>, %arg2: memref<9x512xf32, #tpu.memory_space<vmem>>, %arg3: memref<9x512xf32, #tpu.memory_space<vmem>>, %arg4: memref<9x512xf32, #tpu.memory_space<vmem>>, %arg5: memref<9x512xf32, #tpu.memory_space<vmem>>, %arg6: memref<6x512xf32, #tpu.memory_space<vmem>>, %arg7: memref<32x1xf32, #tpu.memory_space<vmem>>, %arg8: memref<32x1xf32, #tpu.memory_space<vmem>>, %arg9: memref<32x1xf32, #tpu.memory_space<vmem>>, %arg10: memref<32x1xf32, #tpu.memory_space<vmem>>, %arg11: memref<36x8x1xf32, #tpu.memory_space<vmem>>, %arg12: memref<4x8x1xf32, #tpu.memory_space<vmem>>, %arg13: memref<32x32xbf16, #tpu.memory_space<vmem>>, %arg14: memref<32x1xf32, #tpu.memory_space<vmem>>, %arg15: memref<64x288xbf16, #tpu.memory_space<vmem>>, %arg16: memref<64x1xf32, #tpu.memory_space<vmem>>, %arg17: memref<32x64xbf16, #tpu.memory_space<vmem>>, %arg18: memref<32x1xf32, #tpu.memory_space<vmem>>, %arg19: memref<1x32x512xf32, #tpu.memory_space<vmem>>, %arg20: memref<32x512xf32, #tpu.memory_space<vmem>>, %arg21: memref<288x512xbf16, #tpu.memory_space<vmem>>) attributes {dimension_semantics = [#tpu.dimension_semantics<parallel>], iteration_bounds = array<i64: 2>, scalar_prefetch = 0 : i64, scratch_operands = 2 : i64, tpu.core_type = #tpu.core_type<tc>, window_params = [{transform_indices = @transform_0, window_bounds = array<i64: 1, 32, 512>}, {pipeline_mode = #tpu.pipeline_mode<synchronous>, transform_indices = @transform_1, window_bounds = array<i64: 9, 512>}, {pipeline_mode = #tpu.pipeline_mode<synchronous>, transform_indices = @transform_2, window_bounds = array<i64: 9, 512>}, {pipeline_mode = #tpu.pipeline_mode<synchronous>, transform_indices = @transform_3, window_bounds = array<i64: 9, 512>}, {pipeline_mode = #tpu.pipeline_mode<synchronous>, transform_indices = @transform_4, window_bounds = array<i64: 9, 512>}, {pipeline_mode = #tpu.pipeline_mode<synchronous>, transform_indices = @transform_5, window_bounds = array<i64: 6, 512>}, {pipeline_mode = #tpu.pipeline_mode<synchronous>, transform_indices = @transform_6, window_bounds = array<i64: 32, 1>}, {pipeline_mode = #tpu.pipeline_mode<synchronous>, transform_indices = @transform_7, window_bounds = array<i64: 32, 1>}, {pipeline_mode = #tpu.pipeline_mode<synchronous>, transform_indices = @transform_8, window_bounds = array<i64: 32, 1>}, {pipeline_mode = #tpu.pipeline_mode<synchronous>, transform_indices = @transform_9, window_bounds = array<i64: 32, 1>}, {pipeline_mode = #tpu.pipeline_mode<synchronous>, transform_indices = @transform_10, window_bounds = array<i64: 36, 8, 1>}, {pipeline_mode = #tpu.pipeline_mode<synchronous>, transform_indices = @transform_11, window_bounds = array<i64: 4, 8, 1>}, {pipeline_mode = #tpu.pipeline_mode<synchronous>, transform_indices = @transform_12, window_bounds = array<i64: 32, 32>}, {pipeline_mode = #tpu.pipeline_mode<synchronous>, transform_indices = @transform_13, window_bounds = array<i64: 32, 1>}, {pipeline_mode = #tpu.pipeline_mode<synchronous>, transform_indices = @transform_14, window_bounds = array<i64: 64, 288>}, {pipeline_mode = #tpu.pipeline_mode<synchronous>, transform_indices = @transform_15, window_bounds = array<i64: 64, 1>}, {pipeline_mode = #tpu.pipeline_mode<synchronous>, transform_indices = @transform_16, window_bounds = array<i64: 32, 64>}, {pipeline_mode = #tpu.pipeline_mode<synchronous>, transform_indices = @transform_17, window_bounds = array<i64: 32, 1>}, {transform_indices = @transform_18, window_bounds = array<i64: 1, 32, 512>}]} {
    %c0 = arith.constant 0 : index
    %c0_0 = arith.constant 0 : index
    %c0_1 = arith.constant 0 : index
    %0 = vector.load %arg1[%c0, %c0_0, %c0_1] : memref<1x32x512xf32, #tpu.memory_space<vmem>>, vector<1x32x512xf32>
    %1 = vector.shape_cast %0 : vector<1x32x512xf32> to vector<32x512xf32>
    %cst = arith.constant dense<0.000000e+00> : vector<512xf32>
    %2 = vector.multi_reduction <add>, %1, %cst [0] : vector<32x512xf32> to vector<512xf32>
    %3 = vector.shape_cast %2 : vector<512xf32> to vector<1x512xf32>
    %cst_2 = arith.constant 3.200000e+01 : f32
    %4 = vector.broadcast %cst_2 : f32 to vector<1x512xf32>
    %5 = arith.divf %3, %4 : vector<1x512xf32>
    %6 = vector.broadcast %5 : vector<1x512xf32> to vector<32x512xf32>
    %7 = arith.subf %1, %6 : vector<32x512xf32>
    %8 = arith.mulf %7, %7 : vector<32x512xf32>
    %cst_3 = arith.constant dense<0.000000e+00> : vector<512xf32>
    %9 = vector.multi_reduction <add>, %8, %cst_3 [0] : vector<32x512xf32> to vector<512xf32>
    %10 = vector.shape_cast %9 : vector<512xf32> to vector<1x512xf32>
    %cst_4 = arith.constant 3.200000e+01 : f32
    %11 = vector.broadcast %cst_4 : f32 to vector<1x512xf32>
    %12 = arith.divf %10, %11 : vector<1x512xf32>
    %c0_5 = arith.constant 0 : index
    %c0_6 = arith.constant 0 : index
    %13 = vector.load %arg7[%c0_5, %c0_6] : memref<32x1xf32, #tpu.memory_space<vmem>>, vector<32x1xf32>
    %14 = vector.broadcast %5 : vector<1x512xf32> to vector<32x512xf32>
    %15 = arith.subf %1, %14 : vector<32x512xf32>
    %cst_7 = arith.constant 9.99999997E-7 : f32
    %16 = vector.broadcast %cst_7 : f32 to vector<1x512xf32>
    %17 = arith.addf %12, %16 : vector<1x512xf32>
    %18 = math.rsqrt %17 : vector<1x512xf32>
    %19 = vector.broadcast %18 : vector<1x512xf32> to vector<32x512xf32>
    %20 = arith.mulf %15, %19 : vector<32x512xf32>
    %21 = vector.broadcast %13 : vector<32x1xf32> to vector<32x512xf32>
    %22 = arith.mulf %21, %20 : vector<32x512xf32>
    %c0_8 = arith.constant 0 : index
    %c0_9 = arith.constant 0 : index
    %23 = vector.load %arg8[%c0_8, %c0_9] : memref<32x1xf32, #tpu.memory_space<vmem>>, vector<32x1xf32>
    %24 = vector.broadcast %23 : vector<32x1xf32> to vector<32x512xf32>
    %25 = arith.addf %22, %24 : vector<32x512xf32>
    %c0_10 = arith.constant 0 : index
    %c0_11 = arith.constant 0 : index
    %26 = vector.load %arg2[%c0_10, %c0_11] : memref<9x512xf32, #tpu.memory_space<vmem>>, vector<9x512xf32>
    %c0_12 = arith.constant 0 : index
    %c0_13 = arith.constant 0 : index
    %27 = vector.load %arg6[%c0_12, %c0_13] : memref<6x512xf32, #tpu.memory_space<vmem>>, vector<6x512xf32>
    %cst_14 = arith.constant 1.000000e+00 : f32
    %28 = vector.broadcast %cst_14 : f32 to vector<6x512xf32>
    %29 = arith.subf %28, %27 : vector<6x512xf32>
    %30 = vector.extract_strided_slice %25 {offsets = [0, 0], sizes = [8, 512], strides = [1, 1]} : vector<32x512xf32> to vector<8x512xf32>
    %c0_15 = arith.constant 0 : index
    %c0_16 = arith.constant 0 : index
    %c0_17 = arith.constant 0 : index
    %31 = vector.load %arg12[%c0_15, %c0_16, %c0_17] : memref<4x8x1xf32, #tpu.memory_space<vmem>>, vector<1x8x1xf32>
    %32 = vector.shape_cast %31 : vector<1x8x1xf32> to vector<8x1xf32>
    %cst_18 = arith.constant 0.000000e+00 : f32
    %33 = vector.broadcast %cst_18 : f32 to vector<8x512xf32>
    %34 = vector.broadcast %32 : vector<8x1xf32> to vector<8x512xf32>
    %35 = arith.addf %34, %33 : vector<8x512xf32>
    %36 = vector.extract_strided_slice %26 {offsets = [0, 0], sizes = [1, 512], strides = [1, 1]} : vector<9x512xf32> to vector<1x512xf32>
    %c0_19 = arith.constant 0 : index
    %c0_20 = arith.constant 0 : index
    %c0_21 = arith.constant 0 : index
    %37 = vector.load %arg11[%c0_19, %c0_20, %c0_21] : memref<36x8x1xf32, #tpu.memory_space<vmem>>, vector<1x8x1xf32>
    %38 = vector.shape_cast %37 : vector<1x8x1xf32> to vector<8x1xf32>
    %c17_i32 = arith.constant 17 : i32
    %39 = tpu.dynamic_rotate %30 by %c17_i32 dim 1 : vector<8x512xf32>, i32 -> vector<8x512xf32>
    %40 = vector.broadcast %36 : vector<1x512xf32> to vector<8x512xf32>
    %41 = arith.mulf %40, %39 : vector<8x512xf32>
    %42 = vector.broadcast %38 : vector<8x1xf32> to vector<8x512xf32>
    %43 = arith.mulf %42, %41 : vector<8x512xf32>
    %44 = arith.addf %35, %43 : vector<8x512xf32>
    %45 = vector.extract_strided_slice %26 {offsets = [1, 0], sizes = [1, 512], strides = [1, 1]} : vector<9x512xf32> to vector<1x512xf32>
    %c1 = arith.constant 1 : index
    %c0_22 = arith.constant 0 : index
    %c0_23 = arith.constant 0 : index
    %46 = vector.load %arg11[%c1, %c0_22, %c0_23] : memref<36x8x1xf32, #tpu.memory_space<vmem>>, vector<1x8x1xf32>
    %47 = vector.shape_cast %46 : vector<1x8x1xf32> to vector<8x1xf32>
    %c16_i32 = arith.constant 16 : i32
    %48 = tpu.dynamic_rotate %30 by %c16_i32 dim 1 : vector<8x512xf32>, i32 -> vector<8x512xf32>
    %49 = vector.broadcast %45 : vector<1x512xf32> to vector<8x512xf32>
    %50 = arith.mulf %49, %48 : vector<8x512xf32>
    %51 = vector.broadcast %47 : vector<8x1xf32> to vector<8x512xf32>
    %52 = arith.mulf %51, %50 : vector<8x512xf32>
    %53 = arith.addf %44, %52 : vector<8x512xf32>
    %54 = vector.extract_strided_slice %26 {offsets = [2, 0], sizes = [1, 512], strides = [1, 1]} : vector<9x512xf32> to vector<1x512xf32>
    %c2 = arith.constant 2 : index
    %c0_24 = arith.constant 0 : index
    %c0_25 = arith.constant 0 : index
    %55 = vector.load %arg11[%c2, %c0_24, %c0_25] : memref<36x8x1xf32, #tpu.memory_space<vmem>>, vector<1x8x1xf32>
    %56 = vector.shape_cast %55 : vector<1x8x1xf32> to vector<8x1xf32>
    %c15_i32 = arith.constant 15 : i32
    %57 = tpu.dynamic_rotate %30 by %c15_i32 dim 1 : vector<8x512xf32>, i32 -> vector<8x512xf32>
    %58 = vector.broadcast %54 : vector<1x512xf32> to vector<8x512xf32>
    %59 = arith.mulf %58, %57 : vector<8x512xf32>
    %60 = vector.broadcast %56 : vector<8x1xf32> to vector<8x512xf32>
    %61 = arith.mulf %60, %59 : vector<8x512xf32>
    %62 = arith.addf %53, %61 : vector<8x512xf32>
    %63 = vector.extract_strided_slice %26 {offsets = [3, 0], sizes = [1, 512], strides = [1, 1]} : vector<9x512xf32> to vector<1x512xf32>
    %c3 = arith.constant 3 : index
    %c0_26 = arith.constant 0 : index
    %c0_27 = arith.constant 0 : index
    %64 = vector.load %arg11[%c3, %c0_26, %c0_27] : memref<36x8x1xf32, #tpu.memory_space<vmem>>, vector<1x8x1xf32>
    %65 = vector.shape_cast %64 : vector<1x8x1xf32> to vector<8x1xf32>
    %c1_i32 = arith.constant 1 : i32
    %66 = tpu.dynamic_rotate %30 by %c1_i32 dim 1 : vector<8x512xf32>, i32 -> vector<8x512xf32>
    %67 = vector.broadcast %63 : vector<1x512xf32> to vector<8x512xf32>
    %68 = arith.mulf %67, %66 : vector<8x512xf32>
    %69 = vector.broadcast %65 : vector<8x1xf32> to vector<8x512xf32>
    %70 = arith.mulf %69, %68 : vector<8x512xf32>
    %71 = arith.addf %62, %70 : vector<8x512xf32>
    %72 = vector.extract_strided_slice %26 {offsets = [4, 0], sizes = [1, 512], strides = [1, 1]} : vector<9x512xf32> to vector<1x512xf32>
    %c4 = arith.constant 4 : index
    %c0_28 = arith.constant 0 : index
    %c0_29 = arith.constant 0 : index
    %73 = vector.load %arg11[%c4, %c0_28, %c0_29] : memref<36x8x1xf32, #tpu.memory_space<vmem>>, vector<1x8x1xf32>
    %74 = vector.shape_cast %73 : vector<1x8x1xf32> to vector<8x1xf32>
    %75 = vector.broadcast %72 : vector<1x512xf32> to vector<8x512xf32>
    %76 = arith.mulf %75, %30 : vector<8x512xf32>
    %77 = vector.broadcast %74 : vector<8x1xf32> to vector<8x512xf32>
    %78 = arith.mulf %77, %76 : vector<8x512xf32>
    %79 = arith.addf %71, %78 : vector<8x512xf32>
    %80 = vector.extract_strided_slice %26 {offsets = [5, 0], sizes = [1, 512], strides = [1, 1]} : vector<9x512xf32> to vector<1x512xf32>
    %c5 = arith.constant 5 : index
    %c0_30 = arith.constant 0 : index
    %c0_31 = arith.constant 0 : index
    %81 = vector.load %arg11[%c5, %c0_30, %c0_31] : memref<36x8x1xf32, #tpu.memory_space<vmem>>, vector<1x8x1xf32>
    %82 = vector.shape_cast %81 : vector<1x8x1xf32> to vector<8x1xf32>
    %c511_i32 = arith.constant 511 : i32
    %83 = tpu.dynamic_rotate %30 by %c511_i32 dim 1 : vector<8x512xf32>, i32 -> vector<8x512xf32>
    %84 = vector.broadcast %80 : vector<1x512xf32> to vector<8x512xf32>
    %85 = arith.mulf %84, %83 : vector<8x512xf32>
    %86 = vector.broadcast %82 : vector<8x1xf32> to vector<8x512xf32>
    %87 = arith.mulf %86, %85 : vector<8x512xf32>
    %88 = arith.addf %79, %87 : vector<8x512xf32>
    %89 = vector.extract_strided_slice %26 {offsets = [6, 0], sizes = [1, 512], strides = [1, 1]} : vector<9x512xf32> to vector<1x512xf32>
    %c6 = arith.constant 6 : index
    %c0_32 = arith.constant 0 : index
    %c0_33 = arith.constant 0 : index
    %90 = vector.load %arg11[%c6, %c0_32, %c0_33] : memref<36x8x1xf32, #tpu.memory_space<vmem>>, vector<1x8x1xf32>
    %91 = vector.shape_cast %90 : vector<1x8x1xf32> to vector<8x1xf32>
    %c497_i32 = arith.constant 497 : i32
    %92 = tpu.dynamic_rotate %30 by %c497_i32 dim 1 : vector<8x512xf32>, i32 -> vector<8x512xf32>
    %93 = vector.broadcast %89 : vector<1x512xf32> to vector<8x512xf32>
    %94 = arith.mulf %93, %92 : vector<8x512xf32>
    %95 = vector.broadcast %91 : vector<8x1xf32> to vector<8x512xf32>
    %96 = arith.mulf %95, %94 : vector<8x512xf32>
    %97 = arith.addf %88, %96 : vector<8x512xf32>
    %98 = vector.extract_strided_slice %26 {offsets = [7, 0], sizes = [1, 512], strides = [1, 1]} : vector<9x512xf32> to vector<1x512xf32>
    %c7 = arith.constant 7 : index
    %c0_34 = arith.constant 0 : index
    %c0_35 = arith.constant 0 : index
    %99 = vector.load %arg11[%c7, %c0_34, %c0_35] : memref<36x8x1xf32, #tpu.memory_space<vmem>>, vector<1x8x1xf32>
    %100 = vector.shape_cast %99 : vector<1x8x1xf32> to vector<8x1xf32>
    %c496_i32 = arith.constant 496 : i32
    %101 = tpu.dynamic_rotate %30 by %c496_i32 dim 1 : vector<8x512xf32>, i32 -> vector<8x512xf32>
    %102 = vector.broadcast %98 : vector<1x512xf32> to vector<8x512xf32>
    %103 = arith.mulf %102, %101 : vector<8x512xf32>
    %104 = vector.broadcast %100 : vector<8x1xf32> to vector<8x512xf32>
    %105 = arith.mulf %104, %103 : vector<8x512xf32>
    %106 = arith.addf %97, %105 : vector<8x512xf32>
    %107 = vector.extract_strided_slice %26 {offsets = [8, 0], sizes = [1, 512], strides = [1, 1]} : vector<9x512xf32> to vector<1x512xf32>
    %c8 = arith.constant 8 : index
    %c0_36 = arith.constant 0 : index
    %c0_37 = arith.constant 0 : index
    %108 = vector.load %arg11[%c8, %c0_36, %c0_37] : memref<36x8x1xf32, #tpu.memory_space<vmem>>, vector<1x8x1xf32>
    %109 = vector.shape_cast %108 : vector<1x8x1xf32> to vector<8x1xf32>
    %c495_i32 = arith.constant 495 : i32
    %110 = tpu.dynamic_rotate %30 by %c495_i32 dim 1 : vector<8x512xf32>, i32 -> vector<8x512xf32>
    %111 = vector.broadcast %107 : vector<1x512xf32> to vector<8x512xf32>
    %112 = arith.mulf %111, %110 : vector<8x512xf32>
    %113 = vector.broadcast %109 : vector<8x1xf32> to vector<8x512xf32>
    %114 = arith.mulf %113, %112 : vector<8x512xf32>
    %115 = arith.addf %106, %114 : vector<8x512xf32>
    %c0_38 = arith.constant 0 : index
    %c0_39 = arith.constant 0 : index
    %116 = vector.load %arg20[%c0_38, %c0_39] : memref<32x512xf32, #tpu.memory_space<vmem>>, vector<8x512xf32>
    tpu.vector_store %arg20[%c0_38, %c0_39], %115 {strides = array<i32>} : memref<32x512xf32, #tpu.memory_space<vmem>>, vector<8x512xf32>,
    %117 = vector.extract_strided_slice %25 {offsets = [8, 0], sizes = [8, 512], strides = [1, 1]} : vector<32x512xf32> to vector<8x512xf32>
    %118 = vector.extract_strided_slice %27 {offsets = [0, 0], sizes = [1, 512], strides = [1, 1]} : vector<6x512xf32> to vector<1x512xf32>
    %c511_i32_40 = arith.constant 511 : i32
    %119 = tpu.dynamic_rotate %117 by %c511_i32_40 dim 1 : vector<8x512xf32>, i32 -> vector<8x512xf32>
    %120 = vector.broadcast %118 : vector<1x512xf32> to vector<8x512xf32>
    %121 = arith.mulf %120, %119 : vector<8x512xf32>
    %122 = vector.extract_strided_slice %29 {offsets = [0, 0], sizes = [1, 512], strides = [1, 1]} : vector<6x512xf32> to vector<1x512xf32>
    %c1_i32_41 = arith.constant 1 : i32
    %123 = tpu.dynamic_rotate %117 by %c1_i32_41 dim 1 : vector<8x512xf32>, i32 -> vector<8x512xf32>
    %124 = vector.broadcast %122 : vector<1x512xf32> to vector<8x512xf32>
    %125 = arith.mulf %124, %123 : vector<8x512xf32>
    %126 = arith.addf %121, %125 : vector<8x512xf32>
    %127 = arith.maximumf %117, %126 : vector<8x512xf32>
    %128 = vector.extract_strided_slice %27 {offsets = [3, 0], sizes = [1, 512], strides = [1, 1]} : vector<6x512xf32> to vector<1x512xf32>
    %c496_i32_42 = arith.constant 496 : i32
    %129 = tpu.dynamic_rotate %127 by %c496_i32_42 dim 1 : vector<8x512xf32>, i32 -> vector<8x512xf32>
    %130 = vector.broadcast %128 : vector<1x512xf32> to vector<8x512xf32>
    %131 = arith.mulf %130, %129 : vector<8x512xf32>
    %132 = vector.extract_strided_slice %29 {offsets = [3, 0], sizes = [1, 512], strides = [1, 1]} : vector<6x512xf32> to vector<1x512xf32>
    %c16_i32_43 = arith.constant 16 : i32
    %133 = tpu.dynamic_rotate %127 by %c16_i32_43 dim 1 : vector<8x512xf32>, i32 -> vector<8x512xf32>
    %134 = vector.broadcast %132 : vector<1x512xf32> to vector<8x512xf32>
    %135 = arith.mulf %134, %133 : vector<8x512xf32>
    %136 = arith.addf %131, %135 : vector<8x512xf32>
    %137 = arith.maximumf %127, %136 : vector<8x512xf32>
    %c0_44 = arith.constant 0 : index
    %c0_45 = arith.constant 0 : index
    %138 = vector.load %arg3[%c0_44, %c0_45] : memref<9x512xf32, #tpu.memory_space<vmem>>, vector<9x512xf32>
    %c1_46 = arith.constant 1 : index
    %c0_47 = arith.constant 0 : index
    %c0_48 = arith.constant 0 : index
    %139 = vector.load %arg12[%c1_46, %c0_47, %c0_48] : memref<4x8x1xf32, #tpu.memory_space<vmem>>, vector<1x8x1xf32>
    %140 = vector.shape_cast %139 : vector<1x8x1xf32> to vector<8x1xf32>
    %cst_49 = arith.constant 0.000000e+00 : f32
    %141 = vector.broadcast %cst_49 : f32 to vector<8x512xf32>
    %142 = vector.broadcast %140 : vector<8x1xf32> to vector<8x512xf32>
    %143 = arith.addf %142, %141 : vector<8x512xf32>
    %144 = vector.extract_strided_slice %138 {offsets = [0, 0], sizes = [1, 512], strides = [1, 1]} : vector<9x512xf32> to vector<1x512xf32>
    %c9 = arith.constant 9 : index
    %c0_50 = arith.constant 0 : index
    %c0_51 = arith.constant 0 : index
    %145 = vector.load %arg11[%c9, %c0_50, %c0_51] : memref<36x8x1xf32, #tpu.memory_space<vmem>>, vector<1x8x1xf32>
    %146 = vector.shape_cast %145 : vector<1x8x1xf32> to vector<8x1xf32>
    %c34_i32 = arith.constant 34 : i32
    %147 = tpu.dynamic_rotate %137 by %c34_i32 dim 1 : vector<8x512xf32>, i32 -> vector<8x512xf32>
    %148 = vector.broadcast %144 : vector<1x512xf32> to vector<8x512xf32>
    %149 = arith.mulf %148, %147 : vector<8x512xf32>
    %150 = vector.broadcast %146 : vector<8x1xf32> to vector<8x512xf32>
    %151 = arith.mulf %150, %149 : vector<8x512xf32>
    %152 = arith.addf %143, %151 : vector<8x512xf32>
    %153 = vector.extract_strided_slice %138 {offsets = [1, 0], sizes = [1, 512], strides = [1, 1]} : vector<9x512xf32> to vector<1x512xf32>
    %c10 = arith.constant 10 : index
    %c0_52 = arith.constant 0 : index
    %c0_53 = arith.constant 0 : index
    %154 = vector.load %arg11[%c10, %c0_52, %c0_53] : memref<36x8x1xf32, #tpu.memory_space<vmem>>, vector<1x8x1xf32>
    %155 = vector.shape_cast %154 : vector<1x8x1xf32> to vector<8x1xf32>
    %c32_i32 = arith.constant 32 : i32
    %156 = tpu.dynamic_rotate %137 by %c32_i32 dim 1 : vector<8x512xf32>, i32 -> vector<8x512xf32>
    %157 = vector.broadcast %153 : vector<1x512xf32> to vector<8x512xf32>
    %158 = arith.mulf %157, %156 : vector<8x512xf32>
    %159 = vector.broadcast %155 : vector<8x1xf32> to vector<8x512xf32>
    %160 = arith.mulf %159, %158 : vector<8x512xf32>
    %161 = arith.addf %152, %160 : vector<8x512xf32>
    %162 = vector.extract_strided_slice %138 {offsets = [2, 0], sizes = [1, 512], strides = [1, 1]} : vector<9x512xf32> to vector<1x512xf32>
    %c11 = arith.constant 11 : index
    %c0_54 = arith.constant 0 : index
    %c0_55 = arith.constant 0 : index
    %163 = vector.load %arg11[%c11, %c0_54, %c0_55] : memref<36x8x1xf32, #tpu.memory_space<vmem>>, vector<1x8x1xf32>
    %164 = vector.shape_cast %163 : vector<1x8x1xf32> to vector<8x1xf32>
    %c30_i32 = arith.constant 30 : i32
    %165 = tpu.dynamic_rotate %137 by %c30_i32 dim 1 : vector<8x512xf32>, i32 -> vector<8x512xf32>
    %166 = vector.broadcast %162 : vector<1x512xf32> to vector<8x512xf32>
    %167 = arith.mulf %166, %165 : vector<8x512xf32>
    %168 = vector.broadcast %164 : vector<8x1xf32> to vector<8x512xf32>
    %169 = arith.mulf %168, %167 : vector<8x512xf32>
    %170 = arith.addf %161, %169 : vector<8x512xf32>
    %171 = vector.extract_strided_slice %138 {offsets = [3, 0], sizes = [1, 512], strides = [1, 1]} : vector<9x512xf32> to vector<1x512xf32>
    %c12 = arith.constant 12 : index
    %c0_56 = arith.constant 0 : index
    %c0_57 = arith.constant 0 : index
    %172 = vector.load %arg11[%c12, %c0_56, %c0_57] : memref<36x8x1xf32, #tpu.memory_space<vmem>>, vector<1x8x1xf32>
    %173 = vector.shape_cast %172 : vector<1x8x1xf32> to vector<8x1xf32>
    %c2_i32 = arith.constant 2 : i32
    %174 = tpu.dynamic_rotate %137 by %c2_i32 dim 1 : vector<8x512xf32>, i32 -> vector<8x512xf32>
    %175 = vector.broadcast %171 : vector<1x512xf32> to vector<8x512xf32>
    %176 = arith.mulf %175, %174 : vector<8x512xf32>
    %177 = vector.broadcast %173 : vector<8x1xf32> to vector<8x512xf32>
    %178 = arith.mulf %177, %176 : vector<8x512xf32>
    %179 = arith.addf %170, %178 : vector<8x512xf32>
    %180 = vector.extract_strided_slice %138 {offsets = [4, 0], sizes = [1, 512], strides = [1, 1]} : vector<9x512xf32> to vector<1x512xf32>
    %c13 = arith.constant 13 : index
    %c0_58 = arith.constant 0 : index
    %c0_59 = arith.constant 0 : index
    %181 = vector.load %arg11[%c13, %c0_58, %c0_59] : memref<36x8x1xf32, #tpu.memory_space<vmem>>, vector<1x8x1xf32>
    %182 = vector.shape_cast %181 : vector<1x8x1xf32> to vector<8x1xf32>
    %183 = vector.broadcast %180 : vector<1x512xf32> to vector<8x512xf32>
    %184 = arith.mulf %183, %137 : vector<8x512xf32>
    %185 = vector.broadcast %182 : vector<8x1xf32> to vector<8x512xf32>
    %186 = arith.mulf %185, %184 : vector<8x512xf32>
    %187 = arith.addf %179, %186 : vector<8x512xf32>
    %188 = vector.extract_strided_slice %138 {offsets = [5, 0], sizes = [1, 512], strides = [1, 1]} : vector<9x512xf32> to vector<1x512xf32>
    %c14 = arith.constant 14 : index
    %c0_60 = arith.constant 0 : index
    %c0_61 = arith.constant 0 : index
    %189 = vector.load %arg11[%c14, %c0_60, %c0_61] : memref<36x8x1xf32, #tpu.memory_space<vmem>>, vector<1x8x1xf32>
    %190 = vector.shape_cast %189 : vector<1x8x1xf32> to vector<8x1xf32>
    %c510_i32 = arith.constant 510 : i32
    %191 = tpu.dynamic_rotate %137 by %c510_i32 dim 1 : vector<8x512xf32>, i32 -> vector<8x512xf32>
    %192 = vector.broadcast %188 : vector<1x512xf32> to vector<8x512xf32>
    %193 = arith.mulf %192, %191 : vector<8x512xf32>
    %194 = vector.broadcast %190 : vector<8x1xf32> to vector<8x512xf32>
    %195 = arith.mulf %194, %193 : vector<8x512xf32>
    %196 = arith.addf %187, %195 : vector<8x512xf32>
    %197 = vector.extract_strided_slice %138 {offsets = [6, 0], sizes = [1, 512], strides = [1, 1]} : vector<9x512xf32> to vector<1x512xf32>
    %c15 = arith.constant 15 : index
    %c0_62 = arith.constant 0 : index
    %c0_63 = arith.constant 0 : index
    %198 = vector.load %arg11[%c15, %c0_62, %c0_63] : memref<36x8x1xf32, #tpu.memory_space<vmem>>, vector<1x8x1xf32>
    %199 = vector.shape_cast %198 : vector<1x8x1xf32> to vector<8x1xf32>
    %c482_i32 = arith.constant 482 : i32
    %200 = tpu.dynamic_rotate %137 by %c482_i32 dim 1 : vector<8x512xf32>, i32 -> vector<8x512xf32>
    %201 = vector.broadcast %197 : vector<1x512xf32> to vector<8x512xf32>
    %202 = arith.mulf %201, %200 : vector<8x512xf32>
    %203 = vector.broadcast %199 : vector<8x1xf32> to vector<8x512xf32>
    %204 = arith.mulf %203, %202 : vector<8x512xf32>
    %205 = arith.addf %196, %204 : vector<8x512xf32>
    %206 = vector.extract_strided_slice %138 {offsets = [7, 0], sizes = [1, 512], strides = [1, 1]} : vector<9x512xf32> to vector<1x512xf32>
    %c16 = arith.constant 16 : index
    %c0_64 = arith.constant 0 : index
    %c0_65 = arith.constant 0 : index
    %207 = vector.load %arg11[%c16, %c0_64, %c0_65] : memref<36x8x1xf32, #tpu.memory_space<vmem>>, vector<1x8x1xf32>
    %208 = vector.shape_cast %207 : vector<1x8x1xf32> to vector<8x1xf32>
    %c480_i32 = arith.constant 480 : i32
    %209 = tpu.dynamic_rotate %137 by %c480_i32 dim 1 : vector<8x512xf32>, i32 -> vector<8x512xf32>
    %210 = vector.broadcast %206 : vector<1x512xf32> to vector<8x512xf32>
    %211 = arith.mulf %210, %209 : vector<8x512xf32>
    %212 = vector.broadcast %208 : vector<8x1xf32> to vector<8x512xf32>
    %213 = arith.mulf %212, %211 : vector<8x512xf32>
    %214 = arith.addf %205, %213 : vector<8x512xf32>
    %215 = vector.extract_strided_slice %138 {offsets = [8, 0], sizes = [1, 512], strides = [1, 1]} : vector<9x512xf32> to vector<1x512xf32>
    %c17 = arith.constant 17 : index
    %c0_66 = arith.constant 0 : index
    %c0_67 = arith.constant 0 : index
    %216 = vector.load %arg11[%c17, %c0_66, %c0_67] : memref<36x8x1xf32, #tpu.memory_space<vmem>>, vector<1x8x1xf32>
    %217 = vector.shape_cast %216 : vector<1x8x1xf32> to vector<8x1xf32>
    %c478_i32 = arith.constant 478 : i32
    %218 = tpu.dynamic_rotate %137 by %c478_i32 dim 1 : vector<8x512xf32>, i32 -> vector<8x512xf32>
    %219 = vector.broadcast %215 : vector<1x512xf32> to vector<8x512xf32>
    %220 = arith.mulf %219, %218 : vector<8x512xf32>
    %221 = vector.broadcast %217 : vector<8x1xf32> to vector<8x512xf32>
    %222 = arith.mulf %221, %220 : vector<8x512xf32>
    %223 = arith.addf %214, %222 : vector<8x512xf32>
    %c8_68 = arith.constant 8 : index
    %c0_69 = arith.constant 0 : index
    %224 = vector.load %arg20[%c8_68, %c0_69] : memref<32x512xf32, #tpu.memory_space<vmem>>, vector<8x512xf32>
    tpu.vector_store %arg20[%c8_68, %c0_69], %223 {strides = array<i32>} : memref<32x512xf32, #tpu.memory_space<vmem>>, vector<8x512xf32>,
    %225 = vector.extract_strided_slice %25 {offsets = [16, 0], sizes = [8, 512], strides = [1, 1]} : vector<32x512xf32> to vector<8x512xf32>
    %226 = vector.extract_strided_slice %27 {offsets = [0, 0], sizes = [1, 512], strides = [1, 1]} : vector<6x512xf32> to vector<1x512xf32>
    %c511_i32_70 = arith.constant 511 : i32
    %227 = tpu.dynamic_rotate %225 by %c511_i32_70 dim 1 : vector<8x512xf32>, i32 -> vector<8x512xf32>
    %228 = vector.broadcast %226 : vector<1x512xf32> to vector<8x512xf32>
    %229 = arith.mulf %228, %227 : vector<8x512xf32>
    %230 = vector.extract_strided_slice %29 {offsets = [0, 0], sizes = [1, 512], strides = [1, 1]} : vector<6x512xf32> to vector<1x512xf32>
    %c1_i32_71 = arith.constant 1 : i32
    %231 = tpu.dynamic_rotate %225 by %c1_i32_71 dim 1 : vector<8x512xf32>, i32 -> vector<8x512xf32>
    %232 = vector.broadcast %230 : vector<1x512xf32> to vector<8x512xf32>
    %233 = arith.mulf %232, %231 : vector<8x512xf32>
    %234 = arith.addf %229, %233 : vector<8x512xf32>
    %235 = arith.maximumf %225, %234 : vector<8x512xf32>
    %236 = vector.extract_strided_slice %27 {offsets = [1, 0], sizes = [1, 512], strides = [1, 1]} : vector<6x512xf32> to vector<1x512xf32>
    %c510_i32_72 = arith.constant 510 : i32
    %237 = tpu.dynamic_rotate %235 by %c510_i32_72 dim 1 : vector<8x512xf32>, i32 -> vector<8x512xf32>
    %238 = vector.broadcast %236 : vector<1x512xf32> to vector<8x512xf32>
    %239 = arith.mulf %238, %237 : vector<8x512xf32>
    %240 = vector.extract_strided_slice %29 {offsets = [1, 0], sizes = [1, 512], strides = [1, 1]} : vector<6x512xf32> to vector<1x512xf32>
    %c2_i32_73 = arith.constant 2 : i32
    %241 = tpu.dynamic_rotate %235 by %c2_i32_73 dim 1 : vector<8x512xf32>, i32 -> vector<8x512xf32>
    %242 = vector.broadcast %240 : vector<1x512xf32> to vector<8x512xf32>
    %243 = arith.mulf %242, %241 : vector<8x512xf32>
    %244 = arith.addf %239, %243 : vector<8x512xf32>
    %245 = arith.maximumf %235, %244 : vector<8x512xf32>
    %246 = vector.extract_strided_slice %27 {offsets = [3, 0], sizes = [1, 512], strides = [1, 1]} : vector<6x512xf32> to vector<1x512xf32>
    %c496_i32_74 = arith.constant 496 : i32
    %247 = tpu.dynamic_rotate %245 by %c496_i32_74 dim 1 : vector<8x512xf32>, i32 -> vector<8x512xf32>
    %248 = vector.broadcast %246 : vector<1x512xf32> to vector<8x512xf32>
    %249 = arith.mulf %248, %247 : vector<8x512xf32>
    %250 = vector.extract_strided_slice %29 {offsets = [3, 0], sizes = [1, 512], strides = [1, 1]} : vector<6x512xf32> to vector<1x512xf32>
    %c16_i32_75 = arith.constant 16 : i32
    %251 = tpu.dynamic_rotate %245 by %c16_i32_75 dim 1 : vector<8x512xf32>, i32 -> vector<8x512xf32>
    %252 = vector.broadcast %250 : vector<1x512xf32> to vector<8x512xf32>
    %253 = arith.mulf %252, %251 : vector<8x512xf32>
    %254 = arith.addf %249, %253 : vector<8x512xf32>
    %255 = arith.maximumf %245, %254 : vector<8x512xf32>
    %256 = vector.extract_strided_slice %27 {offsets = [4, 0], sizes = [1, 512], strides = [1, 1]} : vector<6x512xf32> to vector<1x512xf32>
    %c480_i32_76 = arith.constant 480 : i32
    %257 = tpu.dynamic_rotate %255 by %c480_i32_76 dim 1 : vector<8x512xf32>, i32 -> vector<8x512xf32>
    %258 = vector.broadcast %256 : vector<1x512xf32> to vector<8x512xf32>
    %259 = arith.mulf %258, %257 : vector<8x512xf32>
    %260 = vector.extract_strided_slice %29 {offsets = [4, 0], sizes = [1, 512], strides = [1, 1]} : vector<6x512xf32> to vector<1x512xf32>
    %c32_i32_77 = arith.constant 32 : i32
    %261 = tpu.dynamic_rotate %255 by %c32_i32_77 dim 1 : vector<8x512xf32>, i32 -> vector<8x512xf32>
    %262 = vector.broadcast %260 : vector<1x512xf32> to vector<8x512xf32>
    %263 = arith.mulf %262, %261 : vector<8x512xf32>
    %264 = arith.addf %259, %263 : vector<8x512xf32>
    %265 = arith.maximumf %255, %264 : vector<8x512xf32>
    %c0_78 = arith.constant 0 : index
    %c0_79 = arith.constant 0 : index
    %266 = vector.load %arg4[%c0_78, %c0_79] : memref<9x512xf32, #tpu.memory_space<vmem>>, vector<9x512xf32>
    %c2_80 = arith.constant 2 : index
    %c0_81 = arith.constant 0 : index
    %c0_82 = arith.constant 0 : index
    %267 = vector.load %arg12[%c2_80, %c0_81, %c0_82] : memref<4x8x1xf32, #tpu.memory_space<vmem>>, vector<1x8x1xf32>
    %268 = vector.shape_cast %267 : vector<1x8x1xf32> to vector<8x1xf32>
    %cst_83 = arith.constant 0.000000e+00 : f32
    %269 = vector.broadcast %cst_83 : f32 to vector<8x512xf32>
    %270 = vector.broadcast %268 : vector<8x1xf32> to vector<8x512xf32>
    %271 = arith.addf %270, %269 : vector<8x512xf32>
    %272 = vector.extract_strided_slice %266 {offsets = [0, 0], sizes = [1, 512], strides = [1, 1]} : vector<9x512xf32> to vector<1x512xf32>
    %c18 = arith.constant 18 : index
    %c0_84 = arith.constant 0 : index
    %c0_85 = arith.constant 0 : index
    %273 = vector.load %arg11[%c18, %c0_84, %c0_85] : memref<36x8x1xf32, #tpu.memory_space<vmem>>, vector<1x8x1xf32>
    %274 = vector.shape_cast %273 : vector<1x8x1xf32> to vector<8x1xf32>
    %c68_i32 = arith.constant 68 : i32
    %275 = tpu.dynamic_rotate %265 by %c68_i32 dim 1 : vector<8x512xf32>, i32 -> vector<8x512xf32>
    %276 = vector.broadcast %272 : vector<1x512xf32> to vector<8x512xf32>
    %277 = arith.mulf %276, %275 : vector<8x512xf32>
    %278 = vector.broadcast %274 : vector<8x1xf32> to vector<8x512xf32>
    %279 = arith.mulf %278, %277 : vector<8x512xf32>
    %280 = arith.addf %271, %279 : vector<8x512xf32>
    %281 = vector.extract_strided_slice %266 {offsets = [1, 0], sizes = [1, 512], strides = [1, 1]} : vector<9x512xf32> to vector<1x512xf32>
    %c19 = arith.constant 19 : index
    %c0_86 = arith.constant 0 : index
    %c0_87 = arith.constant 0 : index
    %282 = vector.load %arg11[%c19, %c0_86, %c0_87] : memref<36x8x1xf32, #tpu.memory_space<vmem>>, vector<1x8x1xf32>
    %283 = vector.shape_cast %282 : vector<1x8x1xf32> to vector<8x1xf32>
    %c64_i32 = arith.constant 64 : i32
    %284 = tpu.dynamic_rotate %265 by %c64_i32 dim 1 : vector<8x512xf32>, i32 -> vector<8x512xf32>
    %285 = vector.broadcast %281 : vector<1x512xf32> to vector<8x512xf32>
    %286 = arith.mulf %285, %284 : vector<8x512xf32>
    %287 = vector.broadcast %283 : vector<8x1xf32> to vector<8x512xf32>
    %288 = arith.mulf %287, %286 : vector<8x512xf32>
    %289 = arith.addf %280, %288 : vector<8x512xf32>
    %290 = vector.extract_strided_slice %266 {offsets = [2, 0], sizes = [1, 512], strides = [1, 1]} : vector<9x512xf32> to vector<1x512xf32>
    %c20 = arith.constant 20 : index
    %c0_88 = arith.constant 0 : index
    %c0_89 = arith.constant 0 : index
    %291 = vector.load %arg11[%c20, %c0_88, %c0_89] : memref<36x8x1xf32, #tpu.memory_space<vmem>>, vector<1x8x1xf32>
    %292 = vector.shape_cast %291 : vector<1x8x1xf32> to vector<8x1xf32>
    %c60_i32 = arith.constant 60 : i32
    %293 = tpu.dynamic_rotate %265 by %c60_i32 dim 1 : vector<8x512xf32>, i32 -> vector<8x512xf32>
    %294 = vector.broadcast %290 : vector<1x512xf32> to vector<8x512xf32>
    %295 = arith.mulf %294, %293 : vector<8x512xf32>
    %296 = vector.broadcast %292 : vector<8x1xf32> to vector<8x512xf32>
    %297 = arith.mulf %296, %295 : vector<8x512xf32>
    %298 = arith.addf %289, %297 : vector<8x512xf32>
    %299 = vector.extract_strided_slice %266 {offsets = [3, 0], sizes = [1, 512], strides = [1, 1]} : vector<9x512xf32> to vector<1x512xf32>
    %c21 = arith.constant 21 : index
    %c0_90 = arith.constant 0 : index
    %c0_91 = arith.constant 0 : index
    %300 = vector.load %arg11[%c21, %c0_90, %c0_91] : memref<36x8x1xf32, #tpu.memory_space<vmem>>, vector<1x8x1xf32>
    %301 = vector.shape_cast %300 : vector<1x8x1xf32> to vector<8x1xf32>
    %c4_i32 = arith.constant 4 : i32
    %302 = tpu.dynamic_rotate %265 by %c4_i32 dim 1 : vector<8x512xf32>, i32 -> vector<8x512xf32>
    %303 = vector.broadcast %299 : vector<1x512xf32> to vector<8x512xf32>
    %304 = arith.mulf %303, %302 : vector<8x512xf32>
    %305 = vector.broadcast %301 : vector<8x1xf32> to vector<8x512xf32>
    %306 = arith.mulf %305, %304 : vector<8x512xf32>
    %307 = arith.addf %298, %306 : vector<8x512xf32>
    %308 = vector.extract_strided_slice %266 {offsets = [4, 0], sizes = [1, 512], strides = [1, 1]} : vector<9x512xf32> to vector<1x512xf32>
    %c22 = arith.constant 22 : index
    %c0_92 = arith.constant 0 : index
    %c0_93 = arith.constant 0 : index
    %309 = vector.load %arg11[%c22, %c0_92, %c0_93] : memref<36x8x1xf32, #tpu.memory_space<vmem>>, vector<1x8x1xf32>
    %310 = vector.shape_cast %309 : vector<1x8x1xf32> to vector<8x1xf32>
    %311 = vector.broadcast %308 : vector<1x512xf32> to vector<8x512xf32>
    %312 = arith.mulf %311, %265 : vector<8x512xf32>
    %313 = vector.broadcast %310 : vector<8x1xf32> to vector<8x512xf32>
    %314 = arith.mulf %313, %312 : vector<8x512xf32>
    %315 = arith.addf %307, %314 : vector<8x512xf32>
    %316 = vector.extract_strided_slice %266 {offsets = [5, 0], sizes = [1, 512], strides = [1, 1]} : vector<9x512xf32> to vector<1x512xf32>
    %c23 = arith.constant 23 : index
    %c0_94 = arith.constant 0 : index
    %c0_95 = arith.constant 0 : index
    %317 = vector.load %arg11[%c23, %c0_94, %c0_95] : memref<36x8x1xf32, #tpu.memory_space<vmem>>, vector<1x8x1xf32>
    %318 = vector.shape_cast %317 : vector<1x8x1xf32> to vector<8x1xf32>
    %c508_i32 = arith.constant 508 : i32
    %319 = tpu.dynamic_rotate %265 by %c508_i32 dim 1 : vector<8x512xf32>, i32 -> vector<8x512xf32>
    %320 = vector.broadcast %316 : vector<1x512xf32> to vector<8x512xf32>
    %321 = arith.mulf %320, %319 : vector<8x512xf32>
    %322 = vector.broadcast %318 : vector<8x1xf32> to vector<8x512xf32>
    %323 = arith.mulf %322, %321 : vector<8x512xf32>
    %324 = arith.addf %315, %323 : vector<8x512xf32>
    %325 = vector.extract_strided_slice %266 {offsets = [6, 0], sizes = [1, 512], strides = [1, 1]} : vector<9x512xf32> to vector<1x512xf32>
    %c24 = arith.constant 24 : index
    %c0_96 = arith.constant 0 : index
    %c0_97 = arith.constant 0 : index
    %326 = vector.load %arg11[%c24, %c0_96, %c0_97] : memref<36x8x1xf32, #tpu.memory_space<vmem>>, vector<1x8x1xf32>
    %327 = vector.shape_cast %326 : vector<1x8x1xf32> to vector<8x1xf32>
    %c452_i32 = arith.constant 452 : i32
    %328 = tpu.dynamic_rotate %265 by %c452_i32 dim 1 : vector<8x512xf32>, i32 -> vector<8x512xf32>
    %329 = vector.broadcast %325 : vector<1x512xf32> to vector<8x512xf32>
    %330 = arith.mulf %329, %328 : vector<8x512xf32>
    %331 = vector.broadcast %327 : vector<8x1xf32> to vector<8x512xf32>
    %332 = arith.mulf %331, %330 : vector<8x512xf32>
    %333 = arith.addf %324, %332 : vector<8x512xf32>
    %334 = vector.extract_strided_slice %266 {offsets = [7, 0], sizes = [1, 512], strides = [1, 1]} : vector<9x512xf32> to vector<1x512xf32>
    %c25 = arith.constant 25 : index
    %c0_98 = arith.constant 0 : index
    %c0_99 = arith.constant 0 : index
    %335 = vector.load %arg11[%c25, %c0_98, %c0_99] : memref<36x8x1xf32, #tpu.memory_space<vmem>>, vector<1x8x1xf32>
    %336 = vector.shape_cast %335 : vector<1x8x1xf32> to vector<8x1xf32>
    %c448_i32 = arith.constant 448 : i32
    %337 = tpu.dynamic_rotate %265 by %c448_i32 dim 1 : vector<8x512xf32>, i32 -> vector<8x512xf32>
    %338 = vector.broadcast %334 : vector<1x512xf32> to vector<8x512xf32>
    %339 = arith.mulf %338, %337 : vector<8x512xf32>
    %340 = vector.broadcast %336 : vector<8x1xf32> to vector<8x512xf32>
    %341 = arith.mulf %340, %339 : vector<8x512xf32>
    %342 = arith.addf %333, %341 : vector<8x512xf32>
    %343 = vector.extract_strided_slice %266 {offsets = [8, 0], sizes = [1, 512], strides = [1, 1]} : vector<9x512xf32> to vector<1x512xf32>
    %c26 = arith.constant 26 : index
    %c0_100 = arith.constant 0 : index
    %c0_101 = arith.constant 0 : index
    %344 = vector.load %arg11[%c26, %c0_100, %c0_101] : memref<36x8x1xf32, #tpu.memory_space<vmem>>, vector<1x8x1xf32>
    %345 = vector.shape_cast %344 : vector<1x8x1xf32> to vector<8x1xf32>
    %c444_i32 = arith.constant 444 : i32
    %346 = tpu.dynamic_rotate %265 by %c444_i32 dim 1 : vector<8x512xf32>, i32 -> vector<8x512xf32>
    %347 = vector.broadcast %343 : vector<1x512xf32> to vector<8x512xf32>
    %348 = arith.mulf %347, %346 : vector<8x512xf32>
    %349 = vector.broadcast %345 : vector<8x1xf32> to vector<8x512xf32>
    %350 = arith.mulf %349, %348 : vector<8x512xf32>
    %351 = arith.addf %342, %350 : vector<8x512xf32>
    %c16_102 = arith.constant 16 : index
    %c0_103 = arith.constant 0 : index
    %352 = vector.load %arg20[%c16_102, %c0_103] : memref<32x512xf32, #tpu.memory_space<vmem>>, vector<8x512xf32>
    tpu.vector_store %arg20[%c16_102, %c0_103], %351 {strides = array<i32>} : memref<32x512xf32, #tpu.memory_space<vmem>>, vector<8x512xf32>,
    %353 = vector.extract_strided_slice %25 {offsets = [24, 0], sizes = [8, 512], strides = [1, 1]} : vector<32x512xf32> to vector<8x512xf32>
    %354 = vector.extract_strided_slice %27 {offsets = [0, 0], sizes = [1, 512], strides = [1, 1]} : vector<6x512xf32> to vector<1x512xf32>
    %c511_i32_104 = arith.constant 511 : i32
    %355 = tpu.dynamic_rotate %353 by %c511_i32_104 dim 1 : vector<8x512xf32>, i32 -> vector<8x512xf32>
    %356 = vector.broadcast %354 : vector<1x512xf32> to vector<8x512xf32>
    %357 = arith.mulf %356, %355 : vector<8x512xf32>
    %358 = vector.extract_strided_slice %29 {offsets = [0, 0], sizes = [1, 512], strides = [1, 1]} : vector<6x512xf32> to vector<1x512xf32>
    %c1_i32_105 = arith.constant 1 : i32
    %359 = tpu.dynamic_rotate %353 by %c1_i32_105 dim 1 : vector<8x512xf32>, i32 -> vector<8x512xf32>
    %360 = vector.broadcast %358 : vector<1x512xf32> to vector<8x512xf32>
    %361 = arith.mulf %360, %359 : vector<8x512xf32>
    %362 = arith.addf %357, %361 : vector<8x512xf32>
    %363 = arith.maximumf %353, %362 : vector<8x512xf32>
    %364 = vector.extract_strided_slice %27 {offsets = [1, 0], sizes = [1, 512], strides = [1, 1]} : vector<6x512xf32> to vector<1x512xf32>
    %c510_i32_106 = arith.constant 510 : i32
    %365 = tpu.dynamic_rotate %363 by %c510_i32_106 dim 1 : vector<8x512xf32>, i32 -> vector<8x512xf32>
    %366 = vector.broadcast %364 : vector<1x512xf32> to vector<8x512xf32>
    %367 = arith.mulf %366, %365 : vector<8x512xf32>
    %368 = vector.extract_strided_slice %29 {offsets = [1, 0], sizes = [1, 512], strides = [1, 1]} : vector<6x512xf32> to vector<1x512xf32>
    %c2_i32_107 = arith.constant 2 : i32
    %369 = tpu.dynamic_rotate %363 by %c2_i32_107 dim 1 : vector<8x512xf32>, i32 -> vector<8x512xf32>
    %370 = vector.broadcast %368 : vector<1x512xf32> to vector<8x512xf32>
    %371 = arith.mulf %370, %369 : vector<8x512xf32>
    %372 = arith.addf %367, %371 : vector<8x512xf32>
    %373 = arith.maximumf %363, %372 : vector<8x512xf32>
    %374 = vector.extract_strided_slice %27 {offsets = [2, 0], sizes = [1, 512], strides = [1, 1]} : vector<6x512xf32> to vector<1x512xf32>
    %c508_i32_108 = arith.constant 508 : i32
    %375 = tpu.dynamic_rotate %373 by %c508_i32_108 dim 1 : vector<8x512xf32>, i32 -> vector<8x512xf32>
    %376 = vector.broadcast %374 : vector<1x512xf32> to vector<8x512xf32>
    %377 = arith.mulf %376, %375 : vector<8x512xf32>
    %378 = vector.extract_strided_slice %29 {offsets = [2, 0], sizes = [1, 512], strides = [1, 1]} : vector<6x512xf32> to vector<1x512xf32>
    %c4_i32_109 = arith.constant 4 : i32
    %379 = tpu.dynamic_rotate %373 by %c4_i32_109 dim 1 : vector<8x512xf32>, i32 -> vector<8x512xf32>
    %380 = vector.broadcast %378 : vector<1x512xf32> to vector<8x512xf32>
    %381 = arith.mulf %380, %379 : vector<8x512xf32>
    %382 = arith.addf %377, %381 : vector<8x512xf32>
    %383 = arith.maximumf %373, %382 : vector<8x512xf32>
    %384 = vector.extract_strided_slice %27 {offsets = [3, 0], sizes = [1, 512], strides = [1, 1]} : vector<6x512xf32> to vector<1x512xf32>
    %c496_i32_110 = arith.constant 496 : i32
    %385 = tpu.dynamic_rotate %383 by %c496_i32_110 dim 1 : vector<8x512xf32>, i32 -> vector<8x512xf32>
    %386 = vector.broadcast %384 : vector<1x512xf32> to vector<8x512xf32>
    %387 = arith.mulf %386, %385 : vector<8x512xf32>
    %388 = vector.extract_strided_slice %29 {offsets = [3, 0], sizes = [1, 512], strides = [1, 1]} : vector<6x512xf32> to vector<1x512xf32>
    %c16_i32_111 = arith.constant 16 : i32
    %389 = tpu.dynamic_rotate %383 by %c16_i32_111 dim 1 : vector<8x512xf32>, i32 -> vector<8x512xf32>
    %390 = vector.broadcast %388 : vector<1x512xf32> to vector<8x512xf32>
    %391 = arith.mulf %390, %389 : vector<8x512xf32>
    %392 = arith.addf %387, %391 : vector<8x512xf32>
    %393 = arith.maximumf %383, %392 : vector<8x512xf32>
    %394 = vector.extract_strided_slice %27 {offsets = [4, 0], sizes = [1, 512], strides = [1, 1]} : vector<6x512xf32> to vector<1x512xf32>
    %c480_i32_112 = arith.constant 480 : i32
    %395 = tpu.dynamic_rotate %393 by %c480_i32_112 dim 1 : vector<8x512xf32>, i32 -> vector<8x512xf32>
    %396 = vector.broadcast %394 : vector<1x512xf32> to vector<8x512xf32>
    %397 = arith.mulf %396, %395 : vector<8x512xf32>
    %398 = vector.extract_strided_slice %29 {offsets = [4, 0], sizes = [1, 512], strides = [1, 1]} : vector<6x512xf32> to vector<1x512xf32>
    %c32_i32_113 = arith.constant 32 : i32
    %399 = tpu.dynamic_rotate %393 by %c32_i32_113 dim 1 : vector<8x512xf32>, i32 -> vector<8x512xf32>
    %400 = vector.broadcast %398 : vector<1x512xf32> to vector<8x512xf32>
    %401 = arith.mulf %400, %399 : vector<8x512xf32>
    %402 = arith.addf %397, %401 : vector<8x512xf32>
    %403 = arith.maximumf %393, %402 : vector<8x512xf32>
    %404 = vector.extract_strided_slice %27 {offsets = [5, 0], sizes = [1, 512], strides = [1, 1]} : vector<6x512xf32> to vector<1x512xf32>
    %c448_i32_114 = arith.constant 448 : i32
    %405 = tpu.dynamic_rotate %403 by %c448_i32_114 dim 1 : vector<8x512xf32>, i32 -> vector<8x512xf32>
    %406 = vector.broadcast %404 : vector<1x512xf32> to vector<8x512xf32>
    %407 = arith.mulf %406, %405 : vector<8x512xf32>
    %408 = vector.extract_strided_slice %29 {offsets = [5, 0], sizes = [1, 512], strides = [1, 1]} : vector<6x512xf32> to vector<1x512xf32>
    %c64_i32_115 = arith.constant 64 : i32
    %409 = tpu.dynamic_rotate %403 by %c64_i32_115 dim 1 : vector<8x512xf32>, i32 -> vector<8x512xf32>
    %410 = vector.broadcast %408 : vector<1x512xf32> to vector<8x512xf32>
    %411 = arith.mulf %410, %409 : vector<8x512xf32>
    %412 = arith.addf %407, %411 : vector<8x512xf32>
    %413 = arith.maximumf %403, %412 : vector<8x512xf32>
    %c0_116 = arith.constant 0 : index
    %c0_117 = arith.constant 0 : index
    %414 = vector.load %arg5[%c0_116, %c0_117] : memref<9x512xf32, #tpu.memory_space<vmem>>, vector<9x512xf32>
    %c3_118 = arith.constant 3 : index
    %c0_119 = arith.constant 0 : index
    %c0_120 = arith.constant 0 : index
    %415 = vector.load %arg12[%c3_118, %c0_119, %c0_120] : memref<4x8x1xf32, #tpu.memory_space<vmem>>, vector<1x8x1xf32>
    %416 = vector.shape_cast %415 : vector<1x8x1xf32> to vector<8x1xf32>
    %cst_121 = arith.constant 0.000000e+00 : f32
    %417 = vector.broadcast %cst_121 : f32 to vector<8x512xf32>
    %418 = vector.broadcast %416 : vector<8x1xf32> to vector<8x512xf32>
    %419 = arith.addf %418, %417 : vector<8x512xf32>
    %420 = vector.extract_strided_slice %414 {offsets = [0, 0], sizes = [1, 512], strides = [1, 1]} : vector<9x512xf32> to vector<1x512xf32>
    %c27 = arith.constant 27 : index
    %c0_122 = arith.constant 0 : index
    %c0_123 = arith.constant 0 : index
    %421 = vector.load %arg11[%c27, %c0_122, %c0_123] : memref<36x8x1xf32, #tpu.memory_space<vmem>>, vector<1x8x1xf32>
    %422 = vector.shape_cast %421 : vector<1x8x1xf32> to vector<8x1xf32>
    %c136_i32 = arith.constant 136 : i32
    %423 = tpu.dynamic_rotate %413 by %c136_i32 dim 1 : vector<8x512xf32>, i32 -> vector<8x512xf32>
    %424 = vector.broadcast %420 : vector<1x512xf32> to vector<8x512xf32>
    %425 = arith.mulf %424, %423 : vector<8x512xf32>
    %426 = vector.broadcast %422 : vector<8x1xf32> to vector<8x512xf32>
    %427 = arith.mulf %426, %425 : vector<8x512xf32>
    %428 = arith.addf %419, %427 : vector<8x512xf32>
    %429 = vector.extract_strided_slice %414 {offsets = [1, 0], sizes = [1, 512], strides = [1, 1]} : vector<9x512xf32> to vector<1x512xf32>
    %c28 = arith.constant 28 : index
    %c0_124 = arith.constant 0 : index
    %c0_125 = arith.constant 0 : index
    %430 = vector.load %arg11[%c28, %c0_124, %c0_125] : memref<36x8x1xf32, #tpu.memory_space<vmem>>, vector<1x8x1xf32>
    %431 = vector.shape_cast %430 : vector<1x8x1xf32> to vector<8x1xf32>
    %c128_i32 = arith.constant 128 : i32
    %432 = tpu.dynamic_rotate %413 by %c128_i32 dim 1 : vector<8x512xf32>, i32 -> vector<8x512xf32>
    %433 = vector.broadcast %429 : vector<1x512xf32> to vector<8x512xf32>
    %434 = arith.mulf %433, %432 : vector<8x512xf32>
    %435 = vector.broadcast %431 : vector<8x1xf32> to vector<8x512xf32>
    %436 = arith.mulf %435, %434 : vector<8x512xf32>
    %437 = arith.addf %428, %436 : vector<8x512xf32>
    %438 = vector.extract_strided_slice %414 {offsets = [2, 0], sizes = [1, 512], strides = [1, 1]} : vector<9x512xf32> to vector<1x512xf32>
    %c29 = arith.constant 29 : index
    %c0_126 = arith.constant 0 : index
    %c0_127 = arith.constant 0 : index
    %439 = vector.load %arg11[%c29, %c0_126, %c0_127] : memref<36x8x1xf32, #tpu.memory_space<vmem>>, vector<1x8x1xf32>
    %440 = vector.shape_cast %439 : vector<1x8x1xf32> to vector<8x1xf32>
    %c120_i32 = arith.constant 120 : i32
    %441 = tpu.dynamic_rotate %413 by %c120_i32 dim 1 : vector<8x512xf32>, i32 -> vector<8x512xf32>
    %442 = vector.broadcast %438 : vector<1x512xf32> to vector<8x512xf32>
    %443 = arith.mulf %442, %441 : vector<8x512xf32>
    %444 = vector.broadcast %440 : vector<8x1xf32> to vector<8x512xf32>
    %445 = arith.mulf %444, %443 : vector<8x512xf32>
    %446 = arith.addf %437, %445 : vector<8x512xf32>
    %447 = vector.extract_strided_slice %414 {offsets = [3, 0], sizes = [1, 512], strides = [1, 1]} : vector<9x512xf32> to vector<1x512xf32>
    %c30 = arith.constant 30 : index
    %c0_128 = arith.constant 0 : index
    %c0_129 = arith.constant 0 : index
    %448 = vector.load %arg11[%c30, %c0_128, %c0_129] : memref<36x8x1xf32, #tpu.memory_space<vmem>>, vector<1x8x1xf32>
    %449 = vector.shape_cast %448 : vector<1x8x1xf32> to vector<8x1xf32>
    %c8_i32 = arith.constant 8 : i32
    %450 = tpu.dynamic_rotate %413 by %c8_i32 dim 1 : vector<8x512xf32>, i32 -> vector<8x512xf32>
    %451 = vector.broadcast %447 : vector<1x512xf32> to vector<8x512xf32>
    %452 = arith.mulf %451, %450 : vector<8x512xf32>
    %453 = vector.broadcast %449 : vector<8x1xf32> to vector<8x512xf32>
    %454 = arith.mulf %453, %452 : vector<8x512xf32>
    %455 = arith.addf %446, %454 : vector<8x512xf32>
    %456 = vector.extract_strided_slice %414 {offsets = [4, 0], sizes = [1, 512], strides = [1, 1]} : vector<9x512xf32> to vector<1x512xf32>
    %c31 = arith.constant 31 : index
    %c0_130 = arith.constant 0 : index
    %c0_131 = arith.constant 0 : index
    %457 = vector.load %arg11[%c31, %c0_130, %c0_131] : memref<36x8x1xf32, #tpu.memory_space<vmem>>, vector<1x8x1xf32>
    %458 = vector.shape_cast %457 : vector<1x8x1xf32> to vector<8x1xf32>
    %459 = vector.broadcast %456 : vector<1x512xf32> to vector<8x512xf32>
    %460 = arith.mulf %459, %413 : vector<8x512xf32>
    %461 = vector.broadcast %458 : vector<8x1xf32> to vector<8x512xf32>
    %462 = arith.mulf %461, %460 : vector<8x512xf32>
    %463 = arith.addf %455, %462 : vector<8x512xf32>
    %464 = vector.extract_strided_slice %414 {offsets = [5, 0], sizes = [1, 512], strides = [1, 1]} : vector<9x512xf32> to vector<1x512xf32>
    %c32 = arith.constant 32 : index
    %c0_132 = arith.constant 0 : index
    %c0_133 = arith.constant 0 : index
    %465 = vector.load %arg11[%c32, %c0_132, %c0_133] : memref<36x8x1xf32, #tpu.memory_space<vmem>>, vector<1x8x1xf32>
    %466 = vector.shape_cast %465 : vector<1x8x1xf32> to vector<8x1xf32>
    %c504_i32 = arith.constant 504 : i32
    %467 = tpu.dynamic_rotate %413 by %c504_i32 dim 1 : vector<8x512xf32>, i32 -> vector<8x512xf32>
    %468 = vector.broadcast %464 : vector<1x512xf32> to vector<8x512xf32>
    %469 = arith.mulf %468, %467 : vector<8x512xf32>
    %470 = vector.broadcast %466 : vector<8x1xf32> to vector<8x512xf32>
    %471 = arith.mulf %470, %469 : vector<8x512xf32>
    %472 = arith.addf %463, %471 : vector<8x512xf32>
    %473 = vector.extract_strided_slice %414 {offsets = [6, 0], sizes = [1, 512], strides = [1, 1]} : vector<9x512xf32> to vector<1x512xf32>
    %c33 = arith.constant 33 : index
    %c0_134 = arith.constant 0 : index
    %c0_135 = arith.constant 0 : index
    %474 = vector.load %arg11[%c33, %c0_134, %c0_135] : memref<36x8x1xf32, #tpu.memory_space<vmem>>, vector<1x8x1xf32>
    %475 = vector.shape_cast %474 : vector<1x8x1xf32> to vector<8x1xf32>
    %c392_i32 = arith.constant 392 : i32
    %476 = tpu.dynamic_rotate %413 by %c392_i32 dim 1 : vector<8x512xf32>, i32 -> vector<8x512xf32>
    %477 = vector.broadcast %473 : vector<1x512xf32> to vector<8x512xf32>
    %478 = arith.mulf %477, %476 : vector<8x512xf32>
    %479 = vector.broadcast %475 : vector<8x1xf32> to vector<8x512xf32>
    %480 = arith.mulf %479, %478 : vector<8x512xf32>
    %481 = arith.addf %472, %480 : vector<8x512xf32>
    %482 = vector.extract_strided_slice %414 {offsets = [7, 0], sizes = [1, 512], strides = [1, 1]} : vector<9x512xf32> to vector<1x512xf32>
    %c34 = arith.constant 34 : index
    %c0_136 = arith.constant 0 : index
    %c0_137 = arith.constant 0 : index
    %483 = vector.load %arg11[%c34, %c0_136, %c0_137] : memref<36x8x1xf32, #tpu.memory_space<vmem>>, vector<1x8x1xf32>
    %484 = vector.shape_cast %483 : vector<1x8x1xf32> to vector<8x1xf32>
    %c384_i32 = arith.constant 384 : i32
    %485 = tpu.dynamic_rotate %413 by %c384_i32 dim 1 : vector<8x512xf32>, i32 -> vector<8x512xf32>
    %486 = vector.broadcast %482 : vector<1x512xf32> to vector<8x512xf32>
    %487 = arith.mulf %486, %485 : vector<8x512xf32>
    %488 = vector.broadcast %484 : vector<8x1xf32> to vector<8x512xf32>
    %489 = arith.mulf %488, %487 : vector<8x512xf32>
    %490 = arith.addf %481, %489 : vector<8x512xf32>
    %491 = vector.extract_strided_slice %414 {offsets = [8, 0], sizes = [1, 512], strides = [1, 1]} : vector<9x512xf32> to vector<1x512xf32>
    %c35 = arith.constant 35 : index
    %c0_138 = arith.constant 0 : index
    %c0_139 = arith.constant 0 : index
    %492 = vector.load %arg11[%c35, %c0_138, %c0_139] : memref<36x8x1xf32, #tpu.memory_space<vmem>>, vector<1x8x1xf32>
    %493 = vector.shape_cast %492 : vector<1x8x1xf32> to vector<8x1xf32>
    %c376_i32 = arith.constant 376 : i32
    %494 = tpu.dynamic_rotate %413 by %c376_i32 dim 1 : vector<8x512xf32>, i32 -> vector<8x512xf32>
    %495 = vector.broadcast %491 : vector<1x512xf32> to vector<8x512xf32>
    %496 = arith.mulf %495, %494 : vector<8x512xf32>
    %497 = vector.broadcast %493 : vector<8x1xf32> to vector<8x512xf32>
    %498 = arith.mulf %497, %496 : vector<8x512xf32>
    %499 = arith.addf %490, %498 : vector<8x512xf32>
    %c24_140 = arith.constant 24 : index
    %c0_141 = arith.constant 0 : index
    %500 = vector.load %arg20[%c24_140, %c0_141] : memref<32x512xf32, #tpu.memory_space<vmem>>, vector<8x512xf32>
    tpu.vector_store %arg20[%c24_140, %c0_141], %499 {strides = array<i32>} : memref<32x512xf32, #tpu.memory_space<vmem>>, vector<8x512xf32>,
    %c0_142 = arith.constant 0 : index
    %c0_143 = arith.constant 0 : index
    %501 = vector.load %arg13[%c0_142, %c0_143] : memref<32x32xbf16, #tpu.memory_space<vmem>>, vector<32x32xbf16>
    %c0_144 = arith.constant 0 : index
    %c0_145 = arith.constant 0 : index
    %502 = vector.load %arg20[%c0_144, %c0_145] : memref<32x512xf32, #tpu.memory_space<vmem>>, vector<32x512xf32>
    %503 = arith.truncf %502 : vector<32x512xf32> to vector<32x512xbf16>
    %cst_146 = arith.constant dense<0.000000e+00> : vector<32x512xf32>
    %504 = tpu.matmul %501, %503, %cst_146 {dimension_numbers = #tpu.dot_dimension_numbers<[1], [0], [0], [1], [0, 0, 1, 1], [], []>} : vector<32x32xbf16>, vector<32x512xbf16>, vector<32x512xf32> -> vector<32x512xf32>
    %c0_147 = arith.constant 0 : index
    %c0_148 = arith.constant 0 : index
    %505 = vector.load %arg14[%c0_147, %c0_148] : memref<32x1xf32, #tpu.memory_space<vmem>>, vector<32x1xf32>
    %506 = vector.broadcast %505 : vector<32x1xf32> to vector<32x512xf32>
    %507 = arith.addf %504, %506 : vector<32x512xf32>
    %cst_149 = arith.constant 5.000000e-01 : f32
    %508 = vector.broadcast %cst_149 : f32 to vector<32x512xf32>
    %509 = arith.mulf %508, %507 : vector<32x512xf32>
    %cst_150 = arith.constant 4.471500e-02 : f32
    %510 = vector.broadcast %cst_150 : f32 to vector<32x512xf32>
    %511 = arith.mulf %510, %507 : vector<32x512xf32>
    %512 = arith.mulf %511, %507 : vector<32x512xf32>
    %513 = arith.mulf %512, %507 : vector<32x512xf32>
    %514 = arith.addf %507, %513 : vector<32x512xf32>
    %cst_151 = arith.constant 0.797884583 : f32
    %515 = vector.broadcast %cst_151 : f32 to vector<32x512xf32>
    %516 = arith.mulf %515, %514 : vector<32x512xf32>
    %517 = math.tanh %516 : vector<32x512xf32>
    %cst_152 = arith.constant 1.000000e+00 : f32
    %518 = vector.broadcast %cst_152 : f32 to vector<32x512xf32>
    %519 = arith.addf %518, %517 : vector<32x512xf32>
    %520 = arith.mulf %509, %519 : vector<32x512xf32>
    %521 = arith.mulf %520, %25 : vector<32x512xf32>
    %522 = arith.addf %521, %1 : vector<32x512xf32>
    %cst_153 = arith.constant dense<0.000000e+00> : vector<512xf32>
    %523 = vector.multi_reduction <add>, %522, %cst_153 [0] : vector<32x512xf32> to vector<512xf32>
    %524 = vector.shape_cast %523 : vector<512xf32> to vector<1x512xf32>
    %cst_154 = arith.constant 3.200000e+01 : f32
    %525 = vector.broadcast %cst_154 : f32 to vector<1x512xf32>
    %526 = arith.divf %524, %525 : vector<1x512xf32>
    %527 = vector.broadcast %526 : vector<1x512xf32> to vector<32x512xf32>
    %528 = arith.subf %522, %527 : vector<32x512xf32>
    %529 = arith.mulf %528, %528 : vector<32x512xf32>
    %cst_155 = arith.constant dense<0.000000e+00> : vector<512xf32>
    %530 = vector.multi_reduction <add>, %529, %cst_155 [0] : vector<32x512xf32> to vector<512xf32>
    %531 = vector.shape_cast %530 : vector<512xf32> to vector<1x512xf32>
    %cst_156 = arith.constant 3.200000e+01 : f32
    %532 = vector.broadcast %cst_156 : f32 to vector<1x512xf32>
    %533 = arith.divf %531, %532 : vector<1x512xf32>
    %c0_157 = arith.constant 0 : index
    %c0_158 = arith.constant 0 : index
    %534 = vector.load %arg9[%c0_157, %c0_158] : memref<32x1xf32, #tpu.memory_space<vmem>>, vector<32x1xf32>
    %535 = vector.broadcast %526 : vector<1x512xf32> to vector<32x512xf32>
    %536 = arith.subf %522, %535 : vector<32x512xf32>
    %cst_159 = arith.constant 9.99999997E-7 : f32
    %537 = vector.broadcast %cst_159 : f32 to vector<1x512xf32>
    %538 = arith.addf %533, %537 : vector<1x512xf32>
    %539 = math.rsqrt %538 : vector<1x512xf32>
    %540 = vector.broadcast %539 : vector<1x512xf32> to vector<32x512xf32>
    %541 = arith.mulf %536, %540 : vector<32x512xf32>
    %542 = vector.broadcast %534 : vector<32x1xf32> to vector<32x512xf32>
    %543 = arith.mulf %542, %541 : vector<32x512xf32>
    %c0_160 = arith.constant 0 : index
    %c0_161 = arith.constant 0 : index
    %544 = vector.load %arg10[%c0_160, %c0_161] : memref<32x1xf32, #tpu.memory_space<vmem>>, vector<32x1xf32>
    %545 = vector.broadcast %544 : vector<32x1xf32> to vector<32x512xf32>
    %546 = arith.addf %543, %545 : vector<32x512xf32>
    %547 = vector.extract_strided_slice %26 {offsets = [0, 0], sizes = [1, 512], strides = [1, 1]} : vector<9x512xf32> to vector<1x512xf32>
    %c17_i32_162 = arith.constant 17 : i32
    %548 = tpu.dynamic_rotate %546 by %c17_i32_162 dim 1 : vector<32x512xf32>, i32 -> vector<32x512xf32>
    %549 = vector.broadcast %547 : vector<1x512xf32> to vector<32x512xf32>
    %550 = arith.mulf %549, %548 : vector<32x512xf32>
    %551 = arith.truncf %550 : vector<32x512xf32> to vector<32x512xbf16>
    %c0_163 = arith.constant 0 : index
    %c0_164 = arith.constant 0 : index
    %552 = vector.load %arg21[%c0_163, %c0_164] : memref<288x512xbf16, #tpu.memory_space<vmem>>, vector<32x512xbf16>
    tpu.vector_store %arg21[%c0_163, %c0_164], %551 {strides = array<i32>} : memref<288x512xbf16, #tpu.memory_space<vmem>>, vector<32x512xbf16>,
    %553 = vector.extract_strided_slice %26 {offsets = [1, 0], sizes = [1, 512], strides = [1, 1]} : vector<9x512xf32> to vector<1x512xf32>
    %c16_i32_165 = arith.constant 16 : i32
    %554 = tpu.dynamic_rotate %546 by %c16_i32_165 dim 1 : vector<32x512xf32>, i32 -> vector<32x512xf32>
    %555 = vector.broadcast %553 : vector<1x512xf32> to vector<32x512xf32>
    %556 = arith.mulf %555, %554 : vector<32x512xf32>
    %557 = arith.truncf %556 : vector<32x512xf32> to vector<32x512xbf16>
    %c32_166 = arith.constant 32 : index
    %c0_167 = arith.constant 0 : index
    %558 = vector.load %arg21[%c32_166, %c0_167] : memref<288x512xbf16, #tpu.memory_space<vmem>>, vector<32x512xbf16>
    tpu.vector_store %arg21[%c32_166, %c0_167], %557 {strides = array<i32>} : memref<288x512xbf16, #tpu.memory_space<vmem>>, vector<32x512xbf16>,
    %559 = vector.extract_strided_slice %26 {offsets = [2, 0], sizes = [1, 512], strides = [1, 1]} : vector<9x512xf32> to vector<1x512xf32>
    %c15_i32_168 = arith.constant 15 : i32
    %560 = tpu.dynamic_rotate %546 by %c15_i32_168 dim 1 : vector<32x512xf32>, i32 -> vector<32x512xf32>
    %561 = vector.broadcast %559 : vector<1x512xf32> to vector<32x512xf32>
    %562 = arith.mulf %561, %560 : vector<32x512xf32>
    %563 = arith.truncf %562 : vector<32x512xf32> to vector<32x512xbf16>
    %c64 = arith.constant 64 : index
    %c0_169 = arith.constant 0 : index
    %564 = vector.load %arg21[%c64, %c0_169] : memref<288x512xbf16, #tpu.memory_space<vmem>>, vector<32x512xbf16>
    tpu.vector_store %arg21[%c64, %c0_169], %563 {strides = array<i32>} : memref<288x512xbf16, #tpu.memory_space<vmem>>, vector<32x512xbf16>,
    %565 = vector.extract_strided_slice %26 {offsets = [3, 0], sizes = [1, 512], strides = [1, 1]} : vector<9x512xf32> to vector<1x512xf32>
    %c1_i32_170 = arith.constant 1 : i32
    %566 = tpu.dynamic_rotate %546 by %c1_i32_170 dim 1 : vector<32x512xf32>, i32 -> vector<32x512xf32>
    %567 = vector.broadcast %565 : vector<1x512xf32> to vector<32x512xf32>
    %568 = arith.mulf %567, %566 : vector<32x512xf32>
    %569 = arith.truncf %568 : vector<32x512xf32> to vector<32x512xbf16>
    %c96 = arith.constant 96 : index
    %c0_171 = arith.constant 0 : index
    %570 = vector.load %arg21[%c96, %c0_171] : memref<288x512xbf16, #tpu.memory_space<vmem>>, vector<32x512xbf16>
    tpu.vector_store %arg21[%c96, %c0_171], %569 {strides = array<i32>} : memref<288x512xbf16, #tpu.memory_space<vmem>>, vector<32x512xbf16>,
    %571 = vector.extract_strided_slice %26 {offsets = [4, 0], sizes = [1, 512], strides = [1, 1]} : vector<9x512xf32> to vector<1x512xf32>
    %572 = vector.broadcast %571 : vector<1x512xf32> to vector<32x512xf32>
    %573 = arith.mulf %572, %546 : vector<32x512xf32>
    %574 = arith.truncf %573 : vector<32x512xf32> to vector<32x512xbf16>
    %c128 = arith.constant 128 : index
    %c0_172 = arith.constant 0 : index
    %575 = vector.load %arg21[%c128, %c0_172] : memref<288x512xbf16, #tpu.memory_space<vmem>>, vector<32x512xbf16>
    tpu.vector_store %arg21[%c128, %c0_172], %574 {strides = array<i32>} : memref<288x512xbf16, #tpu.memory_space<vmem>>, vector<32x512xbf16>,
    %576 = vector.extract_strided_slice %26 {offsets = [5, 0], sizes = [1, 512], strides = [1, 1]} : vector<9x512xf32> to vector<1x512xf32>
    %c511_i32_173 = arith.constant 511 : i32
    %577 = tpu.dynamic_rotate %546 by %c511_i32_173 dim 1 : vector<32x512xf32>, i32 -> vector<32x512xf32>
    %578 = vector.broadcast %576 : vector<1x512xf32> to vector<32x512xf32>
    %579 = arith.mulf %578, %577 : vector<32x512xf32>
    %580 = arith.truncf %579 : vector<32x512xf32> to vector<32x512xbf16>
    %c160 = arith.constant 160 : index
    %c0_174 = arith.constant 0 : index
    %581 = vector.load %arg21[%c160, %c0_174] : memref<288x512xbf16, #tpu.memory_space<vmem>>, vector<32x512xbf16>
    tpu.vector_store %arg21[%c160, %c0_174], %580 {strides = array<i32>} : memref<288x512xbf16, #tpu.memory_space<vmem>>, vector<32x512xbf16>,
    %582 = vector.extract_strided_slice %26 {offsets = [6, 0], sizes = [1, 512], strides = [1, 1]} : vector<9x512xf32> to vector<1x512xf32>
    %c497_i32_175 = arith.constant 497 : i32
    %583 = tpu.dynamic_rotate %546 by %c497_i32_175 dim 1 : vector<32x512xf32>, i32 -> vector<32x512xf32>
    %584 = vector.broadcast %582 : vector<1x512xf32> to vector<32x512xf32>
    %585 = arith.mulf %584, %583 : vector<32x512xf32>
    %586 = arith.truncf %585 : vector<32x512xf32> to vector<32x512xbf16>
    %c192 = arith.constant 192 : index
    %c0_176 = arith.constant 0 : index
    %587 = vector.load %arg21[%c192, %c0_176] : memref<288x512xbf16, #tpu.memory_space<vmem>>, vector<32x512xbf16>
    tpu.vector_store %arg21[%c192, %c0_176], %586 {strides = array<i32>} : memref<288x512xbf16, #tpu.memory_space<vmem>>, vector<32x512xbf16>,
    %588 = vector.extract_strided_slice %26 {offsets = [7, 0], sizes = [1, 512], strides = [1, 1]} : vector<9x512xf32> to vector<1x512xf32>
    %c496_i32_177 = arith.constant 496 : i32
    %589 = tpu.dynamic_rotate %546 by %c496_i32_177 dim 1 : vector<32x512xf32>, i32 -> vector<32x512xf32>
    %590 = vector.broadcast %588 : vector<1x512xf32> to vector<32x512xf32>
    %591 = arith.mulf %590, %589 : vector<32x512xf32>
    %592 = arith.truncf %591 : vector<32x512xf32> to vector<32x512xbf16>
    %c224 = arith.constant 224 : index
    %c0_178 = arith.constant 0 : index
    %593 = vector.load %arg21[%c224, %c0_178] : memref<288x512xbf16, #tpu.memory_space<vmem>>, vector<32x512xbf16>
    tpu.vector_store %arg21[%c224, %c0_178], %592 {strides = array<i32>} : memref<288x512xbf16, #tpu.memory_space<vmem>>, vector<32x512xbf16>,
    %594 = vector.extract_strided_slice %26 {offsets = [8, 0], sizes = [1, 512], strides = [1, 1]} : vector<9x512xf32> to vector<1x512xf32>
    %c495_i32_179 = arith.constant 495 : i32
    %595 = tpu.dynamic_rotate %546 by %c495_i32_179 dim 1 : vector<32x512xf32>, i32 -> vector<32x512xf32>
    %596 = vector.broadcast %594 : vector<1x512xf32> to vector<32x512xf32>
    %597 = arith.mulf %596, %595 : vector<32x512xf32>
    %598 = arith.truncf %597 : vector<32x512xf32> to vector<32x512xbf16>
    %c256 = arith.constant 256 : index
    %c0_180 = arith.constant 0 : index
    %599 = vector.load %arg21[%c256, %c0_180] : memref<288x512xbf16, #tpu.memory_space<vmem>>, vector<32x512xbf16>
    tpu.vector_store %arg21[%c256, %c0_180], %598 {strides = array<i32>} : memref<288x512xbf16, #tpu.memory_space<vmem>>, vector<32x512xbf16>,
    %c0_181 = arith.constant 0 : index
    %c0_182 = arith.constant 0 : index
    %600 = vector.load %arg21[%c0_181, %c0_182] : memref<288x512xbf16, #tpu.memory_space<vmem>>, vector<288x512xbf16>
    %c0_183 = arith.constant 0 : index
    %c0_184 = arith.constant 0 : index
    %601 = vector.load %arg15[%c0_183, %c0_184] : memref<64x288xbf16, #tpu.memory_space<vmem>>, vector<64x288xbf16>
    %cst_185 = arith.constant dense<0.000000e+00> : vector<64x512xf32>
    %602 = tpu.matmul %601, %600, %cst_185 {dimension_numbers = #tpu.dot_dimension_numbers<[1], [0], [0], [1], [0, 0, 1, 1], [], []>} : vector<64x288xbf16>, vector<288x512xbf16>, vector<64x512xf32> -> vector<64x512xf32>
    %c0_186 = arith.constant 0 : index
    %c0_187 = arith.constant 0 : index
    %603 = vector.load %arg16[%c0_186, %c0_187] : memref<64x1xf32, #tpu.memory_space<vmem>>, vector<64x1xf32>
    %604 = vector.broadcast %603 : vector<64x1xf32> to vector<64x512xf32>
    %605 = arith.addf %602, %604 : vector<64x512xf32>
    %cst_188 = arith.constant 5.000000e-01 : f32
    %606 = vector.broadcast %cst_188 : f32 to vector<64x512xf32>
    %607 = arith.mulf %606, %605 : vector<64x512xf32>
    %cst_189 = arith.constant 4.471500e-02 : f32
    %608 = vector.broadcast %cst_189 : f32 to vector<64x512xf32>
    %609 = arith.mulf %608, %605 : vector<64x512xf32>
    %610 = arith.mulf %609, %605 : vector<64x512xf32>
    %611 = arith.mulf %610, %605 : vector<64x512xf32>
    %612 = arith.addf %605, %611 : vector<64x512xf32>
    %cst_190 = arith.constant 0.797884583 : f32
    %613 = vector.broadcast %cst_190 : f32 to vector<64x512xf32>
    %614 = arith.mulf %613, %612 : vector<64x512xf32>
    %615 = math.tanh %614 : vector<64x512xf32>
    %cst_191 = arith.constant 1.000000e+00 : f32
    %616 = vector.broadcast %cst_191 : f32 to vector<64x512xf32>
    %617 = arith.addf %616, %615 : vector<64x512xf32>
    %618 = arith.mulf %607, %617 : vector<64x512xf32>
    %c0_192 = arith.constant 0 : index
    %c0_193 = arith.constant 0 : index
    %619 = vector.load %arg17[%c0_192, %c0_193] : memref<32x64xbf16, #tpu.memory_space<vmem>>, vector<32x64xbf16>
    %620 = arith.truncf %618 : vector<64x512xf32> to vector<64x512xbf16>
    %cst_194 = arith.constant dense<0.000000e+00> : vector<32x512xf32>
    %621 = tpu.matmul %619, %620, %cst_194 {dimension_numbers = #tpu.dot_dimension_numbers<[1], [0], [0], [1], [0, 0, 1, 1], [], []>} : vector<32x64xbf16>, vector<64x512xbf16>, vector<32x512xf32> -> vector<32x512xf32>
    %c0_195 = arith.constant 0 : index
    %c0_196 = arith.constant 0 : index
    %622 = vector.load %arg18[%c0_195, %c0_196] : memref<32x1xf32, #tpu.memory_space<vmem>>, vector<32x1xf32>
    %623 = vector.broadcast %622 : vector<32x1xf32> to vector<32x512xf32>
    %624 = arith.addf %621, %623 : vector<32x512xf32>
    %625 = arith.addf %522, %624 : vector<32x512xf32>
    %c0_197 = arith.constant 0 : index
    %c0_198 = arith.constant 0 : index
    %c0_199 = arith.constant 0 : index
    %626 = vector.load %arg19[%c0_197, %c0_198, %c0_199] : memref<1x32x512xf32, #tpu.memory_space<vmem>>, vector<1x32x512xf32>
    %627 = vector.shape_cast %626 : vector<1x32x512xf32> to vector<32x512xf32>
    %628 = vector.shape_cast %625 : vector<32x512xf32> to vector<1x32x512xf32>
    tpu.vector_store %arg19[%c0_197, %c0_198, %c0_199], %628 {strides = array<i32>} : memref<1x32x512xf32, #tpu.memory_space<vmem>>, vector<1x32x512xf32>,
    return
  }
  func.func @transform_0(%arg0: i32) -> (i32, i32, i32) {
    %c0_i32 = arith.constant 0 : i32
    %c0_i32_0 = arith.constant 0 : i32
    %c0_i32_1 = arith.constant 0 : i32
    return %arg0, %c0_i32, %c0_i32_0 : i32, i32, i32
  }
  func.func @transform_1(%arg0: i32) -> (i32, i32) {
    %c0_i32 = arith.constant 0 : i32
    %c0_i32_0 = arith.constant 0 : i32
    %c0_i32_1 = arith.constant 0 : i32
    return %c0_i32, %c0_i32_0 : i32, i32
  }
  func.func @transform_2(%arg0: i32) -> (i32, i32) {
    %c0_i32 = arith.constant 0 : i32
    %c0_i32_0 = arith.constant 0 : i32
    %c0_i32_1 = arith.constant 0 : i32
    return %c0_i32, %c0_i32_0 : i32, i32
  }
  func.func @transform_3(%arg0: i32) -> (i32, i32) {
    %c0_i32 = arith.constant 0 : i32
    %c0_i32_0 = arith.constant 0 : i32
    %c0_i32_1 = arith.constant 0 : i32
    return %c0_i32, %c0_i32_0 : i32, i32
  }
  func.func @transform_4(%arg0: i32) -> (i32, i32) {
    %c0_i32 = arith.constant 0 : i32
    %c0_i32_0 = arith.constant 0 : i32
    %c0_i32_1 = arith.constant 0 : i32
    return %c0_i32, %c0_i32_0 : i32, i32
  }
  func.func @transform_5(%arg0: i32) -> (i32, i32) {
    %c0_i32 = arith.constant 0 : i32
    %c0_i32_0 = arith.constant 0 : i32
    %c0_i32_1 = arith.constant 0 : i32
    return %c0_i32, %c0_i32_0 : i32, i32
  }
  func.func @transform_6(%arg0: i32) -> (i32, i32) {
    %c0_i32 = arith.constant 0 : i32
    %c0_i32_0 = arith.constant 0 : i32
    %c0_i32_1 = arith.constant 0 : i32
    return %c0_i32, %c0_i32_0 : i32, i32
  }
  func.func @transform_7(%arg0: i32) -> (i32, i32) {
    %c0_i32 = arith.constant 0 : i32
    %c0_i32_0 = arith.constant 0 : i32
    %c0_i32_1 = arith.constant 0 : i32
    return %c0_i32, %c0_i32_0 : i32, i32
  }
  func.func @transform_8(%arg0: i32) -> (i32, i32) {
    %c0_i32 = arith.constant 0 : i32
    %c0_i32_0 = arith.constant 0 : i32
    %c0_i32_1 = arith.constant 0 : i32
    return %c0_i32, %c0_i32_0 : i32, i32
  }
  func.func @transform_9(%arg0: i32) -> (i32, i32) {
    %c0_i32 = arith.constant 0 : i32
    %c0_i32_0 = arith.constant 0 : i32
    %c0_i32_1 = arith.constant 0 : i32
    return %c0_i32, %c0_i32_0 : i32, i32
  }
  func.func @transform_10(%arg0: i32) -> (i32, i32, i32) {
    %c0_i32 = arith.constant 0 : i32
    %c0_i32_0 = arith.constant 0 : i32
    %c0_i32_1 = arith.constant 0 : i32
    %c0_i32_2 = arith.constant 0 : i32
    return %c0_i32, %c0_i32_0, %c0_i32_1 : i32, i32, i32
  }
  func.func @transform_11(%arg0: i32) -> (i32, i32, i32) {
    %c0_i32 = arith.constant 0 : i32
    %c0_i32_0 = arith.constant 0 : i32
    %c0_i32_1 = arith.constant 0 : i32
    %c0_i32_2 = arith.constant 0 : i32
    return %c0_i32, %c0_i32_0, %c0_i32_1 : i32, i32, i32
  }
  func.func @transform_12(%arg0: i32) -> (i32, i32) {
    %c0_i32 = arith.constant 0 : i32
    %c0_i32_0 = arith.constant 0 : i32
    %c0_i32_1 = arith.constant 0 : i32
    return %c0_i32, %c0_i32_0 : i32, i32
  }
  func.func @transform_13(%arg0: i32) -> (i32, i32) {
    %c0_i32 = arith.constant 0 : i32
    %c0_i32_0 = arith.constant 0 : i32
    %c0_i32_1 = arith.constant 0 : i32
    return %c0_i32, %c0_i32_0 : i32, i32
  }
  func.func @transform_14(%arg0: i32) -> (i32, i32) {
    %c0_i32 = arith.constant 0 : i32
    %c0_i32_0 = arith.constant 0 : i32
    %c0_i32_1 = arith.constant 0 : i32
    return %c0_i32, %c0_i32_0 : i32, i32
  }
  func.func @transform_15(%arg0: i32) -> (i32, i32) {
    %c0_i32 = arith.constant 0 : i32
    %c0_i32_0 = arith.constant 0 : i32
    %c0_i32_1 = arith.constant 0 : i32
    return %c0_i32, %c0_i32_0 : i32, i32
  }
  func.func @transform_16(%arg0: i32) -> (i32, i32) {
    %c0_i32 = arith.constant 0 : i32
    %c0_i32_0 = arith.constant 0 : i32
    %c0_i32_1 = arith.constant 0 : i32
    return %c0_i32, %c0_i32_0 : i32, i32
  }
  func.func @transform_17(%arg0: i32) -> (i32, i32) {
    %c0_i32 = arith.constant 0 : i32
    %c0_i32_0 = arith.constant 0 : i32
    %c0_i32_1 = arith.constant 0 : i32
    return %c0_i32, %c0_i32_0 : i32, i32
  }
  func.func @transform_18(%arg0: i32) -> (i32, i32, i32) {
    %c0_i32 = arith.constant 0 : i32
    %c0_i32_0 = arith.constant 0 : i32
    %c0_i32_1 = arith.constant 0 : i32
    return %arg0, %c0_i32, %c0_i32_0 : i32, i32, i32
  }
}

</mosaic_0001>

<llo_original>
// kernel: tpu_custom_call.1
$region0: #{tpu_custom_call.1}
  #allocation0 [shape = 'u32[]', space=smem, size = 0x4, offset = 0x4, fixed_abs, tag = 'smem constant byte address 0x4 - core index']
  #allocation1 [shape = 'u32[144,128]{1,0:T(1,128)}', space=vmem, size = 0x12000, scoped, tag = 'internal scratch']
  #allocation2 [shape = 'f32[32,512]{1,0:T(8,128)}', space=vmem, size = 0x10000, scoped, tag = 'scratch operand']
  #allocation3 [shape = 'bf16[288,512]{1,0:T(8,128)(2,1)}', space=vmem, size = 0x48000, scoped, tag = 'scratch operand']
  %s0 = inlined_call_operand.vmem [shape: f32[2,32,512], index: 0, kind: input, shape index: {}]
  %s1 = inlined_call_operand.vmem [shape: f32[9,512], index: 1, kind: input, shape index: {}]
  %s2 = inlined_call_operand.vmem [shape: f32[9,512], index: 2, kind: input, shape index: {}]
  %s3 = inlined_call_operand.vmem [shape: f32[9,512], index: 3, kind: input, shape index: {}]
  %s4 = inlined_call_operand.hbm [shape: f32[9,512], index: 4, kind: input, shape index: {}]
  %s5 = inlined_call_operand.vmem [shape: f32[6,512], index: 5, kind: input, shape index: {}]
  %s6 = inlined_call_operand.vmem [shape: f32[32,1], index: 6, kind: input, shape index: {}]
  %s7 = inlined_call_operand.vmem [shape: f32[32,1], index: 7, kind: input, shape index: {}]
  %s8 = inlined_call_operand.vmem [shape: f32[32,1], index: 8, kind: input, shape index: {}]
  %s9 = inlined_call_operand.vmem [shape: f32[32,1], index: 9, kind: input, shape index: {}]
  %s10 = inlined_call_operand.vmem [shape: f32[36,8,1], index: 10, kind: input, shape index: {}]
  %s11 = inlined_call_operand.vmem [shape: f32[4,8,1], index: 11, kind: input, shape index: {}]
  %s12 = inlined_call_operand.vmem [shape: bf16[32,32], index: 12, kind: input, shape index: {}]
  %s13 = inlined_call_operand.vmem [shape: f32[32,1], index: 13, kind: input, shape index: {}]
  %s14 = inlined_call_operand.vmem [shape: bf16[64,288], index: 14, kind: input, shape index: {}]
  %s15 = inlined_call_operand.vmem [shape: f32[64,1], index: 15, kind: input, shape index: {}]
  %s16 = inlined_call_operand.vmem [shape: bf16[32,64], index: 16, kind: input, shape index: {}]
  %s17 = inlined_call_operand.vmem [shape: f32[32,1], index: 17, kind: input, shape index: {}]
  %s18 = inlined_call_operand.hbm [shape: f32[2,32,512], index: 18, kind: output, shape index: {}]
  %s19 = sld [smem:[#allocation0]]
  $region109: #{tpu_custom_call.1} parent=0
    _
  %s21 = ssub.s32 1, %s19
  %s22 = scalar_select 0, %s21, %s19
  $region1: #{tpu_custom_call.1} parent=0
    #allocation4 [shape = 'u8[32768]{0}', space=vmem, size = 0x8000, scoped, tag = 'input window, operand 4, single buffered']
    #allocation5 [shape = 's32[2]{0}', space=sflag, size = 0x8, scoped, tag = 'scoped memory for tpu_custom_call.1']
    #allocation6 [shape = 's32[2]{0}', space=sflag, size = 0x8, scoped, tag = 'scoped memory for tpu_custom_call.1']
    #allocation7 [shape = 'u8[131072]{0}', space=vmem, size = 0x20000, scoped, tag = 'output window, operand 0']
    %23 = vsyncpa [#allocation5], 0
    %24 = vsyncpa [#allocation6], 0
    %s25 = scalar_lea.sflag [#allocation6], 1
    %26 = vsyncpa %s25, 0
    loop: start=0, step=1, limit=4
    $region2: #{tpu_custom_call.1} parent=1 // loop_pre_header
      _
    $region3: #{tpu_custom_call.1} parent=1 // loop_header
      %s28 = sphi 0, %s32
      %p29 = scmp.ge.s32.totalorder %s28, 4
      %s38 = sphi 0, %s40
      %s41 = sphi 0, %s38
      %s42 = sphi 0, %s41
      %s58 = sphi 0, %s42
      %s62 = sphi 0, %s62
      %s64 = sphi 0, %s62
      %s65 = sphi 0, %s64
      %s79 = sphi 0, %s65
      %s83 = sphi 0, %s83
      %s85 = sphi 0, %s83
      %s86 = sphi 0, %s85
      %s100 = sphi 0, %s86
      %s104 = sphi 0, %s104
      %s106 = sphi 0, %s104
      %s107 = sphi 0, %s106
      %s121 = sphi 0, %s107
      %s125 = sphi 0, %s125
      %s127 = sphi 0, %s125
      %s128 = sphi 0, %s127
      %s142 = sphi 0, %s128
      %s146 = sphi 0, %s146
      %s148 = sphi 0, %s146
      %s149 = sphi 0, %s148
      %s163 = sphi 0, %s149
      %s167 = sphi 0, %s167
      %s169 = sphi 0, %s167
      %s170 = sphi 0, %s169
      %s184 = sphi 0, %s170
      %s188 = sphi 0, %s188
      %s190 = sphi 0, %s188
      %s191 = sphi 0, %s190
      %s205 = sphi 0, %s191
      %s209 = sphi 0, %s209
      %s211 = sphi 0, %s209
      %s212 = sphi 0, %s211
      %s226 = sphi 0, %s212
      %s230 = sphi 0, %s230
      %s232 = sphi 0, %s230
      %s233 = sphi 0, %s232
      %s247 = sphi 0, %s233
      %s251 = sphi 0, %s251
      %s253 = sphi 0, %s251
      %s254 = sphi 0, %s253
      %s268 = sphi 0, %s254
      %s272 = sphi 0, %s272
      %s274 = sphi 0, %s272
      %s275 = sphi 0, %s274
      %s289 = sphi 0, %s275
      %s293 = sphi 0, %s293
      %s295 = sphi 0, %s293
      %s296 = sphi 0, %s295
      %s310 = sphi 0, %s296
      %s314 = sphi 0, %s314
      %s316 = sphi 0, %s314
      %s317 = sphi 0, %s316
      %s331 = sphi 0, %s317
      %s335 = sphi 0, %s335
      %s337 = sphi 0, %s335
      %s338 = sphi 0, %s337
      %s352 = sphi 0, %s338
      %s356 = sphi 0, %s356
      %s358 = sphi 0, %s356
      %s359 = sphi 0, %s358
      %s373 = sphi 0, %s359
      %s377 = sphi 0, %s377
      %s379 = sphi 0, %s377
      %s380 = sphi 0, %s379
      %s394 = sphi 0, %s380
      %s398 = sphi 0, %s398
      %s400 = sphi 0, %s398
      %s401 = sphi 0, %s400
      %s415 = sphi 0, %s401
      %s421 = sphi 0, %s423
      %s424 = sphi 0, %s421
      %s425 = sphi 0, %s424
      %s441 = sphi 0, %s425
    $region4: #{tpu_custom_call.1} parent=1 // loop_header_branch
      %31 = sbr.rel (%p29) target = $region8
    $region5: #{tpu_custom_call.1} parent=1 // loop_body
      %s33 = ssub.s32 %s28, 1
      %s34 = ssub.s32 %s28, 2
      %s35 = sadd.s32 %s28, 1
      %s36 = ssub.s32 %s28, %s35
      %p37 = scmp.eq.s32.totalorder %s36, 0
      %s39 = sadd.s32 %s38, 1
      %s40 = scalar_select %p37, %s38, %s39
      %p43 = pneg %p37
      %p44 = scmp.eq.s32.totalorder %s28, 1
      %p45 = por %p43, %p44
      %p46 = scmp.ne.s32.totalorder %s38, %s41
      %p47 = scmp.eq.s32.totalorder %s28, 0
      %p48 = por %p46, %p47
      %p49 = scmp.ne.s32.totalorder %s38, %s41
      %p50 = scmp.eq.s32.totalorder %s33, 1
      %p51 = por %p49, %p50
      %p52 = scmp.ne.s32.totalorder %s41, %s42
      %p53 = scmp.eq.s32.totalorder %s33, 0
      %p54 = por %p52, %p53
      %p55 = scmp.ne.s32.totalorder %s41, %s42
      %p56 = scmp.eq.s32.totalorder %s34, 1
      %p57 = por %p55, %p56
      %p59 = scmp.ne.s32.totalorder %s42, %s58
      %p60 = scmp.eq.s32.totalorder %s34, 0
      %p61 = por %p59, %p60
      %s63 = sadd.s32 %s62, 1
      %p66 = scmp.eq.s32.totalorder %s28, 1
      %p67 = scmp.ne.s32.totalorder %s62, %s64
      %p68 = scmp.eq.s32.totalorder %s28, 0
      %p69 = por %p67, %p68
      %p70 = scmp.ne.s32.totalorder %s62, %s64
      %p71 = scmp.eq.s32.totalorder %s33, 1
      %p72 = por %p70, %p71
      %p73 = scmp.ne.s32.totalorder %s64, %s65
      %p74 = scmp.eq.s32.totalorder %s33, 0
      %p75 = por %p73, %p74
      %p76 = scmp.ne.s32.totalorder %s64, %s65
      %p77 = scmp.eq.s32.totalorder %s34, 1
      %p78 = por %p76, %p77
      %p80 = scmp.ne.s32.totalorder %s65, %s79
      %p81 = scmp.eq.s32.totalorder %s34, 0
      %p82 = por %p80, %p81
      %s84 = sadd.s32 %s83, 1
      %p87 = scmp.eq.s32.totalorder %s28, 1
      %p88 = scmp.ne.s32.totalorder %s83, %s85
      %p89 = scmp.eq.s32.totalorder %s28, 0
      %p90 = por %p88, %p89
      %p91 = scmp.ne.s32.totalorder %s83, %s85
      %p92 = scmp.eq.s32.totalorder %s33, 1
      %p93 = por %p91, %p92
      %p94 = scmp.ne.s32.totalorder %s85, %s86
      %p95 = scmp.eq.s32.totalorder %s33, 0
      %p96 = por %p94, %p95
      %p97 = scmp.ne.s32.totalorder %s85, %s86
      %p98 = scmp.eq.s32.totalorder %s34, 1
      %p99 = por %p97, %p98
      %p101 = scmp.ne.s32.totalorder %s86, %s100
      %p102 = scmp.eq.s32.totalorder %s34, 0
      %p103 = por %p101, %p102
      %s105 = sadd.s32 %s104, 1
      %p108 = scmp.eq.s32.totalorder %s28, 1
      %p109 = scmp.ne.s32.totalorder %s104, %s106
      %p110 = scmp.eq.s32.totalorder %s28, 0
      %p111 = por %p109, %p110
      %p112 = scmp.ne.s32.totalorder %s104, %s106
      %p113 = scmp.eq.s32.totalorder %s33, 1
      %p114 = por %p112, %p113
      %p115 = scmp.ne.s32.totalorder %s106, %s107
      %p116 = scmp.eq.s32.totalorder %s33, 0
      %p117 = por %p115, %p116
      %p118 = scmp.ne.s32.totalorder %s106, %s107
      %p119 = scmp.eq.s32.totalorder %s34, 1
      %p120 = por %p118, %p119
      %p122 = scmp.ne.s32.totalorder %s107, %s121
      %p123 = scmp.eq.s32.totalorder %s34, 0
      %p124 = por %p122, %p123
      %s126 = sadd.s32 %s125, 1
      %p129 = scmp.eq.s32.totalorder %s28, 1
      %p130 = scmp.ne.s32.totalorder %s125, %s127
      %p131 = scmp.eq.s32.totalorder %s28, 0
      %p132 = por %p130, %p131
      %p133 = scmp.ne.s32.totalorder %s125, %s127
      %p134 = scmp.eq.s32.totalorder %s33, 1
      %p135 = por %p133, %p134
      %p136 = scmp.ne.s32.totalorder %s127, %s128
      %p137 = scmp.eq.s32.totalorder %s33, 0
      %p138 = por %p136, %p137
      %p139 = scmp.ne.s32.totalorder %s127, %s128
      %p140 = scmp.eq.s32.totalorder %s34, 1
      %p141 = por %p139, %p140
      %p143 = scmp.ne.s32.totalorder %s128, %s142
      %p144 = scmp.eq.s32.totalorder %s34, 0
      %p145 = por %p143, %p144
      %s147 = sadd.s32 %s146, 1
      %p150 = scmp.eq.s32.totalorder %s28, 1
      %p151 = scmp.ne.s32.totalorder %s146, %s148
      %p152 = scmp.eq.s32.totalorder %s28, 0
      %p153 = por %p151, %p152
      %p154 = scmp.ne.s32.totalorder %s146, %s148
      %p155 = scmp.eq.s32.totalorder %s33, 1
      %p156 = por %p154, %p155
      %p157 = scmp.ne.s32.totalorder %s148, %s149
      %p158 = scmp.eq.s32.totalorder %s33, 0
      %p159 = por %p157, %p158
      %p160 = scmp.ne.s32.totalorder %s148, %s149
      %p161 = scmp.eq.s32.totalorder %s34, 1
      %p162 = por %p160, %p161
      %p164 = scmp.ne.s32.totalorder %s149, %s163
      %p165 = scmp.eq.s32.totalorder %s34, 0
      %p166 = por %p164, %p165
      %s168 = sadd.s32 %s167, 1
      %p171 = scmp.eq.s32.totalorder %s28, 1
      %p172 = scmp.ne.s32.totalorder %s167, %s169
      %p173 = scmp.eq.s32.totalorder %s28, 0
      %p174 = por %p172, %p173
      %p175 = scmp.ne.s32.totalorder %s167, %s169
      %p176 = scmp.eq.s32.totalorder %s33, 1
      %p177 = por %p175, %p176
      %p178 = scmp.ne.s32.totalorder %s169, %s170
      %p179 = scmp.eq.s32.totalorder %s33, 0
      %p180 = por %p178, %p179
      %p181 = scmp.ne.s32.totalorder %s169, %s170
      %p182 = scmp.eq.s32.totalorder %s34, 1
      %p183 = por %p181, %p182
      %p185 = scmp.ne.s32.totalorder %s170, %s184
      %p186 = scmp.eq.s32.totalorder %s34, 0
      %p187 = por %p185, %p186
      %s189 = sadd.s32 %s188, 1
      %p192 = scmp.eq.s32.totalorder %s28, 1
      %p193 = scmp.ne.s32.totalorder %s188, %s190
      %p194 = scmp.eq.s32.totalorder %s28, 0
      %p195 = por %p193, %p194
      %p196 = scmp.ne.s32.totalorder %s188, %s190
      %p197 = scmp.eq.s32.totalorder %s33, 1
      %p198 = por %p196, %p197
      %p199 = scmp.ne.s32.totalorder %s190, %s191
      %p200 = scmp.eq.s32.totalorder %s33, 0
      %p201 = por %p199, %p200
      %p202 = scmp.ne.s32.totalorder %s190, %s191
      %p203 = scmp.eq.s32.totalorder %s34, 1
      %p204 = por %p202, %p203
      %p206 = scmp.ne.s32.totalorder %s191, %s205
      %p207 = scmp.eq.s32.totalorder %s34, 0
      %p208 = por %p206, %p207
      %s210 = sadd.s32 %s209, 1
      %p213 = scmp.eq.s32.totalorder %s28, 1
      %p214 = scmp.ne.s32.totalorder %s209, %s211
      %p215 = scmp.eq.s32.totalorder %s28, 0
      %p216 = por %p214, %p215
      %p217 = scmp.ne.s32.totalorder %s209, %s211
      %p218 = scmp.eq.s32.totalorder %s33, 1
      %p219 = por %p217, %p218
      %p220 = scmp.ne.s32.totalorder %s211, %s212
      %p221 = scmp.eq.s32.totalorder %s33, 0
      %p222 = por %p220, %p221
      %p223 = scmp.ne.s32.totalorder %s211, %s212
      %p224 = scmp.eq.s32.totalorder %s34, 1
      %p225 = por %p223, %p224
      %p227 = scmp.ne.s32.totalorder %s212, %s226
      %p228 = scmp.eq.s32.totalorder %s34, 0
      %p229 = por %p227, %p228
      %s231 = sadd.s32 %s230, 1
      %p234 = scmp.eq.s32.totalorder %s28, 1
      %p235 = scmp.ne.s32.totalorder %s230, %s232
      %p236 = scmp.eq.s32.totalorder %s28, 0
      %p237 = por %p235, %p236
      %p238 = scmp.ne.s32.totalorder %s230, %s232
      %p239 = scmp.eq.s32.totalorder %s33, 1
      %p240 = por %p238, %p239
      %p241 = scmp.ne.s32.totalorder %s232, %s233
      %p242 = scmp.eq.s32.totalorder %s33, 0
      %p243 = por %p241, %p242
      %p244 = scmp.ne.s32.totalorder %s232, %s233
      %p245 = scmp.eq.s32.totalorder %s34, 1
      %p246 = por %p244, %p245
      %p248 = scmp.ne.s32.totalorder %s233, %s247
      %p249 = scmp.eq.s32.totalorder %s34, 0
      %p250 = por %p248, %p249
      %s252 = sadd.s32 %s251, 1
      %p255 = scmp.eq.s32.totalorder %s28, 1
      %p256 = scmp.ne.s32.totalorder %s251, %s253
      %p257 = scmp.eq.s32.totalorder %s28, 0
      %p258 = por %p256, %p257
      %p259 = scmp.ne.s32.totalorder %s251, %s253
      %p260 = scmp.eq.s32.totalorder %s33, 1
      %p261 = por %p259, %p260
      %p262 = scmp.ne.s32.totalorder %s253, %s254
      %p263 = scmp.eq.s32.totalorder %s33, 0
      %p264 = por %p262, %p263
      %p265 = scmp.ne.s32.totalorder %s253, %s254
      %p266 = scmp.eq.s32.totalorder %s34, 1
      %p267 = por %p265, %p266
      %p269 = scmp.ne.s32.totalorder %s254, %s268
      %p270 = scmp.eq.s32.totalorder %s34, 0
      %p271 = por %p269, %p270
      %s273 = sadd.s32 %s272, 1
      %p276 = scmp.eq.s32.totalorder %s28, 1
      %p277 = scmp.ne.s32.totalorder %s272, %s274
      %p278 = scmp.eq.s32.totalorder %s28, 0
      %p279 = por %p277, %p278
      %p280 = scmp.ne.s32.totalorder %s272, %s274
      %p281 = scmp.eq.s32.totalorder %s33, 1
      %p282 = por %p280, %p281
      %p283 = scmp.ne.s32.totalorder %s274, %s275
      %p284 = scmp.eq.s32.totalorder %s33, 0
      %p285 = por %p283, %p284
      %p286 = scmp.ne.s32.totalorder %s274, %s275
      %p287 = scmp.eq.s32.totalorder %s34, 1
      %p288 = por %p286, %p287
      %p290 = scmp.ne.s32.totalorder %s275, %s289
      %p291 = scmp.eq.s32.totalorder %s34, 0
      %p292 = por %p290, %p291
      %s294 = sadd.s32 %s293, 1
      %p297 = scmp.eq.s32.totalorder %s28, 1
      %p298 = scmp.ne.s32.totalorder %s293, %s295
      %p299 = scmp.eq.s32.totalorder %s28, 0
      %p300 = por %p298, %p299
      %p301 = scmp.ne.s32.totalorder %s293, %s295
      %p302 = scmp.eq.s32.totalorder %s33, 1
      %p303 = por %p301, %p302
      %p304 = scmp.ne.s32.totalorder %s295, %s296
      %p305 = scmp.eq.s32.totalorder %s33, 0
      %p306 = por %p304, %p305
      %p307 = scmp.ne.s32.totalorder %s295, %s296
      %p308 = scmp.eq.s32.totalorder %s34, 1
      %p309 = por %p307, %p308
      %p311 = scmp.ne.s32.totalorder %s296, %s310
      %p312 = scmp.eq.s32.totalorder %s34, 0
      %p313 = por %p311, %p312
      %s315 = sadd.s32 %s314, 1
      %p318 = scmp.eq.s32.totalorder %s28, 1
      %p319 = scmp.ne.s32.totalorder %s314, %s316
      %p320 = scmp.eq.s32.totalorder %s28, 0
      %p321 = por %p319, %p320
      %p322 = scmp.ne.s32.totalorder %s314, %s316
      %p323 = scmp.eq.s32.totalorder %s33, 1
      %p324 = por %p322, %p323
      %p325 = scmp.ne.s32.totalorder %s316, %s317
      %p326 = scmp.eq.s32.totalorder %s33, 0
      %p327 = por %p325, %p326
      %p328 = scmp.ne.s32.totalorder %s316, %s317
      %p329 = scmp.eq.s32.totalorder %s34, 1
      %p330 = por %p328, %p329
      %p332 = scmp.ne.s32.totalorder %s317, %s331
      %p333 = scmp.eq.s32.totalorder %s34, 0
      %p334 = por %p332, %p333
      %s336 = sadd.s32 %s335, 1
      %p339 = scmp.eq.s32.totalorder %s28, 1
      %p340 = scmp.ne.s32.totalorder %s335, %s337
      %p341 = scmp.eq.s32.totalorder %s28, 0
      %p342 = por %p340, %p341
      %p343 = scmp.ne.s32.totalorder %s335, %s337
      %p344 = scmp.eq.s32.totalorder %s33, 1
      %p345 = por %p343, %p344
      %p346 = scmp.ne.s32.totalorder %s337, %s338
      %p347 = scmp.eq.s32.totalorder %s33, 0
      %p348 = por %p346, %p347
      %p349 = scmp.ne.s32.totalorder %s337, %s338
      %p350 = scmp.eq.s32.totalorder %s34, 1
      %p351 = por %p349, %p350
      %p353 = scmp.ne.s32.totalorder %s338, %s352
      %p354 = scmp.eq.s32.totalorder %s34, 0
      %p355 = por %p353, %p354
      %s357 = sadd.s32 %s356, 1
      %p360 = scmp.eq.s32.totalorder %s28, 1
      %p361 = scmp.ne.s32.totalorder %s356, %s358
      %p362 = scmp.eq.s32.totalorder %s28, 0
      %p363 = por %p361, %p362
      %p364 = scmp.ne.s32.totalorder %s356, %s358
      %p365 = scmp.eq.s32.totalorder %s33, 1
      %p366 = por %p364, %p365
      %p367 = scmp.ne.s32.totalorder %s358, %s359
      %p368 = scmp.eq.s32.totalorder %s33, 0
      %p369 = por %p367, %p368
      %p370 = scmp.ne.s32.totalorder %s358, %s359
      %p371 = scmp.eq.s32.totalorder %s34, 1
      %p372 = por %p370, %p371
      %p374 = scmp.ne.s32.totalorder %s359, %s373
      %p375 = scmp.eq.s32.totalorder %s34, 0
      %p376 = por %p374, %p375
      %s378 = sadd.s32 %s377, 1
      %p381 = scmp.eq.s32.totalorder %s28, 1
      %p382 = scmp.ne.s32.totalorder %s377, %s379
      %p383 = scmp.eq.s32.totalorder %s28, 0
      %p384 = por %p382, %p383
      %p385 = scmp.ne.s32.totalorder %s377, %s379
      %p386 = scmp.eq.s32.totalorder %s33, 1
      %p387 = por %p385, %p386
      %p388 = scmp.ne.s32.totalorder %s379, %s380
      %p389 = scmp.eq.s32.totalorder %s33, 0
      %p390 = por %p388, %p389
      %p391 = scmp.ne.s32.totalorder %s379, %s380
      %p392 = scmp.eq.s32.totalorder %s34, 1
      %p393 = por %p391, %p392
      %p395 = scmp.ne.s32.totalorder %s380, %s394
      %p396 = scmp.eq.s32.totalorder %s34, 0
      %p397 = por %p395, %p396
      %s399 = sadd.s32 %s398, 1
      %p402 = scmp.eq.s32.totalorder %s28, 1
      %p403 = scmp.ne.s32.totalorder %s398, %s400
      %p404 = scmp.eq.s32.totalorder %s28, 0
      %p405 = por %p403, %p404
      %p406 = scmp.ne.s32.totalorder %s398, %s400
      %p407 = scmp.eq.s32.totalorder %s33, 1
      %p408 = por %p406, %p407
      %p409 = scmp.ne.s32.totalorder %s400, %s401
      %p410 = scmp.eq.s32.totalorder %s33, 0
      %p411 = por %p409, %p410
      %p412 = scmp.ne.s32.totalorder %s400, %s401
      %p413 = scmp.eq.s32.totalorder %s34, 1
      %p414 = por %p412, %p413
      %p416 = scmp.ne.s32.totalorder %s401, %s415
      %p417 = scmp.eq.s32.totalorder %s34, 0
      %p418 = por %p416, %p417
      %s419 = ssub.s32 %s28, %s35
      %p420 = scmp.eq.s32.totalorder %s419, 0
      %s422 = sadd.s32 %s421, 1
      %s423 = scalar_select %p420, %s421, %s422
      %p426 = pneg %p420
      %p427 = scmp.eq.s32.totalorder %s28, 1
      %p428 = por %p426, %p427
      %p429 = scmp.ne.s32.totalorder %s421, %s424
      %p430 = scmp.eq.s32.totalorder %s28, 0
      %p431 = por %p429, %p430
      %p432 = scmp.ne.s32.totalorder %s421, %s424
      %p433 = scmp.eq.s32.totalorder %s33, 1
      %p434 = por %p432, %p433
      %p435 = scmp.ne.s32.totalorder %s424, %s425
      %p436 = scmp.eq.s32.totalorder %s33, 0
      %p437 = por %p435, %p436
      %p438 = scmp.ne.s32.totalorder %s424, %s425
      %p439 = scmp.eq.s32.totalorder %s34, 1
      %p440 = por %p438, %p439
      %p442 = scmp.ne.s32.totalorder %s425, %s441
      %p443 = scmp.eq.s32.totalorder %s34, 0
      %p444 = por %p442, %p443
      %p445 = scmp.le.s32.totalorder 1, %s28
      %p446 = scmp.lt.s32.totalorder %s28, 3
      %p447 = pnand %p445, %p446
      %p448 = pneg %p447
      // Predicated region
      $region9: #{tpu_custom_call.1} parent=5 // pred_check
        _
      $region10: #{tpu_custom_call.1} parent=5 // pred_check_branch
        %450 = sbr.rel (%p447) target = $region12
      $region11: #{tpu_custom_call.1} parent=5 // pred_region
        %s451 = ssub.s32 %s28, 1
        // Predicated region
        $region13: #{tpu_custom_call.1} parent=11 // pred_check
          %p452 = pneg %p75
        $region14: #{tpu_custom_call.1} parent=11 // pred_check_branch
          %454 = sbr.rel (%p452) target = $region16
        $region15: #{tpu_custom_call.1} parent=11 // pred_region
          _
        $region16: #{tpu_custom_call.1} parent=11 // pred_fallthru
          _
        // Predicated region
        $region17: #{tpu_custom_call.1} parent=11 // pred_check
          %p455 = pneg %p96
        $region18: #{tpu_custom_call.1} parent=11 // pred_check_branch
          %457 = sbr.rel (%p455) target = $region20
        $region19: #{tpu_custom_call.1} parent=11 // pred_region
          _
        $region20: #{tpu_custom_call.1} parent=11 // pred_fallthru
          _
        // Predicated region
        $region21: #{tpu_custom_call.1} parent=11 // pred_check
          %p458 = pneg %p117
        $region22: #{tpu_custom_call.1} parent=11 // pred_check_branch
          %460 = sbr.rel (%p458) target = $region24
        $region23: #{tpu_custom_call.1} parent=11 // pred_region
          _
        $region24: #{tpu_custom_call.1} parent=11 // pred_fallthru
          _
        // Predicated region
        $region25: #{tpu_custom_call.1} parent=11 // pred_check
          %p461 = pneg %p138
        $region26: #{tpu_custom_call.1} parent=11 // pred_check_branch
          %463 = sbr.rel (%p461) target = $region28
        $region27: #{tpu_custom_call.1} parent=11 // pred_region
          %s465 = ssub.s32 1024, 1024
          %466 = vsyncadd [#allocation5], %s465
          %s467 = sshll.u32 [#allocation4], 4
          %s468 = int_to_ptr.vmem [resolvable:$true] %s467
          %473 = dma.hbm_to_vmem [thread:$0]  %s4, 1024, %s468, [#allocation5], 512, 512, 32
        $region28: #{tpu_custom_call.1} parent=11 // pred_fallthru
          _
        // Predicated region
        $region29: #{tpu_custom_call.1} parent=11 // pred_check
          %p474 = pneg %p159
        $region30: #{tpu_custom_call.1} parent=11 // pred_check_branch
          %476 = sbr.rel (%p474) target = $region32
        $region31: #{tpu_custom_call.1} parent=11 // pred_region
          _
        $region32: #{tpu_custom_call.1} parent=11 // pred_fallthru
          _
        // Predicated region
        $region33: #{tpu_custom_call.1} parent=11 // pred_check
          %p477 = pneg %p180
        $region34: #{tpu_custom_call.1} parent=11 // pred_check_branch
          %479 = sbr.rel (%p477) target = $region36
        $region35: #{tpu_custom_call.1} parent=11 // pred_region
          _
        $region36: #{tpu_custom_call.1} parent=11 // pred_fallthru
          _
        // Predicated region
        $region37: #{tpu_custom_call.1} parent=11 // pred_check
          %p480 = pneg %p201
        $region38: #{tpu_custom_call.1} parent=11 // pred_check_branch
          %482 = sbr.rel (%p480) target = $region40
        $region39: #{tpu_custom_call.1} parent=11 // pred_region
          _
        $region40: #{tpu_custom_call.1} parent=11 // pred_fallthru
          _
        // Predicated region
        $region41: #{tpu_custom_call.1} parent=11 // pred_check
          %p483 = pneg %p222
        $region42: #{tpu_custom_call.1} parent=11 // pred_check_branch
          %485 = sbr.rel (%p483) target = $region44
        $region43: #{tpu_custom_call.1} parent=11 // pred_region
          _
        $region44: #{tpu_custom_call.1} parent=11 // pred_fallthru
          _
        // Predicated region
        $region45: #{tpu_custom_call.1} parent=11 // pred_check
          %p486 = pneg %p243
        $region46: #{tpu_custom_call.1} parent=11 // pred_check_branch
          %488 = sbr.rel (%p486) target = $region48
        $region47: #{tpu_custom_call.1} parent=11 // pred_region
          _
        $region48: #{tpu_custom_call.1} parent=11 // pred_fallthru
          _
        // Predicated region
        $region49: #{tpu_custom_call.1} parent=11 // pred_check
          %p489 = pneg %p264
        $region50: #{tpu_custom_call.1} parent=11 // pred_check_branch
          %491 = sbr.rel (%p489) target = $region52
        $region51: #{tpu_custom_call.1} parent=11 // pred_region
          _
        $region52: #{tpu_custom_call.1} parent=11 // pred_fallthru
          _
        // Predicated region
        $region53: #{tpu_custom_call.1} parent=11 // pred_check
          %p492 = pneg %p285
        $region54: #{tpu_custom_call.1} parent=11 // pred_check_branch
          %494 = sbr.rel (%p492) target = $region56
        $region55: #{tpu_custom_call.1} parent=11 // pred_region
          _
        $region56: #{tpu_custom_call.1} parent=11 // pred_fallthru
          _
        // Predicated region
        $region57: #{tpu_custom_call.1} parent=11 // pred_check
          %p495 = pneg %p306
        $region58: #{tpu_custom_call.1} parent=11 // pred_check_branch
          %497 = sbr.rel (%p495) target = $region60
        $region59: #{tpu_custom_call.1} parent=11 // pred_region
          _
        $region60: #{tpu_custom_call.1} parent=11 // pred_fallthru
          _
        // Predicated region
        $region61: #{tpu_custom_call.1} parent=11 // pred_check
          %p498 = pneg %p327
        $region62: #{tpu_custom_call.1} parent=11 // pred_check_branch
          %500 = sbr.rel (%p498) target = $region64
        $region63: #{tpu_custom_call.1} parent=11 // pred_region
          _
        $region64: #{tpu_custom_call.1} parent=11 // pred_fallthru
          _
        // Predicated region
        $region65: #{tpu_custom_call.1} parent=11 // pred_check
          %p501 = pneg %p348
        $region66: #{tpu_custom_call.1} parent=11 // pred_check_branch
          %503 = sbr.rel (%p501) target = $region68
        $region67: #{tpu_custom_call.1} parent=11 // pred_region
          _
        $region68: #{tpu_custom_call.1} parent=11 // pred_fallthru
          _
        // Predicated region
        $region69: #{tpu_custom_call.1} parent=11 // pred_check
          %p504 = pneg %p369
        $region70: #{tpu_custom_call.1} parent=11 // pred_check_branch
          %506 = sbr.rel (%p504) target = $region72
        $region71: #{tpu_custom_call.1} parent=11 // pred_region
          _
        $region72: #{tpu_custom_call.1} parent=11 // pred_fallthru
          _
        // Predicated region
        $region73: #{tpu_custom_call.1} parent=11 // pred_check
          %p507 = pneg %p390
        $region74: #{tpu_custom_call.1} parent=11 // pred_check_branch
          %509 = sbr.rel (%p507) target = $region76
        $region75: #{tpu_custom_call.1} parent=11 // pred_region
          _
        $region76: #{tpu_custom_call.1} parent=11 // pred_fallthru
          _
        // Predicated region
        $region77: #{tpu_custom_call.1} parent=11 // pred_check
          %p510 = pneg %p411
        $region78: #{tpu_custom_call.1} parent=11 // pred_check_branch
          %512 = sbr.rel (%p510) target = $region80
        $region79: #{tpu_custom_call.1} parent=11 // pred_region
          _
        $region80: #{tpu_custom_call.1} parent=11 // pred_fallthru
          _
      $region12: #{tpu_custom_call.1} parent=5 // pred_fallthru
        _
      %p513 = scmp.lt.s32.totalorder %s28, 2
      // Predicated region
      $region81: #{tpu_custom_call.1} parent=5 // pred_check
        %p514 = pneg %p513
      $region82: #{tpu_custom_call.1} parent=5 // pred_check_branch
        %516 = sbr.rel (%p514) target = $region84
      $region83: #{tpu_custom_call.1} parent=5 // pred_region
        // Predicated region
        $region85: #{tpu_custom_call.1} parent=83 // pred_check
          %p517 = pneg %p48
        $region86: #{tpu_custom_call.1} parent=83 // pred_check_branch
          %519 = sbr.rel (%p517) target = $region88
        $region87: #{tpu_custom_call.1} parent=83 // pred_region
          %p520 = scmp.lt.s32.totalorder %s28, 1
          %s521 = scalar_select %p520, %s28, 1
          %s522 = smul.addr %s521, 16
          %s523 = smul.addr %s522, 8
          %s524 = scalar_lea.vmem %s0, %s523
        $region88: #{tpu_custom_call.1} parent=83 // pred_fallthru
          _
      $region84: #{tpu_custom_call.1} parent=5 // pred_fallthru
        _
      %p525 = scmp.le.s32.totalorder 1, %s28
      %p526 = scmp.lt.s32.totalorder %s28, 3
      %p527 = pnand %p525, %p526
      %p528 = pneg %p527
      // Predicated region
      $region89: #{tpu_custom_call.1} parent=5 // pred_check
        _
      $region90: #{tpu_custom_call.1} parent=5 // pred_check_branch
        %530 = sbr.rel (%p527) target = $region92
      $region91: #{tpu_custom_call.1} parent=5 // pred_region
        %s531 = ssub.s32 %s28, 1
        // Predicated region
        $region93: #{tpu_custom_call.1} parent=91 // pred_check
          %p532 = pneg %p138
        $region94: #{tpu_custom_call.1} parent=91 // pred_check_branch
          %534 = sbr.rel (%p532) target = $region96
        $region95: #{tpu_custom_call.1} parent=91 // pred_region
          %535 = dma.done [#allocation5], 1024
        $region96: #{tpu_custom_call.1} parent=91 // pred_fallthru
          _
        %p536 = scmp.lt.s32.totalorder %s33, 1
        %s537 = scalar_select %p536, %s33, 1
        %s538 = smul.addr %s537, 16
        %s539 = smul.addr %s538, 8
        %s540 = scalar_lea.vmem %s0, %s539
        %p541 = pneg %p54
        %p542 = pneg %p51
        %p543 = pneg %p75
        %p544 = pneg %p72
        %p545 = pneg %p96
        %p546 = pneg %p93
        %p547 = pneg %p117
        %p548 = pneg %p114
        %p549 = pneg %p138
        %p550 = pneg %p135
        %p551 = pneg %p159
        %p552 = pneg %p156
        %p553 = pneg %p180
        %p554 = pneg %p177
        %p555 = pneg %p201
        %p556 = pneg %p198
        %p557 = pneg %p222
        %p558 = pneg %p219
        %p559 = pneg %p243
        %p560 = pneg %p240
        %p561 = pneg %p264
        %p562 = pneg %p261
        %p563 = pneg %p285
        %p564 = pneg %p282
        %p565 = pneg %p306
        %p566 = pneg %p303
        %p567 = pneg %p327
        %p568 = pneg %p324
        %p569 = pneg %p348
        %p570 = pneg %p345
        %p571 = pneg %p369
        %p572 = pneg %p366
        %p573 = pneg %p390
        %p574 = pneg %p387
        %p575 = pneg %p411
        %p576 = pneg %p408
        %p577 = pneg %p437
        %p578 = pneg %p434
        %s579 = sand.u32 %s424, 1
        %s580 = scalar_lea.sflag [#allocation6], %s579
        %s581 = sand.u32 %s424, 1
        %s582 = smul.addr %s581, 128
        %s583 = scalar_lea.vmem [#allocation7], %s582
        %p584 = scmp.lt.s32.totalorder %s33, 1
        %s585 = scalar_select %p584, %s33, 1
        %s586 = smul.addr %s585, 16
        %s587 = smul.addr %s586, 8
        %s588 = scalar_lea.vmem %s0, %s587
        %v590 = vld [vmem:[%s588] sm:$0xff]
        %v591 = vld [vmem:[%s588 + $0x8] sm:$0xff]
        %v592 = vld [vmem:[%s588 + $0x10] sm:$0xff]
        %v593 = vld [vmem:[%s588 + $0x18] sm:$0xff]
        %v594 = vld [vmem:[%s588 + $0x20] sm:$0xff]
        %v595 = vld [vmem:[%s588 + $0x28] sm:$0xff]
        %v596 = vld [vmem:[%s588 + $0x30] sm:$0xff]
        %v597 = vld [vmem:[%s588 + $0x38] sm:$0xff]
        %v598 = vld [vmem:[%s588 + $0x40] sm:$0xff]
        %v599 = vld [vmem:[%s588 + $0x48] sm:$0xff]
        %v600 = vld [vmem:[%s588 + $0x50] sm:$0xff]
        %v601 = vld [vmem:[%s588 + $0x58] sm:$0xff]
        %v602 = vld [vmem:[%s588 + $0x60] sm:$0xff]
        %v603 = vld [vmem:[%s588 + $0x68] sm:$0xff]
        %v604 = vld [vmem:[%s588 + $0x70] sm:$0xff]
        %v605 = vld [vmem:[%s588 + $0x78] sm:$0xff]
        %v606 = vadd.f32 %v590, %v594
        %v607 = vadd.f32 %v606, %v598
        %v608 = vadd.f32 %v607, %v602
        %v609 = vrot.slane %v608, 4
        %v610 = vadd.f32 %v608, %v609
        %v611 = vrot.slane %v610, 2
        %v612 = vadd.f32 %v610, %v611
        %v613 = vrot.slane %v612, 1
        %v614 = vadd.f32 %v612, %v613
        %v615 = vadd.f32 %v591, %v595
        %v616 = vadd.f32 %v615, %v599
        %v617 = vadd.f32 %v616, %v603
        %v618 = vrot.slane %v617, 4
        %v619 = vadd.f32 %v617, %v618
        %v620 = vrot.slane %v619, 2
        %v621 = vadd.f32 %v619, %v620
        %v622 = vrot.slane %v621, 1
        %v623 = vadd.f32 %v621, %v622
        %v624 = vadd.f32 %v592, %v596
        %v625 = vadd.f32 %v624, %v600
        %v626 = vadd.f32 %v625, %v604
        %v627 = vrot.slane %v626, 4
        %v628 = vadd.f32 %v626, %v627
        %v629 = vrot.slane %v628, 2
        %v630 = vadd.f32 %v628, %v629
        %v631 = vrot.slane %v630, 1
        %v632 = vadd.f32 %v630, %v631
        %v633 = vadd.f32 %v593, %v597
        %v634 = vadd.f32 %v633, %v601
        %v635 = vadd.f32 %v634, %v605
        %v636 = vrot.slane %v635, 4
        %v637 = vadd.f32 %v635, %v636
        %v638 = vrot.slane %v637, 2
        %v639 = vadd.f32 %v637, %v638
        %v640 = vrot.slane %v639, 1
        %v641 = vadd.f32 %v639, %v640
        %v642 = vrcp.pop 32.0
        %v643 = vmul.f32 %v614, %v642
        %v644 = vmul.f32 %v623, %v642
        %v645 = vmul.f32 %v632, %v642
        %v646 = vmul.f32 %v641, %v642
        %v647 = vsub.f32 %v590, %v643
        %v648 = vsub.f32 %v591, %v644
        %v649 = vsub.f32 %v592, %v645
        %v650 = vsub.f32 %v593, %v646
        %v651 = vsub.f32 %v594, %v643
        %v652 = vsub.f32 %v595, %v644
        %v653 = vsub.f32 %v596, %v645
        %v654 = vsub.f32 %v597, %v646
        %v655 = vsub.f32 %v598, %v643
        %v656 = vsub.f32 %v599, %v644
        %v657 = vsub.f32 %v600, %v645
        %v658 = vsub.f32 %v601, %v646
        %v659 = vsub.f32 %v602, %v643
        %v660 = vsub.f32 %v603, %v644
        %v661 = vsub.f32 %v604, %v645
        %v662 = vsub.f32 %v605, %v646
        %v663 = vmul.f32 %v647, %v647
        %v664 = vmul.f32 %v648, %v648
        %v665 = vmul.f32 %v649, %v649
        %v666 = vmul.f32 %v650, %v650
        %v667 = vmul.f32 %v651, %v651
        %v668 = vmul.f32 %v652, %v652
        %v669 = vmul.f32 %v653, %v653
        %v670 = vmul.f32 %v654, %v654
        %v671 = vmul.f32 %v655, %v655
        %v672 = vmul.f32 %v656, %v656
        %v673 = vmul.f32 %v657, %v657
        %v674 = vmul.f32 %v658, %v658
        %v675 = vmul.f32 %v659, %v659
        %v676 = vmul.f32 %v660, %v660
        %v677 = vmul.f32 %v661, %v661
        %v678 = vmul.f32 %v662, %v662
        %v679 = vadd.f32 %v663, %v667
        %v680 = vadd.f32 %v679, %v671
        %v681 = vadd.f32 %v680, %v675
        %v682 = vrot.slane %v681, 4
        %v683 = vadd.f32 %v681, %v682
        %v684 = vrot.slane %v683, 2
        %v685 = vadd.f32 %v683, %v684
        %v686 = vrot.slane %v685, 1
        %v687 = vadd.f32 %v685, %v686
        %v688 = vadd.f32 %v664, %v668
        %v689 = vadd.f32 %v688, %v672
        %v690 = vadd.f32 %v689, %v676
        %v691 = vrot.slane %v690, 4
        %v692 = vadd.f32 %v690, %v691
        %v693 = vrot.slane %v692, 2
        %v694 = vadd.f32 %v692, %v693
        %v695 = vrot.slane %v694, 1
        %v696 = vadd.f32 %v694, %v695
        %v697 = vadd.f32 %v665, %v669
        %v698 = vadd.f32 %v697, %v673
        %v699 = vadd.f32 %v698, %v677
        %v700 = vrot.slane %v699, 4
        %v701 = vadd.f32 %v699, %v700
        %v702 = vrot.slane %v701, 2
        %v703 = vadd.f32 %v701, %v702
        %v704 = vrot.slane %v703, 1
        %v705 = vadd.f32 %v703, %v704
        %v706 = vadd.f32 %v666, %v670
        %v707 = vadd.f32 %v706, %v674
        %v708 = vadd.f32 %v707, %v678
        %v709 = vrot.slane %v708, 4
        %v710 = vadd.f32 %v708, %v709
        %v711 = vrot.slane %v710, 2
        %v712 = vadd.f32 %v710, %v711
        %v713 = vrot.slane %v712, 1
        %v714 = vadd.f32 %v712, %v713
        %v715 = vmul.f32 %v687, %v642
        %v716 = vmul.f32 %v696, %v642
        %v717 = vmul.f32 %v705, %v642
        %v718 = vmul.f32 %v714, %v642
        %v719 = vld [vmem:[%s6] sm:$0xff]
        %v720 = vld [vmem:[%s6 + $0x8] sm:$0xff]
        %v721 = vld [vmem:[%s6 + $0x10] sm:$0xff]
        %v722 = vld [vmem:[%s6 + $0x18] sm:$0xff]
        %v723 = vadd.f32 %v715, 1e-06
        %v724 = vadd.f32 %v716, 1e-06
        %v725 = vadd.f32 %v717, 1e-06
        %v726 = vadd.f32 %v718, 1e-06
        %v727 = vrsqrt.pop %v723
        %v728 = vrsqrt.pop %v724
        %v729 = vrsqrt.pop %v725
        %v730 = vrsqrt.pop %v726
        %v731 = vmul.f32 %v647, %v727
        %v732 = vmul.f32 %v648, %v728
        %v733 = vmul.f32 %v649, %v729
        %v734 = vmul.f32 %v650, %v730
        %v735 = vmul.f32 %v651, %v727
        %v736 = vmul.f32 %v652, %v728
        %v737 = vmul.f32 %v653, %v729
        %v738 = vmul.f32 %v654, %v730
        %v739 = vmul.f32 %v655, %v727
        %v740 = vmul.f32 %v656, %v728
        %v741 = vmul.f32 %v657, %v729
        %v742 = vmul.f32 %v658, %v730
        %v743 = vmul.f32 %v659, %v727
        %v744 = vmul.f32 %v660, %v728
        %v745 = vmul.f32 %v661, %v729
        %v746 = vmul.f32 %v662, %v730
        %748 = vset.pattern.permute.xlu0 0
        %749 = vperm.xlu0 %748, %v719
        %v750 = vpop.permute.xlu0 %749
        %753 = vset.pattern.permute.xlu0 0
        %754 = vperm.xlu0 %753, %v720
        %v755 = vpop.permute.xlu0 %754
        %758 = vset.pattern.permute.xlu0 0
        %759 = vperm.xlu0 %758, %v721
        %v760 = vpop.permute.xlu0 %759
        %763 = vset.pattern.permute.xlu0 0
        %764 = vperm.xlu0 %763, %v722
        %v765 = vpop.permute.xlu0 %764
        %v767 = vmul.f32 %v750, %v731
        %v768 = vmul.f32 %v750, %v732
        %v769 = vmul.f32 %v750, %v733
        %v770 = vmul.f32 %v750, %v734
        %v771 = vmul.f32 %v755, %v735
        %v772 = vmul.f32 %v755, %v736
        %v773 = vmul.f32 %v755, %v737
        %v774 = vmul.f32 %v755, %v738
        %v775 = vmul.f32 %v760, %v739
        %v776 = vmul.f32 %v760, %v740
        %v777 = vmul.f32 %v760, %v741
        %v778 = vmul.f32 %v760, %v742
        %v779 = vmul.f32 %v765, %v743
        %v780 = vmul.f32 %v765, %v744
        %v781 = vmul.f32 %v765, %v745
        %v782 = vmul.f32 %v765, %v746
        %v783 = vld [vmem:[%s7] sm:$0xff]
        %v784 = vld [vmem:[%s7 + $0x8] sm:$0xff]
        %v785 = vld [vmem:[%s7 + $0x10] sm:$0xff]
        %v786 = vld [vmem:[%s7 + $0x18] sm:$0xff]
        %788 = vset.pattern.permute.xlu0 0
        %789 = vperm.xlu0 %788, %v783
        %v790 = vpop.permute.xlu0 %789
        %793 = vset.pattern.permute.xlu0 0
        %794 = vperm.xlu0 %793, %v784
        %v795 = vpop.permute.xlu0 %794
        %798 = vset.pattern.permute.xlu0 0
        %799 = vperm.xlu0 %798, %v785
        %v800 = vpop.permute.xlu0 %799
        %803 = vset.pattern.permute.xlu0 0
        %804 = vperm.xlu0 %803, %v786
        %v805 = vpop.permute.xlu0 %804
        %v807 = vadd.f32 %v767, %v790
        %v808 = vadd.f32 %v768, %v790
        %v809 = vadd.f32 %v769, %v790
        %v810 = vadd.f32 %v770, %v790
        %v811 = vadd.f32 %v771, %v795
        %v812 = vadd.f32 %v772, %v795
        %v813 = vadd.f32 %v773, %v795
        %v814 = vadd.f32 %v774, %v795
        %v815 = vadd.f32 %v775, %v800
        %v816 = vadd.f32 %v776, %v800
        %v817 = vadd.f32 %v777, %v800
        %v818 = vadd.f32 %v778, %v800
        %v819 = vadd.f32 %v779, %v805
        %v820 = vadd.f32 %v780, %v805
        %v821 = vadd.f32 %v781, %v805
        %v822 = vadd.f32 %v782, %v805
        %v823 = vld [vmem:[%s1] sm:$0xff]
        %v824 = vld [vmem:[%s1 + $0x8] sm:$0xff]
        %v825 = vld [vmem:[%s1 + $0x10] sm:$0xff]
        %v826 = vld [vmem:[%s1 + $0x18] sm:$0xff]
        %v827 = vld [vmem:[%s1 + $0x20] sm:$0x1]
        %v828 = vld [vmem:[%s1 + $0x28] sm:$0x1]
        %v829 = vld [vmem:[%s1 + $0x30] sm:$0x1]
        %v830 = vld [vmem:[%s1 + $0x38] sm:$0x1]
        %v831 = vld [vmem:[%s5] sm:$0x3f]
        %v832 = vld [vmem:[%s5 + $0x8] sm:$0x3f]
        %v833 = vld [vmem:[%s5 + $0x10] sm:$0x3f]
        %v834 = vld [vmem:[%s5 + $0x18] sm:$0x3f]
        %v835 = vsub.f32 1.0, %v831
        %v836 = vsub.f32 1.0, %v832
        %v837 = vsub.f32 1.0, %v833
        %v838 = vsub.f32 1.0, %v834
        %v839 = vld [vmem:[%s11] sm:$0xff]
        %841 = vset.pattern.permute.xlu0 0
        %842 = vperm.xlu0 %841, %v839
        %v843 = vpop.permute.xlu0 %842
        %v845 = vadd.f32 %v843, 0.0
        %v846 = vld [vmem:[%s10] sm:$0xff]
        %847 = vrot.lane.b32.xlu0 %v807, 17
        %v848 = vpop.permute.xlu0 %847
        %849 = vrot.lane.b32.xlu0 %v808, 17
        %v850 = vpop.permute.xlu0 %849
        %851 = vrot.lane.b32.xlu0 %v809, 17
        %v852 = vpop.permute.xlu0 %851
        %853 = vrot.lane.b32.xlu0 %v810, 17
        %v854 = vpop.permute.xlu0 %853
        %v855 = vlaneseq
        %v856 = vand.u32 %v855, 127
        %vm857 = vcmp.lt.s32.totalorder %v856, 17
        %v858 = vsel %vm857, %v852, %v854
        %v859 = vsel %vm857, %v850, %v852
        %v860 = vsel %vm857, %v848, %v850
        %v861 = vsel %vm857, %v854, %v848
        %v862 = vlaneseq
        %v863 = vshrl.u32 %v862, 7
        %v864 = vsub.s32 0, %v863
        %v865 = vrot.slane %v823, %v864
        %v866 = vlaneseq
        %v867 = vshrl.u32 %v866, 7
        %v868 = vsub.s32 0, %v867
        %v869 = vrot.slane %v824, %v868
        %v870 = vlaneseq
        %v871 = vshrl.u32 %v870, 7
        %v872 = vsub.s32 0, %v871
        %v873 = vrot.slane %v825, %v872
        %v874 = vlaneseq
        %v875 = vshrl.u32 %v874, 7
        %v876 = vsub.s32 0, %v875
        %v877 = vrot.slane %v826, %v876
        %v878 = vmul.f32 %v865, %v861
        %v879 = vmul.f32 %v869, %v860
        %v880 = vmul.f32 %v873, %v859
        %v881 = vmul.f32 %v877, %v858
        %883 = vset.pattern.permute.xlu0 0
        %884 = vperm.xlu0 %883, %v846
        %v885 = vpop.permute.xlu0 %884
        %v887 = vmul.f32 %v885, %v878
        %v888 = vmul.f32 %v885, %v879
        %v889 = vmul.f32 %v885, %v880
        %v890 = vmul.f32 %v885, %v881
        %v891 = vadd.f32 %v845, %v887
        %v892 = vadd.f32 %v845, %v888
        %v893 = vadd.f32 %v845, %v889
        %v894 = vadd.f32 %v845, %v890
        %s895 = scalar_lea.vmem %s10, 8
        %v896 = vld [vmem:[%s895] sm:$0xff]
        %897 = vrot.lane.b32.xlu0 %v807, 16
        %v898 = vpop.permute.xlu0 %897
        %899 = vrot.lane.b32.xlu0 %v808, 16
        %v900 = vpop.permute.xlu0 %899
        %901 = vrot.lane.b32.xlu0 %v809, 16
        %v902 = vpop.permute.xlu0 %901
        %903 = vrot.lane.b32.xlu0 %v810, 16
        %v904 = vpop.permute.xlu0 %903
        %vm905 = vcmp.lt.s32.totalorder %v856, 16
        %v906 = vsel %vm905, %v902, %v904
        %v907 = vsel %vm905, %v900, %v902
        %v908 = vsel %vm905, %v898, %v900
        %v909 = vsel %vm905, %v904, %v898
        %v910 = vlaneseq
        %v911 = vshrl.u32 %v910, 7
        %v912 = vsub.s32 1, %v911
        %v913 = vrot.slane %v823, %v912
        %v914 = vlaneseq
        %v915 = vshrl.u32 %v914, 7
        %v916 = vsub.s32 1, %v915
        %v917 = vrot.slane %v824, %v916
        %v918 = vlaneseq
        %v919 = vshrl.u32 %v918, 7
        %v920 = vsub.s32 1, %v919
        %v921 = vrot.slane %v825, %v920
        %v922 = vlaneseq
        %v923 = vshrl.u32 %v922, 7
        %v924 = vsub.s32 1, %v923
        %v925 = vrot.slane %v826, %v924
        %v926 = vmul.f32 %v913, %v909
        %v927 = vmul.f32 %v917, %v908
        %v928 = vmul.f32 %v921, %v907
        %v929 = vmul.f32 %v925, %v906
        %931 = vset.pattern.permute.xlu0 0
        %932 = vperm.xlu0 %931, %v896
        %v933 = vpop.permute.xlu0 %932
        %v935 = vmul.f32 %v933, %v926
        %v936 = vmul.f32 %v933, %v927
        %v937 = vmul.f32 %v933, %v928
        %v938 = vmul.f32 %v933, %v929
        %v939 = vadd.f32 %v891, %v935
        %v940 = vadd.f32 %v892, %v936
        %v941 = vadd.f32 %v893, %v937
        %v942 = vadd.f32 %v894, %v938
        %s943 = scalar_lea.vmem %s10, 16
        %v944 = vld [vmem:[%s943] sm:$0xff]
        %945 = vrot.lane.b32.xlu0 %v807, 15
        %v946 = vpop.permute.xlu0 %945
        %947 = vrot.lane.b32.xlu0 %v808, 15
        %v948 = vpop.permute.xlu0 %947
        %949 = vrot.lane.b32.xlu0 %v809, 15
        %v950 = vpop.permute.xlu0 %949
        %951 = vrot.lane.b32.xlu0 %v810, 15
        %v952 = vpop.permute.xlu0 %951
        %vm953 = vcmp.lt.s32.totalorder %v856, 15
        %v954 = vsel %vm953, %v950, %v952
        %v955 = vsel %vm953, %v948, %v950
        %v956 = vsel %vm953, %v946, %v948
        %v957 = vsel %vm953, %v952, %v946
        %v958 = vlaneseq
        %v959 = vshrl.u32 %v958, 7
        %v960 = vsub.s32 2, %v959
        %v961 = vrot.slane %v823, %v960
        %v962 = vlaneseq
        %v963 = vshrl.u32 %v962, 7
        %v964 = vsub.s32 2, %v963
        %v965 = vrot.slane %v824, %v964
        %v966 = vlaneseq
        %v967 = vshrl.u32 %v966, 7
        %v968 = vsub.s32 2, %v967
        %v969 = vrot.slane %v825, %v968
        %v970 = vlaneseq
        %v971 = vshrl.u32 %v970, 7
        %v972 = vsub.s32 2, %v971
        %v973 = vrot.slane %v826, %v972
        %v974 = vmul.f32 %v961, %v957
        %v975 = vmul.f32 %v965, %v956
        %v976 = vmul.f32 %v969, %v955
        %v977 = vmul.f32 %v973, %v954
        %979 = vset.pattern.permute.xlu0 0
        %980 = vperm.xlu0 %979, %v944
        %v981 = vpop.permute.xlu0 %980
        %v983 = vmul.f32 %v981, %v974
        %v984 = vmul.f32 %v981, %v975
        %v985 = vmul.f32 %v981, %v976
        %v986 = vmul.f32 %v981, %v977
        %v987 = vadd.f32 %v939, %v983
        %v988 = vadd.f32 %v940, %v984
        %v989 = vadd.f32 %v941, %v985
        %v990 = vadd.f32 %v942, %v986
        %s991 = scalar_lea.vmem %s10, 24
        %v992 = vld [vmem:[%s991] sm:$0xff]
        %993 = vrot.lane.b32.xlu0 %v807, 1
        %v994 = vpop.permute.xlu0 %993
        %995 = vrot.lane.b32.xlu0 %v808, 1
        %v996 = vpop.permute.xlu0 %995
        %997 = vrot.lane.b32.xlu0 %v809, 1
        %v998 = vpop.permute.xlu0 %997
        %999 = vrot.lane.b32.xlu0 %v810, 1
        %v1000 = vpop.permute.xlu0 %999
        %vm1001 = vcmp.lt.s32.totalorder %v856, 1
        %v1002 = vsel %vm1001, %v998, %v1000
        %v1003 = vsel %vm1001, %v996, %v998
        %v1004 = vsel %vm1001, %v994, %v996
        %v1005 = vsel %vm1001, %v1000, %v994
        %v1006 = vlaneseq
        %v1007 = vshrl.u32 %v1006, 7
        %v1008 = vsub.s32 3, %v1007
        %v1009 = vrot.slane %v823, %v1008
        %v1010 = vlaneseq
        %v1011 = vshrl.u32 %v1010, 7
        %v1012 = vsub.s32 3, %v1011
        %v1013 = vrot.slane %v824, %v1012
        %v1014 = vlaneseq
        %v1015 = vshrl.u32 %v1014, 7
        %v1016 = vsub.s32 3, %v1015
        %v1017 = vrot.slane %v825, %v1016
        %v1018 = vlaneseq
        %v1019 = vshrl.u32 %v1018, 7
        %v1020 = vsub.s32 3, %v1019
        %v1021 = vrot.slane %v826, %v1020
        %v1022 = vmul.f32 %v1009, %v1005
        %v1023 = vmul.f32 %v1013, %v1004
        %v1024 = vmul.f32 %v1017, %v1003
        %v1025 = vmul.f32 %v1021, %v1002
        %1027 = vset.pattern.permute.xlu0 0
        %1028 = vperm.xlu0 %1027, %v992
        %v1029 = vpop.permute.xlu0 %1028
        %v1031 = vmul.f32 %v1029, %v1022
        %v1032 = vmul.f32 %v1029, %v1023
        %v1033 = vmul.f32 %v1029, %v1024
        %v1034 = vmul.f32 %v1029, %v1025
        %v1035 = vadd.f32 %v987, %v1031
        %v1036 = vadd.f32 %v988, %v1032
        %v1037 = vadd.f32 %v989, %v1033
        %v1038 = vadd.f32 %v990, %v1034
        %s1039 = scalar_lea.vmem %s10, 32
        %v1040 = vld [vmem:[%s1039] sm:$0xff]
        %v1041 = vlaneseq
        %v1042 = vshrl.u32 %v1041, 7
        %v1043 = vsub.s32 4, %v1042
        %v1044 = vrot.slane %v823, %v1043
        %v1045 = vlaneseq
        %v1046 = vshrl.u32 %v1045, 7
        %v1047 = vsub.s32 4, %v1046
        %v1048 = vrot.slane %v824, %v1047
        %v1049 = vlaneseq
        %v1050 = vshrl.u32 %v1049, 7
        %v1051 = vsub.s32 4, %v1050
        %v1052 = vrot.slane %v825, %v1051
        %v1053 = vlaneseq
        %v1054 = vshrl.u32 %v1053, 7
        %v1055 = vsub.s32 4, %v1054
        %v1056 = vrot.slane %v826, %v1055
        %v1057 = vmul.f32 %v1044, %v807
        %v1058 = vmul.f32 %v1048, %v808
        %v1059 = vmul.f32 %v1052, %v809
        %v1060 = vmul.f32 %v1056, %v810
        %1062 = vset.pattern.permute.xlu0 0
        %1063 = vperm.xlu0 %1062, %v1040
        %v1064 = vpop.permute.xlu0 %1063
        %v1066 = vmul.f32 %v1064, %v1057
        %v1067 = vmul.f32 %v1064, %v1058
        %v1068 = vmul.f32 %v1064, %v1059
        %v1069 = vmul.f32 %v1064, %v1060
        %v1070 = vadd.f32 %v1035, %v1066
        %v1071 = vadd.f32 %v1036, %v1067
        %v1072 = vadd.f32 %v1037, %v1068
        %v1073 = vadd.f32 %v1038, %v1069
        %s1074 = scalar_lea.vmem %s10, 40
        %v1075 = vld [vmem:[%s1074] sm:$0xff]
        %1076 = vrot.lane.b32.xlu0 %v807, 127
        %v1077 = vpop.permute.xlu0 %1076
        %1078 = vrot.lane.b32.xlu0 %v808, 127
        %v1079 = vpop.permute.xlu0 %1078
        %1080 = vrot.lane.b32.xlu0 %v809, 127
        %v1081 = vpop.permute.xlu0 %1080
        %1082 = vrot.lane.b32.xlu0 %v810, 127
        %v1083 = vpop.permute.xlu0 %1082
        %vm1084 = vcmp.lt.s32.totalorder %v856, 127
        %v1085 = vsel %vm1084, %v1081, %v1083
        %v1086 = vsel %vm1084, %v1079, %v1081
        %v1087 = vsel %vm1084, %v1077, %v1079
        %v1088 = vsel %vm1084, %v1083, %v1077
        %v1089 = vlaneseq
        %v1090 = vshrl.u32 %v1089, 7
        %v1091 = vsub.s32 5, %v1090
        %v1092 = vrot.slane %v823, %v1091
        %v1093 = vlaneseq
        %v1094 = vshrl.u32 %v1093, 7
        %v1095 = vsub.s32 5, %v1094
        %v1096 = vrot.slane %v824, %v1095
        %v1097 = vlaneseq
        %v1098 = vshrl.u32 %v1097, 7
        %v1099 = vsub.s32 5, %v1098
        %v1100 = vrot.slane %v825, %v1099
        %v1101 = vlaneseq
        %v1102 = vshrl.u32 %v1101, 7
        %v1103 = vsub.s32 5, %v1102
        %v1104 = vrot.slane %v826, %v1103
        %v1105 = vmul.f32 %v1092, %v1087
        %v1106 = vmul.f32 %v1096, %v1086
        %v1107 = vmul.f32 %v1100, %v1085
        %v1108 = vmul.f32 %v1104, %v1088
        %1110 = vset.pattern.permute.xlu0 0
        %1111 = vperm.xlu0 %1110, %v1075
        %v1112 = vpop.permute.xlu0 %1111
        %v1114 = vmul.f32 %v1112, %v1105
        %v1115 = vmul.f32 %v1112, %v1106
        %v1116 = vmul.f32 %v1112, %v1107
        %v1117 = vmul.f32 %v1112, %v1108
        %v1118 = vadd.f32 %v1070, %v1114
        %v1119 = vadd.f32 %v1071, %v1115
        %v1120 = vadd.f32 %v1072, %v1116
        %v1121 = vadd.f32 %v1073, %v1117
        %s1122 = scalar_lea.vmem %s10, 48
        %v1123 = vld [vmem:[%s1122] sm:$0xff]
        %1124 = vrot.lane.b32.xlu0 %v807, 113
        %v1125 = vpop.permute.xlu0 %1124
        %1126 = vrot.lane.b32.xlu0 %v808, 113
        %v1127 = vpop.permute.xlu0 %1126
        %1128 = vrot.lane.b32.xlu0 %v809, 113
        %v1129 = vpop.permute.xlu0 %1128
        %1130 = vrot.lane.b32.xlu0 %v810, 113
        %v1131 = vpop.permute.xlu0 %1130
        %vm1132 = vcmp.lt.s32.totalorder %v856, 113
        %v1133 = vsel %vm1132, %v1129, %v1131
        %v1134 = vsel %vm1132, %v1127, %v1129
        %v1135 = vsel %vm1132, %v1125, %v1127
        %v1136 = vsel %vm1132, %v1131, %v1125
        %v1137 = vlaneseq
        %v1138 = vshrl.u32 %v1137, 7
        %v1139 = vsub.s32 6, %v1138
        %v1140 = vrot.slane %v823, %v1139
        %v1141 = vlaneseq
        %v1142 = vshrl.u32 %v1141, 7
        %v1143 = vsub.s32 6, %v1142
        %v1144 = vrot.slane %v824, %v1143
        %v1145 = vlaneseq
        %v1146 = vshrl.u32 %v1145, 7
        %v1147 = vsub.s32 6, %v1146
        %v1148 = vrot.slane %v825, %v1147
        %v1149 = vlaneseq
        %v1150 = vshrl.u32 %v1149, 7
        %v1151 = vsub.s32 6, %v1150
        %v1152 = vrot.slane %v826, %v1151
        %v1153 = vmul.f32 %v1140, %v1135
        %v1154 = vmul.f32 %v1144, %v1134
        %v1155 = vmul.f32 %v1148, %v1133
        %v1156 = vmul.f32 %v1152, %v1136
        %1158 = vset.pattern.permute.xlu0 0
        %1159 = vperm.xlu0 %1158, %v1123
        %v1160 = vpop.permute.xlu0 %1159
        %v1162 = vmul.f32 %v1160, %v1153
        %v1163 = vmul.f32 %v1160, %v1154
        %v1164 = vmul.f32 %v1160, %v1155
        %v1165 = vmul.f32 %v1160, %v1156
        %v1166 = vadd.f32 %v1118, %v1162
        %v1167 = vadd.f32 %v1119, %v1163
        %v1168 = vadd.f32 %v1120, %v1164
        %v1169 = vadd.f32 %v1121, %v1165
        %s1170 = scalar_lea.vmem %s10, 56
        %v1171 = vld [vmem:[%s1170] sm:$0xff]
        %1172 = vrot.lane.b32.xlu0 %v807, 112
        %v1173 = vpop.permute.xlu0 %1172
        %1174 = vrot.lane.b32.xlu0 %v808, 112
        %v1175 = vpop.permute.xlu0 %1174
        %1176 = vrot.lane.b32.xlu0 %v809, 112
        %v1177 = vpop.permute.xlu0 %1176
        %1178 = vrot.lane.b32.xlu0 %v810, 112
        %v1179 = vpop.permute.xlu0 %1178
        %vm1180 = vcmp.lt.s32.totalorder %v856, 112
        %v1181 = vsel %vm1180, %v1177, %v1179
        %v1182 = vsel %vm1180, %v1175, %v1177
        %v1183 = vsel %vm1180, %v1173, %v1175
        %v1184 = vsel %vm1180, %v1179, %v1173
        %v1185 = vlaneseq
        %v1186 = vshrl.u32 %v1185, 7
        %v1187 = vsub.s32 7, %v1186
        %v1188 = vrot.slane %v823, %v1187
        %v1189 = vlaneseq
        %v1190 = vshrl.u32 %v1189, 7
        %v1191 = vsub.s32 7, %v1190
        %v1192 = vrot.slane %v824, %v1191
        %v1193 = vlaneseq
        %v1194 = vshrl.u32 %v1193, 7
        %v1195 = vsub.s32 7, %v1194
        %v1196 = vrot.slane %v825, %v1195
        %v1197 = vlaneseq
        %v1198 = vshrl.u32 %v1197, 7
        %v1199 = vsub.s32 7, %v1198
        %v1200 = vrot.slane %v826, %v1199
        %v1201 = vmul.f32 %v1188, %v1183
        %v1202 = vmul.f32 %v1192, %v1182
        %v1203 = vmul.f32 %v1196, %v1181
        %v1204 = vmul.f32 %v1200, %v1184
        %1206 = vset.pattern.permute.xlu0 0
        %1207 = vperm.xlu0 %1206, %v1171
        %v1208 = vpop.permute.xlu0 %1207
        %v1210 = vmul.f32 %v1208, %v1201
        %v1211 = vmul.f32 %v1208, %v1202
        %v1212 = vmul.f32 %v1208, %v1203
        %v1213 = vmul.f32 %v1208, %v1204
        %v1214 = vadd.f32 %v1166, %v1210
        %v1215 = vadd.f32 %v1167, %v1211
        %v1216 = vadd.f32 %v1168, %v1212
        %v1217 = vadd.f32 %v1169, %v1213
        %s1218 = scalar_lea.vmem %s10, 64
        %v1219 = vld [vmem:[%s1218] sm:$0xff]
        %1220 = vrot.lane.b32.xlu0 %v807, 111
        %v1221 = vpop.permute.xlu0 %1220
        %1222 = vrot.lane.b32.xlu0 %v808, 111
        %v1223 = vpop.permute.xlu0 %1222
        %1224 = vrot.lane.b32.xlu0 %v809, 111
        %v1225 = vpop.permute.xlu0 %1224
        %1226 = vrot.lane.b32.xlu0 %v810, 111
        %v1227 = vpop.permute.xlu0 %1226
        %vm1228 = vcmp.lt.s32.totalorder %v856, 111
        %v1229 = vsel %vm1228, %v1225, %v1227
        %v1230 = vsel %vm1228, %v1223, %v1225
        %v1231 = vsel %vm1228, %v1221, %v1223
        %v1232 = vsel %vm1228, %v1227, %v1221
        %v1233 = vlaneseq
        %v1234 = vshrl.u32 %v1233, 7
        %v1235 = vsub.s32 0, %v1234
        %v1236 = vrot.slane %v827, %v1235
        %v1237 = vlaneseq
        %v1238 = vshrl.u32 %v1237, 7
        %v1239 = vsub.s32 0, %v1238
        %v1240 = vrot.slane %v828, %v1239
        %v1241 = vlaneseq
        %v1242 = vshrl.u32 %v1241, 7
        %v1243 = vsub.s32 0, %v1242
        %v1244 = vrot.slane %v829, %v1243
        %v1245 = vlaneseq
        %v1246 = vshrl.u32 %v1245, 7
        %v1247 = vsub.s32 0, %v1246
        %v1248 = vrot.slane %v830, %v1247
        %v1249 = vmul.f32 %v1236, %v1231
        %v1250 = vmul.f32 %v1240, %v1230
        %v1251 = vmul.f32 %v1244, %v1229
        %v1252 = vmul.f32 %v1248, %v1232
        %1254 = vset.pattern.permute.xlu0 0
        %1255 = vperm.xlu0 %1254, %v1219
        %v1256 = vpop.permute.xlu0 %1255
        %v1258 = vmul.f32 %v1256, %v1249
        %v1259 = vmul.f32 %v1256, %v1250
        %v1260 = vmul.f32 %v1256, %v1251
        %v1261 = vmul.f32 %v1256, %v1252
        %v1262 = vadd.f32 %v1214, %v1258
        %v1263 = vadd.f32 %v1215, %v1259
        %v1264 = vadd.f32 %v1216, %v1260
        %v1265 = vadd.f32 %v1217, %v1261
        %1266 = vst [vmem:[#allocation2] sm:$0xff] %v1262
        %1267 = vst [vmem:[#allocation2 + $0x8] sm:$0xff] %v1263
        %1268 = vst [vmem:[#allocation2 + $0x10] sm:$0xff] %v1264
        %1269 = vst [vmem:[#allocation2 + $0x18] sm:$0xff] %v1265
        %1270 = vrot.lane.b32.xlu0 %v811, 127
        %v1271 = vpop.permute.xlu0 %1270
        %1272 = vrot.lane.b32.xlu0 %v812, 127
        %v1273 = vpop.permute.xlu0 %1272
        %1274 = vrot.lane.b32.xlu0 %v813, 127
        %v1275 = vpop.permute.xlu0 %1274
        %1276 = vrot.lane.b32.xlu0 %v814, 127
        %v1277 = vpop.permute.xlu0 %1276
        %v1278 = vsel %vm1084, %v1275, %v1277
        %v1279 = vsel %vm1084, %v1273, %v1275
        %v1280 = vsel %vm1084, %v1271, %v1273
        %v1281 = vsel %vm1084, %v1277, %v1271
        %v1282 = vlaneseq
        %v1283 = vshrl.u32 %v1282, 7
        %v1284 = vsub.s32 0, %v1283
        %v1285 = vrot.slane %v831, %v1284
        %v1286 = vlaneseq
        %v1287 = vshrl.u32 %v1286, 7
        %v1288 = vsub.s32 0, %v1287
        %v1289 = vrot.slane %v832, %v1288
        %v1290 = vlaneseq
        %v1291 = vshrl.u32 %v1290, 7
        %v1292 = vsub.s32 0, %v1291
        %v1293 = vrot.slane %v833, %v1292
        %v1294 = vlaneseq
        %v1295 = vshrl.u32 %v1294, 7
        %v1296 = vsub.s32 0, %v1295
        %v1297 = vrot.slane %v834, %v1296
        %v1298 = vmul.f32 %v1285, %v1280
        %v1299 = vmul.f32 %v1289, %v1279
        %v1300 = vmul.f32 %v1293, %v1278
        %v1301 = vmul.f32 %v1297, %v1281
        %1302 = vrot.lane.b32.xlu0 %v811, 1
        %v1303 = vpop.permute.xlu0 %1302
        %1304 = vrot.lane.b32.xlu0 %v812, 1
        %v1305 = vpop.permute.xlu0 %1304
        %1306 = vrot.lane.b32.xlu0 %v813, 1
        %v1307 = vpop.permute.xlu0 %1306
        %1308 = vrot.lane.b32.xlu0 %v814, 1
        %v1309 = vpop.permute.xlu0 %1308
        %v1310 = vsel %vm1001, %v1307, %v1309
        %v1311 = vsel %vm1001, %v1305, %v1307
        %v1312 = vsel %vm1001, %v1303, %v1305
        %v1313 = vsel %vm1001, %v1309, %v1303
        %v1314 = vlaneseq
        %v1315 = vshrl.u32 %v1314, 7
        %v1316 = vsub.s32 0, %v1315
        %v1317 = vrot.slane %v835, %v1316
        %v1318 = vlaneseq
        %v1319 = vshrl.u32 %v1318, 7
        %v1320 = vsub.s32 0, %v1319
        %v1321 = vrot.slane %v836, %v1320
        %v1322 = vlaneseq
        %v1323 = vshrl.u32 %v1322, 7
        %v1324 = vsub.s32 0, %v1323
        %v1325 = vrot.slane %v837, %v1324
        %v1326 = vlaneseq
        %v1327 = vshrl.u32 %v1326, 7
        %v1328 = vsub.s32 0, %v1327
        %v1329 = vrot.slane %v838, %v1328
        %v1330 = vmul.f32 %v1317, %v1313
        %v1331 = vmul.f32 %v1321, %v1312
        %v1332 = vmul.f32 %v1325, %v1311
        %v1333 = vmul.f32 %v1329, %v1310
        %v1334 = vadd.f32 %v1298, %v1330
        %v1335 = vadd.f32 %v1299, %v1331
        %v1336 = vadd.f32 %v1300, %v1332
        %v1337 = vadd.f32 %v1301, %v1333
        %v1338 = vmax.f32 %v811, %v1334
        %v1339 = vmax.f32 %v812, %v1335
        %v1340 = vmax.f32 %v813, %v1336
        %v1341 = vmax.f32 %v814, %v1337
        %1342 = vrot.lane.b32.xlu0 %v1338, 112
        %v1343 = vpop.permute.xlu0 %1342
        %1344 = vrot.lane.b32.xlu0 %v1339, 112
        %v1345 = vpop.permute.xlu0 %1344
        %1346 = vrot.lane.b32.xlu0 %v1340, 112
        %v1347 = vpop.permute.xlu0 %1346
        %1348 = vrot.lane.b32.xlu0 %v1341, 112
        %v1349 = vpop.permute.xlu0 %1348
        %v1350 = vsel %vm1180, %v1347, %v1349
        %v1351 = vsel %vm1180, %v1345, %v1347
        %v1352 = vsel %vm1180, %v1343, %v1345
        %v1353 = vsel %vm1180, %v1349, %v1343
        %v1354 = vlaneseq
        %v1355 = vshrl.u32 %v1354, 7
        %v1356 = vsub.s32 3, %v1355
        %v1357 = vrot.slane %v831, %v1356
        %v1358 = vlaneseq
        %v1359 = vshrl.u32 %v1358, 7
        %v1360 = vsub.s32 3, %v1359
        %v1361 = vrot.slane %v832, %v1360
        %v1362 = vlaneseq
        %v1363 = vshrl.u32 %v1362, 7
        %v1364 = vsub.s32 3, %v1363
        %v1365 = vrot.slane %v833, %v1364
        %v1366 = vlaneseq
        %v1367 = vshrl.u32 %v1366, 7
        %v1368 = vsub.s32 3, %v1367
        %v1369 = vrot.slane %v834, %v1368
        %v1370 = vmul.f32 %v1357, %v1352
        %v1371 = vmul.f32 %v1361, %v1351
        %v1372 = vmul.f32 %v1365, %v1350
        %v1373 = vmul.f32 %v1369, %v1353
        %1374 = vrot.lane.b32.xlu0 %v1338, 16
        %v1375 = vpop.permute.xlu0 %1374
        %1376 = vrot.lane.b32.xlu0 %v1339, 16
        %v1377 = vpop.permute.xlu0 %1376
        %1378 = vrot.lane.b32.xlu0 %v1340, 16
        %v1379 = vpop.permute.xlu0 %1378
        %1380 = vrot.lane.b32.xlu0 %v1341, 16
        %v1381 = vpop.permute.xlu0 %1380
        %v1382 = vsel %vm905, %v1379, %v1381
        %v1383 = vsel %vm905, %v1377, %v1379
        %v1384 = vsel %vm905, %v1375, %v1377
        %v1385 = vsel %vm905, %v1381, %v1375
        %v1386 = vlaneseq
        %v1387 = vshrl.u32 %v1386, 7
        %v1388 = vsub.s32 3, %v1387
        %v1389 = vrot.slane %v835, %v1388
        %v1390 = vlaneseq
        %v1391 = vshrl.u32 %v1390, 7
        %v1392 = vsub.s32 3, %v1391
        %v1393 = vrot.slane %v836, %v1392
        %v1394 = vlaneseq
        %v1395 = vshrl.u32 %v1394, 7
        %v1396 = vsub.s32 3, %v1395
        %v1397 = vrot.slane %v837, %v1396
        %v1398 = vlaneseq
        %v1399 = vshrl.u32 %v1398, 7
        %v1400 = vsub.s32 3, %v1399
        %v1401 = vrot.slane %v838, %v1400
        %v1402 = vmul.f32 %v1389, %v1385
        %v1403 = vmul.f32 %v1393, %v1384
        %v1404 = vmul.f32 %v1397, %v1383
        %v1405 = vmul.f32 %v1401, %v1382
        %v1406 = vadd.f32 %v1370, %v1402
        %v1407 = vadd.f32 %v1371, %v1403
        %v1408 = vadd.f32 %v1372, %v1404
        %v1409 = vadd.f32 %v1373, %v1405
        %v1410 = vmax.f32 %v1338, %v1406
        %v1411 = vmax.f32 %v1339, %v1407
        %v1412 = vmax.f32 %v1340, %v1408
        %v1413 = vmax.f32 %v1341, %v1409
        %v1414 = vld [vmem:[%s2] sm:$0xff]
        %v1415 = vld [vmem:[%s2 + $0x8] sm:$0xff]
        %v1416 = vld [vmem:[%s2 + $0x10] sm:$0xff]
        %v1417 = vld [vmem:[%s2 + $0x18] sm:$0xff]
        %v1418 = vld [vmem:[%s2 + $0x20] sm:$0x1]
        %v1419 = vld [vmem:[%s2 + $0x28] sm:$0x1]
        %v1420 = vld [vmem:[%s2 + $0x30] sm:$0x1]
        %v1421 = vld [vmem:[%s2 + $0x38] sm:$0x1]
        %s1422 = scalar_lea.vmem %s11, 8
        %v1423 = vld [vmem:[%s1422] sm:$0xff]
        %1425 = vset.pattern.permute.xlu0 0
        %1426 = vperm.xlu0 %1425, %v1423
        %v1427 = vpop.permute.xlu0 %1426
        %v1429 = vadd.f32 %v1427, 0.0
        %s1430 = scalar_lea.vmem %s10, 72
        %v1431 = vld [vmem:[%s1430] sm:$0xff]
        %1432 = vrot.lane.b32.xlu0 %v1410, 34
        %v1433 = vpop.permute.xlu0 %1432
        %1434 = vrot.lane.b32.xlu0 %v1411, 34
        %v1435 = vpop.permute.xlu0 %1434
        %1436 = vrot.lane.b32.xlu0 %v1412, 34
        %v1437 = vpop.permute.xlu0 %1436
        %1438 = vrot.lane.b32.xlu0 %v1413, 34
        %v1439 = vpop.permute.xlu0 %1438
        %vm1440 = vcmp.lt.s32.totalorder %v856, 34
        %v1441 = vsel %vm1440, %v1437, %v1439
        %v1442 = vsel %vm1440, %v1435, %v1437
        %v1443 = vsel %vm1440, %v1433, %v1435
        %v1444 = vsel %vm1440, %v1439, %v1433
        %v1445 = vlaneseq
        %v1446 = vshrl.u32 %v1445, 7
        %v1447 = vsub.s32 0, %v1446
        %v1448 = vrot.slane %v1414, %v1447
        %v1449 = vlaneseq
        %v1450 = vshrl.u32 %v1449, 7
        %v1451 = vsub.s32 0, %v1450
        %v1452 = vrot.slane %v1415, %v1451
        %v1453 = vlaneseq
        %v1454 = vshrl.u32 %v1453, 7
        %v1455 = vsub.s32 0, %v1454
        %v1456 = vrot.slane %v1416, %v1455
        %v1457 = vlaneseq
        %v1458 = vshrl.u32 %v1457, 7
        %v1459 = vsub.s32 0, %v1458
        %v1460 = vrot.slane %v1417, %v1459
        %v1461 = vmul.f32 %v1448, %v1444
        %v1462 = vmul.f32 %v1452, %v1443
        %v1463 = vmul.f32 %v1456, %v1442
        %v1464 = vmul.f32 %v1460, %v1441
        %1466 = vset.pattern.permute.xlu0 0
        %1467 = vperm.xlu0 %1466, %v1431
        %v1468 = vpop.permute.xlu0 %1467
        %v1470 = vmul.f32 %v1468, %v1461
        %v1471 = vmul.f32 %v1468, %v1462
        %v1472 = vmul.f32 %v1468, %v1463
        %v1473 = vmul.f32 %v1468, %v1464
        %v1474 = vadd.f32 %v1429, %v1470
        %v1475 = vadd.f32 %v1429, %v1471
        %v1476 = vadd.f32 %v1429, %v1472
        %v1477 = vadd.f32 %v1429, %v1473
        %s1478 = scalar_lea.vmem %s10, 80
        %v1479 = vld [vmem:[%s1478] sm:$0xff]
        %1480 = vrot.lane.b32.xlu0 %v1410, 32
        %v1481 = vpop.permute.xlu0 %1480
        %1482 = vrot.lane.b32.xlu0 %v1411, 32
        %v1483 = vpop.permute.xlu0 %1482
        %1484 = vrot.lane.b32.xlu0 %v1412, 32
        %v1485 = vpop.permute.xlu0 %1484
        %1486 = vrot.lane.b32.xlu0 %v1413, 32
        %v1487 = vpop.permute.xlu0 %1486
        %vm1488 = vcmp.lt.s32.totalorder %v856, 32
        %v1489 = vsel %vm1488, %v1485, %v1487
        %v1490 = vsel %vm1488, %v1483, %v1485
        %v1491 = vsel %vm1488, %v1481, %v1483
        %v1492 = vsel %vm1488, %v1487, %v1481
        %v1493 = vlaneseq
        %v1494 = vshrl.u32 %v1493, 7
        %v1495 = vsub.s32 1, %v1494
        %v1496 = vrot.slane %v1414, %v1495
        %v1497 = vlaneseq
        %v1498 = vshrl.u32 %v1497, 7
        %v1499 = vsub.s32 1, %v1498
        %v1500 = vrot.slane %v1415, %v1499
        %v1501 = vlaneseq
        %v1502 = vshrl.u32 %v1501, 7
        %v1503 = vsub.s32 1, %v1502
        %v1504 = vrot.slane %v1416, %v1503
        %v1505 = vlaneseq
        %v1506 = vshrl.u32 %v1505, 7
        %v1507 = vsub.s32 1, %v1506
        %v1508 = vrot.slane %v1417, %v1507
        %v1509 = vmul.f32 %v1496, %v1492
        %v1510 = vmul.f32 %v1500, %v1491
        %v1511 = vmul.f32 %v1504, %v1490
        %v1512 = vmul.f32 %v1508, %v1489
        %1514 = vset.pattern.permute.xlu0 0
        %1515 = vperm.xlu0 %1514, %v1479
        %v1516 = vpop.permute.xlu0 %1515
        %v1518 = vmul.f32 %v1516, %v1509
        %v1519 = vmul.f32 %v1516, %v1510
        %v1520 = vmul.f32 %v1516, %v1511
        %v1521 = vmul.f32 %v1516, %v1512
        %v1522 = vadd.f32 %v1474, %v1518
        %v1523 = vadd.f32 %v1475, %v1519
        %v1524 = vadd.f32 %v1476, %v1520
        %v1525 = vadd.f32 %v1477, %v1521
        %s1526 = scalar_lea.vmem %s10, 88
        %v1527 = vld [vmem:[%s1526] sm:$0xff]
        %1528 = vrot.lane.b32.xlu0 %v1410, 30
        %v1529 = vpop.permute.xlu0 %1528
        %1530 = vrot.lane.b32.xlu0 %v1411, 30
        %v1531 = vpop.permute.xlu0 %1530
        %1532 = vrot.lane.b32.xlu0 %v1412, 30
        %v1533 = vpop.permute.xlu0 %1532
        %1534 = vrot.lane.b32.xlu0 %v1413, 30
        %v1535 = vpop.permute.xlu0 %1534
        %vm1536 = vcmp.lt.s32.totalorder %v856, 30
        %v1537 = vsel %vm1536, %v1533, %v1535
        %v1538 = vsel %vm1536, %v1531, %v1533
        %v1539 = vsel %vm1536, %v1529, %v1531
        %v1540 = vsel %vm1536, %v1535, %v1529
        %v1541 = vlaneseq
        %v1542 = vshrl.u32 %v1541, 7
        %v1543 = vsub.s32 2, %v1542
        %v1544 = vrot.slane %v1414, %v1543
        %v1545 = vlaneseq
        %v1546 = vshrl.u32 %v1545, 7
        %v1547 = vsub.s32 2, %v1546
        %v1548 = vrot.slane %v1415, %v1547
        %v1549 = vlaneseq
        %v1550 = vshrl.u32 %v1549, 7
        %v1551 = vsub.s32 2, %v1550
        %v1552 = vrot.slane %v1416, %v1551
        %v1553 = vlaneseq
        %v1554 = vshrl.u32 %v1553, 7
        %v1555 = vsub.s32 2, %v1554
        %v1556 = vrot.slane %v1417, %v1555
        %v1557 = vmul.f32 %v1544, %v1540
        %v1558 = vmul.f32 %v1548, %v1539
        %v1559 = vmul.f32 %v1552, %v1538
        %v1560 = vmul.f32 %v1556, %v1537
        %1562 = vset.pattern.permute.xlu0 0
        %1563 = vperm.xlu0 %1562, %v1527
        %v1564 = vpop.permute.xlu0 %1563
        %v1566 = vmul.f32 %v1564, %v1557
        %v1567 = vmul.f32 %v1564, %v1558
        %v1568 = vmul.f32 %v1564, %v1559
        %v1569 = vmul.f32 %v1564, %v1560
        %v1570 = vadd.f32 %v1522, %v1566
        %v1571 = vadd.f32 %v1523, %v1567
        %v1572 = vadd.f32 %v1524, %v1568
        %v1573 = vadd.f32 %v1525, %v1569
        %s1574 = scalar_lea.vmem %s10, 96
        %v1575 = vld [vmem:[%s1574] sm:$0xff]
        %1576 = vrot.lane.b32.xlu0 %v1410, 2
        %v1577 = vpop.permute.xlu0 %1576
        %1578 = vrot.lane.b32.xlu0 %v1411, 2
        %v1579 = vpop.permute.xlu0 %1578
        %1580 = vrot.lane.b32.xlu0 %v1412, 2
        %v1581 = vpop.permute.xlu0 %1580
        %1582 = vrot.lane.b32.xlu0 %v1413, 2
        %v1583 = vpop.permute.xlu0 %1582
        %vm1584 = vcmp.lt.s32.totalorder %v856, 2
        %v1585 = vsel %vm1584, %v1581, %v1583
        %v1586 = vsel %vm1584, %v1579, %v1581
        %v1587 = vsel %vm1584, %v1577, %v1579
        %v1588 = vsel %vm1584, %v1583, %v1577
        %v1589 = vlaneseq
        %v1590 = vshrl.u32 %v1589, 7
        %v1591 = vsub.s32 3, %v1590
        %v1592 = vrot.slane %v1414, %v1591
        %v1593 = vlaneseq
        %v1594 = vshrl.u32 %v1593, 7
        %v1595 = vsub.s32 3, %v1594
        %v1596 = vrot.slane %v1415, %v1595
        %v1597 = vlaneseq
        %v1598 = vshrl.u32 %v1597, 7
        %v1599 = vsub.s32 3, %v1598
        %v1600 = vrot.slane %v1416, %v1599
        %v1601 = vlaneseq
        %v1602 = vshrl.u32 %v1601, 7
        %v1603 = vsub.s32 3, %v1602
        %v1604 = vrot.slane %v1417, %v1603
        %v1605 = vmul.f32 %v1592, %v1588
        %v1606 = vmul.f32 %v1596, %v1587
        %v1607 = vmul.f32 %v1600, %v1586
        %v1608 = vmul.f32 %v1604, %v1585
        %1610 = vset.pattern.permute.xlu0 0
        %1611 = vperm.xlu0 %1610, %v1575
        %v1612 = vpop.permute.xlu0 %1611
        %v1614 = vmul.f32 %v1612, %v1605
        %v1615 = vmul.f32 %v1612, %v1606
        %v1616 = vmul.f32 %v1612, %v1607
        %v1617 = vmul.f32 %v1612, %v1608
        %v1618 = vadd.f32 %v1570, %v1614
        %v1619 = vadd.f32 %v1571, %v1615
        %v1620 = vadd.f32 %v1572, %v1616
        %v1621 = vadd.f32 %v1573, %v1617
        %s1622 = scalar_lea.vmem %s10, 104
        %v1623 = vld [vmem:[%s1622] sm:$0xff]
        %v1624 = vlaneseq
        %v1625 = vshrl.u32 %v1624, 7
        %v1626 = vsub.s32 4, %v1625
        %v1627 = vrot.slane %v1414, %v1626
        %v1628 = vlaneseq
        %v1629 = vshrl.u32 %v1628, 7
        %v1630 = vsub.s32 4, %v1629
        %v1631 = vrot.slane %v1415, %v1630
        %v1632 = vlaneseq
        %v1633 = vshrl.u32 %v1632, 7
        %v1634 = vsub.s32 4, %v1633
        %v1635 = vrot.slane %v1416, %v1634
        %v1636 = vlaneseq
        %v1637 = vshrl.u32 %v1636, 7
        %v1638 = vsub.s32 4, %v1637
        %v1639 = vrot.slane %v1417, %v1638
        %v1640 = vmul.f32 %v1627, %v1410
        %v1641 = vmul.f32 %v1631, %v1411
        %v1642 = vmul.f32 %v1635, %v1412
        %v1643 = vmul.f32 %v1639, %v1413
        %1645 = vset.pattern.permute.xlu0 0
        %1646 = vperm.xlu0 %1645, %v1623
        %v1647 = vpop.permute.xlu0 %1646
        %v1649 = vmul.f32 %v1647, %v1640
        %v1650 = vmul.f32 %v1647, %v1641
        %v1651 = vmul.f32 %v1647, %v1642
        %v1652 = vmul.f32 %v1647, %v1643
        %v1653 = vadd.f32 %v1618, %v1649
        %v1654 = vadd.f32 %v1619, %v1650
        %v1655 = vadd.f32 %v1620, %v1651
        %v1656 = vadd.f32 %v1621, %v1652
        %s1657 = scalar_lea.vmem %s10, 112
        %v1658 = vld [vmem:[%s1657] sm:$0xff]
        %1659 = vrot.lane.b32.xlu0 %v1410, 126
        %v1660 = vpop.permute.xlu0 %1659
        %1661 = vrot.lane.b32.xlu0 %v1411, 126
        %v1662 = vpop.permute.xlu0 %1661
        %1663 = vrot.lane.b32.xlu0 %v1412, 126
        %v1664 = vpop.permute.xlu0 %1663
        %1665 = vrot.lane.b32.xlu0 %v1413, 126
        %v1666 = vpop.permute.xlu0 %1665
        %vm1667 = vcmp.lt.s32.totalorder %v856, 126
        %v1668 = vsel %vm1667, %v1664, %v1666
        %v1669 = vsel %vm1667, %v1662, %v1664
        %v1670 = vsel %vm1667, %v1660, %v1662
        %v1671 = vsel %vm1667, %v1666, %v1660
        %v1672 = vlaneseq
        %v1673 = vshrl.u32 %v1672, 7
        %v1674 = vsub.s32 5, %v1673
        %v1675 = vrot.slane %v1414, %v1674
        %v1676 = vlaneseq
        %v1677 = vshrl.u32 %v1676, 7
        %v1678 = vsub.s32 5, %v1677
        %v1679 = vrot.slane %v1415, %v1678
        %v1680 = vlaneseq
        %v1681 = vshrl.u32 %v1680, 7
        %v1682 = vsub.s32 5, %v1681
        %v1683 = vrot.slane %v1416, %v1682
        %v1684 = vlaneseq
        %v1685 = vshrl.u32 %v1684, 7
        %v1686 = vsub.s32 5, %v1685
        %v1687 = vrot.slane %v1417, %v1686
        %v1688 = vmul.f32 %v1675, %v1670
        %v1689 = vmul.f32 %v1679, %v1669
        %v1690 = vmul.f32 %v1683, %v1668
        %v1691 = vmul.f32 %v1687, %v1671
        %1693 = vset.pattern.permute.xlu0 0
        %1694 = vperm.xlu0 %1693, %v1658
        %v1695 = vpop.permute.xlu0 %1694
        %v1697 = vmul.f32 %v1695, %v1688
        %v1698 = vmul.f32 %v1695, %v1689
        %v1699 = vmul.f32 %v1695, %v1690
        %v1700 = vmul.f32 %v1695, %v1691
        %v1701 = vadd.f32 %v1653, %v1697
        %v1702 = vadd.f32 %v1654, %v1698
        %v1703 = vadd.f32 %v1655, %v1699
        %v1704 = vadd.f32 %v1656, %v1700
        %s1705 = scalar_lea.vmem %s10, 120
        %v1706 = vld [vmem:[%s1705] sm:$0xff]
        %1707 = vrot.lane.b32.xlu0 %v1410, 98
        %v1708 = vpop.permute.xlu0 %1707
        %1709 = vrot.lane.b32.xlu0 %v1411, 98
        %v1710 = vpop.permute.xlu0 %1709
        %1711 = vrot.lane.b32.xlu0 %v1412, 98
        %v1712 = vpop.permute.xlu0 %1711
        %1713 = vrot.lane.b32.xlu0 %v1413, 98
        %v1714 = vpop.permute.xlu0 %1713
        %vm1715 = vcmp.lt.s32.totalorder %v856, 98
        %v1716 = vsel %vm1715, %v1712, %v1714
        %v1717 = vsel %vm1715, %v1710, %v1712
        %v1718 = vsel %vm1715, %v1708, %v1710
        %v1719 = vsel %vm1715, %v1714, %v1708
        %v1720 = vlaneseq
        %v1721 = vshrl.u32 %v1720, 7
        %v1722 = vsub.s32 6, %v1721
        %v1723 = vrot.slane %v1414, %v1722
        %v1724 = vlaneseq
        %v1725 = vshrl.u32 %v1724, 7
        %v1726 = vsub.s32 6, %v1725
        %v1727 = vrot.slane %v1415, %v1726
        %v1728 = vlaneseq
        %v1729 = vshrl.u32 %v1728, 7
        %v1730 = vsub.s32 6, %v1729
        %v1731 = vrot.slane %v1416, %v1730
        %v1732 = vlaneseq
        %v1733 = vshrl.u32 %v1732, 7
        %v1734 = vsub.s32 6, %v1733
        %v1735 = vrot.slane %v1417, %v1734
        %v1736 = vmul.f32 %v1723, %v1718
        %v1737 = vmul.f32 %v1727, %v1717
        %v1738 = vmul.f32 %v1731, %v1716
        %v1739 = vmul.f32 %v1735, %v1719
        %1741 = vset.pattern.permute.xlu0 0
        %1742 = vperm.xlu0 %1741, %v1706
        %v1743 = vpop.permute.xlu0 %1742
        %v1745 = vmul.f32 %v1743, %v1736
        %v1746 = vmul.f32 %v1743, %v1737
        %v1747 = vmul.f32 %v1743, %v1738
        %v1748 = vmul.f32 %v1743, %v1739
        %v1749 = vadd.f32 %v1701, %v1745
        %v1750 = vadd.f32 %v1702, %v1746
        %v1751 = vadd.f32 %v1703, %v1747
        %v1752 = vadd.f32 %v1704, %v1748
        %s1753 = scalar_lea.vmem %s10, 128
        %v1754 = vld [vmem:[%s1753] sm:$0xff]
        %1755 = vrot.lane.b32.xlu0 %v1410, 96
        %v1756 = vpop.permute.xlu0 %1755
        %1757 = vrot.lane.b32.xlu0 %v1411, 96
        %v1758 = vpop.permute.xlu0 %1757
        %1759 = vrot.lane.b32.xlu0 %v1412, 96
        %v1760 = vpop.permute.xlu0 %1759
        %1761 = vrot.lane.b32.xlu0 %v1413, 96
        %v1762 = vpop.permute.xlu0 %1761
        %vm1763 = vcmp.lt.s32.totalorder %v856, 96
        %v1764 = vsel %vm1763, %v1760, %v1762
        %v1765 = vsel %vm1763, %v1758, %v1760
        %v1766 = vsel %vm1763, %v1756, %v1758
        %v1767 = vsel %vm1763, %v1762, %v1756
        %v1768 = vlaneseq
        %v1769 = vshrl.u32 %v1768, 7
        %v1770 = vsub.s32 7, %v1769
        %v1771 = vrot.slane %v1414, %v1770
        %v1772 = vlaneseq
        %v1773 = vshrl.u32 %v1772, 7
        %v1774 = vsub.s32 7, %v1773
        %v1775 = vrot.slane %v1415, %v1774
        %v1776 = vlaneseq
        %v1777 = vshrl.u32 %v1776, 7
        %v1778 = vsub.s32 7, %v1777
        %v1779 = vrot.slane %v1416, %v1778
        %v1780 = vlaneseq
        %v1781 = vshrl.u32 %v1780, 7
        %v1782 = vsub.s32 7, %v1781
        %v1783 = vrot.slane %v1417, %v1782
        %v1784 = vmul.f32 %v1771, %v1766
        %v1785 = vmul.f32 %v1775, %v1765
        %v1786 = vmul.f32 %v1779, %v1764
        %v1787 = vmul.f32 %v1783, %v1767
        %1789 = vset.pattern.permute.xlu0 0
        %1790 = vperm.xlu0 %1789, %v1754
        %v1791 = vpop.permute.xlu0 %1790
        %v1793 = vmul.f32 %v1791, %v1784
        %v1794 = vmul.f32 %v1791, %v1785
        %v1795 = vmul.f32 %v1791, %v1786
        %v1796 = vmul.f32 %v1791, %v1787
        %v1797 = vadd.f32 %v1749, %v1793
        %v1798 = vadd.f32 %v1750, %v1794
        %v1799 = vadd.f32 %v1751, %v1795
        %v1800 = vadd.f32 %v1752, %v1796
        %s1801 = scalar_lea.vmem %s10, 136
        %v1802 = vld [vmem:[%s1801] sm:$0xff]
        %1803 = vrot.lane.b32.xlu0 %v1410, 94
        %v1804 = vpop.permute.xlu0 %1803
        %1805 = vrot.lane.b32.xlu0 %v1411, 94
        %v1806 = vpop.permute.xlu0 %1805
        %1807 = vrot.lane.b32.xlu0 %v1412, 94
        %v1808 = vpop.permute.xlu0 %1807
        %1809 = vrot.lane.b32.xlu0 %v1413, 94
        %v1810 = vpop.permute.xlu0 %1809
        %vm1811 = vcmp.lt.s32.totalorder %v856, 94
        %v1812 = vsel %vm1811, %v1808, %v1810
        %v1813 = vsel %vm1811, %v1806, %v1808
        %v1814 = vsel %vm1811, %v1804, %v1806
        %v1815 = vsel %vm1811, %v1810, %v1804
        %v1816 = vlaneseq
        %v1817 = vshrl.u32 %v1816, 7
        %v1818 = vsub.s32 0, %v1817
        %v1819 = vrot.slane %v1418, %v1818
        %v1820 = vlaneseq
        %v1821 = vshrl.u32 %v1820, 7
        %v1822 = vsub.s32 0, %v1821
        %v1823 = vrot.slane %v1419, %v1822
        %v1824 = vlaneseq
        %v1825 = vshrl.u32 %v1824, 7
        %v1826 = vsub.s32 0, %v1825
        %v1827 = vrot.slane %v1420, %v1826
        %v1828 = vlaneseq
        %v1829 = vshrl.u32 %v1828, 7
        %v1830 = vsub.s32 0, %v1829
        %v1831 = vrot.slane %v1421, %v1830
        %v1832 = vmul.f32 %v1819, %v1814
        %v1833 = vmul.f32 %v1823, %v1813
        %v1834 = vmul.f32 %v1827, %v1812
        %v1835 = vmul.f32 %v1831, %v1815
        %1837 = vset.pattern.permute.xlu0 0
        %1838 = vperm.xlu0 %1837, %v1802
        %v1839 = vpop.permute.xlu0 %1838
        %v1841 = vmul.f32 %v1839, %v1832
        %v1842 = vmul.f32 %v1839, %v1833
        %v1843 = vmul.f32 %v1839, %v1834
        %v1844 = vmul.f32 %v1839, %v1835
        %v1845 = vadd.f32 %v1797, %v1841
        %v1846 = vadd.f32 %v1798, %v1842
        %v1847 = vadd.f32 %v1799, %v1843
        %v1848 = vadd.f32 %v1800, %v1844
        %1849 = vst [vmem:[#allocation2 + $0x20] sm:$0xff] %v1845
        %1850 = vst [vmem:[#allocation2 + $0x28] sm:$0xff] %v1846
        %1851 = vst [vmem:[#allocation2 + $0x30] sm:$0xff] %v1847
        %1852 = vst [vmem:[#allocation2 + $0x38] sm:$0xff] %v1848
        %1853 = vrot.lane.b32.xlu0 %v815, 127
        %v1854 = vpop.permute.xlu0 %1853
        %1855 = vrot.lane.b32.xlu0 %v816, 127
        %v1856 = vpop.permute.xlu0 %1855
        %1857 = vrot.lane.b32.xlu0 %v817, 127
        %v1858 = vpop.permute.xlu0 %1857
        %1859 = vrot.lane.b32.xlu0 %v818, 127
        %v1860 = vpop.permute.xlu0 %1859
        %v1861 = vsel %vm1084, %v1858, %v1860
        %v1862 = vsel %vm1084, %v1856, %v1858
        %v1863 = vsel %vm1084, %v1854, %v1856
        %v1864 = vsel %vm1084, %v1860, %v1854
        %v1865 = vmul.f32 %v1285, %v1863
        %v1866 = vmul.f32 %v1289, %v1862
        %v1867 = vmul.f32 %v1293, %v1861
        %v1868 = vmul.f32 %v1297, %v1864
        %1869 = vrot.lane.b32.xlu0 %v815, 1
        %v1870 = vpop.permute.xlu0 %1869
        %1871 = vrot.lane.b32.xlu0 %v816, 1
        %v1872 = vpop.permute.xlu0 %1871
        %1873 = vrot.lane.b32.xlu0 %v817, 1
        %v1874 = vpop.permute.xlu0 %1873
        %1875 = vrot.lane.b32.xlu0 %v818, 1
        %v1876 = vpop.permute.xlu0 %1875
        %v1877 = vsel %vm1001, %v1874, %v1876
        %v1878 = vsel %vm1001, %v1872, %v1874
        %v1879 = vsel %vm1001, %v1870, %v1872
        %v1880 = vsel %vm1001, %v1876, %v1870
        %v1881 = vmul.f32 %v1317, %v1880
        %v1882 = vmul.f32 %v1321, %v1879
        %v1883 = vmul.f32 %v1325, %v1878
        %v1884 = vmul.f32 %v1329, %v1877
        %v1885 = vadd.f32 %v1865, %v1881
        %v1886 = vadd.f32 %v1866, %v1882
        %v1887 = vadd.f32 %v1867, %v1883
        %v1888 = vadd.f32 %v1868, %v1884
        %v1889 = vmax.f32 %v815, %v1885
        %v1890 = vmax.f32 %v816, %v1886
        %v1891 = vmax.f32 %v817, %v1887
        %v1892 = vmax.f32 %v818, %v1888
        %1893 = vrot.lane.b32.xlu0 %v1889, 126
        %v1894 = vpop.permute.xlu0 %1893
        %1895 = vrot.lane.b32.xlu0 %v1890, 126
        %v1896 = vpop.permute.xlu0 %1895
        %1897 = vrot.lane.b32.xlu0 %v1891, 126
        %v1898 = vpop.permute.xlu0 %1897
        %1899 = vrot.lane.b32.xlu0 %v1892, 126
        %v1900 = vpop.permute.xlu0 %1899
        %v1901 = vsel %vm1667, %v1898, %v1900
        %v1902 = vsel %vm1667, %v1896, %v1898
        %v1903 = vsel %vm1667, %v1894, %v1896
        %v1904 = vsel %vm1667, %v1900, %v1894
        %v1905 = vlaneseq
        %v1906 = vshrl.u32 %v1905, 7
        %v1907 = vsub.s32 1, %v1906
        %v1908 = vrot.slane %v831, %v1907
        %v1909 = vlaneseq
        %v1910 = vshrl.u32 %v1909, 7
        %v1911 = vsub.s32 1, %v1910
        %v1912 = vrot.slane %v832, %v1911
        %v1913 = vlaneseq
        %v1914 = vshrl.u32 %v1913, 7
        %v1915 = vsub.s32 1, %v1914
        %v1916 = vrot.slane %v833, %v1915
        %v1917 = vlaneseq
        %v1918 = vshrl.u32 %v1917, 7
        %v1919 = vsub.s32 1, %v1918
        %v1920 = vrot.slane %v834, %v1919
        %v1921 = vmul.f32 %v1908, %v1903
        %v1922 = vmul.f32 %v1912, %v1902
        %v1923 = vmul.f32 %v1916, %v1901
        %v1924 = vmul.f32 %v1920, %v1904
        %1925 = vrot.lane.b32.xlu0 %v1889, 2
        %v1926 = vpop.permute.xlu0 %1925
        %1927 = vrot.lane.b32.xlu0 %v1890, 2
        %v1928 = vpop.permute.xlu0 %1927
        %1929 = vrot.lane.b32.xlu0 %v1891, 2
        %v1930 = vpop.permute.xlu0 %1929
        %1931 = vrot.lane.b32.xlu0 %v1892, 2
        %v1932 = vpop.permute.xlu0 %1931
        %v1933 = vsel %vm1584, %v1930, %v1932
        %v1934 = vsel %vm1584, %v1928, %v1930
        %v1935 = vsel %vm1584, %v1926, %v1928
        %v1936 = vsel %vm1584, %v1932, %v1926
        %v1937 = vlaneseq
        %v1938 = vshrl.u32 %v1937, 7
        %v1939 = vsub.s32 1, %v1938
        %v1940 = vrot.slane %v835, %v1939
        %v1941 = vlaneseq
        %v1942 = vshrl.u32 %v1941, 7
        %v1943 = vsub.s32 1, %v1942
        %v1944 = vrot.slane %v836, %v1943
        %v1945 = vlaneseq
        %v1946 = vshrl.u32 %v1945, 7
        %v1947 = vsub.s32 1, %v1946
        %v1948 = vrot.slane %v837, %v1947
        %v1949 = vlaneseq
        %v1950 = vshrl.u32 %v1949, 7
        %v1951 = vsub.s32 1, %v1950
        %v1952 = vrot.slane %v838, %v1951
        %v1953 = vmul.f32 %v1940, %v1936
        %v1954 = vmul.f32 %v1944, %v1935
        %v1955 = vmul.f32 %v1948, %v1934
        %v1956 = vmul.f32 %v1952, %v1933
        %v1957 = vadd.f32 %v1921, %v1953
        %v1958 = vadd.f32 %v1922, %v1954
        %v1959 = vadd.f32 %v1923, %v1955
        %v1960 = vadd.f32 %v1924, %v1956
        %v1961 = vmax.f32 %v1889, %v1957
        %v1962 = vmax.f32 %v1890, %v1958
        %v1963 = vmax.f32 %v1891, %v1959
        %v1964 = vmax.f32 %v1892, %v1960
        %1965 = vrot.lane.b32.xlu0 %v1961, 112
        %v1966 = vpop.permute.xlu0 %1965
        %1967 = vrot.lane.b32.xlu0 %v1962, 112
        %v1968 = vpop.permute.xlu0 %1967
        %1969 = vrot.lane.b32.xlu0 %v1963, 112
        %v1970 = vpop.permute.xlu0 %1969
        %1971 = vrot.lane.b32.xlu0 %v1964, 112
        %v1972 = vpop.permute.xlu0 %1971
        %v1973 = vsel %vm1180, %v1970, %v1972
        %v1974 = vsel %vm1180, %v1968, %v1970
        %v1975 = vsel %vm1180, %v1966, %v1968
        %v1976 = vsel %vm1180, %v1972, %v1966
        %v1977 = vmul.f32 %v1357, %v1975
        %v1978 = vmul.f32 %v1361, %v1974
        %v1979 = vmul.f32 %v1365, %v1973
        %v1980 = vmul.f32 %v1369, %v1976
        %1981 = vrot.lane.b32.xlu0 %v1961, 16
        %v1982 = vpop.permute.xlu0 %1981
        %1983 = vrot.lane.b32.xlu0 %v1962, 16
        %v1984 = vpop.permute.xlu0 %1983
        %1985 = vrot.lane.b32.xlu0 %v1963, 16
        %v1986 = vpop.permute.xlu0 %1985
        %1987 = vrot.lane.b32.xlu0 %v1964, 16
        %v1988 = vpop.permute.xlu0 %1987
        %v1989 = vsel %vm905, %v1986, %v1988
        %v1990 = vsel %vm905, %v1984, %v1986
        %v1991 = vsel %vm905, %v1982, %v1984
        %v1992 = vsel %vm905, %v1988, %v1982
        %v1993 = vmul.f32 %v1389, %v1992
        %v1994 = vmul.f32 %v1393, %v1991
        %v1995 = vmul.f32 %v1397, %v1990
        %v1996 = vmul.f32 %v1401, %v1989
        %v1997 = vadd.f32 %v1977, %v1993
        %v1998 = vadd.f32 %v1978, %v1994
        %v1999 = vadd.f32 %v1979, %v1995
        %v2000 = vadd.f32 %v1980, %v1996
        %v2001 = vmax.f32 %v1961, %v1997
        %v2002 = vmax.f32 %v1962, %v1998
        %v2003 = vmax.f32 %v1963, %v1999
        %v2004 = vmax.f32 %v1964, %v2000
        %2005 = vrot.lane.b32.xlu0 %v2001, 96
        %v2006 = vpop.permute.xlu0 %2005
        %2007 = vrot.lane.b32.xlu0 %v2002, 96
        %v2008 = vpop.permute.xlu0 %2007
        %2009 = vrot.lane.b32.xlu0 %v2003, 96
        %v2010 = vpop.permute.xlu0 %2009
        %2011 = vrot.lane.b32.xlu0 %v2004, 96
        %v2012 = vpop.permute.xlu0 %2011
        %v2013 = vsel %vm1763, %v2010, %v2012
        %v2014 = vsel %vm1763, %v2008, %v2010
        %v2015 = vsel %vm1763, %v2006, %v2008
        %v2016 = vsel %vm1763, %v2012, %v2006
        %v2017 = vlaneseq
        %v2018 = vshrl.u32 %v2017, 7
        %v2019 = vsub.s32 4, %v2018
        %v2020 = vrot.slane %v831, %v2019
        %v2021 = vlaneseq
        %v2022 = vshrl.u32 %v2021, 7
        %v2023 = vsub.s32 4, %v2022
        %v2024 = vrot.slane %v832, %v2023
        %v2025 = vlaneseq
        %v2026 = vshrl.u32 %v2025, 7
        %v2027 = vsub.s32 4, %v2026
        %v2028 = vrot.slane %v833, %v2027
        %v2029 = vlaneseq
        %v2030 = vshrl.u32 %v2029, 7
        %v2031 = vsub.s32 4, %v2030
        %v2032 = vrot.slane %v834, %v2031
        %v2033 = vmul.f32 %v2020, %v2015
        %v2034 = vmul.f32 %v2024, %v2014
        %v2035 = vmul.f32 %v2028, %v2013
        %v2036 = vmul.f32 %v2032, %v2016
        %2037 = vrot.lane.b32.xlu0 %v2001, 32
        %v2038 = vpop.permute.xlu0 %2037
        %2039 = vrot.lane.b32.xlu0 %v2002, 32
        %v2040 = vpop.permute.xlu0 %2039
        %2041 = vrot.lane.b32.xlu0 %v2003, 32
        %v2042 = vpop.permute.xlu0 %2041
        %2043 = vrot.lane.b32.xlu0 %v2004, 32
        %v2044 = vpop.permute.xlu0 %2043
        %v2045 = vsel %vm1488, %v2042, %v2044
        %v2046 = vsel %vm1488, %v2040, %v2042
        %v2047 = vsel %vm1488, %v2038, %v2040
        %v2048 = vsel %vm1488, %v2044, %v2038
        %v2049 = vlaneseq
        %v2050 = vshrl.u32 %v2049, 7
        %v2051 = vsub.s32 4, %v2050
        %v2052 = vrot.slane %v835, %v2051
        %v2053 = vlaneseq
        %v2054 = vshrl.u32 %v2053, 7
        %v2055 = vsub.s32 4, %v2054
        %v2056 = vrot.slane %v836, %v2055
        %v2057 = vlaneseq
        %v2058 = vshrl.u32 %v2057, 7
        %v2059 = vsub.s32 4, %v2058
        %v2060 = vrot.slane %v837, %v2059
        %v2061 = vlaneseq
        %v2062 = vshrl.u32 %v2061, 7
        %v2063 = vsub.s32 4, %v2062
        %v2064 = vrot.slane %v838, %v2063
        %v2065 = vmul.f32 %v2052, %v2048
        %v2066 = vmul.f32 %v2056, %v2047
        %v2067 = vmul.f32 %v2060, %v2046
        %v2068 = vmul.f32 %v2064, %v2045
        %v2069 = vadd.f32 %v2033, %v2065
        %v2070 = vadd.f32 %v2034, %v2066
        %v2071 = vadd.f32 %v2035, %v2067
        %v2072 = vadd.f32 %v2036, %v2068
        %v2073 = vmax.f32 %v2001, %v2069
        %v2074 = vmax.f32 %v2002, %v2070
        %v2075 = vmax.f32 %v2003, %v2071
        %v2076 = vmax.f32 %v2004, %v2072
        %v2077 = vld [vmem:[%s3] sm:$0xff]
        %v2078 = vld [vmem:[%s3 + $0x8] sm:$0xff]
        %v2079 = vld [vmem:[%s3 + $0x10] sm:$0xff]
        %v2080 = vld [vmem:[%s3 + $0x18] sm:$0xff]
        %v2081 = vld [vmem:[%s3 + $0x20] sm:$0x1]
        %v2082 = vld [vmem:[%s3 + $0x28] sm:$0x1]
        %v2083 = vld [vmem:[%s3 + $0x30] sm:$0x1]
        %v2084 = vld [vmem:[%s3 + $0x38] sm:$0x1]
        %s2085 = scalar_lea.vmem %s11, 16
        %v2086 = vld [vmem:[%s2085] sm:$0xff]
        %2088 = vset.pattern.permute.xlu0 0
        %2089 = vperm.xlu0 %2088, %v2086
        %v2090 = vpop.permute.xlu0 %2089
        %v2092 = vadd.f32 %v2090, 0.0
        %s2093 = scalar_lea.vmem %s10, 144
        %v2094 = vld [vmem:[%s2093] sm:$0xff]
        %2095 = vrot.lane.b32.xlu0 %v2073, 68
        %v2096 = vpop.permute.xlu0 %2095
        %2097 = vrot.lane.b32.xlu0 %v2074, 68
        %v2098 = vpop.permute.xlu0 %2097
        %2099 = vrot.lane.b32.xlu0 %v2075, 68
        %v2100 = vpop.permute.xlu0 %2099
        %2101 = vrot.lane.b32.xlu0 %v2076, 68
        %v2102 = vpop.permute.xlu0 %2101
        %vm2103 = vcmp.lt.s32.totalorder %v856, 68
        %v2104 = vsel %vm2103, %v2100, %v2102
        %v2105 = vsel %vm2103, %v2098, %v2100
        %v2106 = vsel %vm2103, %v2096, %v2098
        %v2107 = vsel %vm2103, %v2102, %v2096
        %v2108 = vlaneseq
        %v2109 = vshrl.u32 %v2108, 7
        %v2110 = vsub.s32 0, %v2109
        %v2111 = vrot.slane %v2077, %v2110
        %v2112 = vlaneseq
        %v2113 = vshrl.u32 %v2112, 7
        %v2114 = vsub.s32 0, %v2113
        %v2115 = vrot.slane %v2078, %v2114
        %v2116 = vlaneseq
        %v2117 = vshrl.u32 %v2116, 7
        %v2118 = vsub.s32 0, %v2117
        %v2119 = vrot.slane %v2079, %v2118
        %v2120 = vlaneseq
        %v2121 = vshrl.u32 %v2120, 7
        %v2122 = vsub.s32 0, %v2121
        %v2123 = vrot.slane %v2080, %v2122
        %v2124 = vmul.f32 %v2111, %v2107
        %v2125 = vmul.f32 %v2115, %v2106
        %v2126 = vmul.f32 %v2119, %v2105
        %v2127 = vmul.f32 %v2123, %v2104
        %2129 = vset.pattern.permute.xlu0 0
        %2130 = vperm.xlu0 %2129, %v2094
        %v2131 = vpop.permute.xlu0 %2130
        %v2133 = vmul.f32 %v2131, %v2124
        %v2134 = vmul.f32 %v2131, %v2125
        %v2135 = vmul.f32 %v2131, %v2126
        %v2136 = vmul.f32 %v2131, %v2127
        %v2137 = vadd.f32 %v2092, %v2133
        %v2138 = vadd.f32 %v2092, %v2134
        %v2139 = vadd.f32 %v2092, %v2135
        %v2140 = vadd.f32 %v2092, %v2136
        %s2141 = scalar_lea.vmem %s10, 152
        %v2142 = vld [vmem:[%s2141] sm:$0xff]
        %2143 = vrot.lane.b32.xlu0 %v2073, 64
        %v2144 = vpop.permute.xlu0 %2143
        %2145 = vrot.lane.b32.xlu0 %v2074, 64
        %v2146 = vpop.permute.xlu0 %2145
        %2147 = vrot.lane.b32.xlu0 %v2075, 64
        %v2148 = vpop.permute.xlu0 %2147
        %2149 = vrot.lane.b32.xlu0 %v2076, 64
        %v2150 = vpop.permute.xlu0 %2149
        %vm2151 = vcmp.lt.s32.totalorder %v856, 64
        %v2152 = vsel %vm2151, %v2148, %v2150
        %v2153 = vsel %vm2151, %v2146, %v2148
        %v2154 = vsel %vm2151, %v2144, %v2146
        %v2155 = vsel %vm2151, %v2150, %v2144
        %v2156 = vlaneseq
        %v2157 = vshrl.u32 %v2156, 7
        %v2158 = vsub.s32 1, %v2157
        %v2159 = vrot.slane %v2077, %v2158
        %v2160 = vlaneseq
        %v2161 = vshrl.u32 %v2160, 7
        %v2162 = vsub.s32 1, %v2161
        %v2163 = vrot.slane %v2078, %v2162
        %v2164 = vlaneseq
        %v2165 = vshrl.u32 %v2164, 7
        %v2166 = vsub.s32 1, %v2165
        %v2167 = vrot.slane %v2079, %v2166
        %v2168 = vlaneseq
        %v2169 = vshrl.u32 %v2168, 7
        %v2170 = vsub.s32 1, %v2169
        %v2171 = vrot.slane %v2080, %v2170
        %v2172 = vmul.f32 %v2159, %v2155
        %v2173 = vmul.f32 %v2163, %v2154
        %v2174 = vmul.f32 %v2167, %v2153
        %v2175 = vmul.f32 %v2171, %v2152
        %2177 = vset.pattern.permute.xlu0 0
        %2178 = vperm.xlu0 %2177, %v2142
        %v2179 = vpop.permute.xlu0 %2178
        %v2181 = vmul.f32 %v2179, %v2172
        %v2182 = vmul.f32 %v2179, %v2173
        %v2183 = vmul.f32 %v2179, %v2174
        %v2184 = vmul.f32 %v2179, %v2175
        %v2185 = vadd.f32 %v2137, %v2181
        %v2186 = vadd.f32 %v2138, %v2182
        %v2187 = vadd.f32 %v2139, %v2183
        %v2188 = vadd.f32 %v2140, %v2184
        %s2189 = scalar_lea.vmem %s10, 160
        %v2190 = vld [vmem:[%s2189] sm:$0xff]
        %2191 = vrot.lane.b32.xlu0 %v2073, 60
        %v2192 = vpop.permute.xlu0 %2191
        %2193 = vrot.lane.b32.xlu0 %v2074, 60
        %v2194 = vpop.permute.xlu0 %2193
        %2195 = vrot.lane.b32.xlu0 %v2075, 60
        %v2196 = vpop.permute.xlu0 %2195
        %2197 = vrot.lane.b32.xlu0 %v2076, 60
        %v2198 = vpop.permute.xlu0 %2197
        %vm2199 = vcmp.lt.s32.totalorder %v856, 60
        %v2200 = vsel %vm2199, %v2196, %v2198
        %v2201 = vsel %vm2199, %v2194, %v2196
        %v2202 = vsel %vm2199, %v2192, %v2194
        %v2203 = vsel %vm2199, %v2198, %v2192
        %v2204 = vlaneseq
        %v2205 = vshrl.u32 %v2204, 7
        %v2206 = vsub.s32 2, %v2205
        %v2207 = vrot.slane %v2077, %v2206
        %v2208 = vlaneseq
        %v2209 = vshrl.u32 %v2208, 7
        %v2210 = vsub.s32 2, %v2209
        %v2211 = vrot.slane %v2078, %v2210
        %v2212 = vlaneseq
        %v2213 = vshrl.u32 %v2212, 7
        %v2214 = vsub.s32 2, %v2213
        %v2215 = vrot.slane %v2079, %v2214
        %v2216 = vlaneseq
        %v2217 = vshrl.u32 %v2216, 7
        %v2218 = vsub.s32 2, %v2217
        %v2219 = vrot.slane %v2080, %v2218
        %v2220 = vmul.f32 %v2207, %v2203
        %v2221 = vmul.f32 %v2211, %v2202
        %v2222 = vmul.f32 %v2215, %v2201
        %v2223 = vmul.f32 %v2219, %v2200
        %2225 = vset.pattern.permute.xlu0 0
        %2226 = vperm.xlu0 %2225, %v2190
        %v2227 = vpop.permute.xlu0 %2226
        %v2229 = vmul.f32 %v2227, %v2220
        %v2230 = vmul.f32 %v2227, %v2221
        %v2231 = vmul.f32 %v2227, %v2222
        %v2232 = vmul.f32 %v2227, %v2223
        %v2233 = vadd.f32 %v2185, %v2229
        %v2234 = vadd.f32 %v2186, %v2230
        %v2235 = vadd.f32 %v2187, %v2231
        %v2236 = vadd.f32 %v2188, %v2232
        %s2237 = scalar_lea.vmem %s10, 168
        %v2238 = vld [vmem:[%s2237] sm:$0xff]
        %2239 = vrot.lane.b32.xlu0 %v2073, 4
        %v2240 = vpop.permute.xlu0 %2239
        %2241 = vrot.lane.b32.xlu0 %v2074, 4
        %v2242 = vpop.permute.xlu0 %2241
        %2243 = vrot.lane.b32.xlu0 %v2075, 4
        %v2244 = vpop.permute.xlu0 %2243
        %2245 = vrot.lane.b32.xlu0 %v2076, 4
        %v2246 = vpop.permute.xlu0 %2245
        %vm2247 = vcmp.lt.s32.totalorder %v856, 4
        %v2248 = vsel %vm2247, %v2244, %v2246
        %v2249 = vsel %vm2247, %v2242, %v2244
        %v2250 = vsel %vm2247, %v2240, %v2242
        %v2251 = vsel %vm2247, %v2246, %v2240
        %v2252 = vlaneseq
        %v2253 = vshrl.u32 %v2252, 7
        %v2254 = vsub.s32 3, %v2253
        %v2255 = vrot.slane %v2077, %v2254
        %v2256 = vlaneseq
        %v2257 = vshrl.u32 %v2256, 7
        %v2258 = vsub.s32 3, %v2257
        %v2259 = vrot.slane %v2078, %v2258
        %v2260 = vlaneseq
        %v2261 = vshrl.u32 %v2260, 7
        %v2262 = vsub.s32 3, %v2261
        %v2263 = vrot.slane %v2079, %v2262
        %v2264 = vlaneseq
        %v2265 = vshrl.u32 %v2264, 7
        %v2266 = vsub.s32 3, %v2265
        %v2267 = vrot.slane %v2080, %v2266
        %v2268 = vmul.f32 %v2255, %v2251
        %v2269 = vmul.f32 %v2259, %v2250
        %v2270 = vmul.f32 %v2263, %v2249
        %v2271 = vmul.f32 %v2267, %v2248
        %2273 = vset.pattern.permute.xlu0 0
        %2274 = vperm.xlu0 %2273, %v2238
        %v2275 = vpop.permute.xlu0 %2274
        %v2277 = vmul.f32 %v2275, %v2268
        %v2278 = vmul.f32 %v2275, %v2269
        %v2279 = vmul.f32 %v2275, %v2270
        %v2280 = vmul.f32 %v2275, %v2271
        %v2281 = vadd.f32 %v2233, %v2277
        %v2282 = vadd.f32 %v2234, %v2278
        %v2283 = vadd.f32 %v2235, %v2279
        %v2284 = vadd.f32 %v2236, %v2280
        %s2285 = scalar_lea.vmem %s10, 176
        %v2286 = vld [vmem:[%s2285] sm:$0xff]
        %v2287 = vlaneseq
        %v2288 = vshrl.u32 %v2287, 7
        %v2289 = vsub.s32 4, %v2288
        %v2290 = vrot.slane %v2077, %v2289
        %v2291 = vlaneseq
        %v2292 = vshrl.u32 %v2291, 7
        %v2293 = vsub.s32 4, %v2292
        %v2294 = vrot.slane %v2078, %v2293
        %v2295 = vlaneseq
        %v2296 = vshrl.u32 %v2295, 7
        %v2297 = vsub.s32 4, %v2296
        %v2298 = vrot.slane %v2079, %v2297
        %v2299 = vlaneseq
        %v2300 = vshrl.u32 %v2299, 7
        %v2301 = vsub.s32 4, %v2300
        %v2302 = vrot.slane %v2080, %v2301
        %v2303 = vmul.f32 %v2290, %v2073
        %v2304 = vmul.f32 %v2294, %v2074
        %v2305 = vmul.f32 %v2298, %v2075
        %v2306 = vmul.f32 %v2302, %v2076
        %2308 = vset.pattern.permute.xlu0 0
        %2309 = vperm.xlu0 %2308, %v2286
        %v2310 = vpop.permute.xlu0 %2309
        %v2312 = vmul.f32 %v2310, %v2303
        %v2313 = vmul.f32 %v2310, %v2304
        %v2314 = vmul.f32 %v2310, %v2305
        %v2315 = vmul.f32 %v2310, %v2306
        %v2316 = vadd.f32 %v2281, %v2312
        %v2317 = vadd.f32 %v2282, %v2313
        %v2318 = vadd.f32 %v2283, %v2314
        %v2319 = vadd.f32 %v2284, %v2315
        %s2320 = scalar_lea.vmem %s10, 184
        %v2321 = vld [vmem:[%s2320] sm:$0xff]
        %2322 = vrot.lane.b32.xlu0 %v2073, 124
        %v2323 = vpop.permute.xlu0 %2322
        %2324 = vrot.lane.b32.xlu0 %v2074, 124
        %v2325 = vpop.permute.xlu0 %2324
        %2326 = vrot.lane.b32.xlu0 %v2075, 124
        %v2327 = vpop.permute.xlu0 %2326
        %2328 = vrot.lane.b32.xlu0 %v2076, 124
        %v2329 = vpop.permute.xlu0 %2328
        %vm2330 = vcmp.lt.s32.totalorder %v856, 124
        %v2331 = vsel %vm2330, %v2327, %v2329
        %v2332 = vsel %vm2330, %v2325, %v2327
        %v2333 = vsel %vm2330, %v2323, %v2325
        %v2334 = vsel %vm2330, %v2329, %v2323
        %v2335 = vlaneseq
        %v2336 = vshrl.u32 %v2335, 7
        %v2337 = vsub.s32 5, %v2336
        %v2338 = vrot.slane %v2077, %v2337
        %v2339 = vlaneseq
        %v2340 = vshrl.u32 %v2339, 7
        %v2341 = vsub.s32 5, %v2340
        %v2342 = vrot.slane %v2078, %v2341
        %v2343 = vlaneseq
        %v2344 = vshrl.u32 %v2343, 7
        %v2345 = vsub.s32 5, %v2344
        %v2346 = vrot.slane %v2079, %v2345
        %v2347 = vlaneseq
        %v2348 = vshrl.u32 %v2347, 7
        %v2349 = vsub.s32 5, %v2348
        %v2350 = vrot.slane %v2080, %v2349
        %v2351 = vmul.f32 %v2338, %v2333
        %v2352 = vmul.f32 %v2342, %v2332
        %v2353 = vmul.f32 %v2346, %v2331
        %v2354 = vmul.f32 %v2350, %v2334
        %2356 = vset.pattern.permute.xlu0 0
        %2357 = vperm.xlu0 %2356, %v2321
        %v2358 = vpop.permute.xlu0 %2357
        %v2360 = vmul.f32 %v2358, %v2351
        %v2361 = vmul.f32 %v2358, %v2352
        %v2362 = vmul.f32 %v2358, %v2353
        %v2363 = vmul.f32 %v2358, %v2354
        %v2364 = vadd.f32 %v2316, %v2360
        %v2365 = vadd.f32 %v2317, %v2361
        %v2366 = vadd.f32 %v2318, %v2362
        %v2367 = vadd.f32 %v2319, %v2363
        %s2368 = scalar_lea.vmem %s10, 192
        %v2369 = vld [vmem:[%s2368] sm:$0xff]
        %v2370 = vlaneseq
        %v2371 = vshrl.u32 %v2370, 7
        %v2372 = vsub.s32 6, %v2371
        %v2373 = vrot.slane %v2077, %v2372
        %v2374 = vlaneseq
        %v2375 = vshrl.u32 %v2374, 7
        %v2376 = vsub.s32 6, %v2375
        %v2377 = vrot.slane %v2078, %v2376
        %v2378 = vlaneseq
        %v2379 = vshrl.u32 %v2378, 7
        %v2380 = vsub.s32 6, %v2379
        %v2381 = vrot.slane %v2079, %v2380
        %v2382 = vlaneseq
        %v2383 = vshrl.u32 %v2382, 7
        %v2384 = vsub.s32 6, %v2383
        %v2385 = vrot.slane %v2080, %v2384
        %v2386 = vmul.f32 %v2373, %v2106
        %v2387 = vmul.f32 %v2377, %v2105
        %v2388 = vmul.f32 %v2381, %v2104
        %v2389 = vmul.f32 %v2385, %v2107
        %2391 = vset.pattern.permute.xlu0 0
        %2392 = vperm.xlu0 %2391, %v2369
        %v2393 = vpop.permute.xlu0 %2392
        %v2395 = vmul.f32 %v2393, %v2386
        %v2396 = vmul.f32 %v2393, %v2387
        %v2397 = vmul.f32 %v2393, %v2388
        %v2398 = vmul.f32 %v2393, %v2389
        %v2399 = vadd.f32 %v2364, %v2395
        %v2400 = vadd.f32 %v2365, %v2396
        %v2401 = vadd.f32 %v2366, %v2397
        %v2402 = vadd.f32 %v2367, %v2398
        %s2403 = scalar_lea.vmem %s10, 200
        %v2404 = vld [vmem:[%s2403] sm:$0xff]
        %v2405 = vlaneseq
        %v2406 = vshrl.u32 %v2405, 7
        %v2407 = vsub.s32 7, %v2406
        %v2408 = vrot.slane %v2077, %v2407
        %v2409 = vlaneseq
        %v2410 = vshrl.u32 %v2409, 7
        %v2411 = vsub.s32 7, %v2410
        %v2412 = vrot.slane %v2078, %v2411
        %v2413 = vlaneseq
        %v2414 = vshrl.u32 %v2413, 7
        %v2415 = vsub.s32 7, %v2414
        %v2416 = vrot.slane %v2079, %v2415
        %v2417 = vlaneseq
        %v2418 = vshrl.u32 %v2417, 7
        %v2419 = vsub.s32 7, %v2418
        %v2420 = vrot.slane %v2080, %v2419
        %v2421 = vmul.f32 %v2408, %v2154
        %v2422 = vmul.f32 %v2412, %v2153
        %v2423 = vmul.f32 %v2416, %v2152
        %v2424 = vmul.f32 %v2420, %v2155
        %2426 = vset.pattern.permute.xlu0 0
        %2427 = vperm.xlu0 %2426, %v2404
        %v2428 = vpop.permute.xlu0 %2427
        %v2430 = vmul.f32 %v2428, %v2421
        %v2431 = vmul.f32 %v2428, %v2422
        %v2432 = vmul.f32 %v2428, %v2423
        %v2433 = vmul.f32 %v2428, %v2424
        %v2434 = vadd.f32 %v2399, %v2430
        %v2435 = vadd.f32 %v2400, %v2431
        %v2436 = vadd.f32 %v2401, %v2432
        %v2437 = vadd.f32 %v2402, %v2433
        %s2438 = scalar_lea.vmem %s10, 208
        %v2439 = vld [vmem:[%s2438] sm:$0xff]
        %v2440 = vlaneseq
        %v2441 = vshrl.u32 %v2440, 7
        %v2442 = vsub.s32 0, %v2441
        %v2443 = vrot.slane %v2081, %v2442
        %v2444 = vlaneseq
        %v2445 = vshrl.u32 %v2444, 7
        %v2446 = vsub.s32 0, %v2445
        %v2447 = vrot.slane %v2082, %v2446
        %v2448 = vlaneseq
        %v2449 = vshrl.u32 %v2448, 7
        %v2450 = vsub.s32 0, %v2449
        %v2451 = vrot.slane %v2083, %v2450
        %v2452 = vlaneseq
        %v2453 = vshrl.u32 %v2452, 7
        %v2454 = vsub.s32 0, %v2453
        %v2455 = vrot.slane %v2084, %v2454
        %v2456 = vmul.f32 %v2443, %v2202
        %v2457 = vmul.f32 %v2447, %v2201
        %v2458 = vmul.f32 %v2451, %v2200
        %v2459 = vmul.f32 %v2455, %v2203
        %2461 = vset.pattern.permute.xlu0 0
        %2462 = vperm.xlu0 %2461, %v2439
        %v2463 = vpop.permute.xlu0 %2462
        %v2465 = vmul.f32 %v2463, %v2456
        %v2466 = vmul.f32 %v2463, %v2457
        %v2467 = vmul.f32 %v2463, %v2458
        %v2468 = vmul.f32 %v2463, %v2459
        %v2469 = vadd.f32 %v2434, %v2465
        %v2470 = vadd.f32 %v2435, %v2466
        %v2471 = vadd.f32 %v2436, %v2467
        %v2472 = vadd.f32 %v2437, %v2468
        %2473 = vst [vmem:[#allocation2 + $0x40] sm:$0xff] %v2469
        %2474 = vst [vmem:[#allocation2 + $0x48] sm:$0xff] %v2470
        %2475 = vst [vmem:[#allocation2 + $0x50] sm:$0xff] %v2471
        %2476 = vst [vmem:[#allocation2 + $0x58] sm:$0xff] %v2472
        %2477 = vrot.lane.b32.xlu0 %v819, 127
        %v2478 = vpop.permute.xlu0 %2477
        %2479 = vrot.lane.b32.xlu0 %v820, 127
        %v2480 = vpop.permute.xlu0 %2479
        %2481 = vrot.lane.b32.xlu0 %v821, 127
        %v2482 = vpop.permute.xlu0 %2481
        %2483 = vrot.lane.b32.xlu0 %v822, 127
        %v2484 = vpop.permute.xlu0 %2483
        %v2485 = vsel %vm1084, %v2482, %v2484
        %v2486 = vsel %vm1084, %v2480, %v2482
        %v2487 = vsel %vm1084, %v2478, %v2480
        %v2488 = vsel %vm1084, %v2484, %v2478
        %v2489 = vmul.f32 %v1285, %v2487
        %v2490 = vmul.f32 %v1289, %v2486
        %v2491 = vmul.f32 %v1293, %v2485
        %v2492 = vmul.f32 %v1297, %v2488
        %2493 = vrot.lane.b32.xlu0 %v819, 1
        %v2494 = vpop.permute.xlu0 %2493
        %2495 = vrot.lane.b32.xlu0 %v820, 1
        %v2496 = vpop.permute.xlu0 %2495
        %2497 = vrot.lane.b32.xlu0 %v821, 1
        %v2498 = vpop.permute.xlu0 %2497
        %2499 = vrot.lane.b32.xlu0 %v822, 1
        %v2500 = vpop.permute.xlu0 %2499
        %v2501 = vsel %vm1001, %v2498, %v2500
        %v2502 = vsel %vm1001, %v2496, %v2498
        %v2503 = vsel %vm1001, %v2494, %v2496
        %v2504 = vsel %vm1001, %v2500, %v2494
        %v2505 = vmul.f32 %v1317, %v2504
        %v2506 = vmul.f32 %v1321, %v2503
        %v2507 = vmul.f32 %v1325, %v2502
        %v2508 = vmul.f32 %v1329, %v2501
        %v2509 = vadd.f32 %v2489, %v2505
        %v2510 = vadd.f32 %v2490, %v2506
        %v2511 = vadd.f32 %v2491, %v2507
        %v2512 = vadd.f32 %v2492, %v2508
        %v2513 = vmax.f32 %v819, %v2509
        %v2514 = vmax.f32 %v820, %v2510
        %v2515 = vmax.f32 %v821, %v2511
        %v2516 = vmax.f32 %v822, %v2512
        %2517 = vrot.lane.b32.xlu0 %v2513, 126
        %v2518 = vpop.permute.xlu0 %2517
        %2519 = vrot.lane.b32.xlu0 %v2514, 126
        %v2520 = vpop.permute.xlu0 %2519
        %2521 = vrot.lane.b32.xlu0 %v2515, 126
        %v2522 = vpop.permute.xlu0 %2521
        %2523 = vrot.lane.b32.xlu0 %v2516, 126
        %v2524 = vpop.permute.xlu0 %2523
        %v2525 = vsel %vm1667, %v2522, %v2524
        %v2526 = vsel %vm1667, %v2520, %v2522
        %v2527 = vsel %vm1667, %v2518, %v2520
        %v2528 = vsel %vm1667, %v2524, %v2518
        %v2529 = vmul.f32 %v1908, %v2527
        %v2530 = vmul.f32 %v1912, %v2526
        %v2531 = vmul.f32 %v1916, %v2525
        %v2532 = vmul.f32 %v1920, %v2528
        %2533 = vrot.lane.b32.xlu0 %v2513, 2
        %v2534 = vpop.permute.xlu0 %2533
        %2535 = vrot.lane.b32.xlu0 %v2514, 2
        %v2536 = vpop.permute.xlu0 %2535
        %2537 = vrot.lane.b32.xlu0 %v2515, 2
        %v2538 = vpop.permute.xlu0 %2537
        %2539 = vrot.lane.b32.xlu0 %v2516, 2
        %v2540 = vpop.permute.xlu0 %2539
        %v2541 = vsel %vm1584, %v2538, %v2540
        %v2542 = vsel %vm1584, %v2536, %v2538
        %v2543 = vsel %vm1584, %v2534, %v2536
        %v2544 = vsel %vm1584, %v2540, %v2534
        %v2545 = vmul.f32 %v1940, %v2544
        %v2546 = vmul.f32 %v1944, %v2543
        %v2547 = vmul.f32 %v1948, %v2542
        %v2548 = vmul.f32 %v1952, %v2541
        %v2549 = vadd.f32 %v2529, %v2545
        %v2550 = vadd.f32 %v2530, %v2546
        %v2551 = vadd.f32 %v2531, %v2547
        %v2552 = vadd.f32 %v2532, %v2548
        %v2553 = vmax.f32 %v2513, %v2549
        %v2554 = vmax.f32 %v2514, %v2550
        %v2555 = vmax.f32 %v2515, %v2551
        %v2556 = vmax.f32 %v2516, %v2552
        %2557 = vrot.lane.b32.xlu0 %v2553, 124
        %v2558 = vpop.permute.xlu0 %2557
        %2559 = vrot.lane.b32.xlu0 %v2554, 124
        %v2560 = vpop.permute.xlu0 %2559
        %2561 = vrot.lane.b32.xlu0 %v2555, 124
        %v2562 = vpop.permute.xlu0 %2561
        %2563 = vrot.lane.b32.xlu0 %v2556, 124
        %v2564 = vpop.permute.xlu0 %2563
        %v2565 = vsel %vm2330, %v2562, %v2564
        %v2566 = vsel %vm2330, %v2560, %v2562
        %v2567 = vsel %vm2330, %v2558, %v2560
        %v2568 = vsel %vm2330, %v2564, %v2558
        %v2569 = vlaneseq
        %v2570 = vshrl.u32 %v2569, 7
        %v2571 = vsub.s32 2, %v2570
        %v2572 = vrot.slane %v831, %v2571
        %v2573 = vlaneseq
        %v2574 = vshrl.u32 %v2573, 7
        %v2575 = vsub.s32 2, %v2574
        %v2576 = vrot.slane %v832, %v2575
        %v2577 = vlaneseq
        %v2578 = vshrl.u32 %v2577, 7
        %v2579 = vsub.s32 2, %v2578
        %v2580 = vrot.slane %v833, %v2579
        %v2581 = vlaneseq
        %v2582 = vshrl.u32 %v2581, 7
        %v2583 = vsub.s32 2, %v2582
        %v2584 = vrot.slane %v834, %v2583
        %v2585 = vmul.f32 %v2572, %v2567
        %v2586 = vmul.f32 %v2576, %v2566
        %v2587 = vmul.f32 %v2580, %v2565
        %v2588 = vmul.f32 %v2584, %v2568
        %2589 = vrot.lane.b32.xlu0 %v2553, 4
        %v2590 = vpop.permute.xlu0 %2589
        %2591 = vrot.lane.b32.xlu0 %v2554, 4
        %v2592 = vpop.permute.xlu0 %2591
        %2593 = vrot.lane.b32.xlu0 %v2555, 4
        %v2594 = vpop.permute.xlu0 %2593
        %2595 = vrot.lane.b32.xlu0 %v2556, 4
        %v2596 = vpop.permute.xlu0 %2595
        %v2597 = vsel %vm2247, %v2594, %v2596
        %v2598 = vsel %vm2247, %v2592, %v2594
        %v2599 = vsel %vm2247, %v2590, %v2592
        %v2600 = vsel %vm2247, %v2596, %v2590
        %v2601 = vlaneseq
        %v2602 = vshrl.u32 %v2601, 7
        %v2603 = vsub.s32 2, %v2602
        %v2604 = vrot.slane %v835, %v2603
        %v2605 = vlaneseq
        %v2606 = vshrl.u32 %v2605, 7
        %v2607 = vsub.s32 2, %v2606
        %v2608 = vrot.slane %v836, %v2607
        %v2609 = vlaneseq
        %v2610 = vshrl.u32 %v2609, 7
        %v2611 = vsub.s32 2, %v2610
        %v2612 = vrot.slane %v837, %v2611
        %v2613 = vlaneseq
        %v2614 = vshrl.u32 %v2613, 7
        %v2615 = vsub.s32 2, %v2614
        %v2616 = vrot.slane %v838, %v2615
        %v2617 = vmul.f32 %v2604, %v2600
        %v2618 = vmul.f32 %v2608, %v2599
        %v2619 = vmul.f32 %v2612, %v2598
        %v2620 = vmul.f32 %v2616, %v2597
        %v2621 = vadd.f32 %v2585, %v2617
        %v2622 = vadd.f32 %v2586, %v2618
        %v2623 = vadd.f32 %v2587, %v2619
        %v2624 = vadd.f32 %v2588, %v2620
        %v2625 = vmax.f32 %v2553, %v2621
        %v2626 = vmax.f32 %v2554, %v2622
        %v2627 = vmax.f32 %v2555, %v2623
        %v2628 = vmax.f32 %v2556, %v2624
        %2629 = vrot.lane.b32.xlu0 %v2625, 112
        %v2630 = vpop.permute.xlu0 %2629
        %2631 = vrot.lane.b32.xlu0 %v2626, 112
        %v2632 = vpop.permute.xlu0 %2631
        %2633 = vrot.lane.b32.xlu0 %v2627, 112
        %v2634 = vpop.permute.xlu0 %2633
        %2635 = vrot.lane.b32.xlu0 %v2628, 112
        %v2636 = vpop.permute.xlu0 %2635
        %v2637 = vsel %vm1180, %v2634, %v2636
        %v2638 = vsel %vm1180, %v2632, %v2634
        %v2639 = vsel %vm1180, %v2630, %v2632
        %v2640 = vsel %vm1180, %v2636, %v2630
        %v2641 = vmul.f32 %v1357, %v2639
        %v2642 = vmul.f32 %v1361, %v2638
        %v2643 = vmul.f32 %v1365, %v2637
        %v2644 = vmul.f32 %v1369, %v2640
        %2645 = vrot.lane.b32.xlu0 %v2625, 16
        %v2646 = vpop.permute.xlu0 %2645
        %2647 = vrot.lane.b32.xlu0 %v2626, 16
        %v2648 = vpop.permute.xlu0 %2647
        %2649 = vrot.lane.b32.xlu0 %v2627, 16
        %v2650 = vpop.permute.xlu0 %2649
        %2651 = vrot.lane.b32.xlu0 %v2628, 16
        %v2652 = vpop.permute.xlu0 %2651
        %v2653 = vsel %vm905, %v2650, %v2652
        %v2654 = vsel %vm905, %v2648, %v2650
        %v2655 = vsel %vm905, %v2646, %v2648
        %v2656 = vsel %vm905, %v2652, %v2646
        %v2657 = vmul.f32 %v1389, %v2656
        %v2658 = vmul.f32 %v1393, %v2655
        %v2659 = vmul.f32 %v1397, %v2654
        %v2660 = vmul.f32 %v1401, %v2653
        %v2661 = vadd.f32 %v2641, %v2657
        %v2662 = vadd.f32 %v2642, %v2658
        %v2663 = vadd.f32 %v2643, %v2659
        %v2664 = vadd.f32 %v2644, %v2660
        %v2665 = vmax.f32 %v2625, %v2661
        %v2666 = vmax.f32 %v2626, %v2662
        %v2667 = vmax.f32 %v2627, %v2663
        %v2668 = vmax.f32 %v2628, %v2664
        %2669 = vrot.lane.b32.xlu0 %v2665, 96
        %v2670 = vpop.permute.xlu0 %2669
        %2671 = vrot.lane.b32.xlu0 %v2666, 96
        %v2672 = vpop.permute.xlu0 %2671
        %2673 = vrot.lane.b32.xlu0 %v2667, 96
        %v2674 = vpop.permute.xlu0 %2673
        %2675 = vrot.lane.b32.xlu0 %v2668, 96
        %v2676 = vpop.permute.xlu0 %2675
        %v2677 = vsel %vm1763, %v2674, %v2676
        %v2678 = vsel %vm1763, %v2672, %v2674
        %v2679 = vsel %vm1763, %v2670, %v2672
        %v2680 = vsel %vm1763, %v2676, %v2670
        %v2681 = vmul.f32 %v2020, %v2679
        %v2682 = vmul.f32 %v2024, %v2678
        %v2683 = vmul.f32 %v2028, %v2677
        %v2684 = vmul.f32 %v2032, %v2680
        %2685 = vrot.lane.b32.xlu0 %v2665, 32
        %v2686 = vpop.permute.xlu0 %2685
        %2687 = vrot.lane.b32.xlu0 %v2666, 32
        %v2688 = vpop.permute.xlu0 %2687
        %2689 = vrot.lane.b32.xlu0 %v2667, 32
        %v2690 = vpop.permute.xlu0 %2689
        %2691 = vrot.lane.b32.xlu0 %v2668, 32
        %v2692 = vpop.permute.xlu0 %2691
        %v2693 = vsel %vm1488, %v2690, %v2692
        %v2694 = vsel %vm1488, %v2688, %v2690
        %v2695 = vsel %vm1488, %v2686, %v2688
        %v2696 = vsel %vm1488, %v2692, %v2686
        %v2697 = vmul.f32 %v2052, %v2696
        %v2698 = vmul.f32 %v2056, %v2695
        %v2699 = vmul.f32 %v2060, %v2694
        %v2700 = vmul.f32 %v2064, %v2693
        %v2701 = vadd.f32 %v2681, %v2697
        %v2702 = vadd.f32 %v2682, %v2698
        %v2703 = vadd.f32 %v2683, %v2699
        %v2704 = vadd.f32 %v2684, %v2700
        %v2705 = vmax.f32 %v2665, %v2701
        %v2706 = vmax.f32 %v2666, %v2702
        %v2707 = vmax.f32 %v2667, %v2703
        %v2708 = vmax.f32 %v2668, %v2704
        %2709 = vrot.lane.b32.xlu0 %v2705, 64
        %v2710 = vpop.permute.xlu0 %2709
        %2711 = vrot.lane.b32.xlu0 %v2706, 64
        %v2712 = vpop.permute.xlu0 %2711
        %2713 = vrot.lane.b32.xlu0 %v2707, 64
        %v2714 = vpop.permute.xlu0 %2713
        %2715 = vrot.lane.b32.xlu0 %v2708, 64
        %v2716 = vpop.permute.xlu0 %2715
        %v2717 = vsel %vm2151, %v2714, %v2716
        %v2718 = vsel %vm2151, %v2712, %v2714
        %v2719 = vsel %vm2151, %v2710, %v2712
        %v2720 = vsel %vm2151, %v2716, %v2710
        %v2721 = vlaneseq
        %v2722 = vshrl.u32 %v2721, 7
        %v2723 = vsub.s32 5, %v2722
        %v2724 = vrot.slane %v831, %v2723
        %v2725 = vlaneseq
        %v2726 = vshrl.u32 %v2725, 7
        %v2727 = vsub.s32 5, %v2726
        %v2728 = vrot.slane %v832, %v2727
        %v2729 = vlaneseq
        %v2730 = vshrl.u32 %v2729, 7
        %v2731 = vsub.s32 5, %v2730
        %v2732 = vrot.slane %v833, %v2731
        %v2733 = vlaneseq
        %v2734 = vshrl.u32 %v2733, 7
        %v2735 = vsub.s32 5, %v2734
        %v2736 = vrot.slane %v834, %v2735
        %v2737 = vmul.f32 %v2724, %v2719
        %v2738 = vmul.f32 %v2728, %v2718
        %v2739 = vmul.f32 %v2732, %v2717
        %v2740 = vmul.f32 %v2736, %v2720
        %v2741 = vlaneseq
        %v2742 = vshrl.u32 %v2741, 7
        %v2743 = vsub.s32 5, %v2742
        %v2744 = vrot.slane %v835, %v2743
        %v2745 = vlaneseq
        %v2746 = vshrl.u32 %v2745, 7
        %v2747 = vsub.s32 5, %v2746
        %v2748 = vrot.slane %v836, %v2747
        %v2749 = vlaneseq
        %v2750 = vshrl.u32 %v2749, 7
        %v2751 = vsub.s32 5, %v2750
        %v2752 = vrot.slane %v837, %v2751
        %v2753 = vlaneseq
        %v2754 = vshrl.u32 %v2753, 7
        %v2755 = vsub.s32 5, %v2754
        %v2756 = vrot.slane %v838, %v2755
        %v2757 = vmul.f32 %v2744, %v2720
        %v2758 = vmul.f32 %v2748, %v2719
        %v2759 = vmul.f32 %v2752, %v2718
        %v2760 = vmul.f32 %v2756, %v2717
        %v2761 = vadd.f32 %v2737, %v2757
        %v2762 = vadd.f32 %v2738, %v2758
        %v2763 = vadd.f32 %v2739, %v2759
        %v2764 = vadd.f32 %v2740, %v2760
        %v2765 = vmax.f32 %v2705, %v2761
        %v2766 = vmax.f32 %v2706, %v2762
        %v2767 = vmax.f32 %v2707, %v2763
        %v2768 = vmax.f32 %v2708, %v2764
        %v2769 = vld [vmem:[#allocation4] sm:$0xff]
        %v2770 = vld [vmem:[#allocation4 + $0x8] sm:$0xff]
        %v2771 = vld [vmem:[#allocation4 + $0x10] sm:$0xff]
        %v2772 = vld [vmem:[#allocation4 + $0x18] sm:$0xff]
        %v2773 = vld [vmem:[#allocation4 + $0x20] sm:$0x1]
        %v2774 = vld [vmem:[#allocation4 + $0x28] sm:$0x1]
        %v2775 = vld [vmem:[#allocation4 + $0x30] sm:$0x1]
        %v2776 = vld [vmem:[#allocation4 + $0x38] sm:$0x1]
        %s2777 = scalar_lea.vmem %s11, 24
        %v2778 = vld [vmem:[%s2777] sm:$0xff]
        %2780 = vset.pattern.permute.xlu0 0
        %2781 = vperm.xlu0 %2780, %v2778
        %v2782 = vpop.permute.xlu0 %2781
        %v2784 = vadd.f32 %v2782, 0.0
        %s2785 = scalar_lea.vmem %s10, 216
        %v2786 = vld [vmem:[%s2785] sm:$0xff]
        %2787 = vrot.lane.b32.xlu0 %v2765, 8
        %v2788 = vpop.permute.xlu0 %2787
        %2789 = vrot.lane.b32.xlu0 %v2766, 8
        %v2790 = vpop.permute.xlu0 %2789
        %2791 = vrot.lane.b32.xlu0 %v2767, 8
        %v2792 = vpop.permute.xlu0 %2791
        %2793 = vrot.lane.b32.xlu0 %v2768, 8
        %v2794 = vpop.permute.xlu0 %2793
        %vm2795 = vcmp.lt.s32.totalorder %v856, 8
        %v2796 = vsel %vm2795, %v2792, %v2794
        %v2797 = vsel %vm2795, %v2790, %v2792
        %v2798 = vsel %vm2795, %v2788, %v2790
        %v2799 = vsel %vm2795, %v2794, %v2788
        %v2800 = vlaneseq
        %v2801 = vshrl.u32 %v2800, 7
        %v2802 = vsub.s32 0, %v2801
        %v2803 = vrot.slane %v2769, %v2802
        %v2804 = vlaneseq
        %v2805 = vshrl.u32 %v2804, 7
        %v2806 = vsub.s32 0, %v2805
        %v2807 = vrot.slane %v2770, %v2806
        %v2808 = vlaneseq
        %v2809 = vshrl.u32 %v2808, 7
        %v2810 = vsub.s32 0, %v2809
        %v2811 = vrot.slane %v2771, %v2810
        %v2812 = vlaneseq
        %v2813 = vshrl.u32 %v2812, 7
        %v2814 = vsub.s32 0, %v2813
        %v2815 = vrot.slane %v2772, %v2814
        %v2816 = vmul.f32 %v2803, %v2796
        %v2817 = vmul.f32 %v2807, %v2799
        %v2818 = vmul.f32 %v2811, %v2798
        %v2819 = vmul.f32 %v2815, %v2797
        %2821 = vset.pattern.permute.xlu0 0
        %2822 = vperm.xlu0 %2821, %v2786
        %v2823 = vpop.permute.xlu0 %2822
        %v2825 = vmul.f32 %v2823, %v2816
        %v2826 = vmul.f32 %v2823, %v2817
        %v2827 = vmul.f32 %v2823, %v2818
        %v2828 = vmul.f32 %v2823, %v2819
        %v2829 = vadd.f32 %v2784, %v2825
        %v2830 = vadd.f32 %v2784, %v2826
        %v2831 = vadd.f32 %v2784, %v2827
        %v2832 = vadd.f32 %v2784, %v2828
        %s2833 = scalar_lea.vmem %s10, 224
        %v2834 = vld [vmem:[%s2833] sm:$0xff]
        %v2835 = vlaneseq
        %v2836 = vshrl.u32 %v2835, 7
        %v2837 = vsub.s32 1, %v2836
        %v2838 = vrot.slane %v2769, %v2837
        %v2839 = vlaneseq
        %v2840 = vshrl.u32 %v2839, 7
        %v2841 = vsub.s32 1, %v2840
        %v2842 = vrot.slane %v2770, %v2841
        %v2843 = vlaneseq
        %v2844 = vshrl.u32 %v2843, 7
        %v2845 = vsub.s32 1, %v2844
        %v2846 = vrot.slane %v2771, %v2845
        %v2847 = vlaneseq
        %v2848 = vshrl.u32 %v2847, 7
        %v2849 = vsub.s32 1, %v2848
        %v2850 = vrot.slane %v2772, %v2849
        %v2851 = vmul.f32 %v2838, %v2768
        %v2852 = vmul.f32 %v2842, %v2765
        %v2853 = vmul.f32 %v2846, %v2766
        %v2854 = vmul.f32 %v2850, %v2767
        %2856 = vset.pattern.permute.xlu0 0
        %2857 = vperm.xlu0 %2856, %v2834
        %v2858 = vpop.permute.xlu0 %2857
        %v2860 = vmul.f32 %v2858, %v2851
        %v2861 = vmul.f32 %v2858, %v2852
        %v2862 = vmul.f32 %v2858, %v2853
        %v2863 = vmul.f32 %v2858, %v2854
        %v2864 = vadd.f32 %v2829, %v2860
        %v2865 = vadd.f32 %v2830, %v2861
        %v2866 = vadd.f32 %v2831, %v2862
        %v2867 = vadd.f32 %v2832, %v2863
        %s2868 = scalar_lea.vmem %s10, 232
        %v2869 = vld [vmem:[%s2868] sm:$0xff]
        %2870 = vrot.lane.b32.xlu0 %v2765, 120
        %v2871 = vpop.permute.xlu0 %2870
        %2872 = vrot.lane.b32.xlu0 %v2766, 120
        %v2873 = vpop.permute.xlu0 %2872
        %2874 = vrot.lane.b32.xlu0 %v2767, 120
        %v2875 = vpop.permute.xlu0 %2874
        %2876 = vrot.lane.b32.xlu0 %v2768, 120
        %v2877 = vpop.permute.xlu0 %2876
        %vm2878 = vcmp.lt.s32.totalorder %v856, 120
        %v2879 = vsel %vm2878, %v2875, %v2877
        %v2880 = vsel %vm2878, %v2873, %v2875
        %v2881 = vsel %vm2878, %v2871, %v2873
        %v2882 = vsel %vm2878, %v2877, %v2871
        %v2883 = vlaneseq
        %v2884 = vshrl.u32 %v2883, 7
        %v2885 = vsub.s32 2, %v2884
        %v2886 = vrot.slane %v2769, %v2885
        %v2887 = vlaneseq
        %v2888 = vshrl.u32 %v2887, 7
        %v2889 = vsub.s32 2, %v2888
        %v2890 = vrot.slane %v2770, %v2889
        %v2891 = vlaneseq
        %v2892 = vshrl.u32 %v2891, 7
        %v2893 = vsub.s32 2, %v2892
        %v2894 = vrot.slane %v2771, %v2893
        %v2895 = vlaneseq
        %v2896 = vshrl.u32 %v2895, 7
        %v2897 = vsub.s32 2, %v2896
        %v2898 = vrot.slane %v2772, %v2897
        %v2899 = vmul.f32 %v2886, %v2882
        %v2900 = vmul.f32 %v2890, %v2881
        %v2901 = vmul.f32 %v2894, %v2880
        %v2902 = vmul.f32 %v2898, %v2879
        %2904 = vset.pattern.permute.xlu0 0
        %2905 = vperm.xlu0 %2904, %v2869
        %v2906 = vpop.permute.xlu0 %2905
        %v2908 = vmul.f32 %v2906, %v2899
        %v2909 = vmul.f32 %v2906, %v2900
        %v2910 = vmul.f32 %v2906, %v2901
        %v2911 = vmul.f32 %v2906, %v2902
        %v2912 = vadd.f32 %v2864, %v2908
        %v2913 = vadd.f32 %v2865, %v2909
        %v2914 = vadd.f32 %v2866, %v2910
        %v2915 = vadd.f32 %v2867, %v2911
        %s2916 = scalar_lea.vmem %s10, 240
        %v2917 = vld [vmem:[%s2916] sm:$0xff]
        %v2918 = vlaneseq
        %v2919 = vshrl.u32 %v2918, 7
        %v2920 = vsub.s32 3, %v2919
        %v2921 = vrot.slane %v2769, %v2920
        %v2922 = vlaneseq
        %v2923 = vshrl.u32 %v2922, 7
        %v2924 = vsub.s32 3, %v2923
        %v2925 = vrot.slane %v2770, %v2924
        %v2926 = vlaneseq
        %v2927 = vshrl.u32 %v2926, 7
        %v2928 = vsub.s32 3, %v2927
        %v2929 = vrot.slane %v2771, %v2928
        %v2930 = vlaneseq
        %v2931 = vshrl.u32 %v2930, 7
        %v2932 = vsub.s32 3, %v2931
        %v2933 = vrot.slane %v2772, %v2932
        %v2934 = vmul.f32 %v2921, %v2799
        %v2935 = vmul.f32 %v2925, %v2798
        %v2936 = vmul.f32 %v2929, %v2797
        %v2937 = vmul.f32 %v2933, %v2796
        %2939 = vset.pattern.permute.xlu0 0
        %2940 = vperm.xlu0 %2939, %v2917
        %v2941 = vpop.permute.xlu0 %2940
        %v2943 = vmul.f32 %v2941, %v2934
        %v2944 = vmul.f32 %v2941, %v2935
        %v2945 = vmul.f32 %v2941, %v2936
        %v2946 = vmul.f32 %v2941, %v2937
        %v2947 = vadd.f32 %v2912, %v2943
        %v2948 = vadd.f32 %v2913, %v2944
        %v2949 = vadd.f32 %v2914, %v2945
        %v2950 = vadd.f32 %v2915, %v2946
        %s2951 = scalar_lea.vmem %s10, 248
        %v2952 = vld [vmem:[%s2951] sm:$0xff]
        %v2953 = vlaneseq
        %v2954 = vshrl.u32 %v2953, 7
        %v2955 = vsub.s32 4, %v2954
        %v2956 = vrot.slane %v2769, %v2955
        %v2957 = vlaneseq
        %v2958 = vshrl.u32 %v2957, 7
        %v2959 = vsub.s32 4, %v2958
        %v2960 = vrot.slane %v2770, %v2959
        %v2961 = vlaneseq
        %v2962 = vshrl.u32 %v2961, 7
        %v2963 = vsub.s32 4, %v2962
        %v2964 = vrot.slane %v2771, %v2963
        %v2965 = vlaneseq
        %v2966 = vshrl.u32 %v2965, 7
        %v2967 = vsub.s32 4, %v2966
        %v2968 = vrot.slane %v2772, %v2967
        %v2969 = vmul.f32 %v2956, %v2765
        %v2970 = vmul.f32 %v2960, %v2766
        %v2971 = vmul.f32 %v2964, %v2767
        %v2972 = vmul.f32 %v2968, %v2768
        %2974 = vset.pattern.permute.xlu0 0
        %2975 = vperm.xlu0 %2974, %v2952
        %v2976 = vpop.permute.xlu0 %2975
        %v2978 = vmul.f32 %v2976, %v2969
        %v2979 = vmul.f32 %v2976, %v2970
        %v2980 = vmul.f32 %v2976, %v2971
        %v2981 = vmul.f32 %v2976, %v2972
        %v2982 = vadd.f32 %v2947, %v2978
        %v2983 = vadd.f32 %v2948, %v2979
        %v2984 = vadd.f32 %v2949, %v2980
        %v2985 = vadd.f32 %v2950, %v2981
        %s2986 = scalar_lea.vmem %s10, 256
        %v2987 = vld [vmem:[%s2986] sm:$0xff]
        %v2988 = vlaneseq
        %v2989 = vshrl.u32 %v2988, 7
        %v2990 = vsub.s32 5, %v2989
        %v2991 = vrot.slane %v2769, %v2990
        %v2992 = vlaneseq
        %v2993 = vshrl.u32 %v2992, 7
        %v2994 = vsub.s32 5, %v2993
        %v2995 = vrot.slane %v2770, %v2994
        %v2996 = vlaneseq
        %v2997 = vshrl.u32 %v2996, 7
        %v2998 = vsub.s32 5, %v2997
        %v2999 = vrot.slane %v2771, %v2998
        %v3000 = vlaneseq
        %v3001 = vshrl.u32 %v3000, 7
        %v3002 = vsub.s32 5, %v3001
        %v3003 = vrot.slane %v2772, %v3002
        %v3004 = vmul.f32 %v2991, %v2881
        %v3005 = vmul.f32 %v2995, %v2880
        %v3006 = vmul.f32 %v2999, %v2879
        %v3007 = vmul.f32 %v3003, %v2882
        %3009 = vset.pattern.permute.xlu0 0
        %3010 = vperm.xlu0 %3009, %v2987
        %v3011 = vpop.permute.xlu0 %3010
        %v3013 = vmul.f32 %v3011, %v3004
        %v3014 = vmul.f32 %v3011, %v3005
        %v3015 = vmul.f32 %v3011, %v3006
        %v3016 = vmul.f32 %v3011, %v3007
        %v3017 = vadd.f32 %v2982, %v3013
        %v3018 = vadd.f32 %v2983, %v3014
        %v3019 = vadd.f32 %v2984, %v3015
        %v3020 = vadd.f32 %v2985, %v3016
        %s3021 = scalar_lea.vmem %s10, 264
        %v3022 = vld [vmem:[%s3021] sm:$0xff]
        %v3023 = vlaneseq
        %v3024 = vshrl.u32 %v3023, 7
        %v3025 = vsub.s32 6, %v3024
        %v3026 = vrot.slane %v2769, %v3025
        %v3027 = vlaneseq
        %v3028 = vshrl.u32 %v3027, 7
        %v3029 = vsub.s32 6, %v3028
        %v3030 = vrot.slane %v2770, %v3029
        %v3031 = vlaneseq
        %v3032 = vshrl.u32 %v3031, 7
        %v3033 = vsub.s32 6, %v3032
        %v3034 = vrot.slane %v2771, %v3033
        %v3035 = vlaneseq
        %v3036 = vshrl.u32 %v3035, 7
        %v3037 = vsub.s32 6, %v3036
        %v3038 = vrot.slane %v2772, %v3037
        %v3039 = vmul.f32 %v3026, %v2798
        %v3040 = vmul.f32 %v3030, %v2797
        %v3041 = vmul.f32 %v3034, %v2796
        %v3042 = vmul.f32 %v3038, %v2799
        %3044 = vset.pattern.permute.xlu0 0
        %3045 = vperm.xlu0 %3044, %v3022
        %v3046 = vpop.permute.xlu0 %3045
        %v3048 = vmul.f32 %v3046, %v3039
        %v3049 = vmul.f32 %v3046, %v3040
        %v3050 = vmul.f32 %v3046, %v3041
        %v3051 = vmul.f32 %v3046, %v3042
        %v3052 = vadd.f32 %v3017, %v3048
        %v3053 = vadd.f32 %v3018, %v3049
        %v3054 = vadd.f32 %v3019, %v3050
        %v3055 = vadd.f32 %v3020, %v3051
        %s3056 = scalar_lea.vmem %s10, 272
        %v3057 = vld [vmem:[%s3056] sm:$0xff]
        %v3058 = vlaneseq
        %v3059 = vshrl.u32 %v3058, 7
        %v3060 = vsub.s32 7, %v3059
        %v3061 = vrot.slane %v2769, %v3060
        %v3062 = vlaneseq
        %v3063 = vshrl.u32 %v3062, 7
        %v3064 = vsub.s32 7, %v3063
        %v3065 = vrot.slane %v2770, %v3064
        %v3066 = vlaneseq
        %v3067 = vshrl.u32 %v3066, 7
        %v3068 = vsub.s32 7, %v3067
        %v3069 = vrot.slane %v2771, %v3068
        %v3070 = vlaneseq
        %v3071 = vshrl.u32 %v3070, 7
        %v3072 = vsub.s32 7, %v3071
        %v3073 = vrot.slane %v2772, %v3072
        %v3074 = vmul.f32 %v3061, %v2766
        %v3075 = vmul.f32 %v3065, %v2767
        %v3076 = vmul.f32 %v3069, %v2768
        %v3077 = vmul.f32 %v3073, %v2765
        %3079 = vset.pattern.permute.xlu0 0
        %3080 = vperm.xlu0 %3079, %v3057
        %v3081 = vpop.permute.xlu0 %3080
        %v3083 = vmul.f32 %v3081, %v3074
        %v3084 = vmul.f32 %v3081, %v3075
        %v3085 = vmul.f32 %v3081, %v3076
        %v3086 = vmul.f32 %v3081, %v3077
        %v3087 = vadd.f32 %v3052, %v3083
        %v3088 = vadd.f32 %v3053, %v3084
        %v3089 = vadd.f32 %v3054, %v3085
        %v3090 = vadd.f32 %v3055, %v3086
        %s3091 = scalar_lea.vmem %s10, 280
        %v3092 = vld [vmem:[%s3091] sm:$0xff]
        %v3093 = vlaneseq
        %v3094 = vshrl.u32 %v3093, 7
        %v3095 = vsub.s32 0, %v3094
        %v3096 = vrot.slane %v2773, %v3095
        %v3097 = vlaneseq
        %v3098 = vshrl.u32 %v3097, 7
        %v3099 = vsub.s32 0, %v3098
        %v3100 = vrot.slane %v2774, %v3099
        %v3101 = vlaneseq
        %v3102 = vshrl.u32 %v3101, 7
        %v3103 = vsub.s32 0, %v3102
        %v3104 = vrot.slane %v2775, %v3103
        %v3105 = vlaneseq
        %v3106 = vshrl.u32 %v3105, 7
        %v3107 = vsub.s32 0, %v3106
        %v3108 = vrot.slane %v2776, %v3107
        %v3109 = vmul.f32 %v3096, %v2880
        %v3110 = vmul.f32 %v3100, %v2879
        %v3111 = vmul.f32 %v3104, %v2882
        %v3112 = vmul.f32 %v3108, %v2881
        %3114 = vset.pattern.permute.xlu0 0
        %3115 = vperm.xlu0 %3114, %v3092
        %v3116 = vpop.permute.xlu0 %3115
        %v3118 = vmul.f32 %v3116, %v3109
        %v3119 = vmul.f32 %v3116, %v3110
        %v3120 = vmul.f32 %v3116, %v3111
        %v3121 = vmul.f32 %v3116, %v3112
        %v3122 = vadd.f32 %v3087, %v3118
        %v3123 = vadd.f32 %v3088, %v3119
        %v3124 = vadd.f32 %v3089, %v3120
        %v3125 = vadd.f32 %v3090, %v3121
        %3126 = vst [vmem:[#allocation2 + $0x60] sm:$0xff] %v3122
        %3127 = vst [vmem:[#allocation2 + $0x68] sm:$0xff] %v3123
        %3128 = vst [vmem:[#allocation2 + $0x70] sm:$0xff] %v3124
        %3129 = vst [vmem:[#allocation2 + $0x78] sm:$0xff] %v3125
        %v3130 = vld [vmem:[%s12] sm:$0xf]
        %v3131 = vld [vmem:[%s12 + $0x4] sm:$0xf]
        %v3132 = vld [vmem:[%s12 + $0x8] sm:$0xf]
        %v3133 = vld [vmem:[%s12 + $0xc] sm:$0xf]
        %v3134 = vld [vmem:[#allocation2] sm:$0xff]
        %v3135 = vld [vmem:[#allocation2 + $0x8] sm:$0xff]
        %v3136 = vld [vmem:[#allocation2 + $0x10] sm:$0xff]
        %v3137 = vld [vmem:[#allocation2 + $0x18] sm:$0xff]
        %v3138 = vld [vmem:[#allocation2 + $0x20] sm:$0xff]
        %v3139 = vld [vmem:[#allocation2 + $0x28] sm:$0xff]
        %v3140 = vld [vmem:[#allocation2 + $0x30] sm:$0xff]
        %v3141 = vld [vmem:[#allocation2 + $0x38] sm:$0xff]
        %v3142 = vld [vmem:[#allocation2 + $0x40] sm:$0xff]
        %v3143 = vld [vmem:[#allocation2 + $0x48] sm:$0xff]
        %v3144 = vld [vmem:[#allocation2 + $0x50] sm:$0xff]
        %v3145 = vld [vmem:[#allocation2 + $0x58] sm:$0xff]
        %v3146 = vld [vmem:[#allocation2 + $0x60] sm:$0xff]
        %v3147 = vld [vmem:[#allocation2 + $0x68] sm:$0xff]
        %v3148 = vld [vmem:[#allocation2 + $0x70] sm:$0xff]
        %v3149 = vld [vmem:[#allocation2 + $0x78] sm:$0xff]
        %v3150 = vpack.c.bf16 %v3138, %v3134
        %v3151 = vpack.c.bf16 %v3139, %v3135
        %v3152 = vpack.c.bf16 %v3140, %v3136
        %v3153 = vpack.c.bf16 %v3141, %v3137
        %v3154 = vpack.c.bf16 %v3146, %v3142
        %v3155 = vpack.c.bf16 %v3147, %v3143
        %v3156 = vpack.c.bf16 %v3148, %v3144
        %v3157 = vpack.c.bf16 %v3149, %v3145
        %v3158 = vld [vmem:[%s13] sm:$0xff]
        %v3159 = vld [vmem:[%s13 + $0x8] sm:$0xff]
        %v3160 = vld [vmem:[%s13 + $0x10] sm:$0xff]
        %v3161 = vld [vmem:[%s13 + $0x18] sm:$0xff]
        %3163 = vset.pattern.permute.xlu0 0
        %3164 = vperm.xlu0 %3163, %v3158
        %v3165 = vpop.permute.xlu0 %3164
        %3168 = vset.pattern.permute.xlu0 0
        %3169 = vperm.xlu0 %3168, %v3159
        %v3170 = vpop.permute.xlu0 %3169
        %3173 = vset.pattern.permute.xlu0 0
        %3174 = vperm.xlu0 %3173, %v3160
        %v3175 = vpop.permute.xlu0 %3174
        %3178 = vset.pattern.permute.xlu0 0
        %3179 = vperm.xlu0 %3178, %v3161
        %v3180 = vpop.permute.xlu0 %3179
        %v3186 = vunpack.c.l.b16 %v3130
        %v3187 = vunpack.c.l.b16 %v3131
        %v3188 = vunpack.c.l.b16 %v3132
        %v3189 = vunpack.c.l.b16 %v3133
        %v3190 = vpack.c.b16 %v3187, %v3186
        %v3191 = vpack.c.b16 %v3189, %v3188
        %vm3192 = vcmask 261120
        %v3194 = vsel %vm3192, %v3190, 0
        %v3197 = vsel %vm3192, %v3191, 0
        %3199 = vmatprep.subr.bf16.mxu0 0
        %3200 = vmatpush1.bf16.msra.mxu0 0
        %3201 = vmatprep.subr.bf16.mxu0 0
        %3202 = vmatpush1.bf16.msra.mxu0 0
        %3203 = vmatprep.subr.bf16.mxu0 0
        %3204 = vmatpush1.bf16.msra.mxu0 0
        %3205 = vmatprep.subr.bf16.mxu0 0
        %3206 = vmatpush1.bf16.msra.mxu0 0
        %3207 = vmatprep.subr.bf16.mxu0 0
        %3208 = vmatpush1.bf16.msra.mxu0 0
        %3209 = vmatprep.subr.bf16.mxu0 0
        %3210 = vmatpush1.bf16.msra.mxu0 0
        %3211 = vmatprep.subr.bf16.mxu0 %v3155
        %3212 = vmatpush1.bf16.msra.mxu0 %v3154
        %3213 = vmatprep.subr.bf16.mxu0 %v3151
        %3214 = vmatpush1.bf16.msra.mxu0 %v3150
        %3215 = vmatprep.subr.bf16.mxu0 0
        %3216 = vmatpush2.bf16.msra.mxu0 0
        %3217 = vmatprep.subr.bf16.mxu0 0
        %3218 = vmatpush2.bf16.msra.mxu0 0
        %3219 = vmatprep.subr.bf16.mxu0 0
        %3220 = vmatpush2.bf16.msra.mxu0 0
        %3221 = vmatprep.subr.bf16.mxu0 0
        %3222 = vmatpush2.bf16.msra.mxu0 0
        %3223 = vmatprep.subr.bf16.mxu0 0
        %3224 = vmatpush2.bf16.msra.mxu0 0
        %3225 = vmatprep.subr.bf16.mxu0 0
        %3226 = vmatpush2.bf16.msra.mxu0 0
        %3227 = vmatprep.subr.bf16.mxu0 0
        %3228 = vmatpush2.bf16.msra.mxu0 0
        %3229 = vmatprep.subr.bf16.mxu0 0
        %3230 = vmatpush2.bf16.msra.mxu0 0
        %3231 = vmatprep.mubr.bf16.mxu0 0
        %3232 = vmatmul.mubr.bf16.gmra.mxu0 %v3194
        %v3233 = vpop.f32.mrf.mxu0
        %v3234 = vadd.f32 %v3165, %v3233
        %v3235 = vpop.f32.mrf.mxu0
        %v3236 = vadd.f32 %v3165, %v3235
        %v3237 = vpop.f32.mrf.mxu0
        %v3238 = vadd.f32 %v3170, %v3237
        %v3239 = vpop.f32.mrf.mxu0
        %v3240 = vadd.f32 %v3170, %v3239
        %3241 = vmatprep.mubr.bf16.mxu0 0
        %3242 = vmatmul.mubr.bf16.gmra.mxu0 %v3197
        %v3243 = vpop.f32.mrf.mxu0
        %v3244 = vadd.f32 %v3175, %v3243
        %v3245 = vpop.f32.mrf.mxu0
        %v3246 = vadd.f32 %v3175, %v3245
        %v3247 = vpop.f32.mrf.mxu0
        %v3248 = vadd.f32 %v3180, %v3247
        %v3249 = vpop.f32.mrf.mxu0
        %v3250 = vadd.f32 %v3180, %v3249
        %3251 = vdwg.mxu0
        %3252 = vmatprep.subr.bf16.mxu0 0
        %3253 = vmatpush1.bf16.msra.mxu0 0
        %3254 = vmatprep.subr.bf16.mxu0 0
        %3255 = vmatpush1.bf16.msra.mxu0 0
        %3256 = vmatprep.subr.bf16.mxu0 0
        %3257 = vmatpush1.bf16.msra.mxu0 0
        %3258 = vmatprep.subr.bf16.mxu0 0
        %3259 = vmatpush1.bf16.msra.mxu0 0
        %3260 = vmatprep.subr.bf16.mxu0 0
        %3261 = vmatpush1.bf16.msra.mxu0 0
        %3262 = vmatprep.subr.bf16.mxu0 0
        %3263 = vmatpush1.bf16.msra.mxu0 0
        %3264 = vmatprep.subr.bf16.mxu0 %v3157
        %3265 = vmatpush1.bf16.msra.mxu0 %v3156
        %3266 = vmatprep.subr.bf16.mxu0 %v3153
        %3267 = vmatpush1.bf16.msra.mxu0 %v3152
        %3268 = vmatprep.subr.bf16.mxu0 0
        %3269 = vmatpush2.bf16.msra.mxu0 0
        %3270 = vmatprep.subr.bf16.mxu0 0
        %3271 = vmatpush2.bf16.msra.mxu0 0
        %3272 = vmatprep.subr.bf16.mxu0 0
        %3273 = vmatpush2.bf16.msra.mxu0 0
        %3274 = vmatprep.subr.bf16.mxu0 0
        %3275 = vmatpush2.bf16.msra.mxu0 0
        %3276 = vmatprep.subr.bf16.mxu0 0
        %3277 = vmatpush2.bf16.msra.mxu0 0
        %3278 = vmatprep.subr.bf16.mxu0 0
        %3279 = vmatpush2.bf16.msra.mxu0 0
        %3280 = vmatprep.subr.bf16.mxu0 0
        %3281 = vmatpush2.bf16.msra.mxu0 0
        %3282 = vmatprep.subr.bf16.mxu0 0
        %3283 = vmatpush2.bf16.msra.mxu0 0
        %3284 = vmatprep.mubr.bf16.mxu0 0
        %3285 = vmatmul.mubr.bf16.gmra.mxu0 %v3194
        %v3286 = vpop.f32.mrf.mxu0
        %v3287 = vadd.f32 %v3165, %v3286
        %v3288 = vpop.f32.mrf.mxu0
        %v3289 = vadd.f32 %v3165, %v3288
        %v3290 = vpop.f32.mrf.mxu0
        %v3291 = vadd.f32 %v3170, %v3290
        %v3292 = vpop.f32.mrf.mxu0
        %v3293 = vadd.f32 %v3170, %v3292
        %3294 = vmatprep.mubr.bf16.mxu0 0
        %3295 = vmatmul.mubr.bf16.gmra.mxu0 %v3197
        %v3296 = vpop.f32.mrf.mxu0
        %v3297 = vadd.f32 %v3175, %v3296
        %v3298 = vpop.f32.mrf.mxu0
        %v3299 = vadd.f32 %v3175, %v3298
        %v3300 = vpop.f32.mrf.mxu0
        %v3301 = vadd.f32 %v3180, %v3300
        %v3302 = vpop.f32.mrf.mxu0
        %v3303 = vadd.f32 %v3180, %v3302
        %3304 = vdwg.mxu0
        %v3305 = vmul.f32 %v3234, 0.5
        %v3306 = vmul.f32 %v3236, 0.5
        %v3307 = vmul.f32 %v3287, 0.5
        %v3308 = vmul.f32 %v3289, 0.5
        %v3309 = vmul.f32 %v3238, 0.5
        %v3310 = vmul.f32 %v3240, 0.5
        %v3311 = vmul.f32 %v3291, 0.5
        %v3312 = vmul.f32 %v3293, 0.5
        %v3313 = vmul.f32 %v3244, 0.5
        %v3314 = vmul.f32 %v3246, 0.5
        %v3315 = vmul.f32 %v3297, 0.5
        %v3316 = vmul.f32 %v3299, 0.5
        %v3317 = vmul.f32 %v3248, 0.5
        %v3318 = vmul.f32 %v3250, 0.5
        %v3319 = vmul.f32 %v3301, 0.5
        %v3320 = vmul.f32 %v3303, 0.5
        %v3321 = vmul.f32 %v3234, 0.044715
        %v3322 = vmul.f32 %v3236, 0.044715
        %v3323 = vmul.f32 %v3287, 0.044715
        %v3324 = vmul.f32 %v3289, 0.044715
        %v3325 = vmul.f32 %v3238, 0.044715
        %v3326 = vmul.f32 %v3240, 0.044715
        %v3327 = vmul.f32 %v3291, 0.044715
        %v3328 = vmul.f32 %v3293, 0.044715
        %v3329 = vmul.f32 %v3244, 0.044715
        %v3330 = vmul.f32 %v3246, 0.044715
        %v3331 = vmul.f32 %v3297, 0.044715
        %v3332 = vmul.f32 %v3299, 0.044715
        %v3333 = vmul.f32 %v3248, 0.044715
        %v3334 = vmul.f32 %v3250, 0.044715
        %v3335 = vmul.f32 %v3301, 0.044715
        %v3336 = vmul.f32 %v3303, 0.044715
        %v3337 = vmul.f32 %v3321, %v3234
        %v3338 = vmul.f32 %v3322, %v3236
        %v3339 = vmul.f32 %v3323, %v3287
        %v3340 = vmul.f32 %v3324, %v3289
        %v3341 = vmul.f32 %v3325, %v3238
        %v3342 = vmul.f32 %v3326, %v3240
        %v3343 = vmul.f32 %v3327, %v3291
        %v3344 = vmul.f32 %v3328, %v3293
        %v3345 = vmul.f32 %v3329, %v3244
        %v3346 = vmul.f32 %v3330, %v3246
        %v3347 = vmul.f32 %v3331, %v3297
        %v3348 = vmul.f32 %v3332, %v3299
        %v3349 = vmul.f32 %v3333, %v3248
        %v3350 = vmul.f32 %v3334, %v3250
        %v3351 = vmul.f32 %v3335, %v3301
        %v3352 = vmul.f32 %v3336, %v3303
        %v3353 = vmul.f32 %v3337, %v3234
        %v3354 = vmul.f32 %v3338, %v3236
        %v3355 = vmul.f32 %v3339, %v3287
        %v3356 = vmul.f32 %v3340, %v3289
        %v3357 = vmul.f32 %v3341, %v3238
        %v3358 = vmul.f32 %v3342, %v3240
        %v3359 = vmul.f32 %v3343, %v3291
        %v3360 = vmul.f32 %v3344, %v3293
        %v3361 = vmul.f32 %v3345, %v3244
        %v3362 = vmul.f32 %v3346, %v3246
        %v3363 = vmul.f32 %v3347, %v3297
        %v3364 = vmul.f32 %v3348, %v3299
        %v3365 = vmul.f32 %v3349, %v3248
        %v3366 = vmul.f32 %v3350, %v3250
        %v3367 = vmul.f32 %v3351, %v3301
        %v3368 = vmul.f32 %v3352, %v3303
        %v3369 = vadd.f32 %v3234, %v3353
        %v3370 = vadd.f32 %v3236, %v3354
        %v3371 = vadd.f32 %v3287, %v3355
        %v3372 = vadd.f32 %v3289, %v3356
        %v3373 = vadd.f32 %v3238, %v3357
        %v3374 = vadd.f32 %v3240, %v3358
        %v3375 = vadd.f32 %v3291, %v3359
        %v3376 = vadd.f32 %v3293, %v3360
        %v3377 = vadd.f32 %v3244, %v3361
        %v3378 = vadd.f32 %v3246, %v3362
        %v3379 = vadd.f32 %v3297, %v3363
        %v3380 = vadd.f32 %v3299, %v3364
        %v3381 = vadd.f32 %v3248, %v3365
        %v3382 = vadd.f32 %v3250, %v3366
        %v3383 = vadd.f32 %v3301, %v3367
        %v3384 = vadd.f32 %v3303, %v3368
        %v3385 = vmul.f32 %v3369, 0.7978846
        %v3386 = vmul.f32 %v3370, 0.7978846
        %v3387 = vmul.f32 %v3371, 0.7978846
        %v3388 = vmul.f32 %v3372, 0.7978846
        %v3389 = vmul.f32 %v3373, 0.7978846
        %v3390 = vmul.f32 %v3374, 0.7978846
        %v3391 = vmul.f32 %v3375, 0.7978846
        %v3392 = vmul.f32 %v3376, 0.7978846
        %v3393 = vmul.f32 %v3377, 0.7978846
        %v3394 = vmul.f32 %v3378, 0.7978846
        %v3395 = vmul.f32 %v3379, 0.7978846
        %v3396 = vmul.f32 %v3380, 0.7978846
        %v3397 = vmul.f32 %v3381, 0.7978846
        %v3398 = vmul.f32 %v3382, 0.7978846
        %v3399 = vmul.f32 %v3383, 0.7978846
        %v3400 = vmul.f32 %v3384, 0.7978846
        %v3401 = vtanh.pop %v3385
        %v3402 = vtanh.pop %v3386
        %v3403 = vtanh.pop %v3387
        %v3404 = vtanh.pop %v3388
        %v3405 = vtanh.pop %v3389
        %v3406 = vtanh.pop %v3390
        %v3407 = vtanh.pop %v3391
        %v3408 = vtanh.pop %v3392
        %v3409 = vtanh.pop %v3393
        %v3410 = vtanh.pop %v3394
        %v3411 = vtanh.pop %v3395
        %v3412 = vtanh.pop %v3396
        %v3413 = vtanh.pop %v3397
        %v3414 = vtanh.pop %v3398
        %v3415 = vtanh.pop %v3399
        %v3416 = vtanh.pop %v3400
        %v3417 = vadd.f32 %v3401, 1.0
        %v3418 = vadd.f32 %v3402, 1.0
        %v3419 = vadd.f32 %v3403, 1.0
        %v3420 = vadd.f32 %v3404, 1.0
        %v3421 = vadd.f32 %v3405, 1.0
        %v3422 = vadd.f32 %v3406, 1.0
        %v3423 = vadd.f32 %v3407, 1.0
        %v3424 = vadd.f32 %v3408, 1.0
        %v3425 = vadd.f32 %v3409, 1.0
        %v3426 = vadd.f32 %v3410, 1.0
        %v3427 = vadd.f32 %v3411, 1.0
        %v3428 = vadd.f32 %v3412, 1.0
        %v3429 = vadd.f32 %v3413, 1.0
        %v3430 = vadd.f32 %v3414, 1.0
        %v3431 = vadd.f32 %v3415, 1.0
        %v3432 = vadd.f32 %v3416, 1.0
        %v3433 = vmul.f32 %v3305, %v3417
        %v3434 = vmul.f32 %v3306, %v3418
        %v3435 = vmul.f32 %v3307, %v3419
        %v3436 = vmul.f32 %v3308, %v3420
        %v3437 = vmul.f32 %v3309, %v3421
        %v3438 = vmul.f32 %v3310, %v3422
        %v3439 = vmul.f32 %v3311, %v3423
        %v3440 = vmul.f32 %v3312, %v3424
        %v3441 = vmul.f32 %v3313, %v3425
        %v3442 = vmul.f32 %v3314, %v3426
        %v3443 = vmul.f32 %v3315, %v3427
        %v3444 = vmul.f32 %v3316, %v3428
        %v3445 = vmul.f32 %v3317, %v3429
        %v3446 = vmul.f32 %v3318, %v3430
        %v3447 = vmul.f32 %v3319, %v3431
        %v3448 = vmul.f32 %v3320, %v3432
        %v3449 = vmul.f32 %v3433, %v807
        %v3450 = vmul.f32 %v3434, %v808
        %v3451 = vmul.f32 %v3435, %v809
        %v3452 = vmul.f32 %v3436, %v810
        %v3453 = vmul.f32 %v3437, %v811
        %v3454 = vmul.f32 %v3438, %v812
        %v3455 = vmul.f32 %v3439, %v813
        %v3456 = vmul.f32 %v3440, %v814
        %v3457 = vmul.f32 %v3441, %v815
        %v3458 = vmul.f32 %v3442, %v816
        %v3459 = vmul.f32 %v3443, %v817
        %v3460 = vmul.f32 %v3444, %v818
        %v3461 = vmul.f32 %v3445, %v819
        %v3462 = vmul.f32 %v3446, %v820
        %v3463 = vmul.f32 %v3447, %v821
        %v3464 = vmul.f32 %v3448, %v822
        %v3465 = vadd.f32 %v3449, %v590
        %v3466 = vadd.f32 %v3450, %v591
        %v3467 = vadd.f32 %v3451, %v592
        %v3468 = vadd.f32 %v3452, %v593
        %v3469 = vadd.f32 %v3453, %v594
        %v3470 = vadd.f32 %v3454, %v595
        %v3471 = vadd.f32 %v3455, %v596
        %v3472 = vadd.f32 %v3456, %v597
        %v3473 = vadd.f32 %v3457, %v598
        %v3474 = vadd.f32 %v3458, %v599
        %v3475 = vadd.f32 %v3459, %v600
        %v3476 = vadd.f32 %v3460, %v601
        %v3477 = vadd.f32 %v3461, %v602
        %v3478 = vadd.f32 %v3462, %v603
        %v3479 = vadd.f32 %v3463, %v604
        %v3480 = vadd.f32 %v3464, %v605
        %v3481 = vadd.f32 %v3465, %v3469
        %v3482 = vadd.f32 %v3481, %v3473
        %v3483 = vadd.f32 %v3482, %v3477
        %v3484 = vrot.slane %v3483, 4
        %v3485 = vadd.f32 %v3483, %v3484
        %v3486 = vrot.slane %v3485, 2
        %v3487 = vadd.f32 %v3485, %v3486
        %v3488 = vrot.slane %v3487, 1
        %v3489 = vadd.f32 %v3487, %v3488
        %v3490 = vadd.f32 %v3466, %v3470
        %v3491 = vadd.f32 %v3490, %v3474
        %v3492 = vadd.f32 %v3491, %v3478
        %v3493 = vrot.slane %v3492, 4
        %v3494 = vadd.f32 %v3492, %v3493
        %v3495 = vrot.slane %v3494, 2
        %v3496 = vadd.f32 %v3494, %v3495
        %v3497 = vrot.slane %v3496, 1
        %v3498 = vadd.f32 %v3496, %v3497
        %v3499 = vadd.f32 %v3467, %v3471
        %v3500 = vadd.f32 %v3499, %v3475
        %v3501 = vadd.f32 %v3500, %v3479
        %v3502 = vrot.slane %v3501, 4
        %v3503 = vadd.f32 %v3501, %v3502
        %v3504 = vrot.slane %v3503, 2
        %v3505 = vadd.f32 %v3503, %v3504
        %v3506 = vrot.slane %v3505, 1
        %v3507 = vadd.f32 %v3505, %v3506
        %v3508 = vadd.f32 %v3468, %v3472
        %v3509 = vadd.f32 %v3508, %v3476
        %v3510 = vadd.f32 %v3509, %v3480
        %v3511 = vrot.slane %v3510, 4
        %v3512 = vadd.f32 %v3510, %v3511
        %v3513 = vrot.slane %v3512, 2
        %v3514 = vadd.f32 %v3512, %v3513
        %v3515 = vrot.slane %v3514, 1
        %v3516 = vadd.f32 %v3514, %v3515
        %v3517 = vmul.f32 %v3489, %v642
        %v3518 = vmul.f32 %v3498, %v642
        %v3519 = vmul.f32 %v3507, %v642
        %v3520 = vmul.f32 %v3516, %v642
        %v3521 = vsub.f32 %v3465, %v3517
        %v3522 = vsub.f32 %v3466, %v3518
        %v3523 = vsub.f32 %v3467, %v3519
        %v3524 = vsub.f32 %v3468, %v3520
        %v3525 = vsub.f32 %v3469, %v3517
        %v3526 = vsub.f32 %v3470, %v3518
        %v3527 = vsub.f32 %v3471, %v3519
        %v3528 = vsub.f32 %v3472, %v3520
        %v3529 = vsub.f32 %v3473, %v3517
        %v3530 = vsub.f32 %v3474, %v3518
        %v3531 = vsub.f32 %v3475, %v3519
        %v3532 = vsub.f32 %v3476, %v3520
        %v3533 = vsub.f32 %v3477, %v3517
        %v3534 = vsub.f32 %v3478, %v3518
        %v3535 = vsub.f32 %v3479, %v3519
        %v3536 = vsub.f32 %v3480, %v3520
        %v3537 = vmul.f32 %v3521, %v3521
        %v3538 = vmul.f32 %v3522, %v3522
        %v3539 = vmul.f32 %v3523, %v3523
        %v3540 = vmul.f32 %v3524, %v3524
        %v3541 = vmul.f32 %v3525, %v3525
        %v3542 = vmul.f32 %v3526, %v3526
        %v3543 = vmul.f32 %v3527, %v3527
        %v3544 = vmul.f32 %v3528, %v3528
        %v3545 = vmul.f32 %v3529, %v3529
        %v3546 = vmul.f32 %v3530, %v3530
        %v3547 = vmul.f32 %v3531, %v3531
        %v3548 = vmul.f32 %v3532, %v3532
        %v3549 = vmul.f32 %v3533, %v3533
        %v3550 = vmul.f32 %v3534, %v3534
        %v3551 = vmul.f32 %v3535, %v3535
        %v3552 = vmul.f32 %v3536, %v3536
        %v3553 = vadd.f32 %v3537, %v3541
        %v3554 = vadd.f32 %v3553, %v3545
        %v3555 = vadd.f32 %v3554, %v3549
        %v3556 = vrot.slane %v3555, 4
        %v3557 = vadd.f32 %v3555, %v3556
        %v3558 = vrot.slane %v3557, 2
        %v3559 = vadd.f32 %v3557, %v3558
        %v3560 = vrot.slane %v3559, 1
        %v3561 = vadd.f32 %v3559, %v3560
        %v3562 = vadd.f32 %v3538, %v3542
        %v3563 = vadd.f32 %v3562, %v3546
        %v3564 = vadd.f32 %v3563, %v3550
        %v3565 = vrot.slane %v3564, 4
        %v3566 = vadd.f32 %v3564, %v3565
        %v3567 = vrot.slane %v3566, 2
        %v3568 = vadd.f32 %v3566, %v3567
        %v3569 = vrot.slane %v3568, 1
        %v3570 = vadd.f32 %v3568, %v3569
        %v3571 = vadd.f32 %v3539, %v3543
        %v3572 = vadd.f32 %v3571, %v3547
        %v3573 = vadd.f32 %v3572, %v3551
        %v3574 = vrot.slane %v3573, 4
        %v3575 = vadd.f32 %v3573, %v3574
        %v3576 = vrot.slane %v3575, 2
        %v3577 = vadd.f32 %v3575, %v3576
        %v3578 = vrot.slane %v3577, 1
        %v3579 = vadd.f32 %v3577, %v3578
        %v3580 = vadd.f32 %v3540, %v3544
        %v3581 = vadd.f32 %v3580, %v3548
        %v3582 = vadd.f32 %v3581, %v3552
        %v3583 = vrot.slane %v3582, 4
        %v3584 = vadd.f32 %v3582, %v3583
        %v3585 = vrot.slane %v3584, 2
        %v3586 = vadd.f32 %v3584, %v3585
        %v3587 = vrot.slane %v3586, 1
        %v3588 = vadd.f32 %v3586, %v3587
        %v3589 = vmul.f32 %v3561, %v642
        %v3590 = vmul.f32 %v3570, %v642
        %v3591 = vmul.f32 %v3579, %v642
        %v3592 = vmul.f32 %v3588, %v642
        %v3593 = vld [vmem:[%s8] sm:$0xff]
        %v3594 = vld [vmem:[%s8 + $0x8] sm:$0xff]
        %v3595 = vld [vmem:[%s8 + $0x10] sm:$0xff]
        %v3596 = vld [vmem:[%s8 + $0x18] sm:$0xff]
        %v3597 = vadd.f32 %v3589, 1e-06
        %v3598 = vadd.f32 %v3590, 1e-06
        %v3599 = vadd.f32 %v3591, 1e-06
        %v3600 = vadd.f32 %v3592, 1e-06
        %v3601 = vrsqrt.pop %v3597
        %v3602 = vrsqrt.pop %v3598
        %v3603 = vrsqrt.pop %v3599
        %v3604 = vrsqrt.pop %v3600
        %v3605 = vmul.f32 %v3521, %v3601
        %v3606 = vmul.f32 %v3522, %v3602
        %v3607 = vmul.f32 %v3523, %v3603
        %v3608 = vmul.f32 %v3524, %v3604
        %v3609 = vmul.f32 %v3525, %v3601
        %v3610 = vmul.f32 %v3526, %v3602
        %v3611 = vmul.f32 %v3527, %v3603
        %v3612 = vmul.f32 %v3528, %v3604
        %v3613 = vmul.f32 %v3529, %v3601
        %v3614 = vmul.f32 %v3530, %v3602
        %v3615 = vmul.f32 %v3531, %v3603
        %v3616 = vmul.f32 %v3532, %v3604
        %v3617 = vmul.f32 %v3533, %v3601
        %v3618 = vmul.f32 %v3534, %v3602
        %v3619 = vmul.f32 %v3535, %v3603
        %v3620 = vmul.f32 %v3536, %v3604
        %3622 = vset.pattern.permute.xlu0 0
        %3623 = vperm.xlu0 %3622, %v3593
        %v3624 = vpop.permute.xlu0 %3623
        %3627 = vset.pattern.permute.xlu0 0
        %3628 = vperm.xlu0 %3627, %v3594
        %v3629 = vpop.permute.xlu0 %3628
        %3632 = vset.pattern.permute.xlu0 0
        %3633 = vperm.xlu0 %3632, %v3595
        %v3634 = vpop.permute.xlu0 %3633
        %3637 = vset.pattern.permute.xlu0 0
        %3638 = vperm.xlu0 %3637, %v3596
        %v3639 = vpop.permute.xlu0 %3638
        %v3641 = vmul.f32 %v3624, %v3605
        %v3642 = vmul.f32 %v3624, %v3606
        %v3643 = vmul.f32 %v3624, %v3607
        %v3644 = vmul.f32 %v3624, %v3608
        %v3645 = vmul.f32 %v3629, %v3609
        %v3646 = vmul.f32 %v3629, %v3610
        %v3647 = vmul.f32 %v3629, %v3611
        %v3648 = vmul.f32 %v3629, %v3612
        %v3649 = vmul.f32 %v3634, %v3613
        %v3650 = vmul.f32 %v3634, %v3614
        %v3651 = vmul.f32 %v3634, %v3615
        %v3652 = vmul.f32 %v3634, %v3616
        %v3653 = vmul.f32 %v3639, %v3617
        %v3654 = vmul.f32 %v3639, %v3618
        %v3655 = vmul.f32 %v3639, %v3619
        %v3656 = vmul.f32 %v3639, %v3620
        %v3657 = vld [vmem:[%s9] sm:$0xff]
        %v3658 = vld [vmem:[%s9 + $0x8] sm:$0xff]
        %v3659 = vld [vmem:[%s9 + $0x10] sm:$0xff]
        %v3660 = vld [vmem:[%s9 + $0x18] sm:$0xff]
        %3662 = vset.pattern.permute.xlu0 0
        %3663 = vperm.xlu0 %3662, %v3657
        %v3664 = vpop.permute.xlu0 %3663
        %3667 = vset.pattern.permute.xlu0 0
        %3668 = vperm.xlu0 %3667, %v3658
        %v3669 = vpop.permute.xlu0 %3668
        %3672 = vset.pattern.permute.xlu0 0
        %3673 = vperm.xlu0 %3672, %v3659
        %v3674 = vpop.permute.xlu0 %3673
        %3677 = vset.pattern.permute.xlu0 0
        %3678 = vperm.xlu0 %3677, %v3660
        %v3679 = vpop.permute.xlu0 %3678
        %v3681 = vadd.f32 %v3641, %v3664
        %v3682 = vadd.f32 %v3642, %v3664
        %v3683 = vadd.f32 %v3643, %v3664
        %v3684 = vadd.f32 %v3644, %v3664
        %v3685 = vadd.f32 %v3645, %v3669
        %v3686 = vadd.f32 %v3646, %v3669
        %v3687 = vadd.f32 %v3647, %v3669
        %v3688 = vadd.f32 %v3648, %v3669
        %v3689 = vadd.f32 %v3649, %v3674
        %v3690 = vadd.f32 %v3650, %v3674
        %v3691 = vadd.f32 %v3651, %v3674
        %v3692 = vadd.f32 %v3652, %v3674
        %v3693 = vadd.f32 %v3653, %v3679
        %v3694 = vadd.f32 %v3654, %v3679
        %v3695 = vadd.f32 %v3655, %v3679
        %v3696 = vadd.f32 %v3656, %v3679
        %3697 = vrot.lane.b32.xlu0 %v3681, 17
        %v3698 = vpop.permute.xlu0 %3697
        %3699 = vrot.lane.b32.xlu0 %v3685, 17
        %v3700 = vpop.permute.xlu0 %3699
        %3701 = vrot.lane.b32.xlu0 %v3689, 17
        %v3702 = vpop.permute.xlu0 %3701
        %3703 = vrot.lane.b32.xlu0 %v3693, 17
        %v3704 = vpop.permute.xlu0 %3703
        %3705 = vrot.lane.b32.xlu0 %v3682, 17
        %v3706 = vpop.permute.xlu0 %3705
        %3707 = vrot.lane.b32.xlu0 %v3686, 17
        %v3708 = vpop.permute.xlu0 %3707
        %3709 = vrot.lane.b32.xlu0 %v3690, 17
        %v3710 = vpop.permute.xlu0 %3709
        %3711 = vrot.lane.b32.xlu0 %v3694, 17
        %v3712 = vpop.permute.xlu0 %3711
        %3713 = vrot.lane.b32.xlu0 %v3683, 17
        %v3714 = vpop.permute.xlu0 %3713
        %3715 = vrot.lane.b32.xlu0 %v3687, 17
        %v3716 = vpop.permute.xlu0 %3715
        %3717 = vrot.lane.b32.xlu0 %v3691, 17
        %v3718 = vpop.permute.xlu0 %3717
        %3719 = vrot.lane.b32.xlu0 %v3695, 17
        %v3720 = vpop.permute.xlu0 %3719
        %3721 = vrot.lane.b32.xlu0 %v3684, 17
        %v3722 = vpop.permute.xlu0 %3721
        %3723 = vrot.lane.b32.xlu0 %v3688, 17
        %v3724 = vpop.permute.xlu0 %3723
        %3725 = vrot.lane.b32.xlu0 %v3692, 17
        %v3726 = vpop.permute.xlu0 %3725
        %3727 = vrot.lane.b32.xlu0 %v3696, 17
        %v3728 = vpop.permute.xlu0 %3727
        %v3729 = vsel %vm857, %v3714, %v3722
        %v3730 = vsel %vm857, %v3716, %v3724
        %v3731 = vsel %vm857, %v3718, %v3726
        %v3732 = vsel %vm857, %v3720, %v3728
        %v3733 = vsel %vm857, %v3706, %v3714
        %v3734 = vsel %vm857, %v3708, %v3716
        %v3735 = vsel %vm857, %v3710, %v3718
        %v3736 = vsel %vm857, %v3712, %v3720
        %v3737 = vsel %vm857, %v3698, %v3706
        %v3738 = vsel %vm857, %v3700, %v3708
        %v3739 = vsel %vm857, %v3702, %v3710
        %v3740 = vsel %vm857, %v3704, %v3712
        %v3741 = vsel %vm857, %v3722, %v3698
        %v3742 = vsel %vm857, %v3724, %v3700
        %v3743 = vsel %vm857, %v3726, %v3702
        %v3744 = vsel %vm857, %v3728, %v3704
        %v3745 = vmul.f32 %v865, %v3741
        %v3746 = vmul.f32 %v869, %v3737
        %v3747 = vmul.f32 %v873, %v3733
        %v3748 = vmul.f32 %v877, %v3729
        %v3749 = vmul.f32 %v865, %v3742
        %v3750 = vmul.f32 %v869, %v3738
        %v3751 = vmul.f32 %v873, %v3734
        %v3752 = vmul.f32 %v877, %v3730
        %v3753 = vmul.f32 %v865, %v3743
        %v3754 = vmul.f32 %v869, %v3739
        %v3755 = vmul.f32 %v873, %v3735
        %v3756 = vmul.f32 %v877, %v3731
        %v3757 = vmul.f32 %v865, %v3744
        %v3758 = vmul.f32 %v869, %v3740
        %v3759 = vmul.f32 %v873, %v3736
        %v3760 = vmul.f32 %v877, %v3732
        %v3761 = vpack.c.bf16 %v3749, %v3745
        %v3762 = vpack.c.bf16 %v3750, %v3746
        %v3763 = vpack.c.bf16 %v3751, %v3747
        %v3764 = vpack.c.bf16 %v3752, %v3748
        %v3765 = vpack.c.bf16 %v3757, %v3753
        %v3766 = vpack.c.bf16 %v3758, %v3754
        %v3767 = vpack.c.bf16 %v3759, %v3755
        %v3768 = vpack.c.bf16 %v3760, %v3756
        %v3777 = vunpack.c.l.b16 %v3761
        %v3778 = vunpack.c.l.b16 %v3762
        %v3779 = vunpack.c.l.b16 %v3763
        %v3780 = vunpack.c.l.b16 %v3764
        %v3781 = vunpack.c.h.b16 %v3761
        %v3782 = vunpack.c.h.b16 %v3762
        %v3783 = vunpack.c.h.b16 %v3763
        %v3784 = vunpack.c.h.b16 %v3764
        %v3785 = vunpack.c.l.b16 %v3765
        %v3786 = vunpack.c.l.b16 %v3766
        %v3787 = vunpack.c.l.b16 %v3767
        %v3788 = vunpack.c.l.b16 %v3768
        %v3789 = vunpack.c.h.b16 %v3765
        %v3790 = vunpack.c.h.b16 %v3766
        %v3791 = vunpack.c.h.b16 %v3767
        %v3792 = vunpack.c.h.b16 %v3768
        %v3793 = vpack.c.b16 %v3778, %v3777
        %v3794 = vpack.c.b16 %v3780, %v3779
        %v3795 = vpack.c.b16 %v3782, %v3781
        %v3796 = vpack.c.b16 %v3784, %v3783
        %v3797 = vpack.c.b16 %v3786, %v3785
        %v3798 = vpack.c.b16 %v3788, %v3787
        %v3799 = vpack.c.b16 %v3790, %v3789
        %v3800 = vpack.c.b16 %v3792, %v3791
        %3809 = vst [vmem:[#allocation3] sm:$0xff] %v3793
        %3810 = vst [vmem:[#allocation3 + $0x8] sm:$0xff] %v3794
        %3811 = vst [vmem:[#allocation3 + $0x10] sm:$0xff] %v3795
        %3812 = vst [vmem:[#allocation3 + $0x18] sm:$0xff] %v3796
        %3813 = vst [vmem:[#allocation3 + $0x20] sm:$0xff] %v3797
        %3814 = vst [vmem:[#allocation3 + $0x28] sm:$0xff] %v3798
        %3815 = vst [vmem:[#allocation3 + $0x30] sm:$0xff] %v3799
        %3816 = vst [vmem:[#allocation3 + $0x38] sm:$0xff] %v3800
        %3817 = vrot.lane.b32.xlu0 %v3681, 16
        %v3818 = vpop.permute.xlu0 %3817
        %3819 = vrot.lane.b32.xlu0 %v3685, 16
        %v3820 = vpop.permute.xlu0 %3819
        %3821 = vrot.lane.b32.xlu0 %v3689, 16
        %v3822 = vpop.permute.xlu0 %3821
        %3823 = vrot.lane.b32.xlu0 %v3693, 16
        %v3824 = vpop.permute.xlu0 %3823
        %3825 = vrot.lane.b32.xlu0 %v3682, 16
        %v3826 = vpop.permute.xlu0 %3825
        %3827 = vrot.lane.b32.xlu0 %v3686, 16
        %v3828 = vpop.permute.xlu0 %3827
        %3829 = vrot.lane.b32.xlu0 %v3690, 16
        %v3830 = vpop.permute.xlu0 %3829
        %3831 = vrot.lane.b32.xlu0 %v3694, 16
        %v3832 = vpop.permute.xlu0 %3831
        %3833 = vrot.lane.b32.xlu0 %v3683, 16
        %v3834 = vpop.permute.xlu0 %3833
        %3835 = vrot.lane.b32.xlu0 %v3687, 16
        %v3836 = vpop.permute.xlu0 %3835
        %3837 = vrot.lane.b32.xlu0 %v3691, 16
        %v3838 = vpop.permute.xlu0 %3837
        %3839 = vrot.lane.b32.xlu0 %v3695, 16
        %v3840 = vpop.permute.xlu0 %3839
        %3841 = vrot.lane.b32.xlu0 %v3684, 16
        %v3842 = vpop.permute.xlu0 %3841
        %3843 = vrot.lane.b32.xlu0 %v3688, 16
        %v3844 = vpop.permute.xlu0 %3843
        %3845 = vrot.lane.b32.xlu0 %v3692, 16
        %v3846 = vpop.permute.xlu0 %3845
        %3847 = vrot.lane.b32.xlu0 %v3696, 16
        %v3848 = vpop.permute.xlu0 %3847
        %v3849 = vsel %vm905, %v3834, %v3842
        %v3850 = vsel %vm905, %v3836, %v3844
        %v3851 = vsel %vm905, %v3838, %v3846
        %v3852 = vsel %vm905, %v3840, %v3848
        %v3853 = vsel %vm905, %v3826, %v3834
        %v3854 = vsel %vm905, %v3828, %v3836
        %v3855 = vsel %vm905, %v3830, %v3838
        %v3856 = vsel %vm905, %v3832, %v3840
        %v3857 = vsel %vm905, %v3818, %v3826
        %v3858 = vsel %vm905, %v3820, %v3828
        %v3859 = vsel %vm905, %v3822, %v3830
        %v3860 = vsel %vm905, %v3824, %v3832
        %v3861 = vsel %vm905, %v3842, %v3818
        %v3862 = vsel %vm905, %v3844, %v3820
        %v3863 = vsel %vm905, %v3846, %v3822
        %v3864 = vsel %vm905, %v3848, %v3824
        %v3865 = vmul.f32 %v913, %v3861
        %v3866 = vmul.f32 %v917, %v3857
        %v3867 = vmul.f32 %v921, %v3853
        %v3868 = vmul.f32 %v925, %v3849
        %v3869 = vmul.f32 %v913, %v3862
        %v3870 = vmul.f32 %v917, %v3858
        %v3871 = vmul.f32 %v921, %v3854
        %v3872 = vmul.f32 %v925, %v3850
        %v3873 = vmul.f32 %v913, %v3863
        %v3874 = vmul.f32 %v917, %v3859
        %v3875 = vmul.f32 %v921, %v3855
        %v3876 = vmul.f32 %v925, %v3851
        %v3877 = vmul.f32 %v913, %v3864
        %v3878 = vmul.f32 %v917, %v3860
        %v3879 = vmul.f32 %v921, %v3856
        %v3880 = vmul.f32 %v925, %v3852
        %v3881 = vpack.c.bf16 %v3869, %v3865
        %v3882 = vpack.c.bf16 %v3870, %v3866
        %v3883 = vpack.c.bf16 %v3871, %v3867
        %v3884 = vpack.c.bf16 %v3872, %v3868
        %v3885 = vpack.c.bf16 %v3877, %v3873
        %v3886 = vpack.c.bf16 %v3878, %v3874
        %v3887 = vpack.c.bf16 %v3879, %v3875
        %v3888 = vpack.c.bf16 %v3880, %v3876
        %v3897 = vunpack.c.l.b16 %v3881
        %v3898 = vunpack.c.l.b16 %v3882
        %v3899 = vunpack.c.l.b16 %v3883
        %v3900 = vunpack.c.l.b16 %v3884
        %v3901 = vunpack.c.h.b16 %v3881
        %v3902 = vunpack.c.h.b16 %v3882
        %v3903 = vunpack.c.h.b16 %v3883
        %v3904 = vunpack.c.h.b16 %v3884
        %v3905 = vunpack.c.l.b16 %v3885
        %v3906 = vunpack.c.l.b16 %v3886
        %v3907 = vunpack.c.l.b16 %v3887
        %v3908 = vunpack.c.l.b16 %v3888
        %v3909 = vunpack.c.h.b16 %v3885
        %v3910 = vunpack.c.h.b16 %v3886
        %v3911 = vunpack.c.h.b16 %v3887
        %v3912 = vunpack.c.h.b16 %v3888
        %v3913 = vpack.c.b16 %v3898, %v3897
        %v3914 = vpack.c.b16 %v3900, %v3899
        %v3915 = vpack.c.b16 %v3902, %v3901
        %v3916 = vpack.c.b16 %v3904, %v3903
        %v3917 = vpack.c.b16 %v3906, %v3905
        %v3918 = vpack.c.b16 %v3908, %v3907
        %v3919 = vpack.c.b16 %v3910, %v3909
        %v3920 = vpack.c.b16 %v3912, %v3911
        %3929 = vst [vmem:[#allocation3 + $0x40] sm:$0xff] %v3913
        %3930 = vst [vmem:[#allocation3 + $0x48] sm:$0xff] %v3914
        %3931 = vst [vmem:[#allocation3 + $0x50] sm:$0xff] %v3915
        %3932 = vst [vmem:[#allocation3 + $0x58] sm:$0xff] %v3916
        %3933 = vst [vmem:[#allocation3 + $0x60] sm:$0xff] %v3917
        %3934 = vst [vmem:[#allocation3 + $0x68] sm:$0xff] %v3918
        %3935 = vst [vmem:[#allocation3 + $0x70] sm:$0xff] %v3919
        %3936 = vst [vmem:[#allocation3 + $0x78] sm:$0xff] %v3920
        %3937 = vrot.lane.b32.xlu0 %v3681, 15
        %v3938 = vpop.permute.xlu0 %3937
        %3939 = vrot.lane.b32.xlu0 %v3685, 15
        %v3940 = vpop.permute.xlu0 %3939
        %3941 = vrot.lane.b32.xlu0 %v3689, 15
        %v3942 = vpop.permute.xlu0 %3941
        %3943 = vrot.lane.b32.xlu0 %v3693, 15
        %v3944 = vpop.permute.xlu0 %3943
        %3945 = vrot.lane.b32.xlu0 %v3682, 15
        %v3946 = vpop.permute.xlu0 %3945
        %3947 = vrot.lane.b32.xlu0 %v3686, 15
        %v3948 = vpop.permute.xlu0 %3947
        %3949 = vrot.lane.b32.xlu0 %v3690, 15
        %v3950 = vpop.permute.xlu0 %3949
        %3951 = vrot.lane.b32.xlu0 %v3694, 15
        %v3952 = vpop.permute.xlu0 %3951
        %3953 = vrot.lane.b32.xlu0 %v3683, 15
        %v3954 = vpop.permute.xlu0 %3953
        %3955 = vrot.lane.b32.xlu0 %v3687, 15
        %v3956 = vpop.permute.xlu0 %3955
        %3957 = vrot.lane.b32.xlu0 %v3691, 15
        %v3958 = vpop.permute.xlu0 %3957
        %3959 = vrot.lane.b32.xlu0 %v3695, 15
        %v3960 = vpop.permute.xlu0 %3959
        %3961 = vrot.lane.b32.xlu0 %v3684, 15
        %v3962 = vpop.permute.xlu0 %3961
        %3963 = vrot.lane.b32.xlu0 %v3688, 15
        %v3964 = vpop.permute.xlu0 %3963
        %3965 = vrot.lane.b32.xlu0 %v3692, 15
        %v3966 = vpop.permute.xlu0 %3965
        %3967 = vrot.lane.b32.xlu0 %v3696, 15
        %v3968 = vpop.permute.xlu0 %3967
        %v3969 = vsel %vm953, %v3954, %v3962
        %v3970 = vsel %vm953, %v3956, %v3964
        %v3971 = vsel %vm953, %v3958, %v3966
        %v3972 = vsel %vm953, %v3960, %v3968
        %v3973 = vsel %vm953, %v3946, %v3954
        %v3974 = vsel %vm953, %v3948, %v3956
        %v3975 = vsel %vm953, %v3950, %v3958
        %v3976 = vsel %vm953, %v3952, %v3960
        %v3977 = vsel %vm953, %v3938, %v3946
        %v3978 = vsel %vm953, %v3940, %v3948
        %v3979 = vsel %vm953, %v3942, %v3950
        %v3980 = vsel %vm953, %v3944, %v3952
        %v3981 = vsel %vm953, %v3962, %v3938
        %v3982 = vsel %vm953, %v3964, %v3940
        %v3983 = vsel %vm953, %v3966, %v3942
        %v3984 = vsel %vm953, %v3968, %v3944
        %v3985 = vmul.f32 %v961, %v3981
        %v3986 = vmul.f32 %v965, %v3977
        %v3987 = vmul.f32 %v969, %v3973
        %v3988 = vmul.f32 %v973, %v3969
        %v3989 = vmul.f32 %v961, %v3982
        %v3990 = vmul.f32 %v965, %v3978
        %v3991 = vmul.f32 %v969, %v3974
        %v3992 = vmul.f32 %v973, %v3970
        %v3993 = vmul.f32 %v961, %v3983
        %v3994 = vmul.f32 %v965, %v3979
        %v3995 = vmul.f32 %v969, %v3975
        %v3996 = vmul.f32 %v973, %v3971
        %v3997 = vmul.f32 %v961, %v3984
        %v3998 = vmul.f32 %v965, %v3980
        %v3999 = vmul.f32 %v969, %v3976
        %v4000 = vmul.f32 %v973, %v3972
        %v4001 = vpack.c.bf16 %v3989, %v3985
        %v4002 = vpack.c.bf16 %v3990, %v3986
        %v4003 = vpack.c.bf16 %v3991, %v3987
        %v4004 = vpack.c.bf16 %v3992, %v3988
        %v4005 = vpack.c.bf16 %v3997, %v3993
        %v4006 = vpack.c.bf16 %v3998, %v3994
        %v4007 = vpack.c.bf16 %v3999, %v3995
        %v4008 = vpack.c.bf16 %v4000, %v3996
        %v4017 = vunpack.c.l.b16 %v4001
        %v4018 = vunpack.c.l.b16 %v4002
        %v4019 = vunpack.c.l.b16 %v4003
        %v4020 = vunpack.c.l.b16 %v4004
        %v4021 = vunpack.c.h.b16 %v4001
        %v4022 = vunpack.c.h.b16 %v4002
        %v4023 = vunpack.c.h.b16 %v4003
        %v4024 = vunpack.c.h.b16 %v4004
        %v4025 = vunpack.c.l.b16 %v4005
        %v4026 = vunpack.c.l.b16 %v4006
        %v4027 = vunpack.c.l.b16 %v4007
        %v4028 = vunpack.c.l.b16 %v4008
        %v4029 = vunpack.c.h.b16 %v4005
        %v4030 = vunpack.c.h.b16 %v4006
        %v4031 = vunpack.c.h.b16 %v4007
        %v4032 = vunpack.c.h.b16 %v4008
        %v4033 = vpack.c.b16 %v4018, %v4017
        %v4034 = vpack.c.b16 %v4020, %v4019
        %v4035 = vpack.c.b16 %v4022, %v4021
        %v4036 = vpack.c.b16 %v4024, %v4023
        %v4037 = vpack.c.b16 %v4026, %v4025
        %v4038 = vpack.c.b16 %v4028, %v4027
        %v4039 = vpack.c.b16 %v4030, %v4029
        %v4040 = vpack.c.b16 %v4032, %v4031
        %4049 = vst [vmem:[#allocation3 + $0x80] sm:$0xff] %v4033
        %4050 = vst [vmem:[#allocation3 + $0x88] sm:$0xff] %v4034
        %4051 = vst [vmem:[#allocation3 + $0x90] sm:$0xff] %v4035
        %4052 = vst [vmem:[#allocation3 + $0x98] sm:$0xff] %v4036
        %4053 = vst [vmem:[#allocation3 + $0xa0] sm:$0xff] %v4037
        %4054 = vst [vmem:[#allocation3 + $0xa8] sm:$0xff] %v4038
        %4055 = vst [vmem:[#allocation3 + $0xb0] sm:$0xff] %v4039
        %4056 = vst [vmem:[#allocation3 + $0xb8] sm:$0xff] %v4040
        %4057 = vrot.lane.b32.xlu0 %v3681, 1
        %v4058 = vpop.permute.xlu0 %4057
        %4059 = vrot.lane.b32.xlu0 %v3685, 1
        %v4060 = vpop.permute.xlu0 %4059
        %4061 = vrot.lane.b32.xlu0 %v3689, 1
        %v4062 = vpop.permute.xlu0 %4061
        %4063 = vrot.lane.b32.xlu0 %v3693, 1
        %v4064 = vpop.permute.xlu0 %4063
        %4065 = vrot.lane.b32.xlu0 %v3682, 1
        %v4066 = vpop.permute.xlu0 %4065
        %4067 = vrot.lane.b32.xlu0 %v3686, 1
        %v4068 = vpop.permute.xlu0 %4067
        %4069 = vrot.lane.b32.xlu0 %v3690, 1
        %v4070 = vpop.permute.xlu0 %4069
        %4071 = vrot.lane.b32.xlu0 %v3694, 1
        %v4072 = vpop.permute.xlu0 %4071
        %4073 = vrot.lane.b32.xlu0 %v3683, 1
        %v4074 = vpop.permute.xlu0 %4073
        %4075 = vrot.lane.b32.xlu0 %v3687, 1
        %v4076 = vpop.permute.xlu0 %4075
        %4077 = vrot.lane.b32.xlu0 %v3691, 1
        %v4078 = vpop.permute.xlu0 %4077
        %4079 = vrot.lane.b32.xlu0 %v3695, 1
        %v4080 = vpop.permute.xlu0 %4079
        %4081 = vrot.lane.b32.xlu0 %v3684, 1
        %v4082 = vpop.permute.xlu0 %4081
        %4083 = vrot.lane.b32.xlu0 %v3688, 1
        %v4084 = vpop.permute.xlu0 %4083
        %4085 = vrot.lane.b32.xlu0 %v3692, 1
        %v4086 = vpop.permute.xlu0 %4085
        %4087 = vrot.lane.b32.xlu0 %v3696, 1
        %v4088 = vpop.permute.xlu0 %4087
        %v4089 = vsel %vm1001, %v4074, %v4082
        %v4090 = vsel %vm1001, %v4076, %v4084
        %v4091 = vsel %vm1001, %v4078, %v4086
        %v4092 = vsel %vm1001, %v4080, %v4088
        %v4093 = vsel %vm1001, %v4066, %v4074
        %v4094 = vsel %vm1001, %v4068, %v4076
        %v4095 = vsel %vm1001, %v4070, %v4078
        %v4096 = vsel %vm1001, %v4072, %v4080
        %v4097 = vsel %vm1001, %v4058, %v4066
        %v4098 = vsel %vm1001, %v4060, %v4068
        %v4099 = vsel %vm1001, %v4062, %v4070
        %v4100 = vsel %vm1001, %v4064, %v4072
        %v4101 = vsel %vm1001, %v4082, %v4058
        %v4102 = vsel %vm1001, %v4084, %v4060
        %v4103 = vsel %vm1001, %v4086, %v4062
        %v4104 = vsel %vm1001, %v4088, %v4064
        %v4105 = vmul.f32 %v1009, %v4101
        %v4106 = vmul.f32 %v1013, %v4097
        %v4107 = vmul.f32 %v1017, %v4093
        %v4108 = vmul.f32 %v1021, %v4089
        %v4109 = vmul.f32 %v1009, %v4102
        %v4110 = vmul.f32 %v1013, %v4098
        %v4111 = vmul.f32 %v1017, %v4094
        %v4112 = vmul.f32 %v1021, %v4090
        %v4113 = vmul.f32 %v1009, %v4103
        %v4114 = vmul.f32 %v1013, %v4099
        %v4115 = vmul.f32 %v1017, %v4095
        %v4116 = vmul.f32 %v1021, %v4091
        %v4117 = vmul.f32 %v1009, %v4104
        %v4118 = vmul.f32 %v1013, %v4100
        %v4119 = vmul.f32 %v1017, %v4096
        %v4120 = vmul.f32 %v1021, %v4092
        %v4121 = vpack.c.bf16 %v4109, %v4105
        %v4122 = vpack.c.bf16 %v4110, %v4106
        %v4123 = vpack.c.bf16 %v4111, %v4107
        %v4124 = vpack.c.bf16 %v4112, %v4108
        %v4125 = vpack.c.bf16 %v4117, %v4113
        %v4126 = vpack.c.bf16 %v4118, %v4114
        %v4127 = vpack.c.bf16 %v4119, %v4115
        %v4128 = vpack.c.bf16 %v4120, %v4116
        %v4137 = vunpack.c.l.b16 %v4121
        %v4138 = vunpack.c.l.b16 %v4122
        %v4139 = vunpack.c.l.b16 %v4123
        %v4140 = vunpack.c.l.b16 %v4124
        %v4141 = vunpack.c.h.b16 %v4121
        %v4142 = vunpack.c.h.b16 %v4122
        %v4143 = vunpack.c.h.b16 %v4123
        %v4144 = vunpack.c.h.b16 %v4124
        %v4145 = vunpack.c.l.b16 %v4125
        %v4146 = vunpack.c.l.b16 %v4126
        %v4147 = vunpack.c.l.b16 %v4127
        %v4148 = vunpack.c.l.b16 %v4128
        %v4149 = vunpack.c.h.b16 %v4125
        %v4150 = vunpack.c.h.b16 %v4126
        %v4151 = vunpack.c.h.b16 %v4127
        %v4152 = vunpack.c.h.b16 %v4128
        %v4153 = vpack.c.b16 %v4138, %v4137
        %v4154 = vpack.c.b16 %v4140, %v4139
        %v4155 = vpack.c.b16 %v4142, %v4141
        %v4156 = vpack.c.b16 %v4144, %v4143
        %v4157 = vpack.c.b16 %v4146, %v4145
        %v4158 = vpack.c.b16 %v4148, %v4147
        %v4159 = vpack.c.b16 %v4150, %v4149
        %v4160 = vpack.c.b16 %v4152, %v4151
        %4169 = vst [vmem:[#allocation3 + $0xc0] sm:$0xff] %v4153
        %4170 = vst [vmem:[#allocation3 + $0xc8] sm:$0xff] %v4154
        %4171 = vst [vmem:[#allocation3 + $0xd0] sm:$0xff] %v4155
        %4172 = vst [vmem:[#allocation3 + $0xd8] sm:$0xff] %v4156
        %4173 = vst [vmem:[#allocation3 + $0xe0] sm:$0xff] %v4157
        %4174 = vst [vmem:[#allocation3 + $0xe8] sm:$0xff] %v4158
        %4175 = vst [vmem:[#allocation3 + $0xf0] sm:$0xff] %v4159
        %4176 = vst [vmem:[#allocation3 + $0xf8] sm:$0xff] %v4160
        %v4177 = vmul.f32 %v1044, %v3681
        %v4178 = vmul.f32 %v1048, %v3682
        %v4179 = vmul.f32 %v1052, %v3683
        %v4180 = vmul.f32 %v1056, %v3684
        %v4181 = vmul.f32 %v1044, %v3685
        %v4182 = vmul.f32 %v1048, %v3686
        %v4183 = vmul.f32 %v1052, %v3687
        %v4184 = vmul.f32 %v1056, %v3688
        %v4185 = vmul.f32 %v1044, %v3689
        %v4186 = vmul.f32 %v1048, %v3690
        %v4187 = vmul.f32 %v1052, %v3691
        %v4188 = vmul.f32 %v1056, %v3692
        %v4189 = vmul.f32 %v1044, %v3693
        %v4190 = vmul.f32 %v1048, %v3694
        %v4191 = vmul.f32 %v1052, %v3695
        %v4192 = vmul.f32 %v1056, %v3696
        %v4193 = vpack.c.bf16 %v4181, %v4177
        %v4194 = vpack.c.bf16 %v4182, %v4178
        %v4195 = vpack.c.bf16 %v4183, %v4179
        %v4196 = vpack.c.bf16 %v4184, %v4180
        %v4197 = vpack.c.bf16 %v4189, %v4185
        %v4198 = vpack.c.bf16 %v4190, %v4186
        %v4199 = vpack.c.bf16 %v4191, %v4187
        %v4200 = vpack.c.bf16 %v4192, %v4188
        %v4209 = vunpack.c.l.b16 %v4193
        %v4210 = vunpack.c.l.b16 %v4194
        %v4211 = vunpack.c.l.b16 %v4195
        %v4212 = vunpack.c.l.b16 %v4196
        %v4213 = vunpack.c.h.b16 %v4193
        %v4214 = vunpack.c.h.b16 %v4194
        %v4215 = vunpack.c.h.b16 %v4195
        %v4216 = vunpack.c.h.b16 %v4196
        %v4217 = vunpack.c.l.b16 %v4197
        %v4218 = vunpack.c.l.b16 %v4198
        %v4219 = vunpack.c.l.b16 %v4199
        %v4220 = vunpack.c.l.b16 %v4200
        %v4221 = vunpack.c.h.b16 %v4197
        %v4222 = vunpack.c.h.b16 %v4198
        %v4223 = vunpack.c.h.b16 %v4199
        %v4224 = vunpack.c.h.b16 %v4200
        %v4225 = vpack.c.b16 %v4210, %v4209
        %v4226 = vpack.c.b16 %v4212, %v4211
        %v4227 = vpack.c.b16 %v4214, %v4213
        %v4228 = vpack.c.b16 %v4216, %v4215
        %v4229 = vpack.c.b16 %v4218, %v4217
        %v4230 = vpack.c.b16 %v4220, %v4219
        %v4231 = vpack.c.b16 %v4222, %v4221
        %v4232 = vpack.c.b16 %v4224, %v4223
        %4241 = vst [vmem:[#allocation3 + $0x100] sm:$0xff] %v4225
        %4242 = vst [vmem:[#allocation3 + $0x108] sm:$0xff] %v4226
        %4243 = vst [vmem:[#allocation3 + $0x110] sm:$0xff] %v4227
        %4244 = vst [vmem:[#allocation3 + $0x118] sm:$0xff] %v4228
        %4245 = vst [vmem:[#allocation3 + $0x120] sm:$0xff] %v4229
        %4246 = vst [vmem:[#allocation3 + $0x128] sm:$0xff] %v4230
        %4247 = vst [vmem:[#allocation3 + $0x130] sm:$0xff] %v4231
        %4248 = vst [vmem:[#allocation3 + $0x138] sm:$0xff] %v4232
        %4249 = vrot.lane.b32.xlu0 %v3681, 127
        %v4250 = vpop.permute.xlu0 %4249
        %4251 = vrot.lane.b32.xlu0 %v3685, 127
        %v4252 = vpop.permute.xlu0 %4251
        %4253 = vrot.lane.b32.xlu0 %v3689, 127
        %v4254 = vpop.permute.xlu0 %4253
        %4255 = vrot.lane.b32.xlu0 %v3693, 127
        %v4256 = vpop.permute.xlu0 %4255
        %4257 = vrot.lane.b32.xlu0 %v3682, 127
        %v4258 = vpop.permute.xlu0 %4257
        %4259 = vrot.lane.b32.xlu0 %v3686, 127
        %v4260 = vpop.permute.xlu0 %4259
        %4261 = vrot.lane.b32.xlu0 %v3690, 127
        %v4262 = vpop.permute.xlu0 %4261
        %4263 = vrot.lane.b32.xlu0 %v3694, 127
        %v4264 = vpop.permute.xlu0 %4263
        %4265 = vrot.lane.b32.xlu0 %v3683, 127
        %v4266 = vpop.permute.xlu0 %4265
        %4267 = vrot.lane.b32.xlu0 %v3687, 127
        %v4268 = vpop.permute.xlu0 %4267
        %4269 = vrot.lane.b32.xlu0 %v3691, 127
        %v4270 = vpop.permute.xlu0 %4269
        %4271 = vrot.lane.b32.xlu0 %v3695, 127
        %v4272 = vpop.permute.xlu0 %4271
        %4273 = vrot.lane.b32.xlu0 %v3684, 127
        %v4274 = vpop.permute.xlu0 %4273
        %4275 = vrot.lane.b32.xlu0 %v3688, 127
        %v4276 = vpop.permute.xlu0 %4275
        %4277 = vrot.lane.b32.xlu0 %v3692, 127
        %v4278 = vpop.permute.xlu0 %4277
        %4279 = vrot.lane.b32.xlu0 %v3696, 127
        %v4280 = vpop.permute.xlu0 %4279
        %v4281 = vsel %vm1084, %v4266, %v4274
        %v4282 = vsel %vm1084, %v4268, %v4276
        %v4283 = vsel %vm1084, %v4270, %v4278
        %v4284 = vsel %vm1084, %v4272, %v4280
        %v4285 = vsel %vm1084, %v4258, %v4266
        %v4286 = vsel %vm1084, %v4260, %v4268
        %v4287 = vsel %vm1084, %v4262, %v4270
        %v4288 = vsel %vm1084, %v4264, %v4272
        %v4289 = vsel %vm1084, %v4250, %v4258
        %v4290 = vsel %vm1084, %v4252, %v4260
        %v4291 = vsel %vm1084, %v4254, %v4262
        %v4292 = vsel %vm1084, %v4256, %v4264
        %v4293 = vsel %vm1084, %v4274, %v4250
        %v4294 = vsel %vm1084, %v4276, %v4252
        %v4295 = vsel %vm1084, %v4278, %v4254
        %v4296 = vsel %vm1084, %v4280, %v4256
        %v4297 = vmul.f32 %v1092, %v4289
        %v4298 = vmul.f32 %v1096, %v4285
        %v4299 = vmul.f32 %v1100, %v4281
        %v4300 = vmul.f32 %v1104, %v4293
        %v4301 = vmul.f32 %v1092, %v4290
        %v4302 = vmul.f32 %v1096, %v4286
        %v4303 = vmul.f32 %v1100, %v4282
        %v4304 = vmul.f32 %v1104, %v4294
        %v4305 = vmul.f32 %v1092, %v4291
        %v4306 = vmul.f32 %v1096, %v4287
        %v4307 = vmul.f32 %v1100, %v4283
        %v4308 = vmul.f32 %v1104, %v4295
        %v4309 = vmul.f32 %v1092, %v4292
        %v4310 = vmul.f32 %v1096, %v4288
        %v4311 = vmul.f32 %v1100, %v4284
        %v4312 = vmul.f32 %v1104, %v4296
        %v4313 = vpack.c.bf16 %v4301, %v4297
        %v4314 = vpack.c.bf16 %v4302, %v4298
        %v4315 = vpack.c.bf16 %v4303, %v4299
        %v4316 = vpack.c.bf16 %v4304, %v4300
        %v4317 = vpack.c.bf16 %v4309, %v4305
        %v4318 = vpack.c.bf16 %v4310, %v4306
        %v4319 = vpack.c.bf16 %v4311, %v4307
        %v4320 = vpack.c.bf16 %v4312, %v4308
        %v4329 = vunpack.c.l.b16 %v4313
        %v4330 = vunpack.c.l.b16 %v4314
        %v4331 = vunpack.c.l.b16 %v4315
        %v4332 = vunpack.c.l.b16 %v4316
        %v4333 = vunpack.c.h.b16 %v4313
        %v4334 = vunpack.c.h.b16 %v4314
        %v4335 = vunpack.c.h.b16 %v4315
        %v4336 = vunpack.c.h.b16 %v4316
        %v4337 = vunpack.c.l.b16 %v4317
        %v4338 = vunpack.c.l.b16 %v4318
        %v4339 = vunpack.c.l.b16 %v4319
        %v4340 = vunpack.c.l.b16 %v4320
        %v4341 = vunpack.c.h.b16 %v4317
        %v4342 = vunpack.c.h.b16 %v4318
        %v4343 = vunpack.c.h.b16 %v4319
        %v4344 = vunpack.c.h.b16 %v4320
        %v4345 = vpack.c.b16 %v4330, %v4329
        %v4346 = vpack.c.b16 %v4332, %v4331
        %v4347 = vpack.c.b16 %v4334, %v4333
        %v4348 = vpack.c.b16 %v4336, %v4335
        %v4349 = vpack.c.b16 %v4338, %v4337
        %v4350 = vpack.c.b16 %v4340, %v4339
        %v4351 = vpack.c.b16 %v4342, %v4341
        %v4352 = vpack.c.b16 %v4344, %v4343
        %4361 = vst [vmem:[#allocation3 + $0x140] sm:$0xff] %v4345
        %4362 = vst [vmem:[#allocation3 + $0x148] sm:$0xff] %v4346
        %4363 = vst [vmem:[#allocation3 + $0x150] sm:$0xff] %v4347
        %4364 = vst [vmem:[#allocation3 + $0x158] sm:$0xff] %v4348
        %4365 = vst [vmem:[#allocation3 + $0x160] sm:$0xff] %v4349
        %4366 = vst [vmem:[#allocation3 + $0x168] sm:$0xff] %v4350
        %4367 = vst [vmem:[#allocation3 + $0x170] sm:$0xff] %v4351
        %4368 = vst [vmem:[#allocation3 + $0x178] sm:$0xff] %v4352
        %4369 = vrot.lane.b32.xlu0 %v3681, 113
        %v4370 = vpop.permute.xlu0 %4369
        %4371 = vrot.lane.b32.xlu0 %v3685, 113
        %v4372 = vpop.permute.xlu0 %4371
        %4373 = vrot.lane.b32.xlu0 %v3689, 113
        %v4374 = vpop.permute.xlu0 %4373
        %4375 = vrot.lane.b32.xlu0 %v3693, 113
        %v4376 = vpop.permute.xlu0 %4375
        %4377 = vrot.lane.b32.xlu0 %v3682, 113
        %v4378 = vpop.permute.xlu0 %4377
        %4379 = vrot.lane.b32.xlu0 %v3686, 113
        %v4380 = vpop.permute.xlu0 %4379
        %4381 = vrot.lane.b32.xlu0 %v3690, 113
        %v4382 = vpop.permute.xlu0 %4381
        %4383 = vrot.lane.b32.xlu0 %v3694, 113
        %v4384 = vpop.permute.xlu0 %4383
        %4385 = vrot.lane.b32.xlu0 %v3683, 113
        %v4386 = vpop.permute.xlu0 %4385
        %4387 = vrot.lane.b32.xlu0 %v3687, 113
        %v4388 = vpop.permute.xlu0 %4387
        %4389 = vrot.lane.b32.xlu0 %v3691, 113
        %v4390 = vpop.permute.xlu0 %4389
        %4391 = vrot.lane.b32.xlu0 %v3695, 113
        %v4392 = vpop.permute.xlu0 %4391
        %4393 = vrot.lane.b32.xlu0 %v3684, 113
        %v4394 = vpop.permute.xlu0 %4393
        %4395 = vrot.lane.b32.xlu0 %v3688, 113
        %v4396 = vpop.permute.xlu0 %4395
        %4397 = vrot.lane.b32.xlu0 %v3692, 113
        %v4398 = vpop.permute.xlu0 %4397
        %4399 = vrot.lane.b32.xlu0 %v3696, 113
        %v4400 = vpop.permute.xlu0 %4399
        %v4401 = vsel %vm1132, %v4386, %v4394
        %v4402 = vsel %vm1132, %v4388, %v4396
        %v4403 = vsel %vm1132, %v4390, %v4398
        %v4404 = vsel %vm1132, %v4392, %v4400
        %v4405 = vsel %vm1132, %v4378, %v4386
        %v4406 = vsel %vm1132, %v4380, %v4388
        %v4407 = vsel %vm1132, %v4382, %v4390
        %v4408 = vsel %vm1132, %v4384, %v4392
        %v4409 = vsel %vm1132, %v4370, %v4378
        %v4410 = vsel %vm1132, %v4372, %v4380
        %v4411 = vsel %vm1132, %v4374, %v4382
        %v4412 = vsel %vm1132, %v4376, %v4384
        %v4413 = vsel %vm1132, %v4394, %v4370
        %v4414 = vsel %vm1132, %v4396, %v4372
        %v4415 = vsel %vm1132, %v4398, %v4374
        %v4416 = vsel %vm1132, %v4400, %v4376
        %v4417 = vmul.f32 %v1140, %v4409
        %v4418 = vmul.f32 %v1144, %v4405
        %v4419 = vmul.f32 %v1148, %v4401
        %v4420 = vmul.f32 %v1152, %v4413
        %v4421 = vmul.f32 %v1140, %v4410
        %v4422 = vmul.f32 %v1144, %v4406
        %v4423 = vmul.f32 %v1148, %v4402
        %v4424 = vmul.f32 %v1152, %v4414
        %v4425 = vmul.f32 %v1140, %v4411
        %v4426 = vmul.f32 %v1144, %v4407
        %v4427 = vmul.f32 %v1148, %v4403
        %v4428 = vmul.f32 %v1152, %v4415
        %v4429 = vmul.f32 %v1140, %v4412
        %v4430 = vmul.f32 %v1144, %v4408
        %v4431 = vmul.f32 %v1148, %v4404
        %v4432 = vmul.f32 %v1152, %v4416
        %v4433 = vpack.c.bf16 %v4421, %v4417
        %v4434 = vpack.c.bf16 %v4422, %v4418
        %v4435 = vpack.c.bf16 %v4423, %v4419
        %v4436 = vpack.c.bf16 %v4424, %v4420
        %v4437 = vpack.c.bf16 %v4429, %v4425
        %v4438 = vpack.c.bf16 %v4430, %v4426
        %v4439 = vpack.c.bf16 %v4431, %v4427
        %v4440 = vpack.c.bf16 %v4432, %v4428
        %v4449 = vunpack.c.l.b16 %v4433
        %v4450 = vunpack.c.l.b16 %v4434
        %v4451 = vunpack.c.l.b16 %v4435
        %v4452 = vunpack.c.l.b16 %v4436
        %v4453 = vunpack.c.h.b16 %v4433
        %v4454 = vunpack.c.h.b16 %v4434
        %v4455 = vunpack.c.h.b16 %v4435
        %v4456 = vunpack.c.h.b16 %v4436
        %v4457 = vunpack.c.l.b16 %v4437
        %v4458 = vunpack.c.l.b16 %v4438
        %v4459 = vunpack.c.l.b16 %v4439
        %v4460 = vunpack.c.l.b16 %v4440
        %v4461 = vunpack.c.h.b16 %v4437
        %v4462 = vunpack.c.h.b16 %v4438
        %v4463 = vunpack.c.h.b16 %v4439
        %v4464 = vunpack.c.h.b16 %v4440
        %v4465 = vpack.c.b16 %v4450, %v4449
        %v4466 = vpack.c.b16 %v4452, %v4451
        %v4467 = vpack.c.b16 %v4454, %v4453
        %v4468 = vpack.c.b16 %v4456, %v4455
        %v4469 = vpack.c.b16 %v4458, %v4457
        %v4470 = vpack.c.b16 %v4460, %v4459
        %v4471 = vpack.c.b16 %v4462, %v4461
        %v4472 = vpack.c.b16 %v4464, %v4463
        %4481 = vst [vmem:[#allocation3 + $0x180] sm:$0xff] %v4465
        %4482 = vst [vmem:[#allocation3 + $0x188] sm:$0xff] %v4466
        %4483 = vst [vmem:[#allocation3 + $0x190] sm:$0xff] %v4467
        %4484 = vst [vmem:[#allocation3 + $0x198] sm:$0xff] %v4468
        %4485 = vst [vmem:[#allocation3 + $0x1a0] sm:$0xff] %v4469
        %4486 = vst [vmem:[#allocation3 + $0x1a8] sm:$0xff] %v4470
        %4487 = vst [vmem:[#allocation3 + $0x1b0] sm:$0xff] %v4471
        %4488 = vst [vmem:[#allocation3 + $0x1b8] sm:$0xff] %v4472
        %4489 = vrot.lane.b32.xlu0 %v3681, 112
        %v4490 = vpop.permute.xlu0 %4489
        %4491 = vrot.lane.b32.xlu0 %v3685, 112
        %v4492 = vpop.permute.xlu0 %4491
        %4493 = vrot.lane.b32.xlu0 %v3689, 112
        %v4494 = vpop.permute.xlu0 %4493
        %4495 = vrot.lane.b32.xlu0 %v3693, 112
        %v4496 = vpop.permute.xlu0 %4495
        %4497 = vrot.lane.b32.xlu0 %v3682, 112
        %v4498 = vpop.permute.xlu0 %4497
        %4499 = vrot.lane.b32.xlu0 %v3686, 112
        %v4500 = vpop.permute.xlu0 %4499
        %4501 = vrot.lane.b32.xlu0 %v3690, 112
        %v4502 = vpop.permute.xlu0 %4501
        %4503 = vrot.lane.b32.xlu0 %v3694, 112
        %v4504 = vpop.permute.xlu0 %4503
        %4505 = vrot.lane.b32.xlu0 %v3683, 112
        %v4506 = vpop.permute.xlu0 %4505
        %4507 = vrot.lane.b32.xlu0 %v3687, 112
        %v4508 = vpop.permute.xlu0 %4507
        %4509 = vrot.lane.b32.xlu0 %v3691, 112
        %v4510 = vpop.permute.xlu0 %4509
        %4511 = vrot.lane.b32.xlu0 %v3695, 112
        %v4512 = vpop.permute.xlu0 %4511
        %4513 = vrot.lane.b32.xlu0 %v3684, 112
        %v4514 = vpop.permute.xlu0 %4513
        %4515 = vrot.lane.b32.xlu0 %v3688, 112
        %v4516 = vpop.permute.xlu0 %4515
        %4517 = vrot.lane.b32.xlu0 %v3692, 112
        %v4518 = vpop.permute.xlu0 %4517
        %4519 = vrot.lane.b32.xlu0 %v3696, 112
        %v4520 = vpop.permute.xlu0 %4519
        %v4521 = vsel %vm1180, %v4506, %v4514
        %v4522 = vsel %vm1180, %v4508, %v4516
        %v4523 = vsel %vm1180, %v4510, %v4518
        %v4524 = vsel %vm1180, %v4512, %v4520
        %v4525 = vsel %vm1180, %v4498, %v4506
        %v4526 = vsel %vm1180, %v4500, %v4508
        %v4527 = vsel %vm1180, %v4502, %v4510
        %v4528 = vsel %vm1180, %v4504, %v4512
        %v4529 = vsel %vm1180, %v4490, %v4498
        %v4530 = vsel %vm1180, %v4492, %v4500
        %v4531 = vsel %vm1180, %v4494, %v4502
        %v4532 = vsel %vm1180, %v4496, %v4504
        %v4533 = vsel %vm1180, %v4514, %v4490
        %v4534 = vsel %vm1180, %v4516, %v4492
        %v4535 = vsel %vm1180, %v4518, %v4494
        %v4536 = vsel %vm1180, %v4520, %v4496
        %v4537 = vmul.f32 %v1188, %v4529
        %v4538 = vmul.f32 %v1192, %v4525
        %v4539 = vmul.f32 %v1196, %v4521
        %v4540 = vmul.f32 %v1200, %v4533
        %v4541 = vmul.f32 %v1188, %v4530
        %v4542 = vmul.f32 %v1192, %v4526
        %v4543 = vmul.f32 %v1196, %v4522
        %v4544 = vmul.f32 %v1200, %v4534
        %v4545 = vmul.f32 %v1188, %v4531
        %v4546 = vmul.f32 %v1192, %v4527
        %v4547 = vmul.f32 %v1196, %v4523
        %v4548 = vmul.f32 %v1200, %v4535
        %v4549 = vmul.f32 %v1188, %v4532
        %v4550 = vmul.f32 %v1192, %v4528
        %v4551 = vmul.f32 %v1196, %v4524
        %v4552 = vmul.f32 %v1200, %v4536
        %v4553 = vpack.c.bf16 %v4541, %v4537
        %v4554 = vpack.c.bf16 %v4542, %v4538
        %v4555 = vpack.c.bf16 %v4543, %v4539
        %v4556 = vpack.c.bf16 %v4544, %v4540
        %v4557 = vpack.c.bf16 %v4549, %v4545
        %v4558 = vpack.c.bf16 %v4550, %v4546
        %v4559 = vpack.c.bf16 %v4551, %v4547
        %v4560 = vpack.c.bf16 %v4552, %v4548
        %v4569 = vunpack.c.l.b16 %v4553
        %v4570 = vunpack.c.l.b16 %v4554
        %v4571 = vunpack.c.l.b16 %v4555
        %v4572 = vunpack.c.l.b16 %v4556
        %v4573 = vunpack.c.h.b16 %v4553
        %v4574 = vunpack.c.h.b16 %v4554
        %v4575 = vunpack.c.h.b16 %v4555
        %v4576 = vunpack.c.h.b16 %v4556
        %v4577 = vunpack.c.l.b16 %v4557
        %v4578 = vunpack.c.l.b16 %v4558
        %v4579 = vunpack.c.l.b16 %v4559
        %v4580 = vunpack.c.l.b16 %v4560
        %v4581 = vunpack.c.h.b16 %v4557
        %v4582 = vunpack.c.h.b16 %v4558
        %v4583 = vunpack.c.h.b16 %v4559
        %v4584 = vunpack.c.h.b16 %v4560
        %v4585 = vpack.c.b16 %v4570, %v4569
        %v4586 = vpack.c.b16 %v4572, %v4571
        %v4587 = vpack.c.b16 %v4574, %v4573
        %v4588 = vpack.c.b16 %v4576, %v4575
        %v4589 = vpack.c.b16 %v4578, %v4577
        %v4590 = vpack.c.b16 %v4580, %v4579
        %v4591 = vpack.c.b16 %v4582, %v4581
        %v4592 = vpack.c.b16 %v4584, %v4583
        %4601 = vst [vmem:[#allocation3 + $0x1c0] sm:$0xff] %v4585
        %4602 = vst [vmem:[#allocation3 + $0x1c8] sm:$0xff] %v4586
        %4603 = vst [vmem:[#allocation3 + $0x1d0] sm:$0xff] %v4587
        %4604 = vst [vmem:[#allocation3 + $0x1d8] sm:$0xff] %v4588
        %4605 = vst [vmem:[#allocation3 + $0x1e0] sm:$0xff] %v4589
        %4606 = vst [vmem:[#allocation3 + $0x1e8] sm:$0xff] %v4590
        %4607 = vst [vmem:[#allocation3 + $0x1f0] sm:$0xff] %v4591
        %4608 = vst [vmem:[#allocation3 + $0x1f8] sm:$0xff] %v4592
        %4609 = vrot.lane.b32.xlu0 %v3681, 111
        %v4610 = vpop.permute.xlu0 %4609
        %4611 = vrot.lane.b32.xlu0 %v3685, 111
        %v4612 = vpop.permute.xlu0 %4611
        %4613 = vrot.lane.b32.xlu0 %v3689, 111
        %v4614 = vpop.permute.xlu0 %4613
        %4615 = vrot.lane.b32.xlu0 %v3693, 111
        %v4616 = vpop.permute.xlu0 %4615
        %4617 = vrot.lane.b32.xlu0 %v3682, 111
        %v4618 = vpop.permute.xlu0 %4617
        %4619 = vrot.lane.b32.xlu0 %v3686, 111
        %v4620 = vpop.permute.xlu0 %4619
        %4621 = vrot.lane.b32.xlu0 %v3690, 111
        %v4622 = vpop.permute.xlu0 %4621
        %4623 = vrot.lane.b32.xlu0 %v3694, 111
        %v4624 = vpop.permute.xlu0 %4623
        %4625 = vrot.lane.b32.xlu0 %v3683, 111
        %v4626 = vpop.permute.xlu0 %4625
        %4627 = vrot.lane.b32.xlu0 %v3687, 111
        %v4628 = vpop.permute.xlu0 %4627
        %4629 = vrot.lane.b32.xlu0 %v3691, 111
        %v4630 = vpop.permute.xlu0 %4629
        %4631 = vrot.lane.b32.xlu0 %v3695, 111
        %v4632 = vpop.permute.xlu0 %4631
        %4633 = vrot.lane.b32.xlu0 %v3684, 111
        %v4634 = vpop.permute.xlu0 %4633
        %4635 = vrot.lane.b32.xlu0 %v3688, 111
        %v4636 = vpop.permute.xlu0 %4635
        %4637 = vrot.lane.b32.xlu0 %v3692, 111
        %v4638 = vpop.permute.xlu0 %4637
        %4639 = vrot.lane.b32.xlu0 %v3696, 111
        %v4640 = vpop.permute.xlu0 %4639
        %v4641 = vsel %vm1228, %v4626, %v4634
        %v4642 = vsel %vm1228, %v4628, %v4636
        %v4643 = vsel %vm1228, %v4630, %v4638
        %v4644 = vsel %vm1228, %v4632, %v4640
        %v4645 = vsel %vm1228, %v4618, %v4626
        %v4646 = vsel %vm1228, %v4620, %v4628
        %v4647 = vsel %vm1228, %v4622, %v4630
        %v4648 = vsel %vm1228, %v4624, %v4632
        %v4649 = vsel %vm1228, %v4610, %v4618
        %v4650 = vsel %vm1228, %v4612, %v4620
        %v4651 = vsel %vm1228, %v4614, %v4622
        %v4652 = vsel %vm1228, %v4616, %v4624
        %v4653 = vsel %vm1228, %v4634, %v4610
        %v4654 = vsel %vm1228, %v4636, %v4612
        %v4655 = vsel %vm1228, %v4638, %v4614
        %v4656 = vsel %vm1228, %v4640, %v4616
        %v4657 = vmul.f32 %v1236, %v4649
        %v4658 = vmul.f32 %v1240, %v4645
        %v4659 = vmul.f32 %v1244, %v4641
        %v4660 = vmul.f32 %v1248, %v4653
        %v4661 = vmul.f32 %v1236, %v4650
        %v4662 = vmul.f32 %v1240, %v4646
        %v4663 = vmul.f32 %v1244, %v4642
        %v4664 = vmul.f32 %v1248, %v4654
        %v4665 = vmul.f32 %v1236, %v4651
        %v4666 = vmul.f32 %v1240, %v4647
        %v4667 = vmul.f32 %v1244, %v4643
        %v4668 = vmul.f32 %v1248, %v4655
        %v4669 = vmul.f32 %v1236, %v4652
        %v4670 = vmul.f32 %v1240, %v4648
        %v4671 = vmul.f32 %v1244, %v4644
        %v4672 = vmul.f32 %v1248, %v4656
        %v4673 = vpack.c.bf16 %v4661, %v4657
        %v4674 = vpack.c.bf16 %v4662, %v4658
        %v4675 = vpack.c.bf16 %v4663, %v4659
        %v4676 = vpack.c.bf16 %v4664, %v4660
        %v4677 = vpack.c.bf16 %v4669, %v4665
        %v4678 = vpack.c.bf16 %v4670, %v4666
        %v4679 = vpack.c.bf16 %v4671, %v4667
        %v4680 = vpack.c.bf16 %v4672, %v4668
        %v4689 = vunpack.c.l.b16 %v4673
        %v4690 = vunpack.c.l.b16 %v4674
        %v4691 = vunpack.c.l.b16 %v4675
        %v4692 = vunpack.c.l.b16 %v4676
        %v4693 = vunpack.c.h.b16 %v4673
        %v4694 = vunpack.c.h.b16 %v4674
        %v4695 = vunpack.c.h.b16 %v4675
        %v4696 = vunpack.c.h.b16 %v4676
        %v4697 = vunpack.c.l.b16 %v4677
        %v4698 = vunpack.c.l.b16 %v4678
        %v4699 = vunpack.c.l.b16 %v4679
        %v4700 = vunpack.c.l.b16 %v4680
        %v4701 = vunpack.c.h.b16 %v4677
        %v4702 = vunpack.c.h.b16 %v4678
        %v4703 = vunpack.c.h.b16 %v4679
        %v4704 = vunpack.c.h.b16 %v4680
        %v4705 = vpack.c.b16 %v4690, %v4689
        %v4706 = vpack.c.b16 %v4692, %v4691
        %v4707 = vpack.c.b16 %v4694, %v4693
        %v4708 = vpack.c.b16 %v4696, %v4695
        %v4709 = vpack.c.b16 %v4698, %v4697
        %v4710 = vpack.c.b16 %v4700, %v4699
        %v4711 = vpack.c.b16 %v4702, %v4701
        %v4712 = vpack.c.b16 %v4704, %v4703
        %4721 = vst [vmem:[#allocation3 + $0x200] sm:$0xff] %v4705
        %4722 = vst [vmem:[#allocation3 + $0x208] sm:$0xff] %v4706
        %4723 = vst [vmem:[#allocation3 + $0x210] sm:$0xff] %v4707
        %4724 = vst [vmem:[#allocation3 + $0x218] sm:$0xff] %v4708
        %4725 = vst [vmem:[#allocation3 + $0x220] sm:$0xff] %v4709
        %4726 = vst [vmem:[#allocation3 + $0x228] sm:$0xff] %v4710
        %4727 = vst [vmem:[#allocation3 + $0x230] sm:$0xff] %v4711
        %4728 = vst [vmem:[#allocation3 + $0x238] sm:$0xff] %v4712
        %v4729 = vld [vmem:[#allocation3] sm:$0xff]
        %v4730 = vld [vmem:[#allocation3 + $0x8] sm:$0xff]
        %v4731 = vld [vmem:[#allocation3 + $0x10] sm:$0xff]
        %v4732 = vld [vmem:[#allocation3 + $0x18] sm:$0xff]
        %v4733 = vld [vmem:[#allocation3 + $0x20] sm:$0xff]
        %v4734 = vld [vmem:[#allocation3 + $0x28] sm:$0xff]
        %v4735 = vld [vmem:[#allocation3 + $0x30] sm:$0xff]
        %v4736 = vld [vmem:[#allocation3 + $0x38] sm:$0xff]
        %v4737 = vld [vmem:[#allocation3 + $0x40] sm:$0xff]
        %v4738 = vld [vmem:[#allocation3 + $0x48] sm:$0xff]
        %v4739 = vld [vmem:[#allocation3 + $0x50] sm:$0xff]
        %v4740 = vld [vmem:[#allocation3 + $0x58] sm:$0xff]
        %v4741 = vld [vmem:[#allocation3 + $0x60] sm:$0xff]
        %v4742 = vld [vmem:[#allocation3 + $0x68] sm:$0xff]
        %v4743 = vld [vmem:[#allocation3 + $0x70] sm:$0xff]
        %v4744 = vld [vmem:[#allocation3 + $0x78] sm:$0xff]
        %v4745 = vld [vmem:[#allocation3 + $0x80] sm:$0xff]
        %v4746 = vld [vmem:[#allocation3 + $0x88] sm:$0xff]
        %v4747 = vld [vmem:[#allocation3 + $0x90] sm:$0xff]
        %v4748 = vld [vmem:[#allocation3 + $0x98] sm:$0xff]
        %v4749 = vld [vmem:[#allocation3 + $0xa0] sm:$0xff]
        %v4750 = vld [vmem:[#allocation3 + $0xa8] sm:$0xff]
        %v4751 = vld [vmem:[#allocation3 + $0xb0] sm:$0xff]
        %v4752 = vld [vmem:[#allocation3 + $0xb8] sm:$0xff]
        %v4753 = vld [vmem:[#allocation3 + $0xc0] sm:$0xff]
        %v4754 = vld [vmem:[#allocation3 + $0xc8] sm:$0xff]
        %v4755 = vld [vmem:[#allocation3 + $0xd0] sm:$0xff]
        %v4756 = vld [vmem:[#allocation3 + $0xd8] sm:$0xff]
        %v4757 = vld [vmem:[#allocation3 + $0xe0] sm:$0xff]
        %v4758 = vld [vmem:[#allocation3 + $0xe8] sm:$0xff]
        %v4759 = vld [vmem:[#allocation3 + $0xf0] sm:$0xff]
        %v4760 = vld [vmem:[#allocation3 + $0xf8] sm:$0xff]
        %v4761 = vld [vmem:[#allocation3 + $0x100] sm:$0xff]
        %v4762 = vld [vmem:[#allocation3 + $0x108] sm:$0xff]
        %v4763 = vld [vmem:[#allocation3 + $0x110] sm:$0xff]
        %v4764 = vld [vmem:[#allocation3 + $0x118] sm:$0xff]
        %v4765 = vld [vmem:[#allocation3 + $0x120] sm:$0xff]
        %v4766 = vld [vmem:[#allocation3 + $0x128] sm:$0xff]
        %v4767 = vld [vmem:[#allocation3 + $0x130] sm:$0xff]
        %v4768 = vld [vmem:[#allocation3 + $0x138] sm:$0xff]
        %v4769 = vld [vmem:[#allocation3 + $0x140] sm:$0xff]
        %v4770 = vld [vmem:[#allocation3 + $0x148] sm:$0xff]
        %v4771 = vld [vmem:[#allocation3 + $0x150] sm:$0xff]
        %v4772 = vld [vmem:[#allocation3 + $0x158] sm:$0xff]
        %v4773 = vld [vmem:[#allocation3 + $0x160] sm:$0xff]
        %v4774 = vld [vmem:[#allocation3 + $0x168] sm:$0xff]
        %v4775 = vld [vmem:[#allocation3 + $0x170] sm:$0xff]
        %v4776 = vld [vmem:[#allocation3 + $0x178] sm:$0xff]
        %v4777 = vld [vmem:[#allocation3 + $0x180] sm:$0xff]
        %v4778 = vld [vmem:[#allocation3 + $0x188] sm:$0xff]
        %v4779 = vld [vmem:[#allocation3 + $0x190] sm:$0xff]
        %v4780 = vld [vmem:[#allocation3 + $0x198] sm:$0xff]
        %v4781 = vld [vmem:[#allocation3 + $0x1a0] sm:$0xff]
        %v4782 = vld [vmem:[#allocation3 + $0x1a8] sm:$0xff]
        %v4783 = vld [vmem:[#allocation3 + $0x1b0] sm:$0xff]
        %v4784 = vld [vmem:[#allocation3 + $0x1b8] sm:$0xff]
        %v4785 = vld [vmem:[#allocation3 + $0x1c0] sm:$0xff]
        %v4786 = vld [vmem:[#allocation3 + $0x1c8] sm:$0xff]
        %v4787 = vld [vmem:[#allocation3 + $0x1d0] sm:$0xff]
        %v4788 = vld [vmem:[#allocation3 + $0x1d8] sm:$0xff]
        %v4789 = vld [vmem:[#allocation3 + $0x1e0] sm:$0xff]
        %v4790 = vld [vmem:[#allocation3 + $0x1e8] sm:$0xff]
        %v4791 = vld [vmem:[#allocation3 + $0x1f0] sm:$0xff]
        %v4792 = vld [vmem:[#allocation3 + $0x1f8] sm:$0xff]
        %v4793 = vld [vmem:[#allocation3 + $0x200] sm:$0xff]
        %v4794 = vld [vmem:[#allocation3 + $0x208] sm:$0xff]
        %v4795 = vld [vmem:[#allocation3 + $0x210] sm:$0xff]
        %v4796 = vld [vmem:[#allocation3 + $0x218] sm:$0xff]
        %v4797 = vld [vmem:[#allocation3 + $0x220] sm:$0xff]
        %v4798 = vld [vmem:[#allocation3 + $0x228] sm:$0xff]
        %v4799 = vld [vmem:[#allocation3 + $0x230] sm:$0xff]
        %v4800 = vld [vmem:[#allocation3 + $0x238] sm:$0xff]
        %v4801 = vld [vmem:[%s14] sm:$0xff]
        %v4802 = vld [vmem:[%s14 + $0x8] sm:$0xf]
        %v4803 = vld [vmem:[%s14 + $0xc] sm:$0xff]
        %v4804 = vld [vmem:[%s14 + $0x14] sm:$0xf]
        %v4805 = vld [vmem:[%s14 + $0x18] sm:$0xff]
        %v4806 = vld [vmem:[%s14 + $0x20] sm:$0xf]
        %v4807 = vld [vmem:[%s14 + $0x24] sm:$0xff]
        %v4808 = vld [vmem:[%s14 + $0x2c] sm:$0xf]
        %v4809 = vld [vmem:[%s14 + $0x30] sm:$0xff]
        %v4810 = vld [vmem:[%s14 + $0x38] sm:$0xf]
        %v4811 = vld [vmem:[%s14 + $0x3c] sm:$0xff]
        %v4812 = vld [vmem:[%s14 + $0x44] sm:$0xf]
        %v4813 = vld [vmem:[%s14 + $0x48] sm:$0xff]
        %v4814 = vld [vmem:[%s14 + $0x50] sm:$0xf]
        %v4815 = vld [vmem:[%s14 + $0x54] sm:$0xff]
        %v4816 = vld [vmem:[%s14 + $0x5c] sm:$0xf]
        %v4817 = vld [vmem:[%s15] sm:$0xff]
        %v4818 = vld [vmem:[%s15 + $0x8] sm:$0xff]
        %v4819 = vld [vmem:[%s15 + $0x10] sm:$0xff]
        %v4820 = vld [vmem:[%s15 + $0x18] sm:$0xff]
        %v4821 = vld [vmem:[%s15 + $0x20] sm:$0xff]
        %v4822 = vld [vmem:[%s15 + $0x28] sm:$0xff]
        %v4823 = vld [vmem:[%s15 + $0x30] sm:$0xff]
        %v4824 = vld [vmem:[%s15 + $0x38] sm:$0xff]
        %4826 = vset.pattern.permute.xlu0 0
        %4827 = vperm.xlu0 %4826, %v4817
        %v4828 = vpop.permute.xlu0 %4827
        %4831 = vset.pattern.permute.xlu0 0
        %4832 = vperm.xlu0 %4831, %v4818
        %v4833 = vpop.permute.xlu0 %4832
        %4836 = vset.pattern.permute.xlu0 0
        %4837 = vperm.xlu0 %4836, %v4819
        %v4838 = vpop.permute.xlu0 %4837
        %4841 = vset.pattern.permute.xlu0 0
        %4842 = vperm.xlu0 %4841, %v4820
        %v4843 = vpop.permute.xlu0 %4842
        %4846 = vset.pattern.permute.xlu0 0
        %4847 = vperm.xlu0 %4846, %v4821
        %v4848 = vpop.permute.xlu0 %4847
        %4851 = vset.pattern.permute.xlu0 0
        %4852 = vperm.xlu0 %4851, %v4822
        %v4853 = vpop.permute.xlu0 %4852
        %4856 = vset.pattern.permute.xlu0 0
        %4857 = vperm.xlu0 %4856, %v4823
        %v4858 = vpop.permute.xlu0 %4857
        %4861 = vset.pattern.permute.xlu0 0
        %4862 = vperm.xlu0 %4861, %v4824
        %v4863 = vpop.permute.xlu0 %4862
        %v4881 = vunpack.c.l.b16 %v4801
        %v4882 = vunpack.c.h.b16 %v4801
        %v4883 = vunpack.c.l.b16 %v4802
        %v4884 = vunpack.c.l.b16 %v4803
        %v4885 = vunpack.c.h.b16 %v4803
        %v4886 = vunpack.c.l.b16 %v4804
        %v4887 = vunpack.c.l.b16 %v4805
        %v4888 = vunpack.c.h.b16 %v4805
        %v4889 = vunpack.c.l.b16 %v4806
        %v4890 = vunpack.c.l.b16 %v4807
        %v4891 = vunpack.c.h.b16 %v4807
        %v4892 = vunpack.c.l.b16 %v4808
        %v4893 = vunpack.c.l.b16 %v4809
        %v4894 = vunpack.c.h.b16 %v4809
        %v4895 = vunpack.c.l.b16 %v4810
        %v4896 = vunpack.c.l.b16 %v4811
        %v4897 = vunpack.c.h.b16 %v4811
        %v4898 = vunpack.c.l.b16 %v4812
        %v4899 = vunpack.c.l.b16 %v4813
        %v4900 = vunpack.c.h.b16 %v4813
        %v4901 = vunpack.c.l.b16 %v4814
        %v4902 = vunpack.c.l.b16 %v4815
        %v4903 = vunpack.c.h.b16 %v4815
        %v4904 = vunpack.c.l.b16 %v4816
        %v4905 = vpack.c.b16 %v4884, %v4881
        %v4906 = vpack.c.b16 %v4885, %v4882
        %v4907 = vpack.c.b16 %v4886, %v4883
        %v4908 = vpack.c.b16 %v4890, %v4887
        %v4909 = vpack.c.b16 %v4891, %v4888
        %v4910 = vpack.c.b16 %v4892, %v4889
        %v4911 = vpack.c.b16 %v4896, %v4893
        %v4912 = vpack.c.b16 %v4897, %v4894
        %v4913 = vpack.c.b16 %v4898, %v4895
        %v4914 = vpack.c.b16 %v4902, %v4899
        %v4915 = vpack.c.b16 %v4903, %v4900
        %v4916 = vpack.c.b16 %v4904, %v4901
        %v4997 = vunpack.c.l.b16 %v4729
        %v4998 = vunpack.c.h.b16 %v4729
        %v4999 = vunpack.c.l.b16 %v4730
        %v5000 = vunpack.c.h.b16 %v4730
        %v5001 = vunpack.c.l.b16 %v4731
        %v5002 = vunpack.c.h.b16 %v4731
        %v5003 = vunpack.c.l.b16 %v4732
        %v5004 = vunpack.c.h.b16 %v4732
        %v5005 = vunpack.c.l.b16 %v4733
        %v5006 = vunpack.c.h.b16 %v4733
        %v5007 = vunpack.c.l.b16 %v4734
        %v5008 = vunpack.c.h.b16 %v4734
        %v5009 = vunpack.c.l.b16 %v4735
        %v5010 = vunpack.c.h.b16 %v4735
        %v5011 = vunpack.c.l.b16 %v4736
        %v5012 = vunpack.c.h.b16 %v4736
        %v5013 = vunpack.c.l.b16 %v4737
        %v5014 = vunpack.c.h.b16 %v4737
        %v5015 = vunpack.c.l.b16 %v4738
        %v5016 = vunpack.c.h.b16 %v4738
        %v5017 = vunpack.c.l.b16 %v4739
        %v5018 = vunpack.c.h.b16 %v4739
        %v5019 = vunpack.c.l.b16 %v4740
        %v5020 = vunpack.c.h.b16 %v4740
        %v5021 = vunpack.c.l.b16 %v4741
        %v5022 = vunpack.c.h.b16 %v4741
        %v5023 = vunpack.c.l.b16 %v4742
        %v5024 = vunpack.c.h.b16 %v4742
        %v5025 = vunpack.c.l.b16 %v4743
        %v5026 = vunpack.c.h.b16 %v4743
        %v5027 = vunpack.c.l.b16 %v4744
        %v5028 = vunpack.c.h.b16 %v4744
        %v5029 = vunpack.c.l.b16 %v4745
        %v5030 = vunpack.c.h.b16 %v4745
        %v5031 = vunpack.c.l.b16 %v4746
        %v5032 = vunpack.c.h.b16 %v4746
        %v5033 = vunpack.c.l.b16 %v4747
        %v5034 = vunpack.c.h.b16 %v4747
        %v5035 = vunpack.c.l.b16 %v4748
        %v5036 = vunpack.c.h.b16 %v4748
        %v5037 = vunpack.c.l.b16 %v4749
        %v5038 = vunpack.c.h.b16 %v4749
        %v5039 = vunpack.c.l.b16 %v4750
        %v5040 = vunpack.c.h.b16 %v4750
        %v5041 = vunpack.c.l.b16 %v4751
        %v5042 = vunpack.c.h.b16 %v4751
        %v5043 = vunpack.c.l.b16 %v4752
        %v5044 = vunpack.c.h.b16 %v4752
        %v5045 = vunpack.c.l.b16 %v4753
        %v5046 = vunpack.c.h.b16 %v4753
        %v5047 = vunpack.c.l.b16 %v4754
        %v5048 = vunpack.c.h.b16 %v4754
        %v5049 = vunpack.c.l.b16 %v4755
        %v5050 = vunpack.c.h.b16 %v4755
        %v5051 = vunpack.c.l.b16 %v4756
        %v5052 = vunpack.c.h.b16 %v4756
        %v5053 = vunpack.c.l.b16 %v4757
        %v5054 = vunpack.c.h.b16 %v4757
        %v5055 = vunpack.c.l.b16 %v4758
        %v5056 = vunpack.c.h.b16 %v4758
        %v5057 = vunpack.c.l.b16 %v4759
        %v5058 = vunpack.c.h.b16 %v4759
        %v5059 = vunpack.c.l.b16 %v4760
        %v5060 = vunpack.c.h.b16 %v4760
        %v5061 = vunpack.c.l.b16 %v4761
        %v5062 = vunpack.c.h.b16 %v4761
        %v5063 = vunpack.c.l.b16 %v4762
        %v5064 = vunpack.c.h.b16 %v4762
        %v5065 = vunpack.c.l.b16 %v4763
        %v5066 = vunpack.c.h.b16 %v4763
        %v5067 = vunpack.c.l.b16 %v4764
        %v5068 = vunpack.c.h.b16 %v4764
        %v5069 = vunpack.c.l.b16 %v4765
        %v5070 = vunpack.c.h.b16 %v4765
        %v5071 = vunpack.c.l.b16 %v4766
        %v5072 = vunpack.c.h.b16 %v4766
        %v5073 = vunpack.c.l.b16 %v4767
        %v5074 = vunpack.c.h.b16 %v4767
        %v5075 = vunpack.c.l.b16 %v4768
        %v5076 = vunpack.c.h.b16 %v4768
        %v5077 = vunpack.c.l.b16 %v4769
        %v5078 = vunpack.c.h.b16 %v4769
        %v5079 = vunpack.c.l.b16 %v4770
        %v5080 = vunpack.c.h.b16 %v4770
        %v5081 = vunpack.c.l.b16 %v4771
        %v5082 = vunpack.c.h.b16 %v4771
        %v5083 = vunpack.c.l.b16 %v4772
        %v5084 = vunpack.c.h.b16 %v4772
        %v5085 = vunpack.c.l.b16 %v4773
        %v5086 = vunpack.c.h.b16 %v4773
        %v5087 = vunpack.c.l.b16 %v4774
        %v5088 = vunpack.c.h.b16 %v4774
        %v5089 = vunpack.c.l.b16 %v4775
        %v5090 = vunpack.c.h.b16 %v4775
        %v5091 = vunpack.c.l.b16 %v4776
        %v5092 = vunpack.c.h.b16 %v4776
        %v5093 = vunpack.c.l.b16 %v4777
        %v5094 = vunpack.c.h.b16 %v4777
        %v5095 = vunpack.c.l.b16 %v4778
        %v5096 = vunpack.c.h.b16 %v4778
        %v5097 = vunpack.c.l.b16 %v4779
        %v5098 = vunpack.c.h.b16 %v4779
        %v5099 = vunpack.c.l.b16 %v4780
        %v5100 = vunpack.c.h.b16 %v4780
        %v5101 = vunpack.c.l.b16 %v4781
        %v5102 = vunpack.c.h.b16 %v4781
        %v5103 = vunpack.c.l.b16 %v4782
        %v5104 = vunpack.c.h.b16 %v4782
        %v5105 = vunpack.c.l.b16 %v4783
        %v5106 = vunpack.c.h.b16 %v4783
        %v5107 = vunpack.c.l.b16 %v4784
        %v5108 = vunpack.c.h.b16 %v4784
        %v5109 = vunpack.c.l.b16 %v4785
        %v5110 = vunpack.c.h.b16 %v4785
        %v5111 = vunpack.c.l.b16 %v4786
        %v5112 = vunpack.c.h.b16 %v4786
        %v5113 = vunpack.c.l.b16 %v4787
        %v5114 = vunpack.c.h.b16 %v4787
        %v5115 = vunpack.c.l.b16 %v4788
        %v5116 = vunpack.c.h.b16 %v4788
        %v5117 = vunpack.c.l.b16 %v4789
        %v5118 = vunpack.c.h.b16 %v4789
        %v5119 = vunpack.c.l.b16 %v4790
        %v5120 = vunpack.c.h.b16 %v4790
        %v5121 = vunpack.c.l.b16 %v4791
        %v5122 = vunpack.c.h.b16 %v4791
        %v5123 = vunpack.c.l.b16 %v4792
        %v5124 = vunpack.c.h.b16 %v4792
        %v5125 = vunpack.c.l.b16 %v4793
        %v5126 = vunpack.c.h.b16 %v4793
        %v5127 = vunpack.c.l.b16 %v4794
        %v5128 = vunpack.c.h.b16 %v4794
        %v5129 = vunpack.c.l.b16 %v4795
        %v5130 = vunpack.c.h.b16 %v4795
        %v5131 = vunpack.c.l.b16 %v4796
        %v5132 = vunpack.c.h.b16 %v4796
        %v5133 = vunpack.c.l.b16 %v4797
        %v5134 = vunpack.c.h.b16 %v4797
        %v5135 = vunpack.c.l.b16 %v4798
        %v5136 = vunpack.c.h.b16 %v4798
        %v5137 = vunpack.c.l.b16 %v4799
        %v5138 = vunpack.c.h.b16 %v4799
        %v5139 = vunpack.c.l.b16 %v4800
        %v5140 = vunpack.c.h.b16 %v4800
        %v5141 = vpack.c.b16 %v5001, %v4997
        %v5142 = vpack.c.b16 %v5002, %v4998
        %v5143 = vpack.c.b16 %v5003, %v4999
        %v5144 = vpack.c.b16 %v5004, %v5000
        %v5145 = vpack.c.b16 %v5009, %v5005
        %v5146 = vpack.c.b16 %v5010, %v5006
        %v5147 = vpack.c.b16 %v5011, %v5007
        %v5148 = vpack.c.b16 %v5012, %v5008
        %v5149 = vpack.c.b16 %v5017, %v5013
        %v5150 = vpack.c.b16 %v5018, %v5014
        %v5151 = vpack.c.b16 %v5019, %v5015
        %v5152 = vpack.c.b16 %v5020, %v5016
        %v5153 = vpack.c.b16 %v5025, %v5021
        %v5154 = vpack.c.b16 %v5026, %v5022
        %v5155 = vpack.c.b16 %v5027, %v5023
        %v5156 = vpack.c.b16 %v5028, %v5024
        %v5157 = vpack.c.b16 %v5033, %v5029
        %v5158 = vpack.c.b16 %v5034, %v5030
        %v5159 = vpack.c.b16 %v5035, %v5031
        %v5160 = vpack.c.b16 %v5036, %v5032
        %v5161 = vpack.c.b16 %v5041, %v5037
        %v5162 = vpack.c.b16 %v5042, %v5038
        %v5163 = vpack.c.b16 %v5043, %v5039
        %v5164 = vpack.c.b16 %v5044, %v5040
        %v5165 = vpack.c.b16 %v5049, %v5045
        %v5166 = vpack.c.b16 %v5050, %v5046
        %v5167 = vpack.c.b16 %v5051, %v5047
        %v5168 = vpack.c.b16 %v5052, %v5048
        %v5169 = vpack.c.b16 %v5057, %v5053
        %v5170 = vpack.c.b16 %v5058, %v5054
        %v5171 = vpack.c.b16 %v5059, %v5055
        %v5172 = vpack.c.b16 %v5060, %v5056
        %v5173 = vpack.c.b16 %v5065, %v5061
        %v5174 = vpack.c.b16 %v5066, %v5062
        %v5175 = vpack.c.b16 %v5067, %v5063
        %v5176 = vpack.c.b16 %v5068, %v5064
        %v5177 = vpack.c.b16 %v5073, %v5069
        %v5178 = vpack.c.b16 %v5074, %v5070
        %v5179 = vpack.c.b16 %v5075, %v5071
        %v5180 = vpack.c.b16 %v5076, %v5072
        %v5181 = vpack.c.b16 %v5081, %v5077
        %v5182 = vpack.c.b16 %v5082, %v5078
        %v5183 = vpack.c.b16 %v5083, %v5079
        %v5184 = vpack.c.b16 %v5084, %v5080
        %v5185 = vpack.c.b16 %v5089, %v5085
        %v5186 = vpack.c.b16 %v5090, %v5086
        %v5187 = vpack.c.b16 %v5091, %v5087
        %v5188 = vpack.c.b16 %v5092, %v5088
        %v5189 = vpack.c.b16 %v5097, %v5093
        %v5190 = vpack.c.b16 %v5098, %v5094
        %v5191 = vpack.c.b16 %v5099, %v5095
        %v5192 = vpack.c.b16 %v5100, %v5096
        %v5193 = vpack.c.b16 %v5105, %v5101
        %v5194 = vpack.c.b16 %v5106, %v5102
        %v5195 = vpack.c.b16 %v5107, %v5103
        %v5196 = vpack.c.b16 %v5108, %v5104
        %v5197 = vpack.c.b16 %v5113, %v5109
        %v5198 = vpack.c.b16 %v5114, %v5110
        %v5199 = vpack.c.b16 %v5115, %v5111
        %v5200 = vpack.c.b16 %v5116, %v5112
        %v5201 = vpack.c.b16 %v5121, %v5117
        %v5202 = vpack.c.b16 %v5122, %v5118
        %v5203 = vpack.c.b16 %v5123, %v5119
        %v5204 = vpack.c.b16 %v5124, %v5120
        %v5205 = vpack.c.b16 %v5129, %v5125
        %v5206 = vpack.c.b16 %v5130, %v5126
        %v5207 = vpack.c.b16 %v5131, %v5127
        %v5208 = vpack.c.b16 %v5132, %v5128
        %v5209 = vpack.c.b16 %v5137, %v5133
        %v5210 = vpack.c.b16 %v5138, %v5134
        %v5211 = vpack.c.b16 %v5139, %v5135
        %v5212 = vpack.c.b16 %v5140, %v5136
        %v5286 = vsel %vm3192, %v4907, 0
        %v5289 = vsel %vm3192, %v4910, 0
        %v5292 = vsel %vm3192, %v4913, 0
        %v5295 = vsel %vm3192, %v4916, 0
        %5297 = vmatprep.subr.bf16.mxu0 %v5170
        %5298 = vmatpush1.bf16.msra.mxu0 %v5169
        %5299 = vmatprep.subr.bf16.mxu0 %v5166
        %5300 = vmatpush1.bf16.msra.mxu0 %v5165
        %5301 = vmatprep.subr.bf16.mxu0 %v5162
        %5302 = vmatpush1.bf16.msra.mxu0 %v5161
        %5303 = vmatprep.subr.bf16.mxu0 %v5158
        %5304 = vmatpush1.bf16.msra.mxu0 %v5157
        %5305 = vmatprep.subr.bf16.mxu0 %v5154
        %5306 = vmatpush1.bf16.msra.mxu0 %v5153
        %5307 = vmatprep.subr.bf16.mxu0 %v5150
        %5308 = vmatpush1.bf16.msra.mxu0 %v5149
        %5309 = vmatprep.subr.bf16.mxu0 %v5146
        %5310 = vmatpush1.bf16.msra.mxu0 %v5145
        %5311 = vmatprep.subr.bf16.mxu0 %v5142
        %5312 = vmatpush1.bf16.msra.mxu0 %v5141
        %5313 = vmatprep.subr.bf16.mxu0 %v5202
        %5314 = vmatpush2.bf16.msra.mxu0 %v5201
        %5315 = vmatprep.subr.bf16.mxu0 %v5198
        %5316 = vmatpush2.bf16.msra.mxu0 %v5197
        %5317 = vmatprep.subr.bf16.mxu0 %v5194
        %5318 = vmatpush2.bf16.msra.mxu0 %v5193
        %5319 = vmatprep.subr.bf16.mxu0 %v5190
        %5320 = vmatpush2.bf16.msra.mxu0 %v5189
        %5321 = vmatprep.subr.bf16.mxu0 %v5186
        %5322 = vmatpush2.bf16.msra.mxu0 %v5185
        %5323 = vmatprep.subr.bf16.mxu0 %v5182
        %5324 = vmatpush2.bf16.msra.mxu0 %v5181
        %5325 = vmatprep.subr.bf16.mxu0 %v5178
        %5326 = vmatpush2.bf16.msra.mxu0 %v5177
        %5327 = vmatprep.subr.bf16.mxu0 %v5174
        %5328 = vmatpush2.bf16.msra.mxu0 %v5173
        %5329 = vmatprep.mubr.bf16.mxu0 %v4906
        %5330 = vmatmul.mubr.bf16.gmra.mxu0 %v4905
        %v5331 = vpop.f32.mrf.mxu0
        %v5332 = vadd.f32 %v4828, %v5331
        %v5333 = vpop.f32.mrf.mxu0
        %v5334 = vadd.f32 %v4828, %v5333
        %v5335 = vpop.f32.mrf.mxu0
        %v5336 = vadd.f32 %v4833, %v5335
        %v5337 = vpop.f32.mrf.mxu0
        %v5338 = vadd.f32 %v4833, %v5337
        %5339 = vmatprep.mubr.bf16.mxu0 %v4909
        %5340 = vmatmul.mubr.bf16.gmra.mxu0 %v4908
        %v5341 = vpop.f32.mrf.mxu0
        %v5342 = vadd.f32 %v4838, %v5341
        %v5343 = vpop.f32.mrf.mxu0
        %v5344 = vadd.f32 %v4838, %v5343
        %v5345 = vpop.f32.mrf.mxu0
        %v5346 = vadd.f32 %v4843, %v5345
        %v5347 = vpop.f32.mrf.mxu0
        %v5348 = vadd.f32 %v4843, %v5347
        %5349 = vmatprep.mubr.bf16.mxu0 %v4912
        %5350 = vmatmul.mubr.bf16.gmra.mxu0 %v4911
        %v5351 = vpop.f32.mrf.mxu0
        %v5352 = vadd.f32 %v4848, %v5351
        %v5353 = vpop.f32.mrf.mxu0
        %v5354 = vadd.f32 %v4848, %v5353
        %v5355 = vpop.f32.mrf.mxu0
        %v5356 = vadd.f32 %v4853, %v5355
        %v5357 = vpop.f32.mrf.mxu0
        %v5358 = vadd.f32 %v4853, %v5357
        %5359 = vmatprep.mubr.bf16.mxu0 %v4915
        %5360 = vmatmul.mubr.bf16.gmra.mxu0 %v4914
        %v5361 = vpop.f32.mrf.mxu0
        %v5362 = vadd.f32 %v4858, %v5361
        %v5363 = vpop.f32.mrf.mxu0
        %v5364 = vadd.f32 %v4858, %v5363
        %v5365 = vpop.f32.mrf.mxu0
        %v5366 = vadd.f32 %v4863, %v5365
        %v5367 = vpop.f32.mrf.mxu0
        %v5368 = vadd.f32 %v4863, %v5367
        %5369 = vdwg.mxu0
        %5370 = vmatprep.subr.bf16.mxu0 0
        %5371 = vmatpush1.bf16.msra.mxu0 0
        %5372 = vmatprep.subr.bf16.mxu0 0
        %5373 = vmatpush1.bf16.msra.mxu0 0
        %5374 = vmatprep.subr.bf16.mxu0 0
        %5375 = vmatpush1.bf16.msra.mxu0 0
        %5376 = vmatprep.subr.bf16.mxu0 0
        %5377 = vmatpush1.bf16.msra.mxu0 0
        %5378 = vmatprep.subr.bf16.mxu0 0
        %5379 = vmatpush1.bf16.msra.mxu0 0
        %5380 = vmatprep.subr.bf16.mxu0 0
        %5381 = vmatpush1.bf16.msra.mxu0 0
        %5382 = vmatprep.subr.bf16.mxu0 %v5210
        %5383 = vmatpush1.bf16.msra.mxu0 %v5209
        %5384 = vmatprep.subr.bf16.mxu0 %v5206
        %5385 = vmatpush1.bf16.msra.mxu0 %v5205
        %5386 = vmatprep.subr.bf16.mxu0 0
        %5387 = vmatpush2.bf16.msra.mxu0 0
        %5388 = vmatprep.subr.bf16.mxu0 0
        %5389 = vmatpush2.bf16.msra.mxu0 0
        %5390 = vmatprep.subr.bf16.mxu0 0
        %5391 = vmatpush2.bf16.msra.mxu0 0
        %5392 = vmatprep.subr.bf16.mxu0 0
        %5393 = vmatpush2.bf16.msra.mxu0 0
        %5394 = vmatprep.subr.bf16.mxu0 0
        %5395 = vmatpush2.bf16.msra.mxu0 0
        %5396 = vmatprep.subr.bf16.mxu0 0
        %5397 = vmatpush2.bf16.msra.mxu0 0
        %5398 = vmatprep.subr.bf16.mxu0 0
        %5399 = vmatpush2.bf16.msra.mxu0 0
        %5400 = vmatprep.subr.bf16.mxu0 0
        %5401 = vmatpush2.bf16.msra.mxu0 0
        %5402 = vmatprep.mubr.bf16.mxu0 0
        %5403 = vmatmul.mubr.bf16.gmra.mxu0 %v5286
        %v5404 = vpop.f32.mrf.mxu0
        %v5405 = vadd.f32 %v5332, %v5404
        %v5406 = vpop.f32.mrf.mxu0
        %v5407 = vadd.f32 %v5334, %v5406
        %v5408 = vpop.f32.mrf.mxu0
        %v5409 = vadd.f32 %v5336, %v5408
        %v5410 = vpop.f32.mrf.mxu0
        %v5411 = vadd.f32 %v5338, %v5410
        %5412 = vmatprep.mubr.bf16.mxu0 0
        %5413 = vmatmul.mubr.bf16.gmra.mxu0 %v5289
        %v5414 = vpop.f32.mrf.mxu0
        %v5415 = vadd.f32 %v5342, %v5414
        %v5416 = vpop.f32.mrf.mxu0
        %v5417 = vadd.f32 %v5344, %v5416
        %v5418 = vpop.f32.mrf.mxu0
        %v5419 = vadd.f32 %v5346, %v5418
        %v5420 = vpop.f32.mrf.mxu0
        %v5421 = vadd.f32 %v5348, %v5420
        %5422 = vmatprep.mubr.bf16.mxu0 0
        %5423 = vmatmul.mubr.bf16.gmra.mxu0 %v5292
        %v5424 = vpop.f32.mrf.mxu0
        %v5425 = vadd.f32 %v5352, %v5424
        %v5426 = vpop.f32.mrf.mxu0
        %v5427 = vadd.f32 %v5354, %v5426
        %v5428 = vpop.f32.mrf.mxu0
        %v5429 = vadd.f32 %v5356, %v5428
        %v5430 = vpop.f32.mrf.mxu0
        %v5431 = vadd.f32 %v5358, %v5430
        %5432 = vmatprep.mubr.bf16.mxu0 0
        %5433 = vmatmul.mubr.bf16.gmra.mxu0 %v5295
        %v5434 = vpop.f32.mrf.mxu0
        %v5435 = vadd.f32 %v5362, %v5434
        %v5436 = vpop.f32.mrf.mxu0
        %v5437 = vadd.f32 %v5364, %v5436
        %v5438 = vpop.f32.mrf.mxu0
        %v5439 = vadd.f32 %v5366, %v5438
        %v5440 = vpop.f32.mrf.mxu0
        %v5441 = vadd.f32 %v5368, %v5440
        %5442 = vdwg.mxu0
        %5443 = vmatprep.subr.bf16.mxu0 %v5172
        %5444 = vmatpush1.bf16.msra.mxu0 %v5171
        %5445 = vmatprep.subr.bf16.mxu0 %v5168
        %5446 = vmatpush1.bf16.msra.mxu0 %v5167
        %5447 = vmatprep.subr.bf16.mxu0 %v5164
        %5448 = vmatpush1.bf16.msra.mxu0 %v5163
        %5449 = vmatprep.subr.bf16.mxu0 %v5160
        %5450 = vmatpush1.bf16.msra.mxu0 %v5159
        %5451 = vmatprep.subr.bf16.mxu0 %v5156
        %5452 = vmatpush1.bf16.msra.mxu0 %v5155
        %5453 = vmatprep.subr.bf16.mxu0 %v5152
        %5454 = vmatpush1.bf16.msra.mxu0 %v5151
        %5455 = vmatprep.subr.bf16.mxu0 %v5148
        %5456 = vmatpush1.bf16.msra.mxu0 %v5147
        %5457 = vmatprep.subr.bf16.mxu0 %v5144
        %5458 = vmatpush1.bf16.msra.mxu0 %v5143
        %5459 = vmatprep.subr.bf16.mxu0 %v5204
        %5460 = vmatpush2.bf16.msra.mxu0 %v5203
        %5461 = vmatprep.subr.bf16.mxu0 %v5200
        %5462 = vmatpush2.bf16.msra.mxu0 %v5199
        %5463 = vmatprep.subr.bf16.mxu0 %v5196
        %5464 = vmatpush2.bf16.msra.mxu0 %v5195
        %5465 = vmatprep.subr.bf16.mxu0 %v5192
        %5466 = vmatpush2.bf16.msra.mxu0 %v5191
        %5467 = vmatprep.subr.bf16.mxu0 %v5188
        %5468 = vmatpush2.bf16.msra.mxu0 %v5187
        %5469 = vmatprep.subr.bf16.mxu0 %v5184
        %5470 = vmatpush2.bf16.msra.mxu0 %v5183
        %5471 = vmatprep.subr.bf16.mxu0 %v5180
        %5472 = vmatpush2.bf16.msra.mxu0 %v5179
        %5473 = vmatprep.subr.bf16.mxu0 %v5176
        %5474 = vmatpush2.bf16.msra.mxu0 %v5175
        %5475 = vmatprep.mubr.bf16.mxu0 %v4906
        %5476 = vmatmul.mubr.bf16.gmra.mxu0 %v4905
        %v5477 = vpop.f32.mrf.mxu0
        %v5478 = vadd.f32 %v4828, %v5477
        %v5479 = vpop.f32.mrf.mxu0
        %v5480 = vadd.f32 %v4828, %v5479
        %v5481 = vpop.f32.mrf.mxu0
        %v5482 = vadd.f32 %v4833, %v5481
        %v5483 = vpop.f32.mrf.mxu0
        %v5484 = vadd.f32 %v4833, %v5483
        %5485 = vmatprep.mubr.bf16.mxu0 %v4909
        %5486 = vmatmul.mubr.bf16.gmra.mxu0 %v4908
        %v5487 = vpop.f32.mrf.mxu0
        %v5488 = vadd.f32 %v4838, %v5487
        %v5489 = vpop.f32.mrf.mxu0
        %v5490 = vadd.f32 %v4838, %v5489
        %v5491 = vpop.f32.mrf.mxu0
        %v5492 = vadd.f32 %v4843, %v5491
        %v5493 = vpop.f32.mrf.mxu0
        %v5494 = vadd.f32 %v4843, %v5493
        %5495 = vmatprep.mubr.bf16.mxu0 %v4912
        %5496 = vmatmul.mubr.bf16.gmra.mxu0 %v4911
        %v5497 = vpop.f32.mrf.mxu0
        %v5498 = vadd.f32 %v4848, %v5497
        %v5499 = vpop.f32.mrf.mxu0
        %v5500 = vadd.f32 %v4848, %v5499
        %v5501 = vpop.f32.mrf.mxu0
        %v5502 = vadd.f32 %v4853, %v5501
        %v5503 = vpop.f32.mrf.mxu0
        %v5504 = vadd.f32 %v4853, %v5503
        %5505 = vmatprep.mubr.bf16.mxu0 %v4915
        %5506 = vmatmul.mubr.bf16.gmra.mxu0 %v4914
        %v5507 = vpop.f32.mrf.mxu0
        %v5508 = vadd.f32 %v4858, %v5507
        %v5509 = vpop.f32.mrf.mxu0
        %v5510 = vadd.f32 %v4858, %v5509
        %v5511 = vpop.f32.mrf.mxu0
        %v5512 = vadd.f32 %v4863, %v5511
        %v5513 = vpop.f32.mrf.mxu0
        %v5514 = vadd.f32 %v4863, %v5513
        %5515 = vdwg.mxu0
        %5516 = vmatprep.subr.bf16.mxu0 0
        %5517 = vmatpush1.bf16.msra.mxu0 0
        %5518 = vmatprep.subr.bf16.mxu0 0
        %5519 = vmatpush1.bf16.msra.mxu0 0
        %5520 = vmatprep.subr.bf16.mxu0 0
        %5521 = vmatpush1.bf16.msra.mxu0 0
        %5522 = vmatprep.subr.bf16.mxu0 0
        %5523 = vmatpush1.bf16.msra.mxu0 0
        %5524 = vmatprep.subr.bf16.mxu0 0
        %5525 = vmatpush1.bf16.msra.mxu0 0
        %5526 = vmatprep.subr.bf16.mxu0 0
        %5527 = vmatpush1.bf16.msra.mxu0 0
        %5528 = vmatprep.subr.bf16.mxu0 %v5212
        %5529 = vmatpush1.bf16.msra.mxu0 %v5211
        %5530 = vmatprep.subr.bf16.mxu0 %v5208
        %5531 = vmatpush1.bf16.msra.mxu0 %v5207
        %5532 = vmatprep.subr.bf16.mxu0 0
        %5533 = vmatpush2.bf16.msra.mxu0 0
        %5534 = vmatprep.subr.bf16.mxu0 0
        %5535 = vmatpush2.bf16.msra.mxu0 0
        %5536 = vmatprep.subr.bf16.mxu0 0
        %5537 = vmatpush2.bf16.msra.mxu0 0
        %5538 = vmatprep.subr.bf16.mxu0 0
        %5539 = vmatpush2.bf16.msra.mxu0 0
        %5540 = vmatprep.subr.bf16.mxu0 0
        %5541 = vmatpush2.bf16.msra.mxu0 0
        %5542 = vmatprep.subr.bf16.mxu0 0
        %5543 = vmatpush2.bf16.msra.mxu0 0
        %5544 = vmatprep.subr.bf16.mxu0 0
        %5545 = vmatpush2.bf16.msra.mxu0 0
        %5546 = vmatprep.subr.bf16.mxu0 0
        %5547 = vmatpush2.bf16.msra.mxu0 0
        %5548 = vmatprep.mubr.bf16.mxu0 0
        %5549 = vmatmul.mubr.bf16.gmra.mxu0 %v5286
        %v5550 = vpop.f32.mrf.mxu0
        %v5551 = vadd.f32 %v5478, %v5550
        %v5552 = vpop.f32.mrf.mxu0
        %v5553 = vadd.f32 %v5480, %v5552
        %v5554 = vpop.f32.mrf.mxu0
        %v5555 = vadd.f32 %v5482, %v5554
        %v5556 = vpop.f32.mrf.mxu0
        %v5557 = vadd.f32 %v5484, %v5556
        %5558 = vmatprep.mubr.bf16.mxu0 0
        %5559 = vmatmul.mubr.bf16.gmra.mxu0 %v5289
        %v5560 = vpop.f32.mrf.mxu0
        %v5561 = vadd.f32 %v5488, %v5560
        %v5562 = vpop.f32.mrf.mxu0
        %v5563 = vadd.f32 %v5490, %v5562
        %v5564 = vpop.f32.mrf.mxu0
        %v5565 = vadd.f32 %v5492, %v5564
        %v5566 = vpop.f32.mrf.mxu0
        %v5567 = vadd.f32 %v5494, %v5566
        %5568 = vmatprep.mubr.bf16.mxu0 0
        %5569 = vmatmul.mubr.bf16.gmra.mxu0 %v5292
        %v5570 = vpop.f32.mrf.mxu0
        %v5571 = vadd.f32 %v5498, %v5570
        %v5572 = vpop.f32.mrf.mxu0
        %v5573 = vadd.f32 %v5500, %v5572
        %v5574 = vpop.f32.mrf.mxu0
        %v5575 = vadd.f32 %v5502, %v5574
        %v5576 = vpop.f32.mrf.mxu0
        %v5577 = vadd.f32 %v5504, %v5576
        %5578 = vmatprep.mubr.bf16.mxu0 0
        %5579 = vmatmul.mubr.bf16.gmra.mxu0 %v5295
        %v5580 = vpop.f32.mrf.mxu0
        %v5581 = vadd.f32 %v5508, %v5580
        %v5582 = vpop.f32.mrf.mxu0
        %v5583 = vadd.f32 %v5510, %v5582
        %v5584 = vpop.f32.mrf.mxu0
        %v5585 = vadd.f32 %v5512, %v5584
        %v5586 = vpop.f32.mrf.mxu0
        %v5587 = vadd.f32 %v5514, %v5586
        %5588 = vdwg.mxu0
        %v5589 = vmul.f32 %v5405, 0.5
        %v5590 = vmul.f32 %v5407, 0.5
        %v5591 = vmul.f32 %v5551, 0.5
        %v5592 = vmul.f32 %v5553, 0.5
        %v5593 = vmul.f32 %v5409, 0.5
        %v5594 = vmul.f32 %v5411, 0.5
        %v5595 = vmul.f32 %v5555, 0.5
        %v5596 = vmul.f32 %v5557, 0.5
        %v5597 = vmul.f32 %v5415, 0.5
        %v5598 = vmul.f32 %v5417, 0.5
        %v5599 = vmul.f32 %v5561, 0.5
        %v5600 = vmul.f32 %v5563, 0.5
        %v5601 = vmul.f32 %v5419, 0.5
        %v5602 = vmul.f32 %v5421, 0.5
        %v5603 = vmul.f32 %v5565, 0.5
        %v5604 = vmul.f32 %v5567, 0.5
        %v5605 = vmul.f32 %v5425, 0.5
        %v5606 = vmul.f32 %v5427, 0.5
        %v5607 = vmul.f32 %v5571, 0.5
        %v5608 = vmul.f32 %v5573, 0.5
        %v5609 = vmul.f32 %v5429, 0.5
        %v5610 = vmul.f32 %v5431, 0.5
        %v5611 = vmul.f32 %v5575, 0.5
        %v5612 = vmul.f32 %v5577, 0.5
        %v5613 = vmul.f32 %v5435, 0.5
        %v5614 = vmul.f32 %v5437, 0.5
        %v5615 = vmul.f32 %v5581, 0.5
        %v5616 = vmul.f32 %v5583, 0.5
        %v5617 = vmul.f32 %v5439, 0.5
        %v5618 = vmul.f32 %v5441, 0.5
        %v5619 = vmul.f32 %v5585, 0.5
        %v5620 = vmul.f32 %v5587, 0.5
        %v5621 = vmul.f32 %v5405, 0.044715
        %v5622 = vmul.f32 %v5407, 0.044715
        %v5623 = vmul.f32 %v5551, 0.044715
        %v5624 = vmul.f32 %v5553, 0.044715
        %v5625 = vmul.f32 %v5409, 0.044715
        %v5626 = vmul.f32 %v5411, 0.044715
        %v5627 = vmul.f32 %v5555, 0.044715
        %v5628 = vmul.f32 %v5557, 0.044715
        %v5629 = vmul.f32 %v5415, 0.044715
        %v5630 = vmul.f32 %v5417, 0.044715
        %v5631 = vmul.f32 %v5561, 0.044715
        %v5632 = vmul.f32 %v5563, 0.044715
        %v5633 = vmul.f32 %v5419, 0.044715
        %v5634 = vmul.f32 %v5421, 0.044715
        %v5635 = vmul.f32 %v5565, 0.044715
        %v5636 = vmul.f32 %v5567, 0.044715
        %v5637 = vmul.f32 %v5425, 0.044715
        %v5638 = vmul.f32 %v5427, 0.044715
        %v5639 = vmul.f32 %v5571, 0.044715
        %v5640 = vmul.f32 %v5573, 0.044715
        %v5641 = vmul.f32 %v5429, 0.044715
        %v5642 = vmul.f32 %v5431, 0.044715
        %v5643 = vmul.f32 %v5575, 0.044715
        %v5644 = vmul.f32 %v5577, 0.044715
        %v5645 = vmul.f32 %v5435, 0.044715
        %v5646 = vmul.f32 %v5437, 0.044715
        %v5647 = vmul.f32 %v5581, 0.044715
        %v5648 = vmul.f32 %v5583, 0.044715
        %v5649 = vmul.f32 %v5439, 0.044715
        %v5650 = vmul.f32 %v5441, 0.044715
        %v5651 = vmul.f32 %v5585, 0.044715
        %v5652 = vmul.f32 %v5587, 0.044715
        %v5653 = vmul.f32 %v5621, %v5405
        %v5654 = vmul.f32 %v5622, %v5407
        %v5655 = vmul.f32 %v5623, %v5551
        %v5656 = vmul.f32 %v5624, %v5553
        %v5657 = vmul.f32 %v5625, %v5409
        %v5658 = vmul.f32 %v5626, %v5411
        %v5659 = vmul.f32 %v5627, %v5555
        %v5660 = vmul.f32 %v5628, %v5557
        %v5661 = vmul.f32 %v5629, %v5415
        %v5662 = vmul.f32 %v5630, %v5417
        %v5663 = vmul.f32 %v5631, %v5561
        %v5664 = vmul.f32 %v5632, %v5563
        %v5665 = vmul.f32 %v5633, %v5419
        %v5666 = vmul.f32 %v5634, %v5421
        %v5667 = vmul.f32 %v5635, %v5565
        %v5668 = vmul.f32 %v5636, %v5567
        %v5669 = vmul.f32 %v5637, %v5425
        %v5670 = vmul.f32 %v5638, %v5427
        %v5671 = vmul.f32 %v5639, %v5571
        %v5672 = vmul.f32 %v5640, %v5573
        %v5673 = vmul.f32 %v5641, %v5429
        %v5674 = vmul.f32 %v5642, %v5431
        %v5675 = vmul.f32 %v5643, %v5575
        %v5676 = vmul.f32 %v5644, %v5577
        %v5677 = vmul.f32 %v5645, %v5435
        %v5678 = vmul.f32 %v5646, %v5437
        %v5679 = vmul.f32 %v5647, %v5581
        %v5680 = vmul.f32 %v5648, %v5583
        %v5681 = vmul.f32 %v5649, %v5439
        %v5682 = vmul.f32 %v5650, %v5441
        %v5683 = vmul.f32 %v5651, %v5585
        %v5684 = vmul.f32 %v5652, %v5587
        %v5685 = vmul.f32 %v5653, %v5405
        %v5686 = vmul.f32 %v5654, %v5407
        %v5687 = vmul.f32 %v5655, %v5551
        %v5688 = vmul.f32 %v5656, %v5553
        %v5689 = vmul.f32 %v5657, %v5409
        %v5690 = vmul.f32 %v5658, %v5411
        %v5691 = vmul.f32 %v5659, %v5555
        %v5692 = vmul.f32 %v5660, %v5557
        %v5693 = vmul.f32 %v5661, %v5415
        %v5694 = vmul.f32 %v5662, %v5417
        %v5695 = vmul.f32 %v5663, %v5561
        %v5696 = vmul.f32 %v5664, %v5563
        %v5697 = vmul.f32 %v5665, %v5419
        %v5698 = vmul.f32 %v5666, %v5421
        %v5699 = vmul.f32 %v5667, %v5565
        %v5700 = vmul.f32 %v5668, %v5567
        %v5701 = vmul.f32 %v5669, %v5425
        %v5702 = vmul.f32 %v5670, %v5427
        %v5703 = vmul.f32 %v5671, %v5571
        %v5704 = vmul.f32 %v5672, %v5573
        %v5705 = vmul.f32 %v5673, %v5429
        %v5706 = vmul.f32 %v5674, %v5431
        %v5707 = vmul.f32 %v5675, %v5575
        %v5708 = vmul.f32 %v5676, %v5577
        %v5709 = vmul.f32 %v5677, %v5435
        %v5710 = vmul.f32 %v5678, %v5437
        %v5711 = vmul.f32 %v5679, %v5581
        %v5712 = vmul.f32 %v5680, %v5583
        %v5713 = vmul.f32 %v5681, %v5439
        %v5714 = vmul.f32 %v5682, %v5441
        %v5715 = vmul.f32 %v5683, %v5585
        %v5716 = vmul.f32 %v5684, %v5587
        %v5717 = vadd.f32 %v5405, %v5685
        %v5718 = vadd.f32 %v5407, %v5686
        %v5719 = vadd.f32 %v5551, %v5687
        %v5720 = vadd.f32 %v5553, %v5688
        %v5721 = vadd.f32 %v5409, %v5689
        %v5722 = vadd.f32 %v5411, %v5690
        %v5723 = vadd.f32 %v5555, %v5691
        %v5724 = vadd.f32 %v5557, %v5692
        %v5725 = vadd.f32 %v5415, %v5693
        %v5726 = vadd.f32 %v5417, %v5694
        %v5727 = vadd.f32 %v5561, %v5695
        %v5728 = vadd.f32 %v5563, %v5696
        %v5729 = vadd.f32 %v5419, %v5697
        %v5730 = vadd.f32 %v5421, %v5698
        %v5731 = vadd.f32 %v5565, %v5699
        %v5732 = vadd.f32 %v5567, %v5700
        %v5733 = vadd.f32 %v5425, %v5701
        %v5734 = vadd.f32 %v5427, %v5702
        %v5735 = vadd.f32 %v5571, %v5703
        %v5736 = vadd.f32 %v5573, %v5704
        %v5737 = vadd.f32 %v5429, %v5705
        %v5738 = vadd.f32 %v5431, %v5706
        %v5739 = vadd.f32 %v5575, %v5707
        %v5740 = vadd.f32 %v5577, %v5708
        %v5741 = vadd.f32 %v5435, %v5709
        %v5742 = vadd.f32 %v5437, %v5710
        %v5743 = vadd.f32 %v5581, %v5711
        %v5744 = vadd.f32 %v5583, %v5712
        %v5745 = vadd.f32 %v5439, %v5713
        %v5746 = vadd.f32 %v5441, %v5714
        %v5747 = vadd.f32 %v5585, %v5715
        %v5748 = vadd.f32 %v5587, %v5716
        %v5749 = vmul.f32 %v5717, 0.7978846
        %v5750 = vmul.f32 %v5718, 0.7978846
        %v5751 = vmul.f32 %v5719, 0.7978846
        %v5752 = vmul.f32 %v5720, 0.7978846
        %v5753 = vmul.f32 %v5721, 0.7978846
        %v5754 = vmul.f32 %v5722, 0.7978846
        %v5755 = vmul.f32 %v5723, 0.7978846
        %v5756 = vmul.f32 %v5724, 0.7978846
        %v5757 = vmul.f32 %v5725, 0.7978846
        %v5758 = vmul.f32 %v5726, 0.7978846
        %v5759 = vmul.f32 %v5727, 0.7978846
        %v5760 = vmul.f32 %v5728, 0.7978846
        %v5761 = vmul.f32 %v5729, 0.7978846
        %v5762 = vmul.f32 %v5730, 0.7978846
        %v5763 = vmul.f32 %v5731, 0.7978846
        %v5764 = vmul.f32 %v5732, 0.7978846
        %v5765 = vmul.f32 %v5733, 0.7978846
        %v5766 = vmul.f32 %v5734, 0.7978846
        %v5767 = vmul.f32 %v5735, 0.7978846
        %v5768 = vmul.f32 %v5736, 0.7978846
        %v5769 = vmul.f32 %v5737, 0.7978846
        %v5770 = vmul.f32 %v5738, 0.7978846
        %v5771 = vmul.f32 %v5739, 0.7978846
        %v5772 = vmul.f32 %v5740, 0.7978846
        %v5773 = vmul.f32 %v5741, 0.7978846
        %v5774 = vmul.f32 %v5742, 0.7978846
        %v5775 = vmul.f32 %v5743, 0.7978846
        %v5776 = vmul.f32 %v5744, 0.7978846
        %v5777 = vmul.f32 %v5745, 0.7978846
        %v5778 = vmul.f32 %v5746, 0.7978846
        %v5779 = vmul.f32 %v5747, 0.7978846
        %v5780 = vmul.f32 %v5748, 0.7978846
        %v5781 = vtanh.pop %v5749
        %v5782 = vtanh.pop %v5750
        %v5783 = vtanh.pop %v5751
        %v5784 = vtanh.pop %v5752
        %v5785 = vtanh.pop %v5753
        %v5786 = vtanh.pop %v5754
        %v5787 = vtanh.pop %v5755
        %v5788 = vtanh.pop %v5756
        %v5789 = vtanh.pop %v5757
        %v5790 = vtanh.pop %v5758
        %v5791 = vtanh.pop %v5759
        %v5792 = vtanh.pop %v5760
        %v5793 = vtanh.pop %v5761
        %v5794 = vtanh.pop %v5762
        %v5795 = vtanh.pop %v5763
        %v5796 = vtanh.pop %v5764
        %v5797 = vtanh.pop %v5765
        %v5798 = vtanh.pop %v5766
        %v5799 = vtanh.pop %v5767
        %v5800 = vtanh.pop %v5768
        %v5801 = vtanh.pop %v5769
        %v5802 = vtanh.pop %v5770
        %v5803 = vtanh.pop %v5771
        %v5804 = vtanh.pop %v5772
        %v5805 = vtanh.pop %v5773
        %v5806 = vtanh.pop %v5774
        %v5807 = vtanh.pop %v5775
        %v5808 = vtanh.pop %v5776
        %v5809 = vtanh.pop %v5777
        %v5810 = vtanh.pop %v5778
        %v5811 = vtanh.pop %v5779
        %v5812 = vtanh.pop %v5780
        %v5813 = vadd.f32 %v5781, 1.0
        %v5814 = vadd.f32 %v5782, 1.0
        %v5815 = vadd.f32 %v5783, 1.0
        %v5816 = vadd.f32 %v5784, 1.0
        %v5817 = vadd.f32 %v5785, 1.0
        %v5818 = vadd.f32 %v5786, 1.0
        %v5819 = vadd.f32 %v5787, 1.0
        %v5820 = vadd.f32 %v5788, 1.0
        %v5821 = vadd.f32 %v5789, 1.0
        %v5822 = vadd.f32 %v5790, 1.0
        %v5823 = vadd.f32 %v5791, 1.0
        %v5824 = vadd.f32 %v5792, 1.0
        %v5825 = vadd.f32 %v5793, 1.0
        %v5826 = vadd.f32 %v5794, 1.0
        %v5827 = vadd.f32 %v5795, 1.0
        %v5828 = vadd.f32 %v5796, 1.0
        %v5829 = vadd.f32 %v5797, 1.0
        %v5830 = vadd.f32 %v5798, 1.0
        %v5831 = vadd.f32 %v5799, 1.0
        %v5832 = vadd.f32 %v5800, 1.0
        %v5833 = vadd.f32 %v5801, 1.0
        %v5834 = vadd.f32 %v5802, 1.0
        %v5835 = vadd.f32 %v5803, 1.0
        %v5836 = vadd.f32 %v5804, 1.0
        %v5837 = vadd.f32 %v5805, 1.0
        %v5838 = vadd.f32 %v5806, 1.0
        %v5839 = vadd.f32 %v5807, 1.0
        %v5840 = vadd.f32 %v5808, 1.0
        %v5841 = vadd.f32 %v5809, 1.0
        %v5842 = vadd.f32 %v5810, 1.0
        %v5843 = vadd.f32 %v5811, 1.0
        %v5844 = vadd.f32 %v5812, 1.0
        %v5845 = vmul.f32 %v5589, %v5813
        %v5846 = vmul.f32 %v5590, %v5814
        %v5847 = vmul.f32 %v5591, %v5815
        %v5848 = vmul.f32 %v5592, %v5816
        %v5849 = vmul.f32 %v5593, %v5817
        %v5850 = vmul.f32 %v5594, %v5818
        %v5851 = vmul.f32 %v5595, %v5819
        %v5852 = vmul.f32 %v5596, %v5820
        %v5853 = vmul.f32 %v5597, %v5821
        %v5854 = vmul.f32 %v5598, %v5822
        %v5855 = vmul.f32 %v5599, %v5823
        %v5856 = vmul.f32 %v5600, %v5824
        %v5857 = vmul.f32 %v5601, %v5825
        %v5858 = vmul.f32 %v5602, %v5826
        %v5859 = vmul.f32 %v5603, %v5827
        %v5860 = vmul.f32 %v5604, %v5828
        %v5861 = vmul.f32 %v5605, %v5829
        %v5862 = vmul.f32 %v5606, %v5830
        %v5863 = vmul.f32 %v5607, %v5831
        %v5864 = vmul.f32 %v5608, %v5832
        %v5865 = vmul.f32 %v5609, %v5833
        %v5866 = vmul.f32 %v5610, %v5834
        %v5867 = vmul.f32 %v5611, %v5835
        %v5868 = vmul.f32 %v5612, %v5836
        %v5869 = vmul.f32 %v5613, %v5837
        %v5870 = vmul.f32 %v5614, %v5838
        %v5871 = vmul.f32 %v5615, %v5839
        %v5872 = vmul.f32 %v5616, %v5840
        %v5873 = vmul.f32 %v5617, %v5841
        %v5874 = vmul.f32 %v5618, %v5842
        %v5875 = vmul.f32 %v5619, %v5843
        %v5876 = vmul.f32 %v5620, %v5844
        %v5877 = vld [vmem:[%s16] sm:$0xf]
        %v5878 = vld [vmem:[%s16 + $0x4] sm:$0xf]
        %v5879 = vld [vmem:[%s16 + $0x8] sm:$0xf]
        %v5880 = vld [vmem:[%s16 + $0xc] sm:$0xf]
        %v5881 = vpack.c.bf16 %v5849, %v5845
        %v5882 = vpack.c.bf16 %v5850, %v5846
        %v5883 = vpack.c.bf16 %v5851, %v5847
        %v5884 = vpack.c.bf16 %v5852, %v5848
        %v5885 = vpack.c.bf16 %v5857, %v5853
        %v5886 = vpack.c.bf16 %v5858, %v5854
        %v5887 = vpack.c.bf16 %v5859, %v5855
        %v5888 = vpack.c.bf16 %v5860, %v5856
        %v5889 = vpack.c.bf16 %v5865, %v5861
        %v5890 = vpack.c.bf16 %v5866, %v5862
        %v5891 = vpack.c.bf16 %v5867, %v5863
        %v5892 = vpack.c.bf16 %v5868, %v5864
        %v5893 = vpack.c.bf16 %v5873, %v5869
        %v5894 = vpack.c.bf16 %v5874, %v5870
        %v5895 = vpack.c.bf16 %v5875, %v5871
        %v5896 = vpack.c.bf16 %v5876, %v5872
        %v5897 = vld [vmem:[%s17] sm:$0xff]
        %v5898 = vld [vmem:[%s17 + $0x8] sm:$0xff]
        %v5899 = vld [vmem:[%s17 + $0x10] sm:$0xff]
        %v5900 = vld [vmem:[%s17 + $0x18] sm:$0xff]
        %5902 = vset.pattern.permute.xlu0 0
        %5903 = vperm.xlu0 %5902, %v5897
        %v5904 = vpop.permute.xlu0 %5903
        %5907 = vset.pattern.permute.xlu0 0
        %5908 = vperm.xlu0 %5907, %v5898
        %v5909 = vpop.permute.xlu0 %5908
        %5912 = vset.pattern.permute.xlu0 0
        %5913 = vperm.xlu0 %5912, %v5899
        %v5914 = vpop.permute.xlu0 %5913
        %5917 = vset.pattern.permute.xlu0 0
        %5918 = vperm.xlu0 %5917, %v5900
        %v5919 = vpop.permute.xlu0 %5918
        %v5925 = vunpack.c.l.b16 %v5877
        %v5926 = vunpack.c.l.b16 %v5878
        %v5927 = vunpack.c.l.b16 %v5879
        %v5928 = vunpack.c.l.b16 %v5880
        %v5929 = vpack.c.b16 %v5926, %v5925
        %v5930 = vpack.c.b16 %v5928, %v5927
        %vm5931 = vcmask 523264
        %v5933 = vsel %vm5931, %v5929, 0
        %v5936 = vsel %vm5931, %v5930, 0
        %5938 = vmatprep.subr.bf16.mxu0 0
        %5939 = vmatpush1.bf16.msra.mxu0 0
        %5940 = vmatprep.subr.bf16.mxu0 0
        %5941 = vmatpush1.bf16.msra.mxu0 0
        %5942 = vmatprep.subr.bf16.mxu0 0
        %5943 = vmatpush1.bf16.msra.mxu0 0
        %5944 = vmatprep.subr.bf16.mxu0 0
        %5945 = vmatpush1.bf16.msra.mxu0 0
        %5946 = vmatprep.subr.bf16.mxu0 %v5894
        %5947 = vmatpush1.bf16.msra.mxu0 %v5893
        %5948 = vmatprep.subr.bf16.mxu0 %v5890
        %5949 = vmatpush1.bf16.msra.mxu0 %v5889
        %5950 = vmatprep.subr.bf16.mxu0 %v5886
        %5951 = vmatpush1.bf16.msra.mxu0 %v5885
        %5952 = vmatprep.subr.bf16.mxu0 %v5882
        %5953 = vmatpush1.bf16.msra.mxu0 %v5881
        %5954 = vmatprep.subr.bf16.mxu0 0
        %5955 = vmatpush2.bf16.msra.mxu0 0
        %5956 = vmatprep.subr.bf16.mxu0 0
        %5957 = vmatpush2.bf16.msra.mxu0 0
        %5958 = vmatprep.subr.bf16.mxu0 0
        %5959 = vmatpush2.bf16.msra.mxu0 0
        %5960 = vmatprep.subr.bf16.mxu0 0
        %5961 = vmatpush2.bf16.msra.mxu0 0
        %5962 = vmatprep.subr.bf16.mxu0 0
        %5963 = vmatpush2.bf16.msra.mxu0 0
        %5964 = vmatprep.subr.bf16.mxu0 0
        %5965 = vmatpush2.bf16.msra.mxu0 0
        %5966 = vmatprep.subr.bf16.mxu0 0
        %5967 = vmatpush2.bf16.msra.mxu0 0
        %5968 = vmatprep.subr.bf16.mxu0 0
        %5969 = vmatpush2.bf16.msra.mxu0 0
        %5970 = vmatprep.mubr.bf16.mxu0 0
        %5971 = vmatmul.mubr.bf16.gmra.mxu0 %v5933
        %v5972 = vpop.f32.mrf.mxu0
        %v5973 = vadd.f32 %v5904, %v5972
        %v5974 = vpop.f32.mrf.mxu0
        %v5975 = vadd.f32 %v5904, %v5974
        %v5976 = vpop.f32.mrf.mxu0
        %v5977 = vadd.f32 %v5909, %v5976
        %v5978 = vpop.f32.mrf.mxu0
        %v5979 = vadd.f32 %v5909, %v5978
        %5980 = vmatprep.mubr.bf16.mxu0 0
        %5981 = vmatmul.mubr.bf16.gmra.mxu0 %v5936
        %v5982 = vpop.f32.mrf.mxu0
        %v5983 = vadd.f32 %v5914, %v5982
        %v5984 = vpop.f32.mrf.mxu0
        %v5985 = vadd.f32 %v5914, %v5984
        %v5986 = vpop.f32.mrf.mxu0
        %v5987 = vadd.f32 %v5919, %v5986
        %v5988 = vpop.f32.mrf.mxu0
        %v5989 = vadd.f32 %v5919, %v5988
        %5990 = vdwg.mxu0
        %5991 = vmatprep.subr.bf16.mxu0 0
        %5992 = vmatpush1.bf16.msra.mxu0 0
        %5993 = vmatprep.subr.bf16.mxu0 0
        %5994 = vmatpush1.bf16.msra.mxu0 0
        %5995 = vmatprep.subr.bf16.mxu0 0
        %5996 = vmatpush1.bf16.msra.mxu0 0
        %5997 = vmatprep.subr.bf16.mxu0 0
        %5998 = vmatpush1.bf16.msra.mxu0 0
        %5999 = vmatprep.subr.bf16.mxu0 %v5896
        %6000 = vmatpush1.bf16.msra.mxu0 %v5895
        %6001 = vmatprep.subr.bf16.mxu0 %v5892
        %6002 = vmatpush1.bf16.msra.mxu0 %v5891
        %6003 = vmatprep.subr.bf16.mxu0 %v5888
        %6004 = vmatpush1.bf16.msra.mxu0 %v5887
        %6005 = vmatprep.subr.bf16.mxu0 %v5884
        %6006 = vmatpush1.bf16.msra.mxu0 %v5883
        %6007 = vmatprep.subr.bf16.mxu0 0
        %6008 = vmatpush2.bf16.msra.mxu0 0
        %6009 = vmatprep.subr.bf16.mxu0 0
        %6010 = vmatpush2.bf16.msra.mxu0 0
        %6011 = vmatprep.subr.bf16.mxu0 0
        %6012 = vmatpush2.bf16.msra.mxu0 0
        %6013 = vmatprep.subr.bf16.mxu0 0
        %6014 = vmatpush2.bf16.msra.mxu0 0
        %6015 = vmatprep.subr.bf16.mxu0 0
        %6016 = vmatpush2.bf16.msra.mxu0 0
        %6017 = vmatprep.subr.bf16.mxu0 0
        %6018 = vmatpush2.bf16.msra.mxu0 0
        %6019 = vmatprep.subr.bf16.mxu0 0
        %6020 = vmatpush2.bf16.msra.mxu0 0
        %6021 = vmatprep.subr.bf16.mxu0 0
        %6022 = vmatpush2.bf16.msra.mxu0 0
        %6023 = vmatprep.mubr.bf16.mxu0 0
        %6024 = vmatmul.mubr.bf16.gmra.mxu0 %v5933
        %v6025 = vpop.f32.mrf.mxu0
        %v6026 = vadd.f32 %v5904, %v6025
        %v6027 = vpop.f32.mrf.mxu0
        %v6028 = vadd.f32 %v5904, %v6027
        %v6029 = vpop.f32.mrf.mxu0
        %v6030 = vadd.f32 %v5909, %v6029
        %v6031 = vpop.f32.mrf.mxu0
        %v6032 = vadd.f32 %v5909, %v6031
        %6033 = vmatprep.mubr.bf16.mxu0 0
        %6034 = vmatmul.mubr.bf16.gmra.mxu0 %v5936
        %v6035 = vpop.f32.mrf.mxu0
        %v6036 = vadd.f32 %v5914, %v6035
        %v6037 = vpop.f32.mrf.mxu0
        %v6038 = vadd.f32 %v5914, %v6037
        %v6039 = vpop.f32.mrf.mxu0
        %v6040 = vadd.f32 %v5919, %v6039
        %v6041 = vpop.f32.mrf.mxu0
        %v6042 = vadd.f32 %v5919, %v6041
        %6043 = vdwg.mxu0
        %v6044 = vadd.f32 %v3465, %v5973
        %v6045 = vadd.f32 %v3466, %v5975
        %v6046 = vadd.f32 %v3467, %v6026
        %v6047 = vadd.f32 %v3468, %v6028
        %v6048 = vadd.f32 %v3469, %v5977
        %v6049 = vadd.f32 %v3470, %v5979
        %v6050 = vadd.f32 %v3471, %v6030
        %v6051 = vadd.f32 %v3472, %v6032
        %v6052 = vadd.f32 %v3473, %v5983
        %v6053 = vadd.f32 %v3474, %v5985
        %v6054 = vadd.f32 %v3475, %v6036
        %v6055 = vadd.f32 %v3476, %v6038
        %v6056 = vadd.f32 %v3477, %v5987
        %v6057 = vadd.f32 %v3478, %v5989
        %v6058 = vadd.f32 %v3479, %v6040
        %v6059 = vadd.f32 %v3480, %v6042
        %6060 = vst [vmem:[%s583] sm:$0xff] %v6044
        %6061 = vst [vmem:[%s583 + $0x8] sm:$0xff] %v6045
        %6062 = vst [vmem:[%s583 + $0x10] sm:$0xff] %v6046
        %6063 = vst [vmem:[%s583 + $0x18] sm:$0xff] %v6047
        %6064 = vst [vmem:[%s583 + $0x20] sm:$0xff] %v6048
        %6065 = vst [vmem:[%s583 + $0x28] sm:$0xff] %v6049
        %6066 = vst [vmem:[%s583 + $0x30] sm:$0xff] %v6050
        %6067 = vst [vmem:[%s583 + $0x38] sm:$0xff] %v6051
        %6068 = vst [vmem:[%s583 + $0x40] sm:$0xff] %v6052
        %6069 = vst [vmem:[%s583 + $0x48] sm:$0xff] %v6053
        %6070 = vst [vmem:[%s583 + $0x50] sm:$0xff] %v6054
        %6071 = vst [vmem:[%s583 + $0x58] sm:$0xff] %v6055
        %6072 = vst [vmem:[%s583 + $0x60] sm:$0xff] %v6056
        %6073 = vst [vmem:[%s583 + $0x68] sm:$0xff] %v6057
        %6074 = vst [vmem:[%s583 + $0x70] sm:$0xff] %v6058
        %6075 = vst [vmem:[%s583 + $0x78] sm:$0xff] %v6059
        %s6076 = sand.u32 %s424, 1
        %s6077 = scalar_lea.sflag [#allocation6], %s6076
        %s6078 = sand.u32 %s424, 1
        %s6079 = smul.addr %s6078, 128
        %s6080 = scalar_lea.vmem [#allocation7], %s6079
        // Predicated region
        $region97: #{tpu_custom_call.1} parent=91 // pred_check
          %p6081 = pneg %p434
        $region98: #{tpu_custom_call.1} parent=91 // pred_check_branch
          %6083 = sbr.rel (%p6081) target = $region100
        $region99: #{tpu_custom_call.1} parent=91 // pred_region
          %s6085 = ssub.s32 2048, 2048
          %6086 = vsyncadd %s6077, %s6085
          %s6087 = smul.addr %s33, 16
          %s6088 = smul.addr %s6087, 128
          %s6089 = scalar_lea.hbm %s18, %s6088
          %s6090 = sshll.u32 %s6080, 4
          %s6091 = int_to_ptr.vmem [resolvable:$true] %s6090
          %6096 = dma.vmem_to_hbm [thread:$0]  %s6091, 2048, %s6089, %s6077, 512, 512, 32
        $region100: #{tpu_custom_call.1} parent=91 // pred_fallthru
          _
      $region92: #{tpu_custom_call.1} parent=5 // pred_fallthru
        _
      %p6097 = scmp.le.s32.totalorder 2, %s28
      // Predicated region
      $region101: #{tpu_custom_call.1} parent=5 // pred_check
        %p6098 = pneg %p6097
      $region102: #{tpu_custom_call.1} parent=5 // pred_check_branch
        %6100 = sbr.rel (%p6098) target = $region104
      $region103: #{tpu_custom_call.1} parent=5 // pred_region
        %s6101 = ssub.s32 %s28, 2
        // Predicated region
        $region105: #{tpu_custom_call.1} parent=103 // pred_check
          %p6102 = pneg %p440
        $region106: #{tpu_custom_call.1} parent=103 // pred_check_branch
          %6104 = sbr.rel (%p6102) target = $region108
        $region107: #{tpu_custom_call.1} parent=103 // pred_region
          %s6105 = sand.u32 %s425, 1
          %s6106 = scalar_lea.sflag [#allocation6], %s6105
          %s6107 = sand.u32 %s425, 1
          %s6108 = smul.addr %s6107, 128
          %s6109 = scalar_lea.vmem [#allocation7], %s6108
          %6110 = dma.done %s6106, 2048
        $region108: #{tpu_custom_call.1} parent=103 // pred_fallthru
          _
      $region104: #{tpu_custom_call.1} parent=5 // pred_fallthru
        _
    $region6: #{tpu_custom_call.1} parent=1 // loop_footer
      %s32 = sadd.s32 1, %s28
    $region7: #{tpu_custom_call.1} parent=1 // loop_footer_branch
      %27 = sbr.rel target = $region3
    $region8: #{tpu_custom_call.1} parent=1 // loop_exit
      _
    %6111 = vsyncpa [#allocation5], 1
    %s6112 = scalar_lea.sflag [#allocation5], 1
    %6113 = vsyncpa %s6112, 1
    %6114 = vsyncpa [#allocation6], 1
    %s6115 = scalar_lea.sflag [#allocation6], 1
    %6116 = vsyncpa %s6115, 1

</llo_original>
